<compile_context>
chip_gen: v7x
topology: tpu7x:2x2x1
jax: 0.10.0
libtpu: 0.0.40
codegen_flags: <defaults>
</compile_context>

<pallas_src>
import functools

import numpy as np
import jax
import jax.numpy as jnp
from jax.experimental import pallas as pl
from jax.experimental.pallas import tpu as pltpu

NB = 8          # n_channels_base
BATCH = 2
L_IN = 124      # minimum length the encoder's valid convs accept (WADI-like)
EPS = 1e-5      # BatchNorm eps (PyTorch default)

# (name, kind, Cin, Cout, K, stride, activation, has_bn)
LAYERS = (
    ("e1", "conv",   1,       NB,      8, 2, "leaky",   False),
    ("e2", "conv",   NB,      2 * NB,  7, 2, "leaky",   True),
    ("e3", "conv",   2 * NB,  4 * NB,  7, 2, "leaky",   True),
    ("e4", "conv",   4 * NB,  8 * NB,  7, 2, "leaky",   True),
    ("e5", "conv",   8 * NB,  16 * NB, 3, 1, "tanh",    False),
    ("d1", "deconv", 16 * NB, 8 * NB,  7, 1, "leaky",   False),
    ("d2", "deconv", 8 * NB,  4 * NB,  8, 2, "leaky",   True),
    ("d3", "deconv", 4 * NB,  2 * NB,  7, 3, "leaky",   True),
    ("d4", "deconv", 2 * NB,  NB,      6, 2, "leaky",   True),
    ("d5", "deconv", NB,      1,       3, 1, "sigmoid", False),
)


def _layer_out_len(l, kind, k, s):
    return (l - k) // s + 1 if kind == "conv" else (l - 1) * s + k


def output_length(l_in):
    l = l_in
    for (_n, kind, _ci, _co, k, s, _a, _bn) in LAYERS:
        l = _layer_out_len(l, kind, k, s)
    return l


# ----------------------------------------------------------------------------
# Parameters (deterministic, synthetic) -- raw PyTorch layouts.
# ----------------------------------------------------------------------------
def make_params(key):
    params = {}
    keys = iter(jax.random.split(key, 4 * len(LAYERS)))
    for (name, kind, cin, cout, k, _s, _a, has_bn) in LAYERS:
        if kind == "conv":
            w = 0.1 * jax.random.normal(next(keys), (cout, cin, k), jnp.float32)
        else:  # ConvTranspose1d layout (Cin, Cout, K)
            w = 0.1 * jax.random.normal(next(keys), (cin, cout, k), jnp.float32)
        params[name + "_w"] = w
        params[name + "_b"] = 0.05 * jax.random.normal(next(keys), (cout,), jnp.float32)
        if has_bn:
            params[name + "_g"] = 1.0 + 0.1 * jax.random.normal(
                next(keys), (cout,), jnp.float32)
            params[name + "_be"] = 0.05 * jax.random.normal(
                next(keys), (cout,), jnp.float32)
    return params


# ----------------------------------------------------------------------------
# Kernel operands: packed weights + structural 0/1 matrices (all hoisted).
# ----------------------------------------------------------------------------
def pack_operands(params, l_in, batch):
    ops = []
    l = l_in
    for (name, kind, cin, cout, k, s, _a, has_bn) in LAYERS:
        w = params[name + "_w"]
        if kind == "conv":
            # (Cout, Cin, K) -> (K, Cout, Cin)
            wk = jnp.transpose(w, (2, 0, 1))
        else:
            # (Cin, Cout, K) -> flipped, (K, Cout, Cin): wk[j,co,ci]=w[ci,co,K-1-j]
            wk = jnp.transpose(jnp.flip(w, axis=2), (2, 1, 0))
        ops.append(wk)
        ops.append(params[name + "_b"].reshape(cout, 1))
        if has_bn:
            ops.append(params[name + "_g"].reshape(cout, 1))
            ops.append(params[name + "_be"].reshape(cout, 1))

        lout = _layer_out_len(l, kind, k, s)
        if kind == "conv":
            # S[p, b*lout+i] = 1 iff p == b*l + i*s   (stride + batch-boundary pick)
            lg = batch * l - k + 1
            sel = np.zeros((lg, batch * lout), np.float32)
            for b in range(batch):
                for i in range(lout):
                    sel[b * l + i * s, b * lout + i] = 1.0
            ops.append(jnp.asarray(sel))
        else:
            # D[b*l+i, b*lpad + i*s + (k-1)] = 1   (zero-dilate + pad both sides)
            lpad = (l - 1) * s + 1 + 2 * (k - 1)
            dil = np.zeros((batch * l, batch * lpad), np.float32)
            for b in range(batch):
                for i in range(l):
                    dil[b * l + i, b * lpad + i * s + (k - 1)] = 1.0
            ops.append(jnp.asarray(dil))
            # S[b*lpad+t, b*lout+t] = 1   (pick valid per-batch output windows)
            lgd = batch * lpad - k + 1
            sel = np.zeros((lgd, batch * lout), np.float32)
            for b in range(batch):
                for t in range(lout):
                    sel[b * lpad + t, b * lout + t] = 1.0
            ops.append(jnp.asarray(sel))
        l = lout
    return tuple(ops)


# ----------------------------------------------------------------------------
# Single fused Pallas kernel: whole forward pass, activations stay in VMEM.
# ----------------------------------------------------------------------------
def _ae_kernel(x_ref, *refs, cfg):
    o_ref = refs[-1]
    prefs = refs[:-1]

    def mm(a, b):
        # (m, c) @ (c, n); a 1-wide contraction is just a VPU broadcast multiply
        if a.shape[1] == 1:
            return a * b
        return jnp.dot(a, b, preferred_element_type=jnp.float32)

    # Single batched activation tile: channels on sublanes, (batch*length) on lanes.
    h = x_ref[...].astype(jnp.float32)            # (1, B*L_in)

    pi = 0
    for (_name, kind, _cin, _cout, kk, _s, act, has_bn) in cfg:
        w_ref = prefs[pi]; pi += 1                # (K, Cout, Cin)
        bias = prefs[pi][...]; pi += 1            # (Cout, 1)
        if has_bn:
            gamma = prefs[pi][...]                # (Cout, 1)
            beta = prefs[pi + 1][...]             # (Cout, 1)
            pi += 2

        if kind == "deconv":
            # ConvTranspose1d == stride-1 conv (flipped kernel) on a
            # zero-dilated / padded input; the dilation matmul also keeps
            # batch segments separated on the lane axis.
            d_mat = prefs[pi][...]; pi += 1       # (B*Lin, B*Lpad)
            h = mm(h, d_mat)

        s_ref = prefs[pi]; pi += 1                # (Lg, B*Lout)
        lg = s_ref.shape[0]

        # K shifted lane slices + K MXU matmuls accumulated in f32.
        acc = mm(w_ref[0], h[:, 0:lg])
        for j in range(1, kk):
            acc = acc + mm(w_ref[j], h[:, j:j + lg])

        # One selection matmul: applies conv stride / valid-window pick and
        # drops windows that straddle batch boundaries.  Output (Cout, B*Lout).
        y = jnp.dot(acc, s_ref[...], preferred_element_type=jnp.float32) + bias

        if has_bn:
            # Train-mode BatchNorm1d: batch stats over (batch, length), biased var.
            inv_n = 1.0 / float(y.shape[1])
            mean = jnp.sum(y, axis=1, keepdims=True) * inv_n
            ctr = y - mean
            var = jnp.sum(ctr * ctr, axis=1, keepdims=True) * inv_n
            y = ctr * (gamma * jax.lax.rsqrt(var + EPS)) + beta

        if act == "leaky":
            y = jnp.where(y >= 0.0, y, 0.2 * y)
        elif act == "tanh":
            y = jnp.tanh(y)
        else:  # sigmoid
            y = 1.0 / (1.0 + jnp.exp(-y))

        h = y

    # Final layer has Cout == 1: h is (1, B*L_out)  (torch.squeeze(x, dim=1)).
    o_ref[...] = h.astype(o_ref.dtype)


# ----------------------------------------------------------------------------
# Wrapper
# ----------------------------------------------------------------------------
def autoencoder_forward(x, operands):
    batch, l_in = x.shape
    l_out = output_length(l_in)
    x_flat = x.reshape(1, batch * l_in)           # contiguous, free reshape

    vspec = pl.BlockSpec(memory_space=pltpu.MemorySpace.VMEM)
    kern = functools.partial(_ae_kernel, cfg=LAYERS)
    out_flat = pl.pallas_call(
        kern,
        out_shape=jax.ShapeDtypeStruct((1, batch * l_out), jnp.float32),
        in_specs=[vspec] * (1 + len(operands)),
        out_specs=vspec,
    )(x_flat, *operands)
    return out_flat.reshape(batch, l_out)


# ----------------------------------------------------------------------------
# Independent numpy reference (float64) for correctness checking.
# ----------------------------------------------------------------------------
def reference_forward(params, x):
    h = np.asarray(x, np.float64).reshape(x.shape[0], 1, x.shape[1])
    for (name, kind, _cin, cout, k, s, act, has_bn) in LAYERS:
        w = np.asarray(params[name + "_w"], np.float64)
        b = np.asarray(params[name + "_b"], np.float64).reshape(1, cout, 1)
        lin = h.shape[2]
        if kind == "conv":
            lout = (lin - k) // s + 1
            y = np.zeros((h.shape[0], cout, lout))
            for j in range(k):
                xs = h[:, :, j:j + (lout - 1) * s + 1:s]
                y += np.einsum("oc,bcl->bol", w[:, :, j], xs)
        else:
            lout = (lin - 1) * s + k
            y = np.zeros((h.shape[0], cout, lout))
            for j in range(k):
                tmp = np.einsum("io,bil->bol", w[:, :, j], h)
                y[:, :, j:j + (lin - 1) * s + 1:s] += tmp
        y = y + b
        if has_bn:
            g = np.asarray(params[name + "_g"], np.float64).reshape(1, cout, 1)
            be = np.asarray(params[name + "_be"], np.float64).reshape(1, cout, 1)
            mean = y.mean(axis=(0, 2), keepdims=True)
            var = y.var(axis=(0, 2), keepdims=True)   # biased, as in torch training
            y = (y - mean) / np.sqrt(var + EPS) * g + be
        if act == "leaky":
            y = np.where(y >= 0.0, y, 0.2 * y)
        elif act == "tanh":
            y = np.tanh(y)
        else:
            y = 1.0 / (1.0 + np.exp(-y))
        h = y
    return h[:, 0, :]


if __name__ == "__main__":
    key = jax.random.PRNGKey(0)
    k_param, k_x = jax.random.split(key)
    params = make_params(k_param)
    x = jax.random.normal(k_x, (BATCH, L_IN), jnp.float32)

    operands = pack_operands(params, L_IN, BATCH)   # packed once, outside jit
    fwd = jax.jit(autoencoder_forward)
    out = jax.block_until_ready(fwd(x, operands))

    l_out = output_length(L_IN)
    assert out.shape == (BATCH, l_out), out.shape
    out_np = np.asarray(out)
    assert np.all(np.isfinite(out_np))
    assert np.all(out_np >= 0.0) and np.all(out_np <= 1.0)   # final Sigmoid

    ref = reference_forward(jax.device_get(params), np.asarray(x))
    assert np.allclose(out_np, ref, atol=3e-3, rtol=3e-3), float(
        np.max(np.abs(out_np - ref)))
    print("KERNEL_OK")
</pallas_src>

<mosaic_0001>
module attributes {stable_mosaic.version = 11 : i64} {
  func.func @_ae_kernel(%arg0: memref<1x248xf32, #tpu.memory_space<vmem>>, %arg1: memref<8x8x1xf32, #tpu.memory_space<vmem>>, %arg2: memref<8x1xf32, #tpu.memory_space<vmem>>, %arg3: memref<241x118xf32, #tpu.memory_space<vmem>>, %arg4: memref<7x16x8xf32, #tpu.memory_space<vmem>>, %arg5: memref<16x1xf32, #tpu.memory_space<vmem>>, %arg6: memref<16x1xf32, #tpu.memory_space<vmem>>, %arg7: memref<16x1xf32, #tpu.memory_space<vmem>>, %arg8: memref<112x54xf32, #tpu.memory_space<vmem>>, %arg9: memref<7x32x16xf32, #tpu.memory_space<vmem>>, %arg10: memref<32x1xf32, #tpu.memory_space<vmem>>, %arg11: memref<32x1xf32, #tpu.memory_space<vmem>>, %arg12: memref<32x1xf32, #tpu.memory_space<vmem>>, %arg13: memref<48x22xf32, #tpu.memory_space<vmem>>, %arg14: memref<7x64x32xf32, #tpu.memory_space<vmem>>, %arg15: memref<64x1xf32, #tpu.memory_space<vmem>>, %arg16: memref<64x1xf32, #tpu.memory_space<vmem>>, %arg17: memref<64x1xf32, #tpu.memory_space<vmem>>, %arg18: memref<16x6xf32, #tpu.memory_space<vmem>>, %arg19: memref<3x128x64xf32, #tpu.memory_space<vmem>>, %arg20: memref<128x1xf32, #tpu.memory_space<vmem>>, %arg21: memref<4x2xf32, #tpu.memory_space<vmem>>, %arg22: memref<7x64x128xf32, #tpu.memory_space<vmem>>, %arg23: memref<64x1xf32, #tpu.memory_space<vmem>>, %arg24: memref<2x26xf32, #tpu.memory_space<vmem>>, %arg25: memref<20x14xf32, #tpu.memory_space<vmem>>, %arg26: memref<8x32x64xf32, #tpu.memory_space<vmem>>, %arg27: memref<32x1xf32, #tpu.memory_space<vmem>>, %arg28: memref<32x1xf32, #tpu.memory_space<vmem>>, %arg29: memref<32x1xf32, #tpu.memory_space<vmem>>, %arg30: memref<14x54xf32, #tpu.memory_space<vmem>>, %arg31: memref<47x40xf32, #tpu.memory_space<vmem>>, %arg32: memref<7x16x32xf32, #tpu.memory_space<vmem>>, %arg33: memref<16x1xf32, #tpu.memory_space<vmem>>, %arg34: memref<16x1xf32, #tpu.memory_space<vmem>>, %arg35: memref<16x1xf32, #tpu.memory_space<vmem>>, %arg36: memref<40x140xf32, #tpu.memory_space<vmem>>, %arg37: memref<134x128xf32, #tpu.memory_space<vmem>>, %arg38: memref<6x8x16xf32, #tpu.memory_space<vmem>>, %arg39: memref<8x1xf32, #tpu.memory_space<vmem>>, %arg40: memref<8x1xf32, #tpu.memory_space<vmem>>, %arg41: memref<8x1xf32, #tpu.memory_space<vmem>>, %arg42: memref<128x274xf32, #tpu.memory_space<vmem>>, %arg43: memref<269x264xf32, #tpu.memory_space<vmem>>, %arg44: memref<3x1x8xf32, #tpu.memory_space<vmem>>, %arg45: memref<1x1xf32, #tpu.memory_space<vmem>>, %arg46: memref<264x272xf32, #tpu.memory_space<vmem>>, %arg47: memref<270x268xf32, #tpu.memory_space<vmem>>, %arg48: memref<1x268xf32, #tpu.memory_space<vmem>>) attributes {dimension_semantics = [], scalar_prefetch = 0 : i64, scratch_operands = 0 : i64, tpu.core_type = #tpu.core_type<tc>} {
    %c0 = arith.constant 0 : index
    %c0_0 = arith.constant 0 : index
    %0 = vector.load %arg0[%c0, %c0_0] : memref<1x248xf32, #tpu.memory_space<vmem>>, vector<1x248xf32>
    %c0_1 = arith.constant 0 : index
    %c0_2 = arith.constant 0 : index
    %1 = vector.load %arg2[%c0_1, %c0_2] : memref<8x1xf32, #tpu.memory_space<vmem>>, vector<8x1xf32>
    %c0_3 = arith.constant 0 : index
    %c0_4 = arith.constant 0 : index
    %c0_5 = arith.constant 0 : index
    %2 = vector.load %arg1[%c0_3, %c0_4, %c0_5] : memref<8x8x1xf32, #tpu.memory_space<vmem>>, vector<1x8x1xf32>
    %3 = vector.shape_cast %2 : vector<1x8x1xf32> to vector<8x1xf32>
    %4 = vector.extract_strided_slice %0 {offsets = [0, 0], sizes = [1, 241], strides = [1, 1]} : vector<1x248xf32> to vector<1x241xf32>
    %5 = vector.broadcast %3 : vector<8x1xf32> to vector<8x241xf32>
    %6 = vector.broadcast %4 : vector<1x241xf32> to vector<8x241xf32>
    %7 = arith.mulf %5, %6 : vector<8x241xf32>
    %c1 = arith.constant 1 : index
    %c0_6 = arith.constant 0 : index
    %c0_7 = arith.constant 0 : index
    %8 = vector.load %arg1[%c1, %c0_6, %c0_7] : memref<8x8x1xf32, #tpu.memory_space<vmem>>, vector<1x8x1xf32>
    %9 = vector.shape_cast %8 : vector<1x8x1xf32> to vector<8x1xf32>
    %10 = vector.extract_strided_slice %0 {offsets = [0, 1], sizes = [1, 241], strides = [1, 1]} : vector<1x248xf32> to vector<1x241xf32>
    %11 = vector.broadcast %9 : vector<8x1xf32> to vector<8x241xf32>
    %12 = vector.broadcast %10 : vector<1x241xf32> to vector<8x241xf32>
    %13 = arith.mulf %11, %12 : vector<8x241xf32>
    %14 = arith.addf %7, %13 : vector<8x241xf32>
    %c2 = arith.constant 2 : index
    %c0_8 = arith.constant 0 : index
    %c0_9 = arith.constant 0 : index
    %15 = vector.load %arg1[%c2, %c0_8, %c0_9] : memref<8x8x1xf32, #tpu.memory_space<vmem>>, vector<1x8x1xf32>
    %16 = vector.shape_cast %15 : vector<1x8x1xf32> to vector<8x1xf32>
    %17 = vector.extract_strided_slice %0 {offsets = [0, 2], sizes = [1, 241], strides = [1, 1]} : vector<1x248xf32> to vector<1x241xf32>
    %18 = vector.broadcast %16 : vector<8x1xf32> to vector<8x241xf32>
    %19 = vector.broadcast %17 : vector<1x241xf32> to vector<8x241xf32>
    %20 = arith.mulf %18, %19 : vector<8x241xf32>
    %21 = arith.addf %14, %20 : vector<8x241xf32>
    %c3 = arith.constant 3 : index
    %c0_10 = arith.constant 0 : index
    %c0_11 = arith.constant 0 : index
    %22 = vector.load %arg1[%c3, %c0_10, %c0_11] : memref<8x8x1xf32, #tpu.memory_space<vmem>>, vector<1x8x1xf32>
    %23 = vector.shape_cast %22 : vector<1x8x1xf32> to vector<8x1xf32>
    %24 = vector.extract_strided_slice %0 {offsets = [0, 3], sizes = [1, 241], strides = [1, 1]} : vector<1x248xf32> to vector<1x241xf32>
    %25 = vector.broadcast %23 : vector<8x1xf32> to vector<8x241xf32>
    %26 = vector.broadcast %24 : vector<1x241xf32> to vector<8x241xf32>
    %27 = arith.mulf %25, %26 : vector<8x241xf32>
    %28 = arith.addf %21, %27 : vector<8x241xf32>
    %c4 = arith.constant 4 : index
    %c0_12 = arith.constant 0 : index
    %c0_13 = arith.constant 0 : index
    %29 = vector.load %arg1[%c4, %c0_12, %c0_13] : memref<8x8x1xf32, #tpu.memory_space<vmem>>, vector<1x8x1xf32>
    %30 = vector.shape_cast %29 : vector<1x8x1xf32> to vector<8x1xf32>
    %31 = vector.extract_strided_slice %0 {offsets = [0, 4], sizes = [1, 241], strides = [1, 1]} : vector<1x248xf32> to vector<1x241xf32>
    %32 = vector.broadcast %30 : vector<8x1xf32> to vector<8x241xf32>
    %33 = vector.broadcast %31 : vector<1x241xf32> to vector<8x241xf32>
    %34 = arith.mulf %32, %33 : vector<8x241xf32>
    %35 = arith.addf %28, %34 : vector<8x241xf32>
    %c5 = arith.constant 5 : index
    %c0_14 = arith.constant 0 : index
    %c0_15 = arith.constant 0 : index
    %36 = vector.load %arg1[%c5, %c0_14, %c0_15] : memref<8x8x1xf32, #tpu.memory_space<vmem>>, vector<1x8x1xf32>
    %37 = vector.shape_cast %36 : vector<1x8x1xf32> to vector<8x1xf32>
    %38 = vector.extract_strided_slice %0 {offsets = [0, 5], sizes = [1, 241], strides = [1, 1]} : vector<1x248xf32> to vector<1x241xf32>
    %39 = vector.broadcast %37 : vector<8x1xf32> to vector<8x241xf32>
    %40 = vector.broadcast %38 : vector<1x241xf32> to vector<8x241xf32>
    %41 = arith.mulf %39, %40 : vector<8x241xf32>
    %42 = arith.addf %35, %41 : vector<8x241xf32>
    %c6 = arith.constant 6 : index
    %c0_16 = arith.constant 0 : index
    %c0_17 = arith.constant 0 : index
    %43 = vector.load %arg1[%c6, %c0_16, %c0_17] : memref<8x8x1xf32, #tpu.memory_space<vmem>>, vector<1x8x1xf32>
    %44 = vector.shape_cast %43 : vector<1x8x1xf32> to vector<8x1xf32>
    %45 = vector.extract_strided_slice %0 {offsets = [0, 6], sizes = [1, 241], strides = [1, 1]} : vector<1x248xf32> to vector<1x241xf32>
    %46 = vector.broadcast %44 : vector<8x1xf32> to vector<8x241xf32>
    %47 = vector.broadcast %45 : vector<1x241xf32> to vector<8x241xf32>
    %48 = arith.mulf %46, %47 : vector<8x241xf32>
    %49 = arith.addf %42, %48 : vector<8x241xf32>
    %c7 = arith.constant 7 : index
    %c0_18 = arith.constant 0 : index
    %c0_19 = arith.constant 0 : index
    %50 = vector.load %arg1[%c7, %c0_18, %c0_19] : memref<8x8x1xf32, #tpu.memory_space<vmem>>, vector<1x8x1xf32>
    %51 = vector.shape_cast %50 : vector<1x8x1xf32> to vector<8x1xf32>
    %52 = vector.extract_strided_slice %0 {offsets = [0, 7], sizes = [1, 241], strides = [1, 1]} : vector<1x248xf32> to vector<1x241xf32>
    %53 = vector.broadcast %51 : vector<8x1xf32> to vector<8x241xf32>
    %54 = vector.broadcast %52 : vector<1x241xf32> to vector<8x241xf32>
    %55 = arith.mulf %53, %54 : vector<8x241xf32>
    %56 = arith.addf %49, %55 : vector<8x241xf32>
    %c0_20 = arith.constant 0 : index
    %c0_21 = arith.constant 0 : index
    %57 = vector.load %arg3[%c0_20, %c0_21] : memref<241x118xf32, #tpu.memory_space<vmem>>, vector<241x118xf32>
    %cst = arith.constant dense<0.000000e+00> : vector<8x118xf32>
    %58 = tpu.matmul %56, %57, %cst {dimension_numbers = #tpu.dot_dimension_numbers<[1], [0], [0], [1], [0, 0, 1, 1], [], []>} : vector<8x241xf32>, vector<241x118xf32>, vector<8x118xf32> -> vector<8x118xf32>
    %59 = vector.broadcast %1 : vector<8x1xf32> to vector<8x118xf32>
    %60 = arith.addf %58, %59 : vector<8x118xf32>
    %cst_22 = arith.constant 0.000000e+00 : f32
    %61 = vector.broadcast %cst_22 : f32 to vector<8x118xf32>
    %62 = arith.cmpf oge, %60, %61 : vector<8x118xf32>
    %cst_23 = arith.constant 2.000000e-01 : f32
    %63 = vector.broadcast %cst_23 : f32 to vector<8x118xf32>
    %64 = arith.mulf %63, %60 : vector<8x118xf32>
    %65 = arith.select %62, %60, %64 : vector<8x118xi1>, vector<8x118xf32>
    %c0_24 = arith.constant 0 : index
    %c0_25 = arith.constant 0 : index
    %66 = vector.load %arg5[%c0_24, %c0_25] : memref<16x1xf32, #tpu.memory_space<vmem>>, vector<16x1xf32>
    %c0_26 = arith.constant 0 : index
    %c0_27 = arith.constant 0 : index
    %67 = vector.load %arg6[%c0_26, %c0_27] : memref<16x1xf32, #tpu.memory_space<vmem>>, vector<16x1xf32>
    %c0_28 = arith.constant 0 : index
    %c0_29 = arith.constant 0 : index
    %68 = vector.load %arg7[%c0_28, %c0_29] : memref<16x1xf32, #tpu.memory_space<vmem>>, vector<16x1xf32>
    %c0_30 = arith.constant 0 : index
    %c0_31 = arith.constant 0 : index
    %c0_32 = arith.constant 0 : index
    %69 = vector.load %arg4[%c0_30, %c0_31, %c0_32] : memref<7x16x8xf32, #tpu.memory_space<vmem>>, vector<1x16x8xf32>
    %70 = vector.shape_cast %69 : vector<1x16x8xf32> to vector<16x8xf32>
    %71 = vector.extract_strided_slice %65 {offsets = [0, 0], sizes = [8, 112], strides = [1, 1]} : vector<8x118xf32> to vector<8x112xf32>
    %cst_33 = arith.constant dense<0.000000e+00> : vector<16x112xf32>
    %72 = tpu.matmul %70, %71, %cst_33 {dimension_numbers = #tpu.dot_dimension_numbers<[1], [0], [0], [1], [0, 0, 1, 1], [], []>} : vector<16x8xf32>, vector<8x112xf32>, vector<16x112xf32> -> vector<16x112xf32>
    %c1_34 = arith.constant 1 : index
    %c0_35 = arith.constant 0 : index
    %c0_36 = arith.constant 0 : index
    %73 = vector.load %arg4[%c1_34, %c0_35, %c0_36] : memref<7x16x8xf32, #tpu.memory_space<vmem>>, vector<1x16x8xf32>
    %74 = vector.shape_cast %73 : vector<1x16x8xf32> to vector<16x8xf32>
    %75 = vector.extract_strided_slice %65 {offsets = [0, 1], sizes = [8, 112], strides = [1, 1]} : vector<8x118xf32> to vector<8x112xf32>
    %cst_37 = arith.constant dense<0.000000e+00> : vector<16x112xf32>
    %76 = tpu.matmul %74, %75, %cst_37 {dimension_numbers = #tpu.dot_dimension_numbers<[1], [0], [0], [1], [0, 0, 1, 1], [], []>} : vector<16x8xf32>, vector<8x112xf32>, vector<16x112xf32> -> vector<16x112xf32>
    %77 = arith.addf %72, %76 : vector<16x112xf32>
    %c2_38 = arith.constant 2 : index
    %c0_39 = arith.constant 0 : index
    %c0_40 = arith.constant 0 : index
    %78 = vector.load %arg4[%c2_38, %c0_39, %c0_40] : memref<7x16x8xf32, #tpu.memory_space<vmem>>, vector<1x16x8xf32>
    %79 = vector.shape_cast %78 : vector<1x16x8xf32> to vector<16x8xf32>
    %80 = vector.extract_strided_slice %65 {offsets = [0, 2], sizes = [8, 112], strides = [1, 1]} : vector<8x118xf32> to vector<8x112xf32>
    %cst_41 = arith.constant dense<0.000000e+00> : vector<16x112xf32>
    %81 = tpu.matmul %79, %80, %cst_41 {dimension_numbers = #tpu.dot_dimension_numbers<[1], [0], [0], [1], [0, 0, 1, 1], [], []>} : vector<16x8xf32>, vector<8x112xf32>, vector<16x112xf32> -> vector<16x112xf32>
    %82 = arith.addf %77, %81 : vector<16x112xf32>
    %c3_42 = arith.constant 3 : index
    %c0_43 = arith.constant 0 : index
    %c0_44 = arith.constant 0 : index
    %83 = vector.load %arg4[%c3_42, %c0_43, %c0_44] : memref<7x16x8xf32, #tpu.memory_space<vmem>>, vector<1x16x8xf32>
    %84 = vector.shape_cast %83 : vector<1x16x8xf32> to vector<16x8xf32>
    %85 = vector.extract_strided_slice %65 {offsets = [0, 3], sizes = [8, 112], strides = [1, 1]} : vector<8x118xf32> to vector<8x112xf32>
    %cst_45 = arith.constant dense<0.000000e+00> : vector<16x112xf32>
    %86 = tpu.matmul %84, %85, %cst_45 {dimension_numbers = #tpu.dot_dimension_numbers<[1], [0], [0], [1], [0, 0, 1, 1], [], []>} : vector<16x8xf32>, vector<8x112xf32>, vector<16x112xf32> -> vector<16x112xf32>
    %87 = arith.addf %82, %86 : vector<16x112xf32>
    %c4_46 = arith.constant 4 : index
    %c0_47 = arith.constant 0 : index
    %c0_48 = arith.constant 0 : index
    %88 = vector.load %arg4[%c4_46, %c0_47, %c0_48] : memref<7x16x8xf32, #tpu.memory_space<vmem>>, vector<1x16x8xf32>
    %89 = vector.shape_cast %88 : vector<1x16x8xf32> to vector<16x8xf32>
    %90 = vector.extract_strided_slice %65 {offsets = [0, 4], sizes = [8, 112], strides = [1, 1]} : vector<8x118xf32> to vector<8x112xf32>
    %cst_49 = arith.constant dense<0.000000e+00> : vector<16x112xf32>
    %91 = tpu.matmul %89, %90, %cst_49 {dimension_numbers = #tpu.dot_dimension_numbers<[1], [0], [0], [1], [0, 0, 1, 1], [], []>} : vector<16x8xf32>, vector<8x112xf32>, vector<16x112xf32> -> vector<16x112xf32>
    %92 = arith.addf %87, %91 : vector<16x112xf32>
    %c5_50 = arith.constant 5 : index
    %c0_51 = arith.constant 0 : index
    %c0_52 = arith.constant 0 : index
    %93 = vector.load %arg4[%c5_50, %c0_51, %c0_52] : memref<7x16x8xf32, #tpu.memory_space<vmem>>, vector<1x16x8xf32>
    %94 = vector.shape_cast %93 : vector<1x16x8xf32> to vector<16x8xf32>
    %95 = vector.extract_strided_slice %65 {offsets = [0, 5], sizes = [8, 112], strides = [1, 1]} : vector<8x118xf32> to vector<8x112xf32>
    %cst_53 = arith.constant dense<0.000000e+00> : vector<16x112xf32>
    %96 = tpu.matmul %94, %95, %cst_53 {dimension_numbers = #tpu.dot_dimension_numbers<[1], [0], [0], [1], [0, 0, 1, 1], [], []>} : vector<16x8xf32>, vector<8x112xf32>, vector<16x112xf32> -> vector<16x112xf32>
    %97 = arith.addf %92, %96 : vector<16x112xf32>
    %c6_54 = arith.constant 6 : index
    %c0_55 = arith.constant 0 : index
    %c0_56 = arith.constant 0 : index
    %98 = vector.load %arg4[%c6_54, %c0_55, %c0_56] : memref<7x16x8xf32, #tpu.memory_space<vmem>>, vector<1x16x8xf32>
    %99 = vector.shape_cast %98 : vector<1x16x8xf32> to vector<16x8xf32>
    %100 = vector.extract_strided_slice %65 {offsets = [0, 6], sizes = [8, 112], strides = [1, 1]} : vector<8x118xf32> to vector<8x112xf32>
    %cst_57 = arith.constant dense<0.000000e+00> : vector<16x112xf32>
    %101 = tpu.matmul %99, %100, %cst_57 {dimension_numbers = #tpu.dot_dimension_numbers<[1], [0], [0], [1], [0, 0, 1, 1], [], []>} : vector<16x8xf32>, vector<8x112xf32>, vector<16x112xf32> -> vector<16x112xf32>
    %102 = arith.addf %97, %101 : vector<16x112xf32>
    %c0_58 = arith.constant 0 : index
    %c0_59 = arith.constant 0 : index
    %103 = vector.load %arg8[%c0_58, %c0_59] : memref<112x54xf32, #tpu.memory_space<vmem>>, vector<112x54xf32>
    %cst_60 = arith.constant dense<0.000000e+00> : vector<16x54xf32>
    %104 = tpu.matmul %102, %103, %cst_60 {dimension_numbers = #tpu.dot_dimension_numbers<[1], [0], [0], [1], [0, 0, 1, 1], [], []>} : vector<16x112xf32>, vector<112x54xf32>, vector<16x54xf32> -> vector<16x54xf32>
    %105 = vector.broadcast %66 : vector<16x1xf32> to vector<16x54xf32>
    %106 = arith.addf %104, %105 : vector<16x54xf32>
    %cst_61 = arith.constant dense<0.000000e+00> : vector<16xf32>
    %107 = vector.multi_reduction <add>, %106, %cst_61 [1] : vector<16x54xf32> to vector<16xf32>
    %108 = vector.shape_cast %107 : vector<16xf32> to vector<16x1xf32>
    %cst_62 = arith.constant 0.0185185187 : f32
    %109 = vector.broadcast %cst_62 : f32 to vector<16x1xf32>
    %110 = arith.mulf %108, %109 : vector<16x1xf32>
    %111 = vector.broadcast %110 : vector<16x1xf32> to vector<16x54xf32>
    %112 = arith.subf %106, %111 : vector<16x54xf32>
    %113 = arith.mulf %112, %112 : vector<16x54xf32>
    %cst_63 = arith.constant dense<0.000000e+00> : vector<16xf32>
    %114 = vector.multi_reduction <add>, %113, %cst_63 [1] : vector<16x54xf32> to vector<16xf32>
    %115 = vector.shape_cast %114 : vector<16xf32> to vector<16x1xf32>
    %cst_64 = arith.constant 0.0185185187 : f32
    %116 = vector.broadcast %cst_64 : f32 to vector<16x1xf32>
    %117 = arith.mulf %115, %116 : vector<16x1xf32>
    %cst_65 = arith.constant 9.99999974E-6 : f32
    %118 = vector.broadcast %cst_65 : f32 to vector<16x1xf32>
    %119 = arith.addf %117, %118 : vector<16x1xf32>
    %120 = math.rsqrt %119 : vector<16x1xf32>
    %121 = arith.mulf %67, %120 : vector<16x1xf32>
    %122 = vector.broadcast %121 : vector<16x1xf32> to vector<16x54xf32>
    %123 = arith.mulf %112, %122 : vector<16x54xf32>
    %124 = vector.broadcast %68 : vector<16x1xf32> to vector<16x54xf32>
    %125 = arith.addf %123, %124 : vector<16x54xf32>
    %cst_66 = arith.constant 0.000000e+00 : f32
    %126 = vector.broadcast %cst_66 : f32 to vector<16x54xf32>
    %127 = arith.cmpf oge, %125, %126 : vector<16x54xf32>
    %cst_67 = arith.constant 2.000000e-01 : f32
    %128 = vector.broadcast %cst_67 : f32 to vector<16x54xf32>
    %129 = arith.mulf %128, %125 : vector<16x54xf32>
    %130 = arith.select %127, %125, %129 : vector<16x54xi1>, vector<16x54xf32>
    %c0_68 = arith.constant 0 : index
    %c0_69 = arith.constant 0 : index
    %131 = vector.load %arg10[%c0_68, %c0_69] : memref<32x1xf32, #tpu.memory_space<vmem>>, vector<32x1xf32>
    %c0_70 = arith.constant 0 : index
    %c0_71 = arith.constant 0 : index
    %132 = vector.load %arg11[%c0_70, %c0_71] : memref<32x1xf32, #tpu.memory_space<vmem>>, vector<32x1xf32>
    %c0_72 = arith.constant 0 : index
    %c0_73 = arith.constant 0 : index
    %133 = vector.load %arg12[%c0_72, %c0_73] : memref<32x1xf32, #tpu.memory_space<vmem>>, vector<32x1xf32>
    %c0_74 = arith.constant 0 : index
    %c0_75 = arith.constant 0 : index
    %c0_76 = arith.constant 0 : index
    %134 = vector.load %arg9[%c0_74, %c0_75, %c0_76] : memref<7x32x16xf32, #tpu.memory_space<vmem>>, vector<1x32x16xf32>
    %135 = vector.shape_cast %134 : vector<1x32x16xf32> to vector<32x16xf32>
    %136 = vector.extract_strided_slice %130 {offsets = [0, 0], sizes = [16, 48], strides = [1, 1]} : vector<16x54xf32> to vector<16x48xf32>
    %cst_77 = arith.constant dense<0.000000e+00> : vector<32x48xf32>
    %137 = tpu.matmul %135, %136, %cst_77 {dimension_numbers = #tpu.dot_dimension_numbers<[1], [0], [0], [1], [0, 0, 1, 1], [], []>} : vector<32x16xf32>, vector<16x48xf32>, vector<32x48xf32> -> vector<32x48xf32>
    %c1_78 = arith.constant 1 : index
    %c0_79 = arith.constant 0 : index
    %c0_80 = arith.constant 0 : index
    %138 = vector.load %arg9[%c1_78, %c0_79, %c0_80] : memref<7x32x16xf32, #tpu.memory_space<vmem>>, vector<1x32x16xf32>
    %139 = vector.shape_cast %138 : vector<1x32x16xf32> to vector<32x16xf32>
    %140 = vector.extract_strided_slice %130 {offsets = [0, 1], sizes = [16, 48], strides = [1, 1]} : vector<16x54xf32> to vector<16x48xf32>
    %cst_81 = arith.constant dense<0.000000e+00> : vector<32x48xf32>
    %141 = tpu.matmul %139, %140, %cst_81 {dimension_numbers = #tpu.dot_dimension_numbers<[1], [0], [0], [1], [0, 0, 1, 1], [], []>} : vector<32x16xf32>, vector<16x48xf32>, vector<32x48xf32> -> vector<32x48xf32>
    %142 = arith.addf %137, %141 : vector<32x48xf32>
    %c2_82 = arith.constant 2 : index
    %c0_83 = arith.constant 0 : index
    %c0_84 = arith.constant 0 : index
    %143 = vector.load %arg9[%c2_82, %c0_83, %c0_84] : memref<7x32x16xf32, #tpu.memory_space<vmem>>, vector<1x32x16xf32>
    %144 = vector.shape_cast %143 : vector<1x32x16xf32> to vector<32x16xf32>
    %145 = vector.extract_strided_slice %130 {offsets = [0, 2], sizes = [16, 48], strides = [1, 1]} : vector<16x54xf32> to vector<16x48xf32>
    %cst_85 = arith.constant dense<0.000000e+00> : vector<32x48xf32>
    %146 = tpu.matmul %144, %145, %cst_85 {dimension_numbers = #tpu.dot_dimension_numbers<[1], [0], [0], [1], [0, 0, 1, 1], [], []>} : vector<32x16xf32>, vector<16x48xf32>, vector<32x48xf32> -> vector<32x48xf32>
    %147 = arith.addf %142, %146 : vector<32x48xf32>
    %c3_86 = arith.constant 3 : index
    %c0_87 = arith.constant 0 : index
    %c0_88 = arith.constant 0 : index
    %148 = vector.load %arg9[%c3_86, %c0_87, %c0_88] : memref<7x32x16xf32, #tpu.memory_space<vmem>>, vector<1x32x16xf32>
    %149 = vector.shape_cast %148 : vector<1x32x16xf32> to vector<32x16xf32>
    %150 = vector.extract_strided_slice %130 {offsets = [0, 3], sizes = [16, 48], strides = [1, 1]} : vector<16x54xf32> to vector<16x48xf32>
    %cst_89 = arith.constant dense<0.000000e+00> : vector<32x48xf32>
    %151 = tpu.matmul %149, %150, %cst_89 {dimension_numbers = #tpu.dot_dimension_numbers<[1], [0], [0], [1], [0, 0, 1, 1], [], []>} : vector<32x16xf32>, vector<16x48xf32>, vector<32x48xf32> -> vector<32x48xf32>
    %152 = arith.addf %147, %151 : vector<32x48xf32>
    %c4_90 = arith.constant 4 : index
    %c0_91 = arith.constant 0 : index
    %c0_92 = arith.constant 0 : index
    %153 = vector.load %arg9[%c4_90, %c0_91, %c0_92] : memref<7x32x16xf32, #tpu.memory_space<vmem>>, vector<1x32x16xf32>
    %154 = vector.shape_cast %153 : vector<1x32x16xf32> to vector<32x16xf32>
    %155 = vector.extract_strided_slice %130 {offsets = [0, 4], sizes = [16, 48], strides = [1, 1]} : vector<16x54xf32> to vector<16x48xf32>
    %cst_93 = arith.constant dense<0.000000e+00> : vector<32x48xf32>
    %156 = tpu.matmul %154, %155, %cst_93 {dimension_numbers = #tpu.dot_dimension_numbers<[1], [0], [0], [1], [0, 0, 1, 1], [], []>} : vector<32x16xf32>, vector<16x48xf32>, vector<32x48xf32> -> vector<32x48xf32>
    %157 = arith.addf %152, %156 : vector<32x48xf32>
    %c5_94 = arith.constant 5 : index
    %c0_95 = arith.constant 0 : index
    %c0_96 = arith.constant 0 : index
    %158 = vector.load %arg9[%c5_94, %c0_95, %c0_96] : memref<7x32x16xf32, #tpu.memory_space<vmem>>, vector<1x32x16xf32>
    %159 = vector.shape_cast %158 : vector<1x32x16xf32> to vector<32x16xf32>
    %160 = vector.extract_strided_slice %130 {offsets = [0, 5], sizes = [16, 48], strides = [1, 1]} : vector<16x54xf32> to vector<16x48xf32>
    %cst_97 = arith.constant dense<0.000000e+00> : vector<32x48xf32>
    %161 = tpu.matmul %159, %160, %cst_97 {dimension_numbers = #tpu.dot_dimension_numbers<[1], [0], [0], [1], [0, 0, 1, 1], [], []>} : vector<32x16xf32>, vector<16x48xf32>, vector<32x48xf32> -> vector<32x48xf32>
    %162 = arith.addf %157, %161 : vector<32x48xf32>
    %c6_98 = arith.constant 6 : index
    %c0_99 = arith.constant 0 : index
    %c0_100 = arith.constant 0 : index
    %163 = vector.load %arg9[%c6_98, %c0_99, %c0_100] : memref<7x32x16xf32, #tpu.memory_space<vmem>>, vector<1x32x16xf32>
    %164 = vector.shape_cast %163 : vector<1x32x16xf32> to vector<32x16xf32>
    %165 = vector.extract_strided_slice %130 {offsets = [0, 6], sizes = [16, 48], strides = [1, 1]} : vector<16x54xf32> to vector<16x48xf32>
    %cst_101 = arith.constant dense<0.000000e+00> : vector<32x48xf32>
    %166 = tpu.matmul %164, %165, %cst_101 {dimension_numbers = #tpu.dot_dimension_numbers<[1], [0], [0], [1], [0, 0, 1, 1], [], []>} : vector<32x16xf32>, vector<16x48xf32>, vector<32x48xf32> -> vector<32x48xf32>
    %167 = arith.addf %162, %166 : vector<32x48xf32>
    %c0_102 = arith.constant 0 : index
    %c0_103 = arith.constant 0 : index
    %168 = vector.load %arg13[%c0_102, %c0_103] : memref<48x22xf32, #tpu.memory_space<vmem>>, vector<48x22xf32>
    %cst_104 = arith.constant dense<0.000000e+00> : vector<32x22xf32>
    %169 = tpu.matmul %167, %168, %cst_104 {dimension_numbers = #tpu.dot_dimension_numbers<[1], [0], [0], [1], [0, 0, 1, 1], [], []>} : vector<32x48xf32>, vector<48x22xf32>, vector<32x22xf32> -> vector<32x22xf32>
    %170 = vector.broadcast %131 : vector<32x1xf32> to vector<32x22xf32>
    %171 = arith.addf %169, %170 : vector<32x22xf32>
    %cst_105 = arith.constant dense<0.000000e+00> : vector<32xf32>
    %172 = vector.multi_reduction <add>, %171, %cst_105 [1] : vector<32x22xf32> to vector<32xf32>
    %173 = vector.shape_cast %172 : vector<32xf32> to vector<32x1xf32>
    %cst_106 = arith.constant 0.0454545468 : f32
    %174 = vector.broadcast %cst_106 : f32 to vector<32x1xf32>
    %175 = arith.mulf %173, %174 : vector<32x1xf32>
    %176 = vector.broadcast %175 : vector<32x1xf32> to vector<32x22xf32>
    %177 = arith.subf %171, %176 : vector<32x22xf32>
    %178 = arith.mulf %177, %177 : vector<32x22xf32>
    %cst_107 = arith.constant dense<0.000000e+00> : vector<32xf32>
    %179 = vector.multi_reduction <add>, %178, %cst_107 [1] : vector<32x22xf32> to vector<32xf32>
    %180 = vector.shape_cast %179 : vector<32xf32> to vector<32x1xf32>
    %cst_108 = arith.constant 0.0454545468 : f32
    %181 = vector.broadcast %cst_108 : f32 to vector<32x1xf32>
    %182 = arith.mulf %180, %181 : vector<32x1xf32>
    %cst_109 = arith.constant 9.99999974E-6 : f32
    %183 = vector.broadcast %cst_109 : f32 to vector<32x1xf32>
    %184 = arith.addf %182, %183 : vector<32x1xf32>
    %185 = math.rsqrt %184 : vector<32x1xf32>
    %186 = arith.mulf %132, %185 : vector<32x1xf32>
    %187 = vector.broadcast %186 : vector<32x1xf32> to vector<32x22xf32>
    %188 = arith.mulf %177, %187 : vector<32x22xf32>
    %189 = vector.broadcast %133 : vector<32x1xf32> to vector<32x22xf32>
    %190 = arith.addf %188, %189 : vector<32x22xf32>
    %cst_110 = arith.constant 0.000000e+00 : f32
    %191 = vector.broadcast %cst_110 : f32 to vector<32x22xf32>
    %192 = arith.cmpf oge, %190, %191 : vector<32x22xf32>
    %cst_111 = arith.constant 2.000000e-01 : f32
    %193 = vector.broadcast %cst_111 : f32 to vector<32x22xf32>
    %194 = arith.mulf %193, %190 : vector<32x22xf32>
    %195 = arith.select %192, %190, %194 : vector<32x22xi1>, vector<32x22xf32>
    %c0_112 = arith.constant 0 : index
    %c0_113 = arith.constant 0 : index
    %196 = vector.load %arg15[%c0_112, %c0_113] : memref<64x1xf32, #tpu.memory_space<vmem>>, vector<64x1xf32>
    %c0_114 = arith.constant 0 : index
    %c0_115 = arith.constant 0 : index
    %197 = vector.load %arg16[%c0_114, %c0_115] : memref<64x1xf32, #tpu.memory_space<vmem>>, vector<64x1xf32>
    %c0_116 = arith.constant 0 : index
    %c0_117 = arith.constant 0 : index
    %198 = vector.load %arg17[%c0_116, %c0_117] : memref<64x1xf32, #tpu.memory_space<vmem>>, vector<64x1xf32>
    %c0_118 = arith.constant 0 : index
    %c0_119 = arith.constant 0 : index
    %c0_120 = arith.constant 0 : index
    %199 = vector.load %arg14[%c0_118, %c0_119, %c0_120] : memref<7x64x32xf32, #tpu.memory_space<vmem>>, vector<1x64x32xf32>
    %200 = vector.shape_cast %199 : vector<1x64x32xf32> to vector<64x32xf32>
    %201 = vector.extract_strided_slice %195 {offsets = [0, 0], sizes = [32, 16], strides = [1, 1]} : vector<32x22xf32> to vector<32x16xf32>
    %cst_121 = arith.constant dense<0.000000e+00> : vector<64x16xf32>
    %202 = tpu.matmul %200, %201, %cst_121 {dimension_numbers = #tpu.dot_dimension_numbers<[1], [0], [0], [1], [0, 0, 1, 1], [], []>} : vector<64x32xf32>, vector<32x16xf32>, vector<64x16xf32> -> vector<64x16xf32>
    %c1_122 = arith.constant 1 : index
    %c0_123 = arith.constant 0 : index
    %c0_124 = arith.constant 0 : index
    %203 = vector.load %arg14[%c1_122, %c0_123, %c0_124] : memref<7x64x32xf32, #tpu.memory_space<vmem>>, vector<1x64x32xf32>
    %204 = vector.shape_cast %203 : vector<1x64x32xf32> to vector<64x32xf32>
    %205 = vector.extract_strided_slice %195 {offsets = [0, 1], sizes = [32, 16], strides = [1, 1]} : vector<32x22xf32> to vector<32x16xf32>
    %cst_125 = arith.constant dense<0.000000e+00> : vector<64x16xf32>
    %206 = tpu.matmul %204, %205, %cst_125 {dimension_numbers = #tpu.dot_dimension_numbers<[1], [0], [0], [1], [0, 0, 1, 1], [], []>} : vector<64x32xf32>, vector<32x16xf32>, vector<64x16xf32> -> vector<64x16xf32>
    %207 = arith.addf %202, %206 : vector<64x16xf32>
    %c2_126 = arith.constant 2 : index
    %c0_127 = arith.constant 0 : index
    %c0_128 = arith.constant 0 : index
    %208 = vector.load %arg14[%c2_126, %c0_127, %c0_128] : memref<7x64x32xf32, #tpu.memory_space<vmem>>, vector<1x64x32xf32>
    %209 = vector.shape_cast %208 : vector<1x64x32xf32> to vector<64x32xf32>
    %210 = vector.extract_strided_slice %195 {offsets = [0, 2], sizes = [32, 16], strides = [1, 1]} : vector<32x22xf32> to vector<32x16xf32>
    %cst_129 = arith.constant dense<0.000000e+00> : vector<64x16xf32>
    %211 = tpu.matmul %209, %210, %cst_129 {dimension_numbers = #tpu.dot_dimension_numbers<[1], [0], [0], [1], [0, 0, 1, 1], [], []>} : vector<64x32xf32>, vector<32x16xf32>, vector<64x16xf32> -> vector<64x16xf32>
    %212 = arith.addf %207, %211 : vector<64x16xf32>
    %c3_130 = arith.constant 3 : index
    %c0_131 = arith.constant 0 : index
    %c0_132 = arith.constant 0 : index
    %213 = vector.load %arg14[%c3_130, %c0_131, %c0_132] : memref<7x64x32xf32, #tpu.memory_space<vmem>>, vector<1x64x32xf32>
    %214 = vector.shape_cast %213 : vector<1x64x32xf32> to vector<64x32xf32>
    %215 = vector.extract_strided_slice %195 {offsets = [0, 3], sizes = [32, 16], strides = [1, 1]} : vector<32x22xf32> to vector<32x16xf32>
    %cst_133 = arith.constant dense<0.000000e+00> : vector<64x16xf32>
    %216 = tpu.matmul %214, %215, %cst_133 {dimension_numbers = #tpu.dot_dimension_numbers<[1], [0], [0], [1], [0, 0, 1, 1], [], []>} : vector<64x32xf32>, vector<32x16xf32>, vector<64x16xf32> -> vector<64x16xf32>
    %217 = arith.addf %212, %216 : vector<64x16xf32>
    %c4_134 = arith.constant 4 : index
    %c0_135 = arith.constant 0 : index
    %c0_136 = arith.constant 0 : index
    %218 = vector.load %arg14[%c4_134, %c0_135, %c0_136] : memref<7x64x32xf32, #tpu.memory_space<vmem>>, vector<1x64x32xf32>
    %219 = vector.shape_cast %218 : vector<1x64x32xf32> to vector<64x32xf32>
    %220 = vector.extract_strided_slice %195 {offsets = [0, 4], sizes = [32, 16], strides = [1, 1]} : vector<32x22xf32> to vector<32x16xf32>
    %cst_137 = arith.constant dense<0.000000e+00> : vector<64x16xf32>
    %221 = tpu.matmul %219, %220, %cst_137 {dimension_numbers = #tpu.dot_dimension_numbers<[1], [0], [0], [1], [0, 0, 1, 1], [], []>} : vector<64x32xf32>, vector<32x16xf32>, vector<64x16xf32> -> vector<64x16xf32>
    %222 = arith.addf %217, %221 : vector<64x16xf32>
    %c5_138 = arith.constant 5 : index
    %c0_139 = arith.constant 0 : index
    %c0_140 = arith.constant 0 : index
    %223 = vector.load %arg14[%c5_138, %c0_139, %c0_140] : memref<7x64x32xf32, #tpu.memory_space<vmem>>, vector<1x64x32xf32>
    %224 = vector.shape_cast %223 : vector<1x64x32xf32> to vector<64x32xf32>
    %225 = vector.extract_strided_slice %195 {offsets = [0, 5], sizes = [32, 16], strides = [1, 1]} : vector<32x22xf32> to vector<32x16xf32>
    %cst_141 = arith.constant dense<0.000000e+00> : vector<64x16xf32>
    %226 = tpu.matmul %224, %225, %cst_141 {dimension_numbers = #tpu.dot_dimension_numbers<[1], [0], [0], [1], [0, 0, 1, 1], [], []>} : vector<64x32xf32>, vector<32x16xf32>, vector<64x16xf32> -> vector<64x16xf32>
    %227 = arith.addf %222, %226 : vector<64x16xf32>
    %c6_142 = arith.constant 6 : index
    %c0_143 = arith.constant 0 : index
    %c0_144 = arith.constant 0 : index
    %228 = vector.load %arg14[%c6_142, %c0_143, %c0_144] : memref<7x64x32xf32, #tpu.memory_space<vmem>>, vector<1x64x32xf32>
    %229 = vector.shape_cast %228 : vector<1x64x32xf32> to vector<64x32xf32>
    %230 = vector.extract_strided_slice %195 {offsets = [0, 6], sizes = [32, 16], strides = [1, 1]} : vector<32x22xf32> to vector<32x16xf32>
    %cst_145 = arith.constant dense<0.000000e+00> : vector<64x16xf32>
    %231 = tpu.matmul %229, %230, %cst_145 {dimension_numbers = #tpu.dot_dimension_numbers<[1], [0], [0], [1], [0, 0, 1, 1], [], []>} : vector<64x32xf32>, vector<32x16xf32>, vector<64x16xf32> -> vector<64x16xf32>
    %232 = arith.addf %227, %231 : vector<64x16xf32>
    %c0_146 = arith.constant 0 : index
    %c0_147 = arith.constant 0 : index
    %233 = vector.load %arg18[%c0_146, %c0_147] : memref<16x6xf32, #tpu.memory_space<vmem>>, vector<16x6xf32>
    %cst_148 = arith.constant dense<0.000000e+00> : vector<64x6xf32>
    %234 = tpu.matmul %232, %233, %cst_148 {dimension_numbers = #tpu.dot_dimension_numbers<[1], [0], [0], [1], [0, 0, 1, 1], [], []>} : vector<64x16xf32>, vector<16x6xf32>, vector<64x6xf32> -> vector<64x6xf32>
    %235 = vector.broadcast %196 : vector<64x1xf32> to vector<64x6xf32>
    %236 = arith.addf %234, %235 : vector<64x6xf32>
    %cst_149 = arith.constant dense<0.000000e+00> : vector<64xf32>
    %237 = vector.multi_reduction <add>, %236, %cst_149 [1] : vector<64x6xf32> to vector<64xf32>
    %238 = vector.shape_cast %237 : vector<64xf32> to vector<64x1xf32>
    %cst_150 = arith.constant 0.166666672 : f32
    %239 = vector.broadcast %cst_150 : f32 to vector<64x1xf32>
    %240 = arith.mulf %238, %239 : vector<64x1xf32>
    %241 = vector.broadcast %240 : vector<64x1xf32> to vector<64x6xf32>
    %242 = arith.subf %236, %241 : vector<64x6xf32>
    %243 = arith.mulf %242, %242 : vector<64x6xf32>
    %cst_151 = arith.constant dense<0.000000e+00> : vector<64xf32>
    %244 = vector.multi_reduction <add>, %243, %cst_151 [1] : vector<64x6xf32> to vector<64xf32>
    %245 = vector.shape_cast %244 : vector<64xf32> to vector<64x1xf32>
    %cst_152 = arith.constant 0.166666672 : f32
    %246 = vector.broadcast %cst_152 : f32 to vector<64x1xf32>
    %247 = arith.mulf %245, %246 : vector<64x1xf32>
    %cst_153 = arith.constant 9.99999974E-6 : f32
    %248 = vector.broadcast %cst_153 : f32 to vector<64x1xf32>
    %249 = arith.addf %247, %248 : vector<64x1xf32>
    %250 = math.rsqrt %249 : vector<64x1xf32>
    %251 = arith.mulf %197, %250 : vector<64x1xf32>
    %252 = vector.broadcast %251 : vector<64x1xf32> to vector<64x6xf32>
    %253 = arith.mulf %242, %252 : vector<64x6xf32>
    %254 = vector.broadcast %198 : vector<64x1xf32> to vector<64x6xf32>
    %255 = arith.addf %253, %254 : vector<64x6xf32>
    %cst_154 = arith.constant 0.000000e+00 : f32
    %256 = vector.broadcast %cst_154 : f32 to vector<64x6xf32>
    %257 = arith.cmpf oge, %255, %256 : vector<64x6xf32>
    %cst_155 = arith.constant 2.000000e-01 : f32
    %258 = vector.broadcast %cst_155 : f32 to vector<64x6xf32>
    %259 = arith.mulf %258, %255 : vector<64x6xf32>
    %260 = arith.select %257, %255, %259 : vector<64x6xi1>, vector<64x6xf32>
    %c0_156 = arith.constant 0 : index
    %c0_157 = arith.constant 0 : index
    %261 = vector.load %arg20[%c0_156, %c0_157] : memref<128x1xf32, #tpu.memory_space<vmem>>, vector<128x1xf32>
    %c0_158 = arith.constant 0 : index
    %c0_159 = arith.constant 0 : index
    %c0_160 = arith.constant 0 : index
    %262 = vector.load %arg19[%c0_158, %c0_159, %c0_160] : memref<3x128x64xf32, #tpu.memory_space<vmem>>, vector<1x128x64xf32>
    %263 = vector.shape_cast %262 : vector<1x128x64xf32> to vector<128x64xf32>
    %264 = vector.extract_strided_slice %260 {offsets = [0, 0], sizes = [64, 4], strides = [1, 1]} : vector<64x6xf32> to vector<64x4xf32>
    %cst_161 = arith.constant dense<0.000000e+00> : vector<128x4xf32>
    %265 = tpu.matmul %263, %264, %cst_161 {dimension_numbers = #tpu.dot_dimension_numbers<[1], [0], [0], [1], [0, 0, 1, 1], [], []>} : vector<128x64xf32>, vector<64x4xf32>, vector<128x4xf32> -> vector<128x4xf32>
    %c1_162 = arith.constant 1 : index
    %c0_163 = arith.constant 0 : index
    %c0_164 = arith.constant 0 : index
    %266 = vector.load %arg19[%c1_162, %c0_163, %c0_164] : memref<3x128x64xf32, #tpu.memory_space<vmem>>, vector<1x128x64xf32>
    %267 = vector.shape_cast %266 : vector<1x128x64xf32> to vector<128x64xf32>
    %268 = vector.extract_strided_slice %260 {offsets = [0, 1], sizes = [64, 4], strides = [1, 1]} : vector<64x6xf32> to vector<64x4xf32>
    %cst_165 = arith.constant dense<0.000000e+00> : vector<128x4xf32>
    %269 = tpu.matmul %267, %268, %cst_165 {dimension_numbers = #tpu.dot_dimension_numbers<[1], [0], [0], [1], [0, 0, 1, 1], [], []>} : vector<128x64xf32>, vector<64x4xf32>, vector<128x4xf32> -> vector<128x4xf32>
    %270 = arith.addf %265, %269 : vector<128x4xf32>
    %c2_166 = arith.constant 2 : index
    %c0_167 = arith.constant 0 : index
    %c0_168 = arith.constant 0 : index
    %271 = vector.load %arg19[%c2_166, %c0_167, %c0_168] : memref<3x128x64xf32, #tpu.memory_space<vmem>>, vector<1x128x64xf32>
    %272 = vector.shape_cast %271 : vector<1x128x64xf32> to vector<128x64xf32>
    %273 = vector.extract_strided_slice %260 {offsets = [0, 2], sizes = [64, 4], strides = [1, 1]} : vector<64x6xf32> to vector<64x4xf32>
    %cst_169 = arith.constant dense<0.000000e+00> : vector<128x4xf32>
    %274 = tpu.matmul %272, %273, %cst_169 {dimension_numbers = #tpu.dot_dimension_numbers<[1], [0], [0], [1], [0, 0, 1, 1], [], []>} : vector<128x64xf32>, vector<64x4xf32>, vector<128x4xf32> -> vector<128x4xf32>
    %275 = arith.addf %270, %274 : vector<128x4xf32>
    %c0_170 = arith.constant 0 : index
    %c0_171 = arith.constant 0 : index
    %276 = vector.load %arg21[%c0_170, %c0_171] : memref<4x2xf32, #tpu.memory_space<vmem>>, vector<4x2xf32>
    %cst_172 = arith.constant dense<0.000000e+00> : vector<128x2xf32>
    %277 = tpu.matmul %275, %276, %cst_172 {dimension_numbers = #tpu.dot_dimension_numbers<[1], [0], [0], [1], [0, 0, 1, 1], [], []>} : vector<128x4xf32>, vector<4x2xf32>, vector<128x2xf32> -> vector<128x2xf32>
    %278 = vector.broadcast %261 : vector<128x1xf32> to vector<128x2xf32>
    %279 = arith.addf %277, %278 : vector<128x2xf32>
    %280 = math.tanh %279 : vector<128x2xf32>
    %c0_173 = arith.constant 0 : index
    %c0_174 = arith.constant 0 : index
    %281 = vector.load %arg23[%c0_173, %c0_174] : memref<64x1xf32, #tpu.memory_space<vmem>>, vector<64x1xf32>
    %c0_175 = arith.constant 0 : index
    %c0_176 = arith.constant 0 : index
    %282 = vector.load %arg24[%c0_175, %c0_176] : memref<2x26xf32, #tpu.memory_space<vmem>>, vector<2x26xf32>
    %cst_177 = arith.constant dense<0.000000e+00> : vector<128x26xf32>
    %283 = tpu.matmul %280, %282, %cst_177 {dimension_numbers = #tpu.dot_dimension_numbers<[1], [0], [0], [1], [0, 0, 1, 1], [], []>} : vector<128x2xf32>, vector<2x26xf32>, vector<128x26xf32> -> vector<128x26xf32>
    %c0_178 = arith.constant 0 : index
    %c0_179 = arith.constant 0 : index
    %c0_180 = arith.constant 0 : index
    %284 = vector.load %arg22[%c0_178, %c0_179, %c0_180] : memref<7x64x128xf32, #tpu.memory_space<vmem>>, vector<1x64x128xf32>
    %285 = vector.shape_cast %284 : vector<1x64x128xf32> to vector<64x128xf32>
    %286 = vector.extract_strided_slice %283 {offsets = [0, 0], sizes = [128, 20], strides = [1, 1]} : vector<128x26xf32> to vector<128x20xf32>
    %cst_181 = arith.constant dense<0.000000e+00> : vector<64x20xf32>
    %287 = tpu.matmul %285, %286, %cst_181 {dimension_numbers = #tpu.dot_dimension_numbers<[1], [0], [0], [1], [0, 0, 1, 1], [], []>} : vector<64x128xf32>, vector<128x20xf32>, vector<64x20xf32> -> vector<64x20xf32>
    %c1_182 = arith.constant 1 : index
    %c0_183 = arith.constant 0 : index
    %c0_184 = arith.constant 0 : index
    %288 = vector.load %arg22[%c1_182, %c0_183, %c0_184] : memref<7x64x128xf32, #tpu.memory_space<vmem>>, vector<1x64x128xf32>
    %289 = vector.shape_cast %288 : vector<1x64x128xf32> to vector<64x128xf32>
    %290 = vector.extract_strided_slice %283 {offsets = [0, 1], sizes = [128, 20], strides = [1, 1]} : vector<128x26xf32> to vector<128x20xf32>
    %cst_185 = arith.constant dense<0.000000e+00> : vector<64x20xf32>
    %291 = tpu.matmul %289, %290, %cst_185 {dimension_numbers = #tpu.dot_dimension_numbers<[1], [0], [0], [1], [0, 0, 1, 1], [], []>} : vector<64x128xf32>, vector<128x20xf32>, vector<64x20xf32> -> vector<64x20xf32>
    %292 = arith.addf %287, %291 : vector<64x20xf32>
    %c2_186 = arith.constant 2 : index
    %c0_187 = arith.constant 0 : index
    %c0_188 = arith.constant 0 : index
    %293 = vector.load %arg22[%c2_186, %c0_187, %c0_188] : memref<7x64x128xf32, #tpu.memory_space<vmem>>, vector<1x64x128xf32>
    %294 = vector.shape_cast %293 : vector<1x64x128xf32> to vector<64x128xf32>
    %295 = vector.extract_strided_slice %283 {offsets = [0, 2], sizes = [128, 20], strides = [1, 1]} : vector<128x26xf32> to vector<128x20xf32>
    %cst_189 = arith.constant dense<0.000000e+00> : vector<64x20xf32>
    %296 = tpu.matmul %294, %295, %cst_189 {dimension_numbers = #tpu.dot_dimension_numbers<[1], [0], [0], [1], [0, 0, 1, 1], [], []>} : vector<64x128xf32>, vector<128x20xf32>, vector<64x20xf32> -> vector<64x20xf32>
    %297 = arith.addf %292, %296 : vector<64x20xf32>
    %c3_190 = arith.constant 3 : index
    %c0_191 = arith.constant 0 : index
    %c0_192 = arith.constant 0 : index
    %298 = vector.load %arg22[%c3_190, %c0_191, %c0_192] : memref<7x64x128xf32, #tpu.memory_space<vmem>>, vector<1x64x128xf32>
    %299 = vector.shape_cast %298 : vector<1x64x128xf32> to vector<64x128xf32>
    %300 = vector.extract_strided_slice %283 {offsets = [0, 3], sizes = [128, 20], strides = [1, 1]} : vector<128x26xf32> to vector<128x20xf32>
    %cst_193 = arith.constant dense<0.000000e+00> : vector<64x20xf32>
    %301 = tpu.matmul %299, %300, %cst_193 {dimension_numbers = #tpu.dot_dimension_numbers<[1], [0], [0], [1], [0, 0, 1, 1], [], []>} : vector<64x128xf32>, vector<128x20xf32>, vector<64x20xf32> -> vector<64x20xf32>
    %302 = arith.addf %297, %301 : vector<64x20xf32>
    %c4_194 = arith.constant 4 : index
    %c0_195 = arith.constant 0 : index
    %c0_196 = arith.constant 0 : index
    %303 = vector.load %arg22[%c4_194, %c0_195, %c0_196] : memref<7x64x128xf32, #tpu.memory_space<vmem>>, vector<1x64x128xf32>
    %304 = vector.shape_cast %303 : vector<1x64x128xf32> to vector<64x128xf32>
    %305 = vector.extract_strided_slice %283 {offsets = [0, 4], sizes = [128, 20], strides = [1, 1]} : vector<128x26xf32> to vector<128x20xf32>
    %cst_197 = arith.constant dense<0.000000e+00> : vector<64x20xf32>
    %306 = tpu.matmul %304, %305, %cst_197 {dimension_numbers = #tpu.dot_dimension_numbers<[1], [0], [0], [1], [0, 0, 1, 1], [], []>} : vector<64x128xf32>, vector<128x20xf32>, vector<64x20xf32> -> vector<64x20xf32>
    %307 = arith.addf %302, %306 : vector<64x20xf32>
    %c5_198 = arith.constant 5 : index
    %c0_199 = arith.constant 0 : index
    %c0_200 = arith.constant 0 : index
    %308 = vector.load %arg22[%c5_198, %c0_199, %c0_200] : memref<7x64x128xf32, #tpu.memory_space<vmem>>, vector<1x64x128xf32>
    %309 = vector.shape_cast %308 : vector<1x64x128xf32> to vector<64x128xf32>
    %310 = vector.extract_strided_slice %283 {offsets = [0, 5], sizes = [128, 20], strides = [1, 1]} : vector<128x26xf32> to vector<128x20xf32>
    %cst_201 = arith.constant dense<0.000000e+00> : vector<64x20xf32>
    %311 = tpu.matmul %309, %310, %cst_201 {dimension_numbers = #tpu.dot_dimension_numbers<[1], [0], [0], [1], [0, 0, 1, 1], [], []>} : vector<64x128xf32>, vector<128x20xf32>, vector<64x20xf32> -> vector<64x20xf32>
    %312 = arith.addf %307, %311 : vector<64x20xf32>
    %c6_202 = arith.constant 6 : index
    %c0_203 = arith.constant 0 : index
    %c0_204 = arith.constant 0 : index
    %313 = vector.load %arg22[%c6_202, %c0_203, %c0_204] : memref<7x64x128xf32, #tpu.memory_space<vmem>>, vector<1x64x128xf32>
    %314 = vector.shape_cast %313 : vector<1x64x128xf32> to vector<64x128xf32>
    %315 = vector.extract_strided_slice %283 {offsets = [0, 6], sizes = [128, 20], strides = [1, 1]} : vector<128x26xf32> to vector<128x20xf32>
    %cst_205 = arith.constant dense<0.000000e+00> : vector<64x20xf32>
    %316 = tpu.matmul %314, %315, %cst_205 {dimension_numbers = #tpu.dot_dimension_numbers<[1], [0], [0], [1], [0, 0, 1, 1], [], []>} : vector<64x128xf32>, vector<128x20xf32>, vector<64x20xf32> -> vector<64x20xf32>
    %317 = arith.addf %312, %316 : vector<64x20xf32>
    %c0_206 = arith.constant 0 : index
    %c0_207 = arith.constant 0 : index
    %318 = vector.load %arg25[%c0_206, %c0_207] : memref<20x14xf32, #tpu.memory_space<vmem>>, vector<20x14xf32>
    %cst_208 = arith.constant dense<0.000000e+00> : vector<64x14xf32>
    %319 = tpu.matmul %317, %318, %cst_208 {dimension_numbers = #tpu.dot_dimension_numbers<[1], [0], [0], [1], [0, 0, 1, 1], [], []>} : vector<64x20xf32>, vector<20x14xf32>, vector<64x14xf32> -> vector<64x14xf32>
    %320 = vector.broadcast %281 : vector<64x1xf32> to vector<64x14xf32>
    %321 = arith.addf %319, %320 : vector<64x14xf32>
    %cst_209 = arith.constant 0.000000e+00 : f32
    %322 = vector.broadcast %cst_209 : f32 to vector<64x14xf32>
    %323 = arith.cmpf oge, %321, %322 : vector<64x14xf32>
    %cst_210 = arith.constant 2.000000e-01 : f32
    %324 = vector.broadcast %cst_210 : f32 to vector<64x14xf32>
    %325 = arith.mulf %324, %321 : vector<64x14xf32>
    %326 = arith.select %323, %321, %325 : vector<64x14xi1>, vector<64x14xf32>
    %c0_211 = arith.constant 0 : index
    %c0_212 = arith.constant 0 : index
    %327 = vector.load %arg27[%c0_211, %c0_212] : memref<32x1xf32, #tpu.memory_space<vmem>>, vector<32x1xf32>
    %c0_213 = arith.constant 0 : index
    %c0_214 = arith.constant 0 : index
    %328 = vector.load %arg28[%c0_213, %c0_214] : memref<32x1xf32, #tpu.memory_space<vmem>>, vector<32x1xf32>
    %c0_215 = arith.constant 0 : index
    %c0_216 = arith.constant 0 : index
    %329 = vector.load %arg29[%c0_215, %c0_216] : memref<32x1xf32, #tpu.memory_space<vmem>>, vector<32x1xf32>
    %c0_217 = arith.constant 0 : index
    %c0_218 = arith.constant 0 : index
    %330 = vector.load %arg30[%c0_217, %c0_218] : memref<14x54xf32, #tpu.memory_space<vmem>>, vector<14x54xf32>
    %cst_219 = arith.constant dense<0.000000e+00> : vector<64x54xf32>
    %331 = tpu.matmul %326, %330, %cst_219 {dimension_numbers = #tpu.dot_dimension_numbers<[1], [0], [0], [1], [0, 0, 1, 1], [], []>} : vector<64x14xf32>, vector<14x54xf32>, vector<64x54xf32> -> vector<64x54xf32>
    %c0_220 = arith.constant 0 : index
    %c0_221 = arith.constant 0 : index
    %c0_222 = arith.constant 0 : index
    %332 = vector.load %arg26[%c0_220, %c0_221, %c0_222] : memref<8x32x64xf32, #tpu.memory_space<vmem>>, vector<1x32x64xf32>
    %333 = vector.shape_cast %332 : vector<1x32x64xf32> to vector<32x64xf32>
    %334 = vector.extract_strided_slice %331 {offsets = [0, 0], sizes = [64, 47], strides = [1, 1]} : vector<64x54xf32> to vector<64x47xf32>
    %cst_223 = arith.constant dense<0.000000e+00> : vector<32x47xf32>
    %335 = tpu.matmul %333, %334, %cst_223 {dimension_numbers = #tpu.dot_dimension_numbers<[1], [0], [0], [1], [0, 0, 1, 1], [], []>} : vector<32x64xf32>, vector<64x47xf32>, vector<32x47xf32> -> vector<32x47xf32>
    %c1_224 = arith.constant 1 : index
    %c0_225 = arith.constant 0 : index
    %c0_226 = arith.constant 0 : index
    %336 = vector.load %arg26[%c1_224, %c0_225, %c0_226] : memref<8x32x64xf32, #tpu.memory_space<vmem>>, vector<1x32x64xf32>
    %337 = vector.shape_cast %336 : vector<1x32x64xf32> to vector<32x64xf32>
    %338 = vector.extract_strided_slice %331 {offsets = [0, 1], sizes = [64, 47], strides = [1, 1]} : vector<64x54xf32> to vector<64x47xf32>
    %cst_227 = arith.constant dense<0.000000e+00> : vector<32x47xf32>
    %339 = tpu.matmul %337, %338, %cst_227 {dimension_numbers = #tpu.dot_dimension_numbers<[1], [0], [0], [1], [0, 0, 1, 1], [], []>} : vector<32x64xf32>, vector<64x47xf32>, vector<32x47xf32> -> vector<32x47xf32>
    %340 = arith.addf %335, %339 : vector<32x47xf32>
    %c2_228 = arith.constant 2 : index
    %c0_229 = arith.constant 0 : index
    %c0_230 = arith.constant 0 : index
    %341 = vector.load %arg26[%c2_228, %c0_229, %c0_230] : memref<8x32x64xf32, #tpu.memory_space<vmem>>, vector<1x32x64xf32>
    %342 = vector.shape_cast %341 : vector<1x32x64xf32> to vector<32x64xf32>
    %343 = vector.extract_strided_slice %331 {offsets = [0, 2], sizes = [64, 47], strides = [1, 1]} : vector<64x54xf32> to vector<64x47xf32>
    %cst_231 = arith.constant dense<0.000000e+00> : vector<32x47xf32>
    %344 = tpu.matmul %342, %343, %cst_231 {dimension_numbers = #tpu.dot_dimension_numbers<[1], [0], [0], [1], [0, 0, 1, 1], [], []>} : vector<32x64xf32>, vector<64x47xf32>, vector<32x47xf32> -> vector<32x47xf32>
    %345 = arith.addf %340, %344 : vector<32x47xf32>
    %c3_232 = arith.constant 3 : index
    %c0_233 = arith.constant 0 : index
    %c0_234 = arith.constant 0 : index
    %346 = vector.load %arg26[%c3_232, %c0_233, %c0_234] : memref<8x32x64xf32, #tpu.memory_space<vmem>>, vector<1x32x64xf32>
    %347 = vector.shape_cast %346 : vector<1x32x64xf32> to vector<32x64xf32>
    %348 = vector.extract_strided_slice %331 {offsets = [0, 3], sizes = [64, 47], strides = [1, 1]} : vector<64x54xf32> to vector<64x47xf32>
    %cst_235 = arith.constant dense<0.000000e+00> : vector<32x47xf32>
    %349 = tpu.matmul %347, %348, %cst_235 {dimension_numbers = #tpu.dot_dimension_numbers<[1], [0], [0], [1], [0, 0, 1, 1], [], []>} : vector<32x64xf32>, vector<64x47xf32>, vector<32x47xf32> -> vector<32x47xf32>
    %350 = arith.addf %345, %349 : vector<32x47xf32>
    %c4_236 = arith.constant 4 : index
    %c0_237 = arith.constant 0 : index
    %c0_238 = arith.constant 0 : index
    %351 = vector.load %arg26[%c4_236, %c0_237, %c0_238] : memref<8x32x64xf32, #tpu.memory_space<vmem>>, vector<1x32x64xf32>
    %352 = vector.shape_cast %351 : vector<1x32x64xf32> to vector<32x64xf32>
    %353 = vector.extract_strided_slice %331 {offsets = [0, 4], sizes = [64, 47], strides = [1, 1]} : vector<64x54xf32> to vector<64x47xf32>
    %cst_239 = arith.constant dense<0.000000e+00> : vector<32x47xf32>
    %354 = tpu.matmul %352, %353, %cst_239 {dimension_numbers = #tpu.dot_dimension_numbers<[1], [0], [0], [1], [0, 0, 1, 1], [], []>} : vector<32x64xf32>, vector<64x47xf32>, vector<32x47xf32> -> vector<32x47xf32>
    %355 = arith.addf %350, %354 : vector<32x47xf32>
    %c5_240 = arith.constant 5 : index
    %c0_241 = arith.constant 0 : index
    %c0_242 = arith.constant 0 : index
    %356 = vector.load %arg26[%c5_240, %c0_241, %c0_242] : memref<8x32x64xf32, #tpu.memory_space<vmem>>, vector<1x32x64xf32>
    %357 = vector.shape_cast %356 : vector<1x32x64xf32> to vector<32x64xf32>
    %358 = vector.extract_strided_slice %331 {offsets = [0, 5], sizes = [64, 47], strides = [1, 1]} : vector<64x54xf32> to vector<64x47xf32>
    %cst_243 = arith.constant dense<0.000000e+00> : vector<32x47xf32>
    %359 = tpu.matmul %357, %358, %cst_243 {dimension_numbers = #tpu.dot_dimension_numbers<[1], [0], [0], [1], [0, 0, 1, 1], [], []>} : vector<32x64xf32>, vector<64x47xf32>, vector<32x47xf32> -> vector<32x47xf32>
    %360 = arith.addf %355, %359 : vector<32x47xf32>
    %c6_244 = arith.constant 6 : index
    %c0_245 = arith.constant 0 : index
    %c0_246 = arith.constant 0 : index
    %361 = vector.load %arg26[%c6_244, %c0_245, %c0_246] : memref<8x32x64xf32, #tpu.memory_space<vmem>>, vector<1x32x64xf32>
    %362 = vector.shape_cast %361 : vector<1x32x64xf32> to vector<32x64xf32>
    %363 = vector.extract_strided_slice %331 {offsets = [0, 6], sizes = [64, 47], strides = [1, 1]} : vector<64x54xf32> to vector<64x47xf32>
    %cst_247 = arith.constant dense<0.000000e+00> : vector<32x47xf32>
    %364 = tpu.matmul %362, %363, %cst_247 {dimension_numbers = #tpu.dot_dimension_numbers<[1], [0], [0], [1], [0, 0, 1, 1], [], []>} : vector<32x64xf32>, vector<64x47xf32>, vector<32x47xf32> -> vector<32x47xf32>
    %365 = arith.addf %360, %364 : vector<32x47xf32>
    %c7_248 = arith.constant 7 : index
    %c0_249 = arith.constant 0 : index
    %c0_250 = arith.constant 0 : index
    %366 = vector.load %arg26[%c7_248, %c0_249, %c0_250] : memref<8x32x64xf32, #tpu.memory_space<vmem>>, vector<1x32x64xf32>
    %367 = vector.shape_cast %366 : vector<1x32x64xf32> to vector<32x64xf32>
    %368 = vector.extract_strided_slice %331 {offsets = [0, 7], sizes = [64, 47], strides = [1, 1]} : vector<64x54xf32> to vector<64x47xf32>
    %cst_251 = arith.constant dense<0.000000e+00> : vector<32x47xf32>
    %369 = tpu.matmul %367, %368, %cst_251 {dimension_numbers = #tpu.dot_dimension_numbers<[1], [0], [0], [1], [0, 0, 1, 1], [], []>} : vector<32x64xf32>, vector<64x47xf32>, vector<32x47xf32> -> vector<32x47xf32>
    %370 = arith.addf %365, %369 : vector<32x47xf32>
    %c0_252 = arith.constant 0 : index
    %c0_253 = arith.constant 0 : index
    %371 = vector.load %arg31[%c0_252, %c0_253] : memref<47x40xf32, #tpu.memory_space<vmem>>, vector<47x40xf32>
    %cst_254 = arith.constant dense<0.000000e+00> : vector<32x40xf32>
    %372 = tpu.matmul %370, %371, %cst_254 {dimension_numbers = #tpu.dot_dimension_numbers<[1], [0], [0], [1], [0, 0, 1, 1], [], []>} : vector<32x47xf32>, vector<47x40xf32>, vector<32x40xf32> -> vector<32x40xf32>
    %373 = vector.broadcast %327 : vector<32x1xf32> to vector<32x40xf32>
    %374 = arith.addf %372, %373 : vector<32x40xf32>
    %cst_255 = arith.constant dense<0.000000e+00> : vector<32xf32>
    %375 = vector.multi_reduction <add>, %374, %cst_255 [1] : vector<32x40xf32> to vector<32xf32>
    %376 = vector.shape_cast %375 : vector<32xf32> to vector<32x1xf32>
    %cst_256 = arith.constant 2.500000e-02 : f32
    %377 = vector.broadcast %cst_256 : f32 to vector<32x1xf32>
    %378 = arith.mulf %376, %377 : vector<32x1xf32>
    %379 = vector.broadcast %378 : vector<32x1xf32> to vector<32x40xf32>
    %380 = arith.subf %374, %379 : vector<32x40xf32>
    %381 = arith.mulf %380, %380 : vector<32x40xf32>
    %cst_257 = arith.constant dense<0.000000e+00> : vector<32xf32>
    %382 = vector.multi_reduction <add>, %381, %cst_257 [1] : vector<32x40xf32> to vector<32xf32>
    %383 = vector.shape_cast %382 : vector<32xf32> to vector<32x1xf32>
    %cst_258 = arith.constant 2.500000e-02 : f32
    %384 = vector.broadcast %cst_258 : f32 to vector<32x1xf32>
    %385 = arith.mulf %383, %384 : vector<32x1xf32>
    %cst_259 = arith.constant 9.99999974E-6 : f32
    %386 = vector.broadcast %cst_259 : f32 to vector<32x1xf32>
    %387 = arith.addf %385, %386 : vector<32x1xf32>
    %388 = math.rsqrt %387 : vector<32x1xf32>
    %389 = arith.mulf %328, %388 : vector<32x1xf32>
    %390 = vector.broadcast %389 : vector<32x1xf32> to vector<32x40xf32>
    %391 = arith.mulf %380, %390 : vector<32x40xf32>
    %392 = vector.broadcast %329 : vector<32x1xf32> to vector<32x40xf32>
    %393 = arith.addf %391, %392 : vector<32x40xf32>
    %cst_260 = arith.constant 0.000000e+00 : f32
    %394 = vector.broadcast %cst_260 : f32 to vector<32x40xf32>
    %395 = arith.cmpf oge, %393, %394 : vector<32x40xf32>
    %cst_261 = arith.constant 2.000000e-01 : f32
    %396 = vector.broadcast %cst_261 : f32 to vector<32x40xf32>
    %397 = arith.mulf %396, %393 : vector<32x40xf32>
    %398 = arith.select %395, %393, %397 : vector<32x40xi1>, vector<32x40xf32>
    %c0_262 = arith.constant 0 : index
    %c0_263 = arith.constant 0 : index
    %399 = vector.load %arg33[%c0_262, %c0_263] : memref<16x1xf32, #tpu.memory_space<vmem>>, vector<16x1xf32>
    %c0_264 = arith.constant 0 : index
    %c0_265 = arith.constant 0 : index
    %400 = vector.load %arg34[%c0_264, %c0_265] : memref<16x1xf32, #tpu.memory_space<vmem>>, vector<16x1xf32>
    %c0_266 = arith.constant 0 : index
    %c0_267 = arith.constant 0 : index
    %401 = vector.load %arg35[%c0_266, %c0_267] : memref<16x1xf32, #tpu.memory_space<vmem>>, vector<16x1xf32>
    %c0_268 = arith.constant 0 : index
    %c0_269 = arith.constant 0 : index
    %402 = vector.load %arg36[%c0_268, %c0_269] : memref<40x140xf32, #tpu.memory_space<vmem>>, vector<40x140xf32>
    %cst_270 = arith.constant dense<0.000000e+00> : vector<32x140xf32>
    %403 = tpu.matmul %398, %402, %cst_270 {dimension_numbers = #tpu.dot_dimension_numbers<[1], [0], [0], [1], [0, 0, 1, 1], [], []>} : vector<32x40xf32>, vector<40x140xf32>, vector<32x140xf32> -> vector<32x140xf32>
    %c0_271 = arith.constant 0 : index
    %c0_272 = arith.constant 0 : index
    %c0_273 = arith.constant 0 : index
    %404 = vector.load %arg32[%c0_271, %c0_272, %c0_273] : memref<7x16x32xf32, #tpu.memory_space<vmem>>, vector<1x16x32xf32>
    %405 = vector.shape_cast %404 : vector<1x16x32xf32> to vector<16x32xf32>
    %406 = vector.extract_strided_slice %403 {offsets = [0, 0], sizes = [32, 134], strides = [1, 1]} : vector<32x140xf32> to vector<32x134xf32>
    %cst_274 = arith.constant dense<0.000000e+00> : vector<16x134xf32>
    %407 = tpu.matmul %405, %406, %cst_274 {dimension_numbers = #tpu.dot_dimension_numbers<[1], [0], [0], [1], [0, 0, 1, 1], [], []>} : vector<16x32xf32>, vector<32x134xf32>, vector<16x134xf32> -> vector<16x134xf32>
    %c1_275 = arith.constant 1 : index
    %c0_276 = arith.constant 0 : index
    %c0_277 = arith.constant 0 : index
    %408 = vector.load %arg32[%c1_275, %c0_276, %c0_277] : memref<7x16x32xf32, #tpu.memory_space<vmem>>, vector<1x16x32xf32>
    %409 = vector.shape_cast %408 : vector<1x16x32xf32> to vector<16x32xf32>
    %410 = vector.extract_strided_slice %403 {offsets = [0, 1], sizes = [32, 134], strides = [1, 1]} : vector<32x140xf32> to vector<32x134xf32>
    %cst_278 = arith.constant dense<0.000000e+00> : vector<16x134xf32>
    %411 = tpu.matmul %409, %410, %cst_278 {dimension_numbers = #tpu.dot_dimension_numbers<[1], [0], [0], [1], [0, 0, 1, 1], [], []>} : vector<16x32xf32>, vector<32x134xf32>, vector<16x134xf32> -> vector<16x134xf32>
    %412 = arith.addf %407, %411 : vector<16x134xf32>
    %c2_279 = arith.constant 2 : index
    %c0_280 = arith.constant 0 : index
    %c0_281 = arith.constant 0 : index
    %413 = vector.load %arg32[%c2_279, %c0_280, %c0_281] : memref<7x16x32xf32, #tpu.memory_space<vmem>>, vector<1x16x32xf32>
    %414 = vector.shape_cast %413 : vector<1x16x32xf32> to vector<16x32xf32>
    %415 = vector.extract_strided_slice %403 {offsets = [0, 2], sizes = [32, 134], strides = [1, 1]} : vector<32x140xf32> to vector<32x134xf32>
    %cst_282 = arith.constant dense<0.000000e+00> : vector<16x134xf32>
    %416 = tpu.matmul %414, %415, %cst_282 {dimension_numbers = #tpu.dot_dimension_numbers<[1], [0], [0], [1], [0, 0, 1, 1], [], []>} : vector<16x32xf32>, vector<32x134xf32>, vector<16x134xf32> -> vector<16x134xf32>
    %417 = arith.addf %412, %416 : vector<16x134xf32>
    %c3_283 = arith.constant 3 : index
    %c0_284 = arith.constant 0 : index
    %c0_285 = arith.constant 0 : index
    %418 = vector.load %arg32[%c3_283, %c0_284, %c0_285] : memref<7x16x32xf32, #tpu.memory_space<vmem>>, vector<1x16x32xf32>
    %419 = vector.shape_cast %418 : vector<1x16x32xf32> to vector<16x32xf32>
    %420 = vector.extract_strided_slice %403 {offsets = [0, 3], sizes = [32, 134], strides = [1, 1]} : vector<32x140xf32> to vector<32x134xf32>
    %cst_286 = arith.constant dense<0.000000e+00> : vector<16x134xf32>
    %421 = tpu.matmul %419, %420, %cst_286 {dimension_numbers = #tpu.dot_dimension_numbers<[1], [0], [0], [1], [0, 0, 1, 1], [], []>} : vector<16x32xf32>, vector<32x134xf32>, vector<16x134xf32> -> vector<16x134xf32>
    %422 = arith.addf %417, %421 : vector<16x134xf32>
    %c4_287 = arith.constant 4 : index
    %c0_288 = arith.constant 0 : index
    %c0_289 = arith.constant 0 : index
    %423 = vector.load %arg32[%c4_287, %c0_288, %c0_289] : memref<7x16x32xf32, #tpu.memory_space<vmem>>, vector<1x16x32xf32>
    %424 = vector.shape_cast %423 : vector<1x16x32xf32> to vector<16x32xf32>
    %425 = vector.extract_strided_slice %403 {offsets = [0, 4], sizes = [32, 134], strides = [1, 1]} : vector<32x140xf32> to vector<32x134xf32>
    %cst_290 = arith.constant dense<0.000000e+00> : vector<16x134xf32>
    %426 = tpu.matmul %424, %425, %cst_290 {dimension_numbers = #tpu.dot_dimension_numbers<[1], [0], [0], [1], [0, 0, 1, 1], [], []>} : vector<16x32xf32>, vector<32x134xf32>, vector<16x134xf32> -> vector<16x134xf32>
    %427 = arith.addf %422, %426 : vector<16x134xf32>
    %c5_291 = arith.constant 5 : index
    %c0_292 = arith.constant 0 : index
    %c0_293 = arith.constant 0 : index
    %428 = vector.load %arg32[%c5_291, %c0_292, %c0_293] : memref<7x16x32xf32, #tpu.memory_space<vmem>>, vector<1x16x32xf32>
    %429 = vector.shape_cast %428 : vector<1x16x32xf32> to vector<16x32xf32>
    %430 = vector.extract_strided_slice %403 {offsets = [0, 5], sizes = [32, 134], strides = [1, 1]} : vector<32x140xf32> to vector<32x134xf32>
    %cst_294 = arith.constant dense<0.000000e+00> : vector<16x134xf32>
    %431 = tpu.matmul %429, %430, %cst_294 {dimension_numbers = #tpu.dot_dimension_numbers<[1], [0], [0], [1], [0, 0, 1, 1], [], []>} : vector<16x32xf32>, vector<32x134xf32>, vector<16x134xf32> -> vector<16x134xf32>
    %432 = arith.addf %427, %431 : vector<16x134xf32>
    %c6_295 = arith.constant 6 : index
    %c0_296 = arith.constant 0 : index
    %c0_297 = arith.constant 0 : index
    %433 = vector.load %arg32[%c6_295, %c0_296, %c0_297] : memref<7x16x32xf32, #tpu.memory_space<vmem>>, vector<1x16x32xf32>
    %434 = vector.shape_cast %433 : vector<1x16x32xf32> to vector<16x32xf32>
    %435 = vector.extract_strided_slice %403 {offsets = [0, 6], sizes = [32, 134], strides = [1, 1]} : vector<32x140xf32> to vector<32x134xf32>
    %cst_298 = arith.constant dense<0.000000e+00> : vector<16x134xf32>
    %436 = tpu.matmul %434, %435, %cst_298 {dimension_numbers = #tpu.dot_dimension_numbers<[1], [0], [0], [1], [0, 0, 1, 1], [], []>} : vector<16x32xf32>, vector<32x134xf32>, vector<16x134xf32> -> vector<16x134xf32>
    %437 = arith.addf %432, %436 : vector<16x134xf32>
    %c0_299 = arith.constant 0 : index
    %c0_300 = arith.constant 0 : index
    %438 = vector.load %arg37[%c0_299, %c0_300] : memref<134x128xf32, #tpu.memory_space<vmem>>, vector<134x128xf32>
    %cst_301 = arith.constant dense<0.000000e+00> : vector<16x128xf32>
    %439 = tpu.matmul %437, %438, %cst_301 {dimension_numbers = #tpu.dot_dimension_numbers<[1], [0], [0], [1], [0, 0, 1, 1], [], []>} : vector<16x134xf32>, vector<134x128xf32>, vector<16x128xf32> -> vector<16x128xf32>
    %440 = vector.broadcast %399 : vector<16x1xf32> to vector<16x128xf32>
    %441 = arith.addf %439, %440 : vector<16x128xf32>
    %cst_302 = arith.constant dense<0.000000e+00> : vector<16xf32>
    %442 = vector.multi_reduction <add>, %441, %cst_302 [1] : vector<16x128xf32> to vector<16xf32>
    %443 = vector.shape_cast %442 : vector<16xf32> to vector<16x1xf32>
    %cst_303 = arith.constant 7.812500e-03 : f32
    %444 = vector.broadcast %cst_303 : f32 to vector<16x1xf32>
    %445 = arith.mulf %443, %444 : vector<16x1xf32>
    %446 = vector.broadcast %445 : vector<16x1xf32> to vector<16x128xf32>
    %447 = arith.subf %441, %446 : vector<16x128xf32>
    %448 = arith.mulf %447, %447 : vector<16x128xf32>
    %cst_304 = arith.constant dense<0.000000e+00> : vector<16xf32>
    %449 = vector.multi_reduction <add>, %448, %cst_304 [1] : vector<16x128xf32> to vector<16xf32>
    %450 = vector.shape_cast %449 : vector<16xf32> to vector<16x1xf32>
    %cst_305 = arith.constant 7.812500e-03 : f32
    %451 = vector.broadcast %cst_305 : f32 to vector<16x1xf32>
    %452 = arith.mulf %450, %451 : vector<16x1xf32>
    %cst_306 = arith.constant 9.99999974E-6 : f32
    %453 = vector.broadcast %cst_306 : f32 to vector<16x1xf32>
    %454 = arith.addf %452, %453 : vector<16x1xf32>
    %455 = math.rsqrt %454 : vector<16x1xf32>
    %456 = arith.mulf %400, %455 : vector<16x1xf32>
    %457 = vector.broadcast %456 : vector<16x1xf32> to vector<16x128xf32>
    %458 = arith.mulf %447, %457 : vector<16x128xf32>
    %459 = vector.broadcast %401 : vector<16x1xf32> to vector<16x128xf32>
    %460 = arith.addf %458, %459 : vector<16x128xf32>
    %cst_307 = arith.constant 0.000000e+00 : f32
    %461 = vector.broadcast %cst_307 : f32 to vector<16x128xf32>
    %462 = arith.cmpf oge, %460, %461 : vector<16x128xf32>
    %cst_308 = arith.constant 2.000000e-01 : f32
    %463 = vector.broadcast %cst_308 : f32 to vector<16x128xf32>
    %464 = arith.mulf %463, %460 : vector<16x128xf32>
    %465 = arith.select %462, %460, %464 : vector<16x128xi1>, vector<16x128xf32>
    %c0_309 = arith.constant 0 : index
    %c0_310 = arith.constant 0 : index
    %466 = vector.load %arg39[%c0_309, %c0_310] : memref<8x1xf32, #tpu.memory_space<vmem>>, vector<8x1xf32>
    %c0_311 = arith.constant 0 : index
    %c0_312 = arith.constant 0 : index
    %467 = vector.load %arg40[%c0_311, %c0_312] : memref<8x1xf32, #tpu.memory_space<vmem>>, vector<8x1xf32>
    %c0_313 = arith.constant 0 : index
    %c0_314 = arith.constant 0 : index
    %468 = vector.load %arg41[%c0_313, %c0_314] : memref<8x1xf32, #tpu.memory_space<vmem>>, vector<8x1xf32>
    %c0_315 = arith.constant 0 : index
    %c0_316 = arith.constant 0 : index
    %469 = vector.load %arg42[%c0_315, %c0_316] : memref<128x274xf32, #tpu.memory_space<vmem>>, vector<128x274xf32>
    %cst_317 = arith.constant dense<0.000000e+00> : vector<16x274xf32>
    %470 = tpu.matmul %465, %469, %cst_317 {dimension_numbers = #tpu.dot_dimension_numbers<[1], [0], [0], [1], [0, 0, 1, 1], [], []>} : vector<16x128xf32>, vector<128x274xf32>, vector<16x274xf32> -> vector<16x274xf32>
    %c0_318 = arith.constant 0 : index
    %c0_319 = arith.constant 0 : index
    %c0_320 = arith.constant 0 : index
    %471 = vector.load %arg38[%c0_318, %c0_319, %c0_320] : memref<6x8x16xf32, #tpu.memory_space<vmem>>, vector<1x8x16xf32>
    %472 = vector.shape_cast %471 : vector<1x8x16xf32> to vector<8x16xf32>
    %473 = vector.extract_strided_slice %470 {offsets = [0, 0], sizes = [16, 269], strides = [1, 1]} : vector<16x274xf32> to vector<16x269xf32>
    %cst_321 = arith.constant dense<0.000000e+00> : vector<8x269xf32>
    %474 = tpu.matmul %472, %473, %cst_321 {dimension_numbers = #tpu.dot_dimension_numbers<[1], [0], [0], [1], [0, 0, 1, 1], [], []>} : vector<8x16xf32>, vector<16x269xf32>, vector<8x269xf32> -> vector<8x269xf32>
    %c1_322 = arith.constant 1 : index
    %c0_323 = arith.constant 0 : index
    %c0_324 = arith.constant 0 : index
    %475 = vector.load %arg38[%c1_322, %c0_323, %c0_324] : memref<6x8x16xf32, #tpu.memory_space<vmem>>, vector<1x8x16xf32>
    %476 = vector.shape_cast %475 : vector<1x8x16xf32> to vector<8x16xf32>
    %477 = vector.extract_strided_slice %470 {offsets = [0, 1], sizes = [16, 269], strides = [1, 1]} : vector<16x274xf32> to vector<16x269xf32>
    %cst_325 = arith.constant dense<0.000000e+00> : vector<8x269xf32>
    %478 = tpu.matmul %476, %477, %cst_325 {dimension_numbers = #tpu.dot_dimension_numbers<[1], [0], [0], [1], [0, 0, 1, 1], [], []>} : vector<8x16xf32>, vector<16x269xf32>, vector<8x269xf32> -> vector<8x269xf32>
    %479 = arith.addf %474, %478 : vector<8x269xf32>
    %c2_326 = arith.constant 2 : index
    %c0_327 = arith.constant 0 : index
    %c0_328 = arith.constant 0 : index
    %480 = vector.load %arg38[%c2_326, %c0_327, %c0_328] : memref<6x8x16xf32, #tpu.memory_space<vmem>>, vector<1x8x16xf32>
    %481 = vector.shape_cast %480 : vector<1x8x16xf32> to vector<8x16xf32>
    %482 = vector.extract_strided_slice %470 {offsets = [0, 2], sizes = [16, 269], strides = [1, 1]} : vector<16x274xf32> to vector<16x269xf32>
    %cst_329 = arith.constant dense<0.000000e+00> : vector<8x269xf32>
    %483 = tpu.matmul %481, %482, %cst_329 {dimension_numbers = #tpu.dot_dimension_numbers<[1], [0], [0], [1], [0, 0, 1, 1], [], []>} : vector<8x16xf32>, vector<16x269xf32>, vector<8x269xf32> -> vector<8x269xf32>
    %484 = arith.addf %479, %483 : vector<8x269xf32>
    %c3_330 = arith.constant 3 : index
    %c0_331 = arith.constant 0 : index
    %c0_332 = arith.constant 0 : index
    %485 = vector.load %arg38[%c3_330, %c0_331, %c0_332] : memref<6x8x16xf32, #tpu.memory_space<vmem>>, vector<1x8x16xf32>
    %486 = vector.shape_cast %485 : vector<1x8x16xf32> to vector<8x16xf32>
    %487 = vector.extract_strided_slice %470 {offsets = [0, 3], sizes = [16, 269], strides = [1, 1]} : vector<16x274xf32> to vector<16x269xf32>
    %cst_333 = arith.constant dense<0.000000e+00> : vector<8x269xf32>
    %488 = tpu.matmul %486, %487, %cst_333 {dimension_numbers = #tpu.dot_dimension_numbers<[1], [0], [0], [1], [0, 0, 1, 1], [], []>} : vector<8x16xf32>, vector<16x269xf32>, vector<8x269xf32> -> vector<8x269xf32>
    %489 = arith.addf %484, %488 : vector<8x269xf32>
    %c4_334 = arith.constant 4 : index
    %c0_335 = arith.constant 0 : index
    %c0_336 = arith.constant 0 : index
    %490 = vector.load %arg38[%c4_334, %c0_335, %c0_336] : memref<6x8x16xf32, #tpu.memory_space<vmem>>, vector<1x8x16xf32>
    %491 = vector.shape_cast %490 : vector<1x8x16xf32> to vector<8x16xf32>
    %492 = vector.extract_strided_slice %470 {offsets = [0, 4], sizes = [16, 269], strides = [1, 1]} : vector<16x274xf32> to vector<16x269xf32>
    %cst_337 = arith.constant dense<0.000000e+00> : vector<8x269xf32>
    %493 = tpu.matmul %491, %492, %cst_337 {dimension_numbers = #tpu.dot_dimension_numbers<[1], [0], [0], [1], [0, 0, 1, 1], [], []>} : vector<8x16xf32>, vector<16x269xf32>, vector<8x269xf32> -> vector<8x269xf32>
    %494 = arith.addf %489, %493 : vector<8x269xf32>
    %c5_338 = arith.constant 5 : index
    %c0_339 = arith.constant 0 : index
    %c0_340 = arith.constant 0 : index
    %495 = vector.load %arg38[%c5_338, %c0_339, %c0_340] : memref<6x8x16xf32, #tpu.memory_space<vmem>>, vector<1x8x16xf32>
    %496 = vector.shape_cast %495 : vector<1x8x16xf32> to vector<8x16xf32>
    %497 = vector.extract_strided_slice %470 {offsets = [0, 5], sizes = [16, 269], strides = [1, 1]} : vector<16x274xf32> to vector<16x269xf32>
    %cst_341 = arith.constant dense<0.000000e+00> : vector<8x269xf32>
    %498 = tpu.matmul %496, %497, %cst_341 {dimension_numbers = #tpu.dot_dimension_numbers<[1], [0], [0], [1], [0, 0, 1, 1], [], []>} : vector<8x16xf32>, vector<16x269xf32>, vector<8x269xf32> -> vector<8x269xf32>
    %499 = arith.addf %494, %498 : vector<8x269xf32>
    %c0_342 = arith.constant 0 : index
    %c0_343 = arith.constant 0 : index
    %500 = vector.load %arg43[%c0_342, %c0_343] : memref<269x264xf32, #tpu.memory_space<vmem>>, vector<269x264xf32>
    %cst_344 = arith.constant dense<0.000000e+00> : vector<8x264xf32>
    %501 = tpu.matmul %499, %500, %cst_344 {dimension_numbers = #tpu.dot_dimension_numbers<[1], [0], [0], [1], [0, 0, 1, 1], [], []>} : vector<8x269xf32>, vector<269x264xf32>, vector<8x264xf32> -> vector<8x264xf32>
    %502 = vector.broadcast %466 : vector<8x1xf32> to vector<8x264xf32>
    %503 = arith.addf %501, %502 : vector<8x264xf32>
    %cst_345 = arith.constant dense<0.000000e+00> : vector<8xf32>
    %504 = vector.multi_reduction <add>, %503, %cst_345 [1] : vector<8x264xf32> to vector<8xf32>
    %505 = vector.shape_cast %504 : vector<8xf32> to vector<8x1xf32>
    %cst_346 = arith.constant 0.0037878789 : f32
    %506 = vector.broadcast %cst_346 : f32 to vector<8x1xf32>
    %507 = arith.mulf %505, %506 : vector<8x1xf32>
    %508 = vector.broadcast %507 : vector<8x1xf32> to vector<8x264xf32>
    %509 = arith.subf %503, %508 : vector<8x264xf32>
    %510 = arith.mulf %509, %509 : vector<8x264xf32>
    %cst_347 = arith.constant dense<0.000000e+00> : vector<8xf32>
    %511 = vector.multi_reduction <add>, %510, %cst_347 [1] : vector<8x264xf32> to vector<8xf32>
    %512 = vector.shape_cast %511 : vector<8xf32> to vector<8x1xf32>
    %cst_348 = arith.constant 0.0037878789 : f32
    %513 = vector.broadcast %cst_348 : f32 to vector<8x1xf32>
    %514 = arith.mulf %512, %513 : vector<8x1xf32>
    %cst_349 = arith.constant 9.99999974E-6 : f32
    %515 = vector.broadcast %cst_349 : f32 to vector<8x1xf32>
    %516 = arith.addf %514, %515 : vector<8x1xf32>
    %517 = math.rsqrt %516 : vector<8x1xf32>
    %518 = arith.mulf %467, %517 : vector<8x1xf32>
    %519 = vector.broadcast %518 : vector<8x1xf32> to vector<8x264xf32>
    %520 = arith.mulf %509, %519 : vector<8x264xf32>
    %521 = vector.broadcast %468 : vector<8x1xf32> to vector<8x264xf32>
    %522 = arith.addf %520, %521 : vector<8x264xf32>
    %cst_350 = arith.constant 0.000000e+00 : f32
    %523 = vector.broadcast %cst_350 : f32 to vector<8x264xf32>
    %524 = arith.cmpf oge, %522, %523 : vector<8x264xf32>
    %cst_351 = arith.constant 2.000000e-01 : f32
    %525 = vector.broadcast %cst_351 : f32 to vector<8x264xf32>
    %526 = arith.mulf %525, %522 : vector<8x264xf32>
    %527 = arith.select %524, %522, %526 : vector<8x264xi1>, vector<8x264xf32>
    %c0_352 = arith.constant 0 : index
    %c0_353 = arith.constant 0 : index
    %528 = vector.load %arg45[%c0_352, %c0_353] : memref<1x1xf32, #tpu.memory_space<vmem>>, vector<1x1xf32>
    %c0_354 = arith.constant 0 : index
    %c0_355 = arith.constant 0 : index
    %529 = vector.load %arg46[%c0_354, %c0_355] : memref<264x272xf32, #tpu.memory_space<vmem>>, vector<264x272xf32>
    %cst_356 = arith.constant dense<0.000000e+00> : vector<8x272xf32>
    %530 = tpu.matmul %527, %529, %cst_356 {dimension_numbers = #tpu.dot_dimension_numbers<[1], [0], [0], [1], [0, 0, 1, 1], [], []>} : vector<8x264xf32>, vector<264x272xf32>, vector<8x272xf32> -> vector<8x272xf32>
    %c0_357 = arith.constant 0 : index
    %c0_358 = arith.constant 0 : index
    %c0_359 = arith.constant 0 : index
    %531 = vector.load %arg44[%c0_357, %c0_358, %c0_359] : memref<3x1x8xf32, #tpu.memory_space<vmem>>, vector<1x1x8xf32>
    %532 = vector.shape_cast %531 : vector<1x1x8xf32> to vector<1x8xf32>
    %533 = vector.extract_strided_slice %530 {offsets = [0, 0], sizes = [8, 270], strides = [1, 1]} : vector<8x272xf32> to vector<8x270xf32>
    %cst_360 = arith.constant dense<0.000000e+00> : vector<1x270xf32>
    %534 = tpu.matmul %532, %533, %cst_360 {dimension_numbers = #tpu.dot_dimension_numbers<[1], [0], [0], [1], [0, 0, 1, 1], [], []>} : vector<1x8xf32>, vector<8x270xf32>, vector<1x270xf32> -> vector<1x270xf32>
    %c1_361 = arith.constant 1 : index
    %c0_362 = arith.constant 0 : index
    %c0_363 = arith.constant 0 : index
    %535 = vector.load %arg44[%c1_361, %c0_362, %c0_363] : memref<3x1x8xf32, #tpu.memory_space<vmem>>, vector<1x1x8xf32>
    %536 = vector.shape_cast %535 : vector<1x1x8xf32> to vector<1x8xf32>
    %537 = vector.extract_strided_slice %530 {offsets = [0, 1], sizes = [8, 270], strides = [1, 1]} : vector<8x272xf32> to vector<8x270xf32>
    %cst_364 = arith.constant dense<0.000000e+00> : vector<1x270xf32>
    %538 = tpu.matmul %536, %537, %cst_364 {dimension_numbers = #tpu.dot_dimension_numbers<[1], [0], [0], [1], [0, 0, 1, 1], [], []>} : vector<1x8xf32>, vector<8x270xf32>, vector<1x270xf32> -> vector<1x270xf32>
    %539 = arith.addf %534, %538 : vector<1x270xf32>
    %c2_365 = arith.constant 2 : index
    %c0_366 = arith.constant 0 : index
    %c0_367 = arith.constant 0 : index
    %540 = vector.load %arg44[%c2_365, %c0_366, %c0_367] : memref<3x1x8xf32, #tpu.memory_space<vmem>>, vector<1x1x8xf32>
    %541 = vector.shape_cast %540 : vector<1x1x8xf32> to vector<1x8xf32>
    %542 = vector.extract_strided_slice %530 {offsets = [0, 2], sizes = [8, 270], strides = [1, 1]} : vector<8x272xf32> to vector<8x270xf32>
    %cst_368 = arith.constant dense<0.000000e+00> : vector<1x270xf32>
    %543 = tpu.matmul %541, %542, %cst_368 {dimension_numbers = #tpu.dot_dimension_numbers<[1], [0], [0], [1], [0, 0, 1, 1], [], []>} : vector<1x8xf32>, vector<8x270xf32>, vector<1x270xf32> -> vector<1x270xf32>
    %544 = arith.addf %539, %543 : vector<1x270xf32>
    %c0_369 = arith.constant 0 : index
    %c0_370 = arith.constant 0 : index
    %545 = vector.load %arg47[%c0_369, %c0_370] : memref<270x268xf32, #tpu.memory_space<vmem>>, vector<270x268xf32>
    %cst_371 = arith.constant dense<0.000000e+00> : vector<1x268xf32>
    %546 = tpu.matmul %544, %545, %cst_371 {dimension_numbers = #tpu.dot_dimension_numbers<[1], [0], [0], [1], [0, 0, 1, 1], [], []>} : vector<1x270xf32>, vector<270x268xf32>, vector<1x268xf32> -> vector<1x268xf32>
    %547 = vector.broadcast %528 : vector<1x1xf32> to vector<1x268xf32>
    %548 = arith.addf %546, %547 : vector<1x268xf32>
    %cst_372 = arith.constant 0.000000e+00 : f32
    %549 = vector.broadcast %cst_372 : f32 to vector<1x268xf32>
    %550 = arith.subf %549, %548 : vector<1x268xf32>
    %551 = math.exp %550 : vector<1x268xf32>
    %cst_373 = arith.constant 1.000000e+00 : f32
    %552 = vector.broadcast %cst_373 : f32 to vector<1x268xf32>
    %553 = arith.addf %552, %551 : vector<1x268xf32>
    %cst_374 = arith.constant 1.000000e+00 : f32
    %554 = vector.broadcast %cst_374 : f32 to vector<1x268xf32>
    %555 = arith.divf %554, %553 : vector<1x268xf32>
    %c0_375 = arith.constant 0 : index
    %c0_376 = arith.constant 0 : index
    %556 = vector.load %arg48[%c0_375, %c0_376] : memref<1x268xf32, #tpu.memory_space<vmem>>, vector<1x268xf32>
    tpu.vector_store %arg48[%c0_375, %c0_376], %555 {strides = array<i32>} : memref<1x268xf32, #tpu.memory_space<vmem>>, vector<1x268xf32>,
    return
  }
}

</mosaic_0001>

<llo_original>
// kernel: autoencoder_forward.1
$region0: #{autoencoder_forward.1}
  #allocation0 [shape = 'u32[]', space=smem, size = 0x4, offset = 0x4, fixed_abs, tag = 'smem constant byte address 0x4 - core index']
  #allocation1 [shape = 'u32[144,128]{1,0:T(1,128)}', space=vmem, size = 0x12000, scoped, tag = 'internal scratch']
  #allocation2 [shape = 'f32[1,1]{1,0:T(1,128)S(1)}', space=vmem, size = 0x200, scoped, tag = 'scoped memory for autoencoder_forward.1']
  %s0 = inlined_call_operand.smem [shape: u32[49], index: -1, kind: input, shape index: {}]
  %s1 = sld [smem:[%s0]]
  %s2 = scalar_lea.smem %s0, 1
  %s3 = sld [smem:[%s2]]
  %s4 = scalar_lea.smem %s0, 2
  %s5 = sld [smem:[%s4]]
  %s6 = scalar_lea.smem %s0, 3
  %s7 = sld [smem:[%s6]]
  %s8 = scalar_lea.smem %s0, 4
  %s9 = sld [smem:[%s8]]
  %s10 = scalar_lea.smem %s0, 5
  %s11 = sld [smem:[%s10]]
  %s12 = scalar_lea.smem %s0, 6
  %s13 = sld [smem:[%s12]]
  %s14 = scalar_lea.smem %s0, 7
  %s15 = sld [smem:[%s14]]
  %s16 = scalar_lea.smem %s0, 8
  %s17 = sld [smem:[%s16]]
  %s18 = scalar_lea.smem %s0, 9
  %s19 = sld [smem:[%s18]]
  %s20 = scalar_lea.smem %s0, 10
  %s21 = sld [smem:[%s20]]
  %s22 = scalar_lea.smem %s0, 11
  %s23 = sld [smem:[%s22]]
  %s24 = scalar_lea.smem %s0, 12
  %s25 = sld [smem:[%s24]]
  %s26 = scalar_lea.smem %s0, 13
  %s27 = sld [smem:[%s26]]
  %s28 = scalar_lea.smem %s0, 14
  %s29 = sld [smem:[%s28]]
  %s30 = scalar_lea.smem %s0, 15
  %s31 = sld [smem:[%s30]]
  %s32 = scalar_lea.smem %s0, 16
  %s33 = sld [smem:[%s32]]
  %s34 = scalar_lea.smem %s0, 17
  %s35 = sld [smem:[%s34]]
  %s36 = scalar_lea.smem %s0, 18
  %s37 = sld [smem:[%s36]]
  %s38 = scalar_lea.smem %s0, 19
  %s39 = sld [smem:[%s38]]
  %s40 = scalar_lea.smem %s0, 20
  %s41 = sld [smem:[%s40]]
  %s42 = scalar_lea.smem %s0, 21
  %s43 = sld [smem:[%s42]]
  %s44 = scalar_lea.smem %s0, 22
  %s45 = sld [smem:[%s44]]
  %s46 = scalar_lea.smem %s0, 23
  %s47 = sld [smem:[%s46]]
  %s48 = scalar_lea.smem %s0, 24
  %s49 = sld [smem:[%s48]]
  %s50 = scalar_lea.smem %s0, 25
  %s51 = sld [smem:[%s50]]
  %s52 = scalar_lea.smem %s0, 26
  %s53 = sld [smem:[%s52]]
  %s54 = scalar_lea.smem %s0, 27
  %s55 = sld [smem:[%s54]]
  %s56 = scalar_lea.smem %s0, 28
  %s57 = sld [smem:[%s56]]
  %s58 = scalar_lea.smem %s0, 29
  %s59 = sld [smem:[%s58]]
  %s60 = scalar_lea.smem %s0, 30
  %s61 = sld [smem:[%s60]]
  %s62 = scalar_lea.smem %s0, 31
  %s63 = sld [smem:[%s62]]
  %s64 = scalar_lea.smem %s0, 32
  %s65 = sld [smem:[%s64]]
  %s66 = scalar_lea.smem %s0, 33
  %s67 = sld [smem:[%s66]]
  %s68 = scalar_lea.smem %s0, 34
  %s69 = sld [smem:[%s68]]
  %s70 = scalar_lea.smem %s0, 35
  %s71 = sld [smem:[%s70]]
  %s72 = scalar_lea.smem %s0, 36
  %s73 = sld [smem:[%s72]]
  %s74 = scalar_lea.smem %s0, 37
  %s75 = sld [smem:[%s74]]
  %s76 = scalar_lea.smem %s0, 38
  %s77 = sld [smem:[%s76]]
  %s78 = scalar_lea.smem %s0, 39
  %s79 = sld [smem:[%s78]]
  %s80 = scalar_lea.smem %s0, 40
  %s81 = sld [smem:[%s80]]
  %s82 = scalar_lea.smem %s0, 41
  %s83 = sld [smem:[%s82]]
  %s84 = scalar_lea.smem %s0, 42
  %s85 = sld [smem:[%s84]]
  %s86 = scalar_lea.smem %s0, 43
  %s87 = sld [smem:[%s86]]
  %s88 = scalar_lea.smem %s0, 44
  %s89 = sld [smem:[%s88]]
  %s90 = scalar_lea.smem %s0, 45
  %s91 = sld [smem:[%s90]]
  %s92 = scalar_lea.smem %s0, 46
  %s93 = sld [smem:[%s92]]
  %s94 = scalar_lea.smem %s0, 47
  %s95 = sld [smem:[%s94]]
  %s96 = scalar_lea.smem %s0, 48
  %s97 = sld [smem:[%s96]]
  %s98 = sld [smem:[#allocation0]]
  $region202: #{autoencoder_forward.1} parent=0
    _
  %s100 = ssub.s32 1, %s98
  %s101 = scalar_select 0, %s100, %s98
  %v102 = vstv %s91
  %103 = vst [vmem:[#allocation2] sm:$0x1] %v102
  // Predicated region
  $region2: #{autoencoder_forward.1} parent=0 // pred_check
    _
  $region3: #{autoencoder_forward.1} parent=0 // pred_check_branch
    %105 = sbr.rel (0) target = $region5
  $region4: #{autoencoder_forward.1} parent=0 // pred_region
    _
  $region5: #{autoencoder_forward.1} parent=0 // pred_fallthru
    _
  // Predicated region
  $region6: #{autoencoder_forward.1} parent=0 // pred_check
    _
  $region7: #{autoencoder_forward.1} parent=0 // pred_check_branch
    %107 = sbr.rel (0) target = $region9
  $region8: #{autoencoder_forward.1} parent=0 // pred_region
    _
  $region9: #{autoencoder_forward.1} parent=0 // pred_fallthru
    _
  // Predicated region
  $region10: #{autoencoder_forward.1} parent=0 // pred_check
    _
  $region11: #{autoencoder_forward.1} parent=0 // pred_check_branch
    %109 = sbr.rel (0) target = $region13
  $region12: #{autoencoder_forward.1} parent=0 // pred_region
    _
  $region13: #{autoencoder_forward.1} parent=0 // pred_fallthru
    _
  // Predicated region
  $region14: #{autoencoder_forward.1} parent=0 // pred_check
    _
  $region15: #{autoencoder_forward.1} parent=0 // pred_check_branch
    %111 = sbr.rel (0) target = $region17
  $region16: #{autoencoder_forward.1} parent=0 // pred_region
    _
  $region17: #{autoencoder_forward.1} parent=0 // pred_fallthru
    _
  // Predicated region
  $region18: #{autoencoder_forward.1} parent=0 // pred_check
    _
  $region19: #{autoencoder_forward.1} parent=0 // pred_check_branch
    %113 = sbr.rel (0) target = $region21
  $region20: #{autoencoder_forward.1} parent=0 // pred_region
    _
  $region21: #{autoencoder_forward.1} parent=0 // pred_fallthru
    _
  // Predicated region
  $region22: #{autoencoder_forward.1} parent=0 // pred_check
    _
  $region23: #{autoencoder_forward.1} parent=0 // pred_check_branch
    %115 = sbr.rel (0) target = $region25
  $region24: #{autoencoder_forward.1} parent=0 // pred_region
    _
  $region25: #{autoencoder_forward.1} parent=0 // pred_fallthru
    _
  // Predicated region
  $region26: #{autoencoder_forward.1} parent=0 // pred_check
    _
  $region27: #{autoencoder_forward.1} parent=0 // pred_check_branch
    %117 = sbr.rel (0) target = $region29
  $region28: #{autoencoder_forward.1} parent=0 // pred_region
    _
  $region29: #{autoencoder_forward.1} parent=0 // pred_fallthru
    _
  // Predicated region
  $region30: #{autoencoder_forward.1} parent=0 // pred_check
    _
  $region31: #{autoencoder_forward.1} parent=0 // pred_check_branch
    %119 = sbr.rel (0) target = $region33
  $region32: #{autoencoder_forward.1} parent=0 // pred_region
    _
  $region33: #{autoencoder_forward.1} parent=0 // pred_fallthru
    _
  // Predicated region
  $region34: #{autoencoder_forward.1} parent=0 // pred_check
    _
  $region35: #{autoencoder_forward.1} parent=0 // pred_check_branch
    %121 = sbr.rel (0) target = $region37
  $region36: #{autoencoder_forward.1} parent=0 // pred_region
    _
  $region37: #{autoencoder_forward.1} parent=0 // pred_fallthru
    _
  // Predicated region
  $region38: #{autoencoder_forward.1} parent=0 // pred_check
    _
  $region39: #{autoencoder_forward.1} parent=0 // pred_check_branch
    %123 = sbr.rel (0) target = $region41
  $region40: #{autoencoder_forward.1} parent=0 // pred_region
    _
  $region41: #{autoencoder_forward.1} parent=0 // pred_fallthru
    _
  // Predicated region
  $region42: #{autoencoder_forward.1} parent=0 // pred_check
    _
  $region43: #{autoencoder_forward.1} parent=0 // pred_check_branch
    %125 = sbr.rel (0) target = $region45
  $region44: #{autoencoder_forward.1} parent=0 // pred_region
    _
  $region45: #{autoencoder_forward.1} parent=0 // pred_fallthru
    _
  // Predicated region
  $region46: #{autoencoder_forward.1} parent=0 // pred_check
    _
  $region47: #{autoencoder_forward.1} parent=0 // pred_check_branch
    %127 = sbr.rel (0) target = $region49
  $region48: #{autoencoder_forward.1} parent=0 // pred_region
    _
  $region49: #{autoencoder_forward.1} parent=0 // pred_fallthru
    _
  // Predicated region
  $region50: #{autoencoder_forward.1} parent=0 // pred_check
    _
  $region51: #{autoencoder_forward.1} parent=0 // pred_check_branch
    %129 = sbr.rel (0) target = $region53
  $region52: #{autoencoder_forward.1} parent=0 // pred_region
    _
  $region53: #{autoencoder_forward.1} parent=0 // pred_fallthru
    _
  // Predicated region
  $region54: #{autoencoder_forward.1} parent=0 // pred_check
    _
  $region55: #{autoencoder_forward.1} parent=0 // pred_check_branch
    %131 = sbr.rel (0) target = $region57
  $region56: #{autoencoder_forward.1} parent=0 // pred_region
    _
  $region57: #{autoencoder_forward.1} parent=0 // pred_fallthru
    _
  // Predicated region
  $region58: #{autoencoder_forward.1} parent=0 // pred_check
    _
  $region59: #{autoencoder_forward.1} parent=0 // pred_check_branch
    %133 = sbr.rel (0) target = $region61
  $region60: #{autoencoder_forward.1} parent=0 // pred_region
    _
  $region61: #{autoencoder_forward.1} parent=0 // pred_fallthru
    _
  // Predicated region
  $region62: #{autoencoder_forward.1} parent=0 // pred_check
    _
  $region63: #{autoencoder_forward.1} parent=0 // pred_check_branch
    %135 = sbr.rel (0) target = $region65
  $region64: #{autoencoder_forward.1} parent=0 // pred_region
    _
  $region65: #{autoencoder_forward.1} parent=0 // pred_fallthru
    _
  // Predicated region
  $region66: #{autoencoder_forward.1} parent=0 // pred_check
    _
  $region67: #{autoencoder_forward.1} parent=0 // pred_check_branch
    %137 = sbr.rel (0) target = $region69
  $region68: #{autoencoder_forward.1} parent=0 // pred_region
    _
  $region69: #{autoencoder_forward.1} parent=0 // pred_fallthru
    _
  // Predicated region
  $region70: #{autoencoder_forward.1} parent=0 // pred_check
    _
  $region71: #{autoencoder_forward.1} parent=0 // pred_check_branch
    %139 = sbr.rel (0) target = $region73
  $region72: #{autoencoder_forward.1} parent=0 // pred_region
    _
  $region73: #{autoencoder_forward.1} parent=0 // pred_fallthru
    _
  // Predicated region
  $region74: #{autoencoder_forward.1} parent=0 // pred_check
    _
  $region75: #{autoencoder_forward.1} parent=0 // pred_check_branch
    %141 = sbr.rel (0) target = $region77
  $region76: #{autoencoder_forward.1} parent=0 // pred_region
    _
  $region77: #{autoencoder_forward.1} parent=0 // pred_fallthru
    _
  // Predicated region
  $region78: #{autoencoder_forward.1} parent=0 // pred_check
    _
  $region79: #{autoencoder_forward.1} parent=0 // pred_check_branch
    %143 = sbr.rel (0) target = $region81
  $region80: #{autoencoder_forward.1} parent=0 // pred_region
    _
  $region81: #{autoencoder_forward.1} parent=0 // pred_fallthru
    _
  // Predicated region
  $region82: #{autoencoder_forward.1} parent=0 // pred_check
    _
  $region83: #{autoencoder_forward.1} parent=0 // pred_check_branch
    %145 = sbr.rel (0) target = $region85
  $region84: #{autoencoder_forward.1} parent=0 // pred_region
    _
  $region85: #{autoencoder_forward.1} parent=0 // pred_fallthru
    _
  // Predicated region
  $region86: #{autoencoder_forward.1} parent=0 // pred_check
    _
  $region87: #{autoencoder_forward.1} parent=0 // pred_check_branch
    %147 = sbr.rel (0) target = $region89
  $region88: #{autoencoder_forward.1} parent=0 // pred_region
    _
  $region89: #{autoencoder_forward.1} parent=0 // pred_fallthru
    _
  // Predicated region
  $region90: #{autoencoder_forward.1} parent=0 // pred_check
    _
  $region91: #{autoencoder_forward.1} parent=0 // pred_check_branch
    %149 = sbr.rel (0) target = $region93
  $region92: #{autoencoder_forward.1} parent=0 // pred_region
    _
  $region93: #{autoencoder_forward.1} parent=0 // pred_fallthru
    _
  // Predicated region
  $region94: #{autoencoder_forward.1} parent=0 // pred_check
    _
  $region95: #{autoencoder_forward.1} parent=0 // pred_check_branch
    %151 = sbr.rel (0) target = $region97
  $region96: #{autoencoder_forward.1} parent=0 // pred_region
    _
  $region97: #{autoencoder_forward.1} parent=0 // pred_fallthru
    _
  // Predicated region
  $region98: #{autoencoder_forward.1} parent=0 // pred_check
    _
  $region99: #{autoencoder_forward.1} parent=0 // pred_check_branch
    %153 = sbr.rel (0) target = $region101
  $region100: #{autoencoder_forward.1} parent=0 // pred_region
    _
  $region101: #{autoencoder_forward.1} parent=0 // pred_fallthru
    _
  // Predicated region
  $region102: #{autoencoder_forward.1} parent=0 // pred_check
    _
  $region103: #{autoencoder_forward.1} parent=0 // pred_check_branch
    %155 = sbr.rel (0) target = $region105
  $region104: #{autoencoder_forward.1} parent=0 // pred_region
    _
  $region105: #{autoencoder_forward.1} parent=0 // pred_fallthru
    _
  // Predicated region
  $region106: #{autoencoder_forward.1} parent=0 // pred_check
    _
  $region107: #{autoencoder_forward.1} parent=0 // pred_check_branch
    %157 = sbr.rel (0) target = $region109
  $region108: #{autoencoder_forward.1} parent=0 // pred_region
    _
  $region109: #{autoencoder_forward.1} parent=0 // pred_fallthru
    _
  // Predicated region
  $region110: #{autoencoder_forward.1} parent=0 // pred_check
    _
  $region111: #{autoencoder_forward.1} parent=0 // pred_check_branch
    %159 = sbr.rel (0) target = $region113
  $region112: #{autoencoder_forward.1} parent=0 // pred_region
    _
  $region113: #{autoencoder_forward.1} parent=0 // pred_fallthru
    _
  // Predicated region
  $region114: #{autoencoder_forward.1} parent=0 // pred_check
    _
  $region115: #{autoencoder_forward.1} parent=0 // pred_check_branch
    %161 = sbr.rel (0) target = $region117
  $region116: #{autoencoder_forward.1} parent=0 // pred_region
    _
  $region117: #{autoencoder_forward.1} parent=0 // pred_fallthru
    _
  // Predicated region
  $region118: #{autoencoder_forward.1} parent=0 // pred_check
    _
  $region119: #{autoencoder_forward.1} parent=0 // pred_check_branch
    %163 = sbr.rel (0) target = $region121
  $region120: #{autoencoder_forward.1} parent=0 // pred_region
    _
  $region121: #{autoencoder_forward.1} parent=0 // pred_fallthru
    _
  // Predicated region
  $region122: #{autoencoder_forward.1} parent=0 // pred_check
    _
  $region123: #{autoencoder_forward.1} parent=0 // pred_check_branch
    %165 = sbr.rel (0) target = $region125
  $region124: #{autoencoder_forward.1} parent=0 // pred_region
    _
  $region125: #{autoencoder_forward.1} parent=0 // pred_fallthru
    _
  // Predicated region
  $region126: #{autoencoder_forward.1} parent=0 // pred_check
    _
  $region127: #{autoencoder_forward.1} parent=0 // pred_check_branch
    %167 = sbr.rel (0) target = $region129
  $region128: #{autoencoder_forward.1} parent=0 // pred_region
    _
  $region129: #{autoencoder_forward.1} parent=0 // pred_fallthru
    _
  // Predicated region
  $region130: #{autoencoder_forward.1} parent=0 // pred_check
    _
  $region131: #{autoencoder_forward.1} parent=0 // pred_check_branch
    %169 = sbr.rel (0) target = $region133
  $region132: #{autoencoder_forward.1} parent=0 // pred_region
    _
  $region133: #{autoencoder_forward.1} parent=0 // pred_fallthru
    _
  // Predicated region
  $region134: #{autoencoder_forward.1} parent=0 // pred_check
    _
  $region135: #{autoencoder_forward.1} parent=0 // pred_check_branch
    %171 = sbr.rel (0) target = $region137
  $region136: #{autoencoder_forward.1} parent=0 // pred_region
    _
  $region137: #{autoencoder_forward.1} parent=0 // pred_fallthru
    _
  // Predicated region
  $region138: #{autoencoder_forward.1} parent=0 // pred_check
    _
  $region139: #{autoencoder_forward.1} parent=0 // pred_check_branch
    %173 = sbr.rel (0) target = $region141
  $region140: #{autoencoder_forward.1} parent=0 // pred_region
    _
  $region141: #{autoencoder_forward.1} parent=0 // pred_fallthru
    _
  // Predicated region
  $region142: #{autoencoder_forward.1} parent=0 // pred_check
    _
  $region143: #{autoencoder_forward.1} parent=0 // pred_check_branch
    %175 = sbr.rel (0) target = $region145
  $region144: #{autoencoder_forward.1} parent=0 // pred_region
    _
  $region145: #{autoencoder_forward.1} parent=0 // pred_fallthru
    _
  // Predicated region
  $region146: #{autoencoder_forward.1} parent=0 // pred_check
    _
  $region147: #{autoencoder_forward.1} parent=0 // pred_check_branch
    %177 = sbr.rel (0) target = $region149
  $region148: #{autoencoder_forward.1} parent=0 // pred_region
    _
  $region149: #{autoencoder_forward.1} parent=0 // pred_fallthru
    _
  // Predicated region
  $region150: #{autoencoder_forward.1} parent=0 // pred_check
    _
  $region151: #{autoencoder_forward.1} parent=0 // pred_check_branch
    %179 = sbr.rel (0) target = $region153
  $region152: #{autoencoder_forward.1} parent=0 // pred_region
    _
  $region153: #{autoencoder_forward.1} parent=0 // pred_fallthru
    _
  // Predicated region
  $region154: #{autoencoder_forward.1} parent=0 // pred_check
    _
  $region155: #{autoencoder_forward.1} parent=0 // pred_check_branch
    %181 = sbr.rel (0) target = $region157
  $region156: #{autoencoder_forward.1} parent=0 // pred_region
    _
  $region157: #{autoencoder_forward.1} parent=0 // pred_fallthru
    _
  // Predicated region
  $region158: #{autoencoder_forward.1} parent=0 // pred_check
    _
  $region159: #{autoencoder_forward.1} parent=0 // pred_check_branch
    %183 = sbr.rel (0) target = $region161
  $region160: #{autoencoder_forward.1} parent=0 // pred_region
    _
  $region161: #{autoencoder_forward.1} parent=0 // pred_fallthru
    _
  // Predicated region
  $region162: #{autoencoder_forward.1} parent=0 // pred_check
    _
  $region163: #{autoencoder_forward.1} parent=0 // pred_check_branch
    %185 = sbr.rel (0) target = $region165
  $region164: #{autoencoder_forward.1} parent=0 // pred_region
    _
  $region165: #{autoencoder_forward.1} parent=0 // pred_fallthru
    _
  // Predicated region
  $region166: #{autoencoder_forward.1} parent=0 // pred_check
    _
  $region167: #{autoencoder_forward.1} parent=0 // pred_check_branch
    %187 = sbr.rel (0) target = $region169
  $region168: #{autoencoder_forward.1} parent=0 // pred_region
    _
  $region169: #{autoencoder_forward.1} parent=0 // pred_fallthru
    _
  // Predicated region
  $region170: #{autoencoder_forward.1} parent=0 // pred_check
    _
  $region171: #{autoencoder_forward.1} parent=0 // pred_check_branch
    %189 = sbr.rel (0) target = $region173
  $region172: #{autoencoder_forward.1} parent=0 // pred_region
    _
  $region173: #{autoencoder_forward.1} parent=0 // pred_fallthru
    _
  // Predicated region
  $region174: #{autoencoder_forward.1} parent=0 // pred_check
    _
  $region175: #{autoencoder_forward.1} parent=0 // pred_check_branch
    %191 = sbr.rel (0) target = $region177
  $region176: #{autoencoder_forward.1} parent=0 // pred_region
    _
  $region177: #{autoencoder_forward.1} parent=0 // pred_fallthru
    _
  // Predicated region
  $region178: #{autoencoder_forward.1} parent=0 // pred_check
    _
  $region179: #{autoencoder_forward.1} parent=0 // pred_check_branch
    %193 = sbr.rel (0) target = $region181
  $region180: #{autoencoder_forward.1} parent=0 // pred_region
    _
  $region181: #{autoencoder_forward.1} parent=0 // pred_fallthru
    _
  // Predicated region
  $region182: #{autoencoder_forward.1} parent=0 // pred_check
    _
  $region183: #{autoencoder_forward.1} parent=0 // pred_check_branch
    %195 = sbr.rel (0) target = $region185
  $region184: #{autoencoder_forward.1} parent=0 // pred_region
    _
  $region185: #{autoencoder_forward.1} parent=0 // pred_fallthru
    _
  // Predicated region
  $region186: #{autoencoder_forward.1} parent=0 // pred_check
    _
  $region187: #{autoencoder_forward.1} parent=0 // pred_check_branch
    %197 = sbr.rel (0) target = $region189
  $region188: #{autoencoder_forward.1} parent=0 // pred_region
    _
  $region189: #{autoencoder_forward.1} parent=0 // pred_fallthru
    _
  // Predicated region
  $region190: #{autoencoder_forward.1} parent=0 // pred_check
    _
  $region191: #{autoencoder_forward.1} parent=0 // pred_check_branch
    %199 = sbr.rel (0) target = $region193
  $region192: #{autoencoder_forward.1} parent=0 // pred_region
    _
  $region193: #{autoencoder_forward.1} parent=0 // pred_fallthru
    _
  %v200 = vld [vmem:[%s1] sm:$0x3]
  %v201 = vld [vmem:[%s5] sm:$0xff]
  %v202 = vld [vmem:[%s3] sm:$0xff]
  %204 = vset.pattern.permute.xlu0 0
  %205 = vperm.xlu0 %204, %v202
  %v206 = vpop.permute.xlu0 %205
  %v209 = vlaneseq
  %v210 = vshrl.u32 %v209, 7
  %v211 = vsub.s32 0, %v210
  %v212 = vrot.slane %v200, %v211
  %v213 = vlaneseq
  %v214 = vshrl.u32 %v213, 7
  %v215 = vsub.s32 1, %v214
  %v216 = vrot.slane %v200, %v215
  %v219 = vmul.f32 %v206, %v212
  %v220 = vmul.f32 %v206, %v216
  %s221 = scalar_lea.vmem %s3, 8
  %v222 = vld [vmem:[%s221] sm:$0xff]
  %224 = vset.pattern.permute.xlu0 0
  %225 = vperm.xlu0 %224, %v222
  %v226 = vpop.permute.xlu0 %225
  %v228 = vmul.f32 %v226, %v212
  %v229 = vmul.f32 %v226, %v216
  %232 = vrot.lane.b32.xlu0 %v228, 127
  %v233 = vpop.permute.xlu0 %232
  %234 = vrot.lane.b32.xlu0 %v229, 127
  %v235 = vpop.permute.xlu0 %234
  %vm236 = vcmask 1039360
  %v237 = vsel %vm236, %v233, %v235
  %v240 = vadd.f32 %v219, %v237
  %v241 = vadd.f32 %v220, %v235
  %s242 = scalar_lea.vmem %s3, 16
  %v243 = vld [vmem:[%s242] sm:$0xff]
  %245 = vset.pattern.permute.xlu0 0
  %246 = vperm.xlu0 %245, %v243
  %v247 = vpop.permute.xlu0 %246
  %v249 = vmul.f32 %v247, %v212
  %v250 = vmul.f32 %v247, %v216
  %253 = vrot.lane.b32.xlu0 %v249, 126
  %v254 = vpop.permute.xlu0 %253
  %255 = vrot.lane.b32.xlu0 %v250, 126
  %v256 = vpop.permute.xlu0 %255
  %vm257 = vcmask 1031168
  %v258 = vsel %vm257, %v254, %v256
  %v261 = vadd.f32 %v240, %v258
  %v262 = vadd.f32 %v241, %v256
  %s263 = scalar_lea.vmem %s3, 24
  %v264 = vld [vmem:[%s263] sm:$0xff]
  %266 = vset.pattern.permute.xlu0 0
  %267 = vperm.xlu0 %266, %v264
  %v268 = vpop.permute.xlu0 %267
  %v270 = vmul.f32 %v268, %v212
  %v271 = vmul.f32 %v268, %v216
  %274 = vrot.lane.b32.xlu0 %v270, 125
  %v275 = vpop.permute.xlu0 %274
  %276 = vrot.lane.b32.xlu0 %v271, 125
  %v277 = vpop.permute.xlu0 %276
  %vm278 = vcmask 1022976
  %v279 = vsel %vm278, %v275, %v277
  %v282 = vadd.f32 %v261, %v279
  %v283 = vadd.f32 %v262, %v277
  %s284 = scalar_lea.vmem %s3, 32
  %v285 = vld [vmem:[%s284] sm:$0xff]
  %287 = vset.pattern.permute.xlu0 0
  %288 = vperm.xlu0 %287, %v285
  %v289 = vpop.permute.xlu0 %288
  %v291 = vmul.f32 %v289, %v212
  %v292 = vmul.f32 %v289, %v216
  %295 = vrot.lane.b32.xlu0 %v291, 124
  %v296 = vpop.permute.xlu0 %295
  %297 = vrot.lane.b32.xlu0 %v292, 124
  %v298 = vpop.permute.xlu0 %297
  %vm299 = vcmask 1014784
  %v300 = vsel %vm299, %v296, %v298
  %v303 = vadd.f32 %v282, %v300
  %v304 = vadd.f32 %v283, %v298
  %s305 = scalar_lea.vmem %s3, 40
  %v306 = vld [vmem:[%s305] sm:$0xff]
  %308 = vset.pattern.permute.xlu0 0
  %309 = vperm.xlu0 %308, %v306
  %v310 = vpop.permute.xlu0 %309
  %v312 = vmul.f32 %v310, %v212
  %v313 = vmul.f32 %v310, %v216
  %316 = vrot.lane.b32.xlu0 %v312, 123
  %v317 = vpop.permute.xlu0 %316
  %318 = vrot.lane.b32.xlu0 %v313, 123
  %v319 = vpop.permute.xlu0 %318
  %vm320 = vcmask 1006592
  %v321 = vsel %vm320, %v317, %v319
  %v324 = vadd.f32 %v303, %v321
  %v325 = vadd.f32 %v304, %v319
  %s326 = scalar_lea.vmem %s3, 48
  %v327 = vld [vmem:[%s326] sm:$0xff]
  %329 = vset.pattern.permute.xlu0 0
  %330 = vperm.xlu0 %329, %v327
  %v331 = vpop.permute.xlu0 %330
  %v333 = vmul.f32 %v331, %v212
  %v334 = vmul.f32 %v331, %v216
  %337 = vrot.lane.b32.xlu0 %v333, 122
  %v338 = vpop.permute.xlu0 %337
  %339 = vrot.lane.b32.xlu0 %v334, 122
  %v340 = vpop.permute.xlu0 %339
  %vm341 = vcmask 998400
  %v342 = vsel %vm341, %v338, %v340
  %v345 = vadd.f32 %v324, %v342
  %v346 = vadd.f32 %v325, %v340
  %s347 = scalar_lea.vmem %s3, 56
  %v348 = vld [vmem:[%s347] sm:$0xff]
  %350 = vset.pattern.permute.xlu0 0
  %351 = vperm.xlu0 %350, %v348
  %v352 = vpop.permute.xlu0 %351
  %v354 = vmul.f32 %v352, %v212
  %v355 = vmul.f32 %v352, %v216
  %358 = vrot.lane.b32.xlu0 %v354, 121
  %v359 = vpop.permute.xlu0 %358
  %360 = vrot.lane.b32.xlu0 %v355, 121
  %v361 = vpop.permute.xlu0 %360
  %vm362 = vcmask 990208
  %v363 = vsel %vm362, %v359, %v361
  %v366 = vadd.f32 %v345, %v363
  %v367 = vadd.f32 %v346, %v361
  %v368 = vld [vmem:[%s7] sm:$0xff]
  %v369 = vld [vmem:[%s7 + $0x8] sm:$0xff]
  %v370 = vld [vmem:[%s7 + $0x10] sm:$0xff]
  %v371 = vld [vmem:[%s7 + $0x18] sm:$0xff]
  %v372 = vld [vmem:[%s7 + $0x20] sm:$0xff]
  %v373 = vld [vmem:[%s7 + $0x28] sm:$0xff]
  %v374 = vld [vmem:[%s7 + $0x30] sm:$0xff]
  %v375 = vld [vmem:[%s7 + $0x38] sm:$0xff]
  %v376 = vld [vmem:[%s7 + $0x40] sm:$0xff]
  %v377 = vld [vmem:[%s7 + $0x48] sm:$0xff]
  %v378 = vld [vmem:[%s7 + $0x50] sm:$0xff]
  %v379 = vld [vmem:[%s7 + $0x58] sm:$0xff]
  %v380 = vld [vmem:[%s7 + $0x60] sm:$0xff]
  %v381 = vld [vmem:[%s7 + $0x68] sm:$0xff]
  %v382 = vld [vmem:[%s7 + $0x70] sm:$0xff]
  %v383 = vld [vmem:[%s7 + $0x78] sm:$0xff]
  %v384 = vld [vmem:[%s7 + $0x80] sm:$0xff]
  %v385 = vld [vmem:[%s7 + $0x88] sm:$0xff]
  %v386 = vld [vmem:[%s7 + $0x90] sm:$0xff]
  %v387 = vld [vmem:[%s7 + $0x98] sm:$0xff]
  %v388 = vld [vmem:[%s7 + $0xa0] sm:$0xff]
  %v389 = vld [vmem:[%s7 + $0xa8] sm:$0xff]
  %v390 = vld [vmem:[%s7 + $0xb0] sm:$0xff]
  %v391 = vld [vmem:[%s7 + $0xb8] sm:$0xff]
  %v392 = vld [vmem:[%s7 + $0xc0] sm:$0xff]
  %v393 = vld [vmem:[%s7 + $0xc8] sm:$0xff]
  %v394 = vld [vmem:[%s7 + $0xd0] sm:$0xff]
  %v395 = vld [vmem:[%s7 + $0xd8] sm:$0xff]
  %v396 = vld [vmem:[%s7 + $0xe0] sm:$0xff]
  %v397 = vld [vmem:[%s7 + $0xe8] sm:$0xff]
  %v398 = vld [vmem:[%s7 + $0xf0] sm:$0x1]
  %400 = vset.pattern.permute.xlu0 0
  %401 = vperm.xlu0 %400, %v201
  %v402 = vpop.permute.xlu0 %401
  %vm404 = vcmask 924672
  %v406 = vsel %vm404, %v367, 0
  %vm408 = vcmask 1040384
  %v410 = vsel %vm408, %v398, 0
  %412 = vmatprep.subr.mxu0 0.0
  %413 = vmatpush1.msra.mxu0 %v368
  %414 = vmatprep.subr.mxu0 0.0
  %415 = vmatpush1.msra.mxu0 %v369
  %416 = vmatprep.subr.mxu0 0.0
  %417 = vmatpush1.msra.mxu0 %v370
  %418 = vmatprep.subr.mxu0 0.0
  %419 = vmatpush1.msra.mxu0 %v371
  %420 = vmatprep.subr.mxu0 0.0
  %421 = vmatpush1.msra.mxu0 %v372
  %422 = vmatprep.subr.mxu0 0.0
  %423 = vmatpush1.msra.mxu0 %v373
  %424 = vmatprep.subr.mxu0 0.0
  %425 = vmatpush1.msra.mxu0 %v374
  %426 = vmatprep.subr.mxu0 0.0
  %427 = vmatpush1.msra.mxu0 %v375
  %428 = vmatprep.subr.mxu0 0.0
  %429 = vmatpush1.msra.mxu0 %v376
  %430 = vmatprep.subr.mxu0 0.0
  %431 = vmatpush1.msra.mxu0 %v377
  %432 = vmatprep.subr.mxu0 0.0
  %433 = vmatpush1.msra.mxu0 %v378
  %434 = vmatprep.subr.mxu0 0.0
  %435 = vmatpush1.msra.mxu0 %v379
  %436 = vmatprep.subr.mxu0 0.0
  %437 = vmatpush1.msra.mxu0 %v380
  %438 = vmatprep.subr.mxu0 0.0
  %439 = vmatpush1.msra.mxu0 %v381
  %440 = vmatprep.subr.mxu0 0.0
  %441 = vmatpush1.msra.mxu0 %v382
  %442 = vmatprep.subr.mxu0 0.0
  %443 = vmatpush1.msra.mxu0 %v383
  %444 = vmatprep.subr.mxu0 0.0
  %445 = vmatpush1.msra.mxu0 %v384
  %446 = vmatprep.subr.mxu0 0.0
  %447 = vmatpush1.msra.mxu0 %v385
  %448 = vmatprep.subr.mxu0 0.0
  %449 = vmatpush1.msra.mxu0 %v386
  %450 = vmatprep.subr.mxu0 0.0
  %451 = vmatpush1.msra.mxu0 %v387
  %452 = vmatprep.subr.mxu0 0.0
  %453 = vmatpush1.msra.mxu0 %v388
  %454 = vmatprep.subr.mxu0 0.0
  %455 = vmatpush1.msra.mxu0 %v389
  %456 = vmatprep.subr.mxu0 0.0
  %457 = vmatpush1.msra.mxu0 %v390
  %458 = vmatprep.subr.mxu0 0.0
  %459 = vmatpush1.msra.mxu0 %v391
  %460 = vmatprep.subr.mxu0 0.0
  %461 = vmatpush1.msra.mxu0 %v392
  %462 = vmatprep.subr.mxu0 0.0
  %463 = vmatpush1.msra.mxu0 %v393
  %464 = vmatprep.subr.mxu0 0.0
  %465 = vmatpush1.msra.mxu0 %v394
  %466 = vmatprep.subr.mxu0 0.0
  %467 = vmatpush1.msra.mxu0 %v395
  %468 = vmatprep.subr.mxu0 0.0
  %469 = vmatpush1.msra.mxu0 %v396
  %470 = vmatprep.subr.mxu0 0.0
  %471 = vmatpush1.msra.mxu0 %v397
  %472 = vmatprep.subr.mxu0 0.0
  %473 = vmatpush1.msra.mxu0 %v410
  %474 = vmatprep.subr.mxu0 0.0
  %475 = vmatpush1.msra.mxu0 0.0
  %476 = vmatprep.mubr.f32.mxu0 %v406
  %477 = vmatmul.mubr.f32.gmra.mrb[0].mxu0 %v366
  %v478 = vpop.f32.mrb[0].mxu0
  %v479 = vadd.f32 %v402, %v478
  %v480 = vpop.f32.mrb[0].mxu0
  %481 = vdwg.mxu0
  %vm482 = vcmp.ge.f32.partialorder %v479, 0.0
  %v483 = vmul.f32 %v479, 0.2
  %v484 = vsel %vm482, %v479, %v483
  %v485 = vld [vmem:[%s11] sm:$0xff]
  %v486 = vld [vmem:[%s11 + $0x8] sm:$0xff]
  %v487 = vld [vmem:[%s13] sm:$0xff]
  %v488 = vld [vmem:[%s13 + $0x8] sm:$0xff]
  %v489 = vld [vmem:[%s15] sm:$0xff]
  %v490 = vld [vmem:[%s15 + $0x8] sm:$0xff]
  %v491 = vld [vmem:[%s9] sm:$0xff]
  %v492 = vld [vmem:[%s9 + $0x8] sm:$0xff]
  %s493 = scalar_lea.vmem %s9, 16
  %v494 = vld [vmem:[%s493] sm:$0xff]
  %v495 = vld [vmem:[%s493 + $0x8] sm:$0xff]
  %497 = vrot.lane.b32.xlu0 %v484, 127
  %v498 = vpop.permute.xlu0 %497
  %vm500 = vcmask 64512
  %v502 = vsel %vm500, %v494, 0
  %v505 = vsel %vm500, %v495, 0
  %507 = vmatprep.subr.mxu0 0.0
  %508 = vmatpush1.msra.mxu0 %v498
  %509 = vmatprep.subr.mxu0 0.0
  %510 = vmatpush1.msra.mxu0 0.0
  %511 = vmatprep.subr.mxu0 0.0
  %512 = vmatpush1.msra.mxu0 0.0
  %513 = vmatprep.subr.mxu0 0.0
  %514 = vmatpush1.msra.mxu0 0.0
  %515 = vmatprep.subr.mxu0 0.0
  %516 = vmatpush1.msra.mxu0 0.0
  %517 = vmatprep.subr.mxu0 0.0
  %518 = vmatpush1.msra.mxu0 0.0
  %519 = vmatprep.subr.mxu0 0.0
  %520 = vmatpush1.msra.mxu0 0.0
  %521 = vmatprep.subr.mxu0 0.0
  %522 = vmatpush1.msra.mxu0 0.0
  %523 = vmatprep.subr.mxu0 0.0
  %524 = vmatpush1.msra.mxu0 0.0
  %525 = vmatprep.subr.mxu0 0.0
  %526 = vmatpush1.msra.mxu0 0.0
  %527 = vmatprep.subr.mxu0 0.0
  %528 = vmatpush1.msra.mxu0 0.0
  %529 = vmatprep.subr.mxu0 0.0
  %530 = vmatpush1.msra.mxu0 0.0
  %531 = vmatprep.subr.mxu0 0.0
  %532 = vmatpush1.msra.mxu0 0.0
  %533 = vmatprep.subr.mxu0 0.0
  %534 = vmatpush1.msra.mxu0 0.0
  %535 = vmatprep.subr.mxu0 0.0
  %536 = vmatpush1.msra.mxu0 0.0
  %537 = vmatprep.subr.mxu0 0.0
  %538 = vmatpush1.msra.mxu0 0.0
  %539 = vmatprep.subr.mxu0 0.0
  %540 = vmatpush1.msra.mxu0 0.0
  %541 = vmatprep.subr.mxu0 0.0
  %542 = vmatpush1.msra.mxu0 0.0
  %543 = vmatprep.subr.mxu0 0.0
  %544 = vmatpush1.msra.mxu0 0.0
  %545 = vmatprep.subr.mxu0 0.0
  %546 = vmatpush1.msra.mxu0 0.0
  %547 = vmatprep.subr.mxu0 0.0
  %548 = vmatpush1.msra.mxu0 0.0
  %549 = vmatprep.subr.mxu0 0.0
  %550 = vmatpush1.msra.mxu0 0.0
  %551 = vmatprep.subr.mxu0 0.0
  %552 = vmatpush1.msra.mxu0 0.0
  %553 = vmatprep.subr.mxu0 0.0
  %554 = vmatpush1.msra.mxu0 0.0
  %555 = vmatprep.subr.mxu0 0.0
  %556 = vmatpush1.msra.mxu0 0.0
  %557 = vmatprep.subr.mxu0 0.0
  %558 = vmatpush1.msra.mxu0 0.0
  %559 = vmatprep.subr.mxu0 0.0
  %560 = vmatpush1.msra.mxu0 0.0
  %561 = vmatprep.subr.mxu0 0.0
  %562 = vmatpush1.msra.mxu0 0.0
  %563 = vmatprep.subr.mxu0 0.0
  %564 = vmatpush1.msra.mxu0 0.0
  %565 = vmatprep.subr.mxu0 0.0
  %566 = vmatpush1.msra.mxu0 0.0
  %567 = vmatprep.subr.mxu0 0.0
  %568 = vmatpush1.msra.mxu0 0.0
  %569 = vmatprep.subr.mxu0 0.0
  %570 = vmatpush1.msra.mxu0 0.0
  %571 = vmatprep.mubr.f32.mxu0 0.0
  %572 = vmatmul.mubr.f32.gmra.mrb[0].mxu0 %v502
  %v573 = vpop.f32.mrb[0].mxu0
  %v574 = vadd.f32 0.0, %v573
  %v575 = vpop.f32.mrb[0].mxu0
  %576 = vmatprep.mubr.f32.mxu0 0.0
  %577 = vmatmul.mubr.f32.gmra.mrb[0].mxu0 %v505
  %v578 = vpop.f32.mrb[0].mxu0
  %v579 = vadd.f32 0.0, %v578
  %v580 = vpop.f32.mrb[0].mxu0
  %581 = vdwg.mxu0
  %v583 = vsel %vm500, %v491, 0
  %v586 = vsel %vm500, %v492, 0
  %588 = vmatprep.subr.mxu0 0.0
  %589 = vmatpush1.msra.mxu0 %v484
  %590 = vmatprep.subr.mxu0 0.0
  %591 = vmatpush1.msra.mxu0 0.0
  %592 = vmatprep.subr.mxu0 0.0
  %593 = vmatpush1.msra.mxu0 0.0
  %594 = vmatprep.subr.mxu0 0.0
  %595 = vmatpush1.msra.mxu0 0.0
  %596 = vmatprep.subr.mxu0 0.0
  %597 = vmatpush1.msra.mxu0 0.0
  %598 = vmatprep.subr.mxu0 0.0
  %599 = vmatpush1.msra.mxu0 0.0
  %600 = vmatprep.subr.mxu0 0.0
  %601 = vmatpush1.msra.mxu0 0.0
  %602 = vmatprep.subr.mxu0 0.0
  %603 = vmatpush1.msra.mxu0 0.0
  %604 = vmatprep.subr.mxu0 0.0
  %605 = vmatpush1.msra.mxu0 0.0
  %606 = vmatprep.subr.mxu0 0.0
  %607 = vmatpush1.msra.mxu0 0.0
  %608 = vmatprep.subr.mxu0 0.0
  %609 = vmatpush1.msra.mxu0 0.0
  %610 = vmatprep.subr.mxu0 0.0
  %611 = vmatpush1.msra.mxu0 0.0
  %612 = vmatprep.subr.mxu0 0.0
  %613 = vmatpush1.msra.mxu0 0.0
  %614 = vmatprep.subr.mxu0 0.0
  %615 = vmatpush1.msra.mxu0 0.0
  %616 = vmatprep.subr.mxu0 0.0
  %617 = vmatpush1.msra.mxu0 0.0
  %618 = vmatprep.subr.mxu0 0.0
  %619 = vmatpush1.msra.mxu0 0.0
  %620 = vmatprep.subr.mxu0 0.0
  %621 = vmatpush1.msra.mxu0 0.0
  %622 = vmatprep.subr.mxu0 0.0
  %623 = vmatpush1.msra.mxu0 0.0
  %624 = vmatprep.subr.mxu0 0.0
  %625 = vmatpush1.msra.mxu0 0.0
  %626 = vmatprep.subr.mxu0 0.0
  %627 = vmatpush1.msra.mxu0 0.0
  %628 = vmatprep.subr.mxu0 0.0
  %629 = vmatpush1.msra.mxu0 0.0
  %630 = vmatprep.subr.mxu0 0.0
  %631 = vmatpush1.msra.mxu0 0.0
  %632 = vmatprep.subr.mxu0 0.0
  %633 = vmatpush1.msra.mxu0 0.0
  %634 = vmatprep.subr.mxu0 0.0
  %635 = vmatpush1.msra.mxu0 0.0
  %636 = vmatprep.subr.mxu0 0.0
  %637 = vmatpush1.msra.mxu0 0.0
  %638 = vmatprep.subr.mxu0 0.0
  %639 = vmatpush1.msra.mxu0 0.0
  %640 = vmatprep.subr.mxu0 0.0
  %641 = vmatpush1.msra.mxu0 0.0
  %642 = vmatprep.subr.mxu0 0.0
  %643 = vmatpush1.msra.mxu0 0.0
  %644 = vmatprep.subr.mxu0 0.0
  %645 = vmatpush1.msra.mxu0 0.0
  %646 = vmatprep.subr.mxu0 0.0
  %647 = vmatpush1.msra.mxu0 0.0
  %648 = vmatprep.subr.mxu0 0.0
  %649 = vmatpush1.msra.mxu0 0.0
  %650 = vmatprep.subr.mxu0 0.0
  %651 = vmatpush1.msra.mxu0 0.0
  %652 = vmatprep.mubr.f32.mxu0 0.0
  %653 = vmatmul.mubr.f32.gmra.mrb[0].mxu0 %v583
  %v654 = vpop.f32.mrb[0].mxu0
  %v655 = vadd.f32 %v574, %v654
  %v656 = vpop.f32.mrb[0].mxu0
  %657 = vmatprep.mubr.f32.mxu0 0.0
  %658 = vmatmul.mubr.f32.gmra.mrb[0].mxu0 %v586
  %v659 = vpop.f32.mrb[0].mxu0
  %v660 = vadd.f32 %v579, %v659
  %v661 = vpop.f32.mrb[0].mxu0
  %662 = vdwg.mxu0
  %s663 = scalar_lea.vmem %s9, 32
  %v664 = vld [vmem:[%s663] sm:$0xff]
  %v665 = vld [vmem:[%s663 + $0x8] sm:$0xff]
  %666 = vrot.lane.b32.xlu0 %v484, 126
  %v667 = vpop.permute.xlu0 %666
  %v670 = vsel %vm500, %v664, 0
  %v673 = vsel %vm500, %v665, 0
  %675 = vmatprep.subr.mxu0 0.0
  %676 = vmatpush1.msra.mxu0 %v667
  %677 = vmatprep.subr.mxu0 0.0
  %678 = vmatpush1.msra.mxu0 0.0
  %679 = vmatprep.subr.mxu0 0.0
  %680 = vmatpush1.msra.mxu0 0.0
  %681 = vmatprep.subr.mxu0 0.0
  %682 = vmatpush1.msra.mxu0 0.0
  %683 = vmatprep.subr.mxu0 0.0
  %684 = vmatpush1.msra.mxu0 0.0
  %685 = vmatprep.subr.mxu0 0.0
  %686 = vmatpush1.msra.mxu0 0.0
  %687 = vmatprep.subr.mxu0 0.0
  %688 = vmatpush1.msra.mxu0 0.0
  %689 = vmatprep.subr.mxu0 0.0
  %690 = vmatpush1.msra.mxu0 0.0
  %691 = vmatprep.subr.mxu0 0.0
  %692 = vmatpush1.msra.mxu0 0.0
  %693 = vmatprep.subr.mxu0 0.0
  %694 = vmatpush1.msra.mxu0 0.0
  %695 = vmatprep.subr.mxu0 0.0
  %696 = vmatpush1.msra.mxu0 0.0
  %697 = vmatprep.subr.mxu0 0.0
  %698 = vmatpush1.msra.mxu0 0.0
  %699 = vmatprep.subr.mxu0 0.0
  %700 = vmatpush1.msra.mxu0 0.0
  %701 = vmatprep.subr.mxu0 0.0
  %702 = vmatpush1.msra.mxu0 0.0
  %703 = vmatprep.subr.mxu0 0.0
  %704 = vmatpush1.msra.mxu0 0.0
  %705 = vmatprep.subr.mxu0 0.0
  %706 = vmatpush1.msra.mxu0 0.0
  %707 = vmatprep.subr.mxu0 0.0
  %708 = vmatpush1.msra.mxu0 0.0
  %709 = vmatprep.subr.mxu0 0.0
  %710 = vmatpush1.msra.mxu0 0.0
  %711 = vmatprep.subr.mxu0 0.0
  %712 = vmatpush1.msra.mxu0 0.0
  %713 = vmatprep.subr.mxu0 0.0
  %714 = vmatpush1.msra.mxu0 0.0
  %715 = vmatprep.subr.mxu0 0.0
  %716 = vmatpush1.msra.mxu0 0.0
  %717 = vmatprep.subr.mxu0 0.0
  %718 = vmatpush1.msra.mxu0 0.0
  %719 = vmatprep.subr.mxu0 0.0
  %720 = vmatpush1.msra.mxu0 0.0
  %721 = vmatprep.subr.mxu0 0.0
  %722 = vmatpush1.msra.mxu0 0.0
  %723 = vmatprep.subr.mxu0 0.0
  %724 = vmatpush1.msra.mxu0 0.0
  %725 = vmatprep.subr.mxu0 0.0
  %726 = vmatpush1.msra.mxu0 0.0
  %727 = vmatprep.subr.mxu0 0.0
  %728 = vmatpush1.msra.mxu0 0.0
  %729 = vmatprep.subr.mxu0 0.0
  %730 = vmatpush1.msra.mxu0 0.0
  %731 = vmatprep.subr.mxu0 0.0
  %732 = vmatpush1.msra.mxu0 0.0
  %733 = vmatprep.subr.mxu0 0.0
  %734 = vmatpush1.msra.mxu0 0.0
  %735 = vmatprep.subr.mxu0 0.0
  %736 = vmatpush1.msra.mxu0 0.0
  %737 = vmatprep.subr.mxu0 0.0
  %738 = vmatpush1.msra.mxu0 0.0
  %739 = vmatprep.mubr.f32.mxu0 0.0
  %740 = vmatmul.mubr.f32.gmra.mrb[0].mxu0 %v670
  %v741 = vpop.f32.mrb[0].mxu0
  %v742 = vadd.f32 0.0, %v741
  %v743 = vpop.f32.mrb[0].mxu0
  %744 = vmatprep.mubr.f32.mxu0 0.0
  %745 = vmatmul.mubr.f32.gmra.mrb[0].mxu0 %v673
  %v746 = vpop.f32.mrb[0].mxu0
  %v747 = vadd.f32 0.0, %v746
  %v748 = vpop.f32.mrb[0].mxu0
  %749 = vdwg.mxu0
  %v750 = vadd.f32 %v655, %v742
  %v751 = vadd.f32 %v660, %v747
  %s752 = scalar_lea.vmem %s9, 48
  %v753 = vld [vmem:[%s752] sm:$0xff]
  %v754 = vld [vmem:[%s752 + $0x8] sm:$0xff]
  %755 = vrot.lane.b32.xlu0 %v484, 125
  %v756 = vpop.permute.xlu0 %755
  %v759 = vsel %vm500, %v753, 0
  %v762 = vsel %vm500, %v754, 0
  %764 = vmatprep.subr.mxu0 0.0
  %765 = vmatpush1.msra.mxu0 %v756
  %766 = vmatprep.subr.mxu0 0.0
  %767 = vmatpush1.msra.mxu0 0.0
  %768 = vmatprep.subr.mxu0 0.0
  %769 = vmatpush1.msra.mxu0 0.0
  %770 = vmatprep.subr.mxu0 0.0
  %771 = vmatpush1.msra.mxu0 0.0
  %772 = vmatprep.subr.mxu0 0.0
  %773 = vmatpush1.msra.mxu0 0.0
  %774 = vmatprep.subr.mxu0 0.0
  %775 = vmatpush1.msra.mxu0 0.0
  %776 = vmatprep.subr.mxu0 0.0
  %777 = vmatpush1.msra.mxu0 0.0
  %778 = vmatprep.subr.mxu0 0.0
  %779 = vmatpush1.msra.mxu0 0.0
  %780 = vmatprep.subr.mxu0 0.0
  %781 = vmatpush1.msra.mxu0 0.0
  %782 = vmatprep.subr.mxu0 0.0
  %783 = vmatpush1.msra.mxu0 0.0
  %784 = vmatprep.subr.mxu0 0.0
  %785 = vmatpush1.msra.mxu0 0.0
  %786 = vmatprep.subr.mxu0 0.0
  %787 = vmatpush1.msra.mxu0 0.0
  %788 = vmatprep.subr.mxu0 0.0
  %789 = vmatpush1.msra.mxu0 0.0
  %790 = vmatprep.subr.mxu0 0.0
  %791 = vmatpush1.msra.mxu0 0.0
  %792 = vmatprep.subr.mxu0 0.0
  %793 = vmatpush1.msra.mxu0 0.0
  %794 = vmatprep.subr.mxu0 0.0
  %795 = vmatpush1.msra.mxu0 0.0
  %796 = vmatprep.subr.mxu0 0.0
  %797 = vmatpush1.msra.mxu0 0.0
  %798 = vmatprep.subr.mxu0 0.0
  %799 = vmatpush1.msra.mxu0 0.0
  %800 = vmatprep.subr.mxu0 0.0
  %801 = vmatpush1.msra.mxu0 0.0
  %802 = vmatprep.subr.mxu0 0.0
  %803 = vmatpush1.msra.mxu0 0.0
  %804 = vmatprep.subr.mxu0 0.0
  %805 = vmatpush1.msra.mxu0 0.0
  %806 = vmatprep.subr.mxu0 0.0
  %807 = vmatpush1.msra.mxu0 0.0
  %808 = vmatprep.subr.mxu0 0.0
  %809 = vmatpush1.msra.mxu0 0.0
  %810 = vmatprep.subr.mxu0 0.0
  %811 = vmatpush1.msra.mxu0 0.0
  %812 = vmatprep.subr.mxu0 0.0
  %813 = vmatpush1.msra.mxu0 0.0
  %814 = vmatprep.subr.mxu0 0.0
  %815 = vmatpush1.msra.mxu0 0.0
  %816 = vmatprep.subr.mxu0 0.0
  %817 = vmatpush1.msra.mxu0 0.0
  %818 = vmatprep.subr.mxu0 0.0
  %819 = vmatpush1.msra.mxu0 0.0
  %820 = vmatprep.subr.mxu0 0.0
  %821 = vmatpush1.msra.mxu0 0.0
  %822 = vmatprep.subr.mxu0 0.0
  %823 = vmatpush1.msra.mxu0 0.0
  %824 = vmatprep.subr.mxu0 0.0
  %825 = vmatpush1.msra.mxu0 0.0
  %826 = vmatprep.subr.mxu0 0.0
  %827 = vmatpush1.msra.mxu0 0.0
  %828 = vmatprep.mubr.f32.mxu0 0.0
  %829 = vmatmul.mubr.f32.gmra.mrb[0].mxu0 %v759
  %v830 = vpop.f32.mrb[0].mxu0
  %v831 = vadd.f32 0.0, %v830
  %v832 = vpop.f32.mrb[0].mxu0
  %833 = vmatprep.mubr.f32.mxu0 0.0
  %834 = vmatmul.mubr.f32.gmra.mrb[0].mxu0 %v762
  %v835 = vpop.f32.mrb[0].mxu0
  %v836 = vadd.f32 0.0, %v835
  %v837 = vpop.f32.mrb[0].mxu0
  %838 = vdwg.mxu0
  %v839 = vadd.f32 %v750, %v831
  %v840 = vadd.f32 %v751, %v836
  %s841 = scalar_lea.vmem %s9, 64
  %v842 = vld [vmem:[%s841] sm:$0xff]
  %v843 = vld [vmem:[%s841 + $0x8] sm:$0xff]
  %844 = vrot.lane.b32.xlu0 %v484, 124
  %v845 = vpop.permute.xlu0 %844
  %v848 = vsel %vm500, %v842, 0
  %v851 = vsel %vm500, %v843, 0
  %853 = vmatprep.subr.mxu0 0.0
  %854 = vmatpush1.msra.mxu0 %v845
  %855 = vmatprep.subr.mxu0 0.0
  %856 = vmatpush1.msra.mxu0 0.0
  %857 = vmatprep.subr.mxu0 0.0
  %858 = vmatpush1.msra.mxu0 0.0
  %859 = vmatprep.subr.mxu0 0.0
  %860 = vmatpush1.msra.mxu0 0.0
  %861 = vmatprep.subr.mxu0 0.0
  %862 = vmatpush1.msra.mxu0 0.0
  %863 = vmatprep.subr.mxu0 0.0
  %864 = vmatpush1.msra.mxu0 0.0
  %865 = vmatprep.subr.mxu0 0.0
  %866 = vmatpush1.msra.mxu0 0.0
  %867 = vmatprep.subr.mxu0 0.0
  %868 = vmatpush1.msra.mxu0 0.0
  %869 = vmatprep.subr.mxu0 0.0
  %870 = vmatpush1.msra.mxu0 0.0
  %871 = vmatprep.subr.mxu0 0.0
  %872 = vmatpush1.msra.mxu0 0.0
  %873 = vmatprep.subr.mxu0 0.0
  %874 = vmatpush1.msra.mxu0 0.0
  %875 = vmatprep.subr.mxu0 0.0
  %876 = vmatpush1.msra.mxu0 0.0
  %877 = vmatprep.subr.mxu0 0.0
  %878 = vmatpush1.msra.mxu0 0.0
  %879 = vmatprep.subr.mxu0 0.0
  %880 = vmatpush1.msra.mxu0 0.0
  %881 = vmatprep.subr.mxu0 0.0
  %882 = vmatpush1.msra.mxu0 0.0
  %883 = vmatprep.subr.mxu0 0.0
  %884 = vmatpush1.msra.mxu0 0.0
  %885 = vmatprep.subr.mxu0 0.0
  %886 = vmatpush1.msra.mxu0 0.0
  %887 = vmatprep.subr.mxu0 0.0
  %888 = vmatpush1.msra.mxu0 0.0
  %889 = vmatprep.subr.mxu0 0.0
  %890 = vmatpush1.msra.mxu0 0.0
  %891 = vmatprep.subr.mxu0 0.0
  %892 = vmatpush1.msra.mxu0 0.0
  %893 = vmatprep.subr.mxu0 0.0
  %894 = vmatpush1.msra.mxu0 0.0
  %895 = vmatprep.subr.mxu0 0.0
  %896 = vmatpush1.msra.mxu0 0.0
  %897 = vmatprep.subr.mxu0 0.0
  %898 = vmatpush1.msra.mxu0 0.0
  %899 = vmatprep.subr.mxu0 0.0
  %900 = vmatpush1.msra.mxu0 0.0
  %901 = vmatprep.subr.mxu0 0.0
  %902 = vmatpush1.msra.mxu0 0.0
  %903 = vmatprep.subr.mxu0 0.0
  %904 = vmatpush1.msra.mxu0 0.0
  %905 = vmatprep.subr.mxu0 0.0
  %906 = vmatpush1.msra.mxu0 0.0
  %907 = vmatprep.subr.mxu0 0.0
  %908 = vmatpush1.msra.mxu0 0.0
  %909 = vmatprep.subr.mxu0 0.0
  %910 = vmatpush1.msra.mxu0 0.0
  %911 = vmatprep.subr.mxu0 0.0
  %912 = vmatpush1.msra.mxu0 0.0
  %913 = vmatprep.subr.mxu0 0.0
  %914 = vmatpush1.msra.mxu0 0.0
  %915 = vmatprep.subr.mxu0 0.0
  %916 = vmatpush1.msra.mxu0 0.0
  %917 = vmatprep.mubr.f32.mxu0 0.0
  %918 = vmatmul.mubr.f32.gmra.mrb[0].mxu0 %v848
  %v919 = vpop.f32.mrb[0].mxu0
  %v920 = vadd.f32 0.0, %v919
  %v921 = vpop.f32.mrb[0].mxu0
  %922 = vmatprep.mubr.f32.mxu0 0.0
  %923 = vmatmul.mubr.f32.gmra.mrb[0].mxu0 %v851
  %v924 = vpop.f32.mrb[0].mxu0
  %v925 = vadd.f32 0.0, %v924
  %v926 = vpop.f32.mrb[0].mxu0
  %927 = vdwg.mxu0
  %v928 = vadd.f32 %v839, %v920
  %v929 = vadd.f32 %v840, %v925
  %s930 = scalar_lea.vmem %s9, 80
  %v931 = vld [vmem:[%s930] sm:$0xff]
  %v932 = vld [vmem:[%s930 + $0x8] sm:$0xff]
  %933 = vrot.lane.b32.xlu0 %v484, 123
  %v934 = vpop.permute.xlu0 %933
  %v937 = vsel %vm500, %v931, 0
  %v940 = vsel %vm500, %v932, 0
  %942 = vmatprep.subr.mxu0 0.0
  %943 = vmatpush1.msra.mxu0 %v934
  %944 = vmatprep.subr.mxu0 0.0
  %945 = vmatpush1.msra.mxu0 0.0
  %946 = vmatprep.subr.mxu0 0.0
  %947 = vmatpush1.msra.mxu0 0.0
  %948 = vmatprep.subr.mxu0 0.0
  %949 = vmatpush1.msra.mxu0 0.0
  %950 = vmatprep.subr.mxu0 0.0
  %951 = vmatpush1.msra.mxu0 0.0
  %952 = vmatprep.subr.mxu0 0.0
  %953 = vmatpush1.msra.mxu0 0.0
  %954 = vmatprep.subr.mxu0 0.0
  %955 = vmatpush1.msra.mxu0 0.0
  %956 = vmatprep.subr.mxu0 0.0
  %957 = vmatpush1.msra.mxu0 0.0
  %958 = vmatprep.subr.mxu0 0.0
  %959 = vmatpush1.msra.mxu0 0.0
  %960 = vmatprep.subr.mxu0 0.0
  %961 = vmatpush1.msra.mxu0 0.0
  %962 = vmatprep.subr.mxu0 0.0
  %963 = vmatpush1.msra.mxu0 0.0
  %964 = vmatprep.subr.mxu0 0.0
  %965 = vmatpush1.msra.mxu0 0.0
  %966 = vmatprep.subr.mxu0 0.0
  %967 = vmatpush1.msra.mxu0 0.0
  %968 = vmatprep.subr.mxu0 0.0
  %969 = vmatpush1.msra.mxu0 0.0
  %970 = vmatprep.subr.mxu0 0.0
  %971 = vmatpush1.msra.mxu0 0.0
  %972 = vmatprep.subr.mxu0 0.0
  %973 = vmatpush1.msra.mxu0 0.0
  %974 = vmatprep.subr.mxu0 0.0
  %975 = vmatpush1.msra.mxu0 0.0
  %976 = vmatprep.subr.mxu0 0.0
  %977 = vmatpush1.msra.mxu0 0.0
  %978 = vmatprep.subr.mxu0 0.0
  %979 = vmatpush1.msra.mxu0 0.0
  %980 = vmatprep.subr.mxu0 0.0
  %981 = vmatpush1.msra.mxu0 0.0
  %982 = vmatprep.subr.mxu0 0.0
  %983 = vmatpush1.msra.mxu0 0.0
  %984 = vmatprep.subr.mxu0 0.0
  %985 = vmatpush1.msra.mxu0 0.0
  %986 = vmatprep.subr.mxu0 0.0
  %987 = vmatpush1.msra.mxu0 0.0
  %988 = vmatprep.subr.mxu0 0.0
  %989 = vmatpush1.msra.mxu0 0.0
  %990 = vmatprep.subr.mxu0 0.0
  %991 = vmatpush1.msra.mxu0 0.0
  %992 = vmatprep.subr.mxu0 0.0
  %993 = vmatpush1.msra.mxu0 0.0
  %994 = vmatprep.subr.mxu0 0.0
  %995 = vmatpush1.msra.mxu0 0.0
  %996 = vmatprep.subr.mxu0 0.0
  %997 = vmatpush1.msra.mxu0 0.0
  %998 = vmatprep.subr.mxu0 0.0
  %999 = vmatpush1.msra.mxu0 0.0
  %1000 = vmatprep.subr.mxu0 0.0
  %1001 = vmatpush1.msra.mxu0 0.0
  %1002 = vmatprep.subr.mxu0 0.0
  %1003 = vmatpush1.msra.mxu0 0.0
  %1004 = vmatprep.subr.mxu0 0.0
  %1005 = vmatpush1.msra.mxu0 0.0
  %1006 = vmatprep.mubr.f32.mxu0 0.0
  %1007 = vmatmul.mubr.f32.gmra.mrb[0].mxu0 %v937
  %v1008 = vpop.f32.mrb[0].mxu0
  %v1009 = vadd.f32 0.0, %v1008
  %v1010 = vpop.f32.mrb[0].mxu0
  %1011 = vmatprep.mubr.f32.mxu0 0.0
  %1012 = vmatmul.mubr.f32.gmra.mrb[0].mxu0 %v940
  %v1013 = vpop.f32.mrb[0].mxu0
  %v1014 = vadd.f32 0.0, %v1013
  %v1015 = vpop.f32.mrb[0].mxu0
  %1016 = vdwg.mxu0
  %v1017 = vadd.f32 %v928, %v1009
  %v1018 = vadd.f32 %v929, %v1014
  %s1019 = scalar_lea.vmem %s9, 96
  %v1020 = vld [vmem:[%s1019] sm:$0xff]
  %v1021 = vld [vmem:[%s1019 + $0x8] sm:$0xff]
  %1022 = vrot.lane.b32.xlu0 %v484, 122
  %v1023 = vpop.permute.xlu0 %1022
  %v1026 = vsel %vm500, %v1020, 0
  %v1029 = vsel %vm500, %v1021, 0
  %1031 = vmatprep.subr.mxu0 0.0
  %1032 = vmatpush1.msra.mxu0 %v1023
  %1033 = vmatprep.subr.mxu0 0.0
  %1034 = vmatpush1.msra.mxu0 0.0
  %1035 = vmatprep.subr.mxu0 0.0
  %1036 = vmatpush1.msra.mxu0 0.0
  %1037 = vmatprep.subr.mxu0 0.0
  %1038 = vmatpush1.msra.mxu0 0.0
  %1039 = vmatprep.subr.mxu0 0.0
  %1040 = vmatpush1.msra.mxu0 0.0
  %1041 = vmatprep.subr.mxu0 0.0
  %1042 = vmatpush1.msra.mxu0 0.0
  %1043 = vmatprep.subr.mxu0 0.0
  %1044 = vmatpush1.msra.mxu0 0.0
  %1045 = vmatprep.subr.mxu0 0.0
  %1046 = vmatpush1.msra.mxu0 0.0
  %1047 = vmatprep.subr.mxu0 0.0
  %1048 = vmatpush1.msra.mxu0 0.0
  %1049 = vmatprep.subr.mxu0 0.0
  %1050 = vmatpush1.msra.mxu0 0.0
  %1051 = vmatprep.subr.mxu0 0.0
  %1052 = vmatpush1.msra.mxu0 0.0
  %1053 = vmatprep.subr.mxu0 0.0
  %1054 = vmatpush1.msra.mxu0 0.0
  %1055 = vmatprep.subr.mxu0 0.0
  %1056 = vmatpush1.msra.mxu0 0.0
  %1057 = vmatprep.subr.mxu0 0.0
  %1058 = vmatpush1.msra.mxu0 0.0
  %1059 = vmatprep.subr.mxu0 0.0
  %1060 = vmatpush1.msra.mxu0 0.0
  %1061 = vmatprep.subr.mxu0 0.0
  %1062 = vmatpush1.msra.mxu0 0.0
  %1063 = vmatprep.subr.mxu0 0.0
  %1064 = vmatpush1.msra.mxu0 0.0
  %1065 = vmatprep.subr.mxu0 0.0
  %1066 = vmatpush1.msra.mxu0 0.0
  %1067 = vmatprep.subr.mxu0 0.0
  %1068 = vmatpush1.msra.mxu0 0.0
  %1069 = vmatprep.subr.mxu0 0.0
  %1070 = vmatpush1.msra.mxu0 0.0
  %1071 = vmatprep.subr.mxu0 0.0
  %1072 = vmatpush1.msra.mxu0 0.0
  %1073 = vmatprep.subr.mxu0 0.0
  %1074 = vmatpush1.msra.mxu0 0.0
  %1075 = vmatprep.subr.mxu0 0.0
  %1076 = vmatpush1.msra.mxu0 0.0
  %1077 = vmatprep.subr.mxu0 0.0
  %1078 = vmatpush1.msra.mxu0 0.0
  %1079 = vmatprep.subr.mxu0 0.0
  %1080 = vmatpush1.msra.mxu0 0.0
  %1081 = vmatprep.subr.mxu0 0.0
  %1082 = vmatpush1.msra.mxu0 0.0
  %1083 = vmatprep.subr.mxu0 0.0
  %1084 = vmatpush1.msra.mxu0 0.0
  %1085 = vmatprep.subr.mxu0 0.0
  %1086 = vmatpush1.msra.mxu0 0.0
  %1087 = vmatprep.subr.mxu0 0.0
  %1088 = vmatpush1.msra.mxu0 0.0
  %1089 = vmatprep.subr.mxu0 0.0
  %1090 = vmatpush1.msra.mxu0 0.0
  %1091 = vmatprep.subr.mxu0 0.0
  %1092 = vmatpush1.msra.mxu0 0.0
  %1093 = vmatprep.subr.mxu0 0.0
  %1094 = vmatpush1.msra.mxu0 0.0
  %1095 = vmatprep.mubr.f32.mxu0 0.0
  %1096 = vmatmul.mubr.f32.gmra.mrb[0].mxu0 %v1026
  %v1097 = vpop.f32.mrb[0].mxu0
  %v1098 = vadd.f32 0.0, %v1097
  %v1099 = vpop.f32.mrb[0].mxu0
  %1100 = vmatprep.mubr.f32.mxu0 0.0
  %1101 = vmatmul.mubr.f32.gmra.mrb[0].mxu0 %v1029
  %v1102 = vpop.f32.mrb[0].mxu0
  %v1103 = vadd.f32 0.0, %v1102
  %v1104 = vpop.f32.mrb[0].mxu0
  %1105 = vdwg.mxu0
  %v1106 = vadd.f32 %v1017, %v1098
  %v1107 = vadd.f32 %v1018, %v1103
  %v1108 = vld [vmem:[%s17] sm:$0xff]
  %v1109 = vld [vmem:[%s17 + $0x8] sm:$0xff]
  %v1110 = vld [vmem:[%s17 + $0x10] sm:$0xff]
  %v1111 = vld [vmem:[%s17 + $0x18] sm:$0xff]
  %v1112 = vld [vmem:[%s17 + $0x20] sm:$0xff]
  %v1113 = vld [vmem:[%s17 + $0x28] sm:$0xff]
  %v1114 = vld [vmem:[%s17 + $0x30] sm:$0xff]
  %v1115 = vld [vmem:[%s17 + $0x38] sm:$0xff]
  %v1116 = vld [vmem:[%s17 + $0x40] sm:$0xff]
  %v1117 = vld [vmem:[%s17 + $0x48] sm:$0xff]
  %v1118 = vld [vmem:[%s17 + $0x50] sm:$0xff]
  %v1119 = vld [vmem:[%s17 + $0x58] sm:$0xff]
  %v1120 = vld [vmem:[%s17 + $0x60] sm:$0xff]
  %v1121 = vld [vmem:[%s17 + $0x68] sm:$0xff]
  %1123 = vset.pattern.permute.xlu0 0
  %1124 = vperm.xlu0 %1123, %v485
  %v1125 = vpop.permute.xlu0 %1124
  %1128 = vset.pattern.permute.xlu0 0
  %1129 = vperm.xlu0 %1128, %v486
  %v1130 = vpop.permute.xlu0 %1129
  %vm1132 = vcmask 916480
  %v1134 = vsel %vm1132, %v1106, 0
  %v1137 = vsel %vm1132, %v1107, 0
  %1139 = vmatprep.subr.mxu0 0.0
  %1140 = vmatpush1.msra.mxu0 %v1108
  %1141 = vmatprep.subr.mxu0 0.0
  %1142 = vmatpush1.msra.mxu0 %v1109
  %1143 = vmatprep.subr.mxu0 0.0
  %1144 = vmatpush1.msra.mxu0 %v1110
  %1145 = vmatprep.subr.mxu0 0.0
  %1146 = vmatpush1.msra.mxu0 %v1111
  %1147 = vmatprep.subr.mxu0 0.0
  %1148 = vmatpush1.msra.mxu0 %v1112
  %1149 = vmatprep.subr.mxu0 0.0
  %1150 = vmatpush1.msra.mxu0 %v1113
  %1151 = vmatprep.subr.mxu0 0.0
  %1152 = vmatpush1.msra.mxu0 %v1114
  %1153 = vmatprep.subr.mxu0 0.0
  %1154 = vmatpush1.msra.mxu0 %v1115
  %1155 = vmatprep.subr.mxu0 0.0
  %1156 = vmatpush1.msra.mxu0 %v1116
  %1157 = vmatprep.subr.mxu0 0.0
  %1158 = vmatpush1.msra.mxu0 %v1117
  %1159 = vmatprep.subr.mxu0 0.0
  %1160 = vmatpush1.msra.mxu0 %v1118
  %1161 = vmatprep.subr.mxu0 0.0
  %1162 = vmatpush1.msra.mxu0 %v1119
  %1163 = vmatprep.subr.mxu0 0.0
  %1164 = vmatpush1.msra.mxu0 %v1120
  %1165 = vmatprep.subr.mxu0 0.0
  %1166 = vmatpush1.msra.mxu0 %v1121
  %1167 = vmatprep.subr.mxu0 0.0
  %1168 = vmatpush1.msra.mxu0 0.0
  %1169 = vmatprep.subr.mxu0 0.0
  %1170 = vmatpush1.msra.mxu0 0.0
  %1171 = vmatprep.subr.mxu0 0.0
  %1172 = vmatpush1.msra.mxu0 0.0
  %1173 = vmatprep.subr.mxu0 0.0
  %1174 = vmatpush1.msra.mxu0 0.0
  %1175 = vmatprep.subr.mxu0 0.0
  %1176 = vmatpush1.msra.mxu0 0.0
  %1177 = vmatprep.subr.mxu0 0.0
  %1178 = vmatpush1.msra.mxu0 0.0
  %1179 = vmatprep.subr.mxu0 0.0
  %1180 = vmatpush1.msra.mxu0 0.0
  %1181 = vmatprep.subr.mxu0 0.0
  %1182 = vmatpush1.msra.mxu0 0.0
  %1183 = vmatprep.subr.mxu0 0.0
  %1184 = vmatpush1.msra.mxu0 0.0
  %1185 = vmatprep.subr.mxu0 0.0
  %1186 = vmatpush1.msra.mxu0 0.0
  %1187 = vmatprep.subr.mxu0 0.0
  %1188 = vmatpush1.msra.mxu0 0.0
  %1189 = vmatprep.subr.mxu0 0.0
  %1190 = vmatpush1.msra.mxu0 0.0
  %1191 = vmatprep.subr.mxu0 0.0
  %1192 = vmatpush1.msra.mxu0 0.0
  %1193 = vmatprep.subr.mxu0 0.0
  %1194 = vmatpush1.msra.mxu0 0.0
  %1195 = vmatprep.subr.mxu0 0.0
  %1196 = vmatpush1.msra.mxu0 0.0
  %1197 = vmatprep.subr.mxu0 0.0
  %1198 = vmatpush1.msra.mxu0 0.0
  %1199 = vmatprep.subr.mxu0 0.0
  %1200 = vmatpush1.msra.mxu0 0.0
  %1201 = vmatprep.subr.mxu0 0.0
  %1202 = vmatpush1.msra.mxu0 0.0
  %1203 = vmatprep.mubr.f32.mxu0 0.0
  %1204 = vmatmul.mubr.f32.gmra.mrb[0].mxu0 %v1134
  %v1205 = vpop.f32.mrb[0].mxu0
  %v1206 = vadd.f32 %v1125, %v1205
  %v1207 = vpop.f32.mrb[0].mxu0
  %1208 = vmatprep.mubr.f32.mxu0 0.0
  %1209 = vmatmul.mubr.f32.gmra.mrb[0].mxu0 %v1137
  %v1210 = vpop.f32.mrb[0].mxu0
  %v1211 = vadd.f32 %v1130, %v1210
  %v1212 = vpop.f32.mrb[0].mxu0
  %1213 = vdwg.mxu0
  %vm1214 = vcmask 441344
  %v1215 = vsel %vm1214, %v1206, 0.0
  %1216 = vadd.xlane.f32.xlu0 %v1215
  %v1217 = vpop.xlane.xlu0 %1216
  %v1218 = vsel %vm1214, %v1211, 0.0
  %1219 = vadd.xlane.f32.xlu0 %v1218
  %v1220 = vpop.xlane.xlu0 %1219
  %v1221 = vmul.f32 %v1217, 0.018518519
  %v1222 = vmul.f32 %v1220, 0.018518519
  %v1223 = vsub.f32 %v1206, %v1221
  %v1224 = vsub.f32 %v1211, %v1222
  %v1225 = vmul.f32 %v1223, %v1223
  %v1226 = vmul.f32 %v1224, %v1224
  %v1227 = vsel %vm1214, %v1225, 0.0
  %1228 = vadd.xlane.f32.xlu0 %v1227
  %v1229 = vpop.xlane.xlu0 %1228
  %v1230 = vsel %vm1214, %v1226, 0.0
  %1231 = vadd.xlane.f32.xlu0 %v1230
  %v1232 = vpop.xlane.xlu0 %1231
  %v1233 = vmul.f32 %v1229, 0.018518519
  %v1234 = vmul.f32 %v1232, 0.018518519
  %v1235 = vadd.f32 %v1233, 1e-05
  %v1236 = vadd.f32 %v1234, 1e-05
  %v1237 = vrsqrt.pop %v1235
  %v1238 = vrsqrt.pop %v1236
  %v1239 = vmul.f32 %v487, %v1237
  %v1240 = vmul.f32 %v488, %v1238
  %1242 = vset.pattern.permute.xlu0 0
  %1243 = vperm.xlu0 %1242, %v1239
  %v1244 = vpop.permute.xlu0 %1243
  %1247 = vset.pattern.permute.xlu0 0
  %1248 = vperm.xlu0 %1247, %v1240
  %v1249 = vpop.permute.xlu0 %1248
  %v1251 = vmul.f32 %v1223, %v1244
  %v1252 = vmul.f32 %v1224, %v1249
  %1254 = vset.pattern.permute.xlu0 0
  %1255 = vperm.xlu0 %1254, %v489
  %v1256 = vpop.permute.xlu0 %1255
  %1259 = vset.pattern.permute.xlu0 0
  %1260 = vperm.xlu0 %1259, %v490
  %v1261 = vpop.permute.xlu0 %1260
  %v1263 = vadd.f32 %v1251, %v1256
  %v1264 = vadd.f32 %v1252, %v1261
  %vm1265 = vcmp.ge.f32.partialorder %v1263, 0.0
  %vm1266 = vcmp.ge.f32.partialorder %v1264, 0.0
  %v1267 = vmul.f32 %v1263, 0.2
  %v1268 = vmul.f32 %v1264, 0.2
  %v1269 = vsel %vm1265, %v1263, %v1267
  %v1270 = vsel %vm1266, %v1264, %v1268
  %v1271 = vld [vmem:[%s21] sm:$0xff]
  %v1272 = vld [vmem:[%s21 + $0x8] sm:$0xff]
  %v1273 = vld [vmem:[%s21 + $0x10] sm:$0xff]
  %v1274 = vld [vmem:[%s21 + $0x18] sm:$0xff]
  %v1275 = vld [vmem:[%s23] sm:$0xff]
  %v1276 = vld [vmem:[%s23 + $0x8] sm:$0xff]
  %v1277 = vld [vmem:[%s23 + $0x10] sm:$0xff]
  %v1278 = vld [vmem:[%s23 + $0x18] sm:$0xff]
  %v1279 = vld [vmem:[%s25] sm:$0xff]
  %v1280 = vld [vmem:[%s25 + $0x8] sm:$0xff]
  %v1281 = vld [vmem:[%s25 + $0x10] sm:$0xff]
  %v1282 = vld [vmem:[%s25 + $0x18] sm:$0xff]
  %v1283 = vld [vmem:[%s19] sm:$0xff]
  %v1284 = vld [vmem:[%s19 + $0x8] sm:$0xff]
  %v1285 = vld [vmem:[%s19 + $0x10] sm:$0xff]
  %v1286 = vld [vmem:[%s19 + $0x18] sm:$0xff]
  %s1287 = scalar_lea.vmem %s19, 32
  %v1288 = vld [vmem:[%s1287] sm:$0xff]
  %v1289 = vld [vmem:[%s1287 + $0x8] sm:$0xff]
  %v1290 = vld [vmem:[%s1287 + $0x10] sm:$0xff]
  %v1291 = vld [vmem:[%s1287 + $0x18] sm:$0xff]
  %1294 = vrot.lane.b32.xlu0 %v1269, 127
  %v1295 = vpop.permute.xlu0 %1294
  %1296 = vrot.lane.b32.xlu0 %v1270, 127
  %v1297 = vpop.permute.xlu0 %1296
  %vm1300 = vcmask 130048
  %v1302 = vsel %vm1300, %v1288, 0
  %v1305 = vsel %vm1300, %v1289, 0
  %v1308 = vsel %vm1300, %v1290, 0
  %v1311 = vsel %vm1300, %v1291, 0
  %1313 = vmatprep.subr.mxu0 0.0
  %1314 = vmatpush1.msra.mxu0 %v1295
  %1315 = vmatprep.subr.mxu0 0.0
  %1316 = vmatpush1.msra.mxu0 %v1297
  %1317 = vmatprep.subr.mxu0 0.0
  %1318 = vmatpush1.msra.mxu0 0.0
  %1319 = vmatprep.subr.mxu0 0.0
  %1320 = vmatpush1.msra.mxu0 0.0
  %1321 = vmatprep.subr.mxu0 0.0
  %1322 = vmatpush1.msra.mxu0 0.0
  %1323 = vmatprep.subr.mxu0 0.0
  %1324 = vmatpush1.msra.mxu0 0.0
  %1325 = vmatprep.subr.mxu0 0.0
  %1326 = vmatpush1.msra.mxu0 0.0
  %1327 = vmatprep.subr.mxu0 0.0
  %1328 = vmatpush1.msra.mxu0 0.0
  %1329 = vmatprep.subr.mxu0 0.0
  %1330 = vmatpush1.msra.mxu0 0.0
  %1331 = vmatprep.subr.mxu0 0.0
  %1332 = vmatpush1.msra.mxu0 0.0
  %1333 = vmatprep.subr.mxu0 0.0
  %1334 = vmatpush1.msra.mxu0 0.0
  %1335 = vmatprep.subr.mxu0 0.0
  %1336 = vmatpush1.msra.mxu0 0.0
  %1337 = vmatprep.subr.mxu0 0.0
  %1338 = vmatpush1.msra.mxu0 0.0
  %1339 = vmatprep.subr.mxu0 0.0
  %1340 = vmatpush1.msra.mxu0 0.0
  %1341 = vmatprep.subr.mxu0 0.0
  %1342 = vmatpush1.msra.mxu0 0.0
  %1343 = vmatprep.subr.mxu0 0.0
  %1344 = vmatpush1.msra.mxu0 0.0
  %1345 = vmatprep.subr.mxu0 0.0
  %1346 = vmatpush1.msra.mxu0 0.0
  %1347 = vmatprep.subr.mxu0 0.0
  %1348 = vmatpush1.msra.mxu0 0.0
  %1349 = vmatprep.subr.mxu0 0.0
  %1350 = vmatpush1.msra.mxu0 0.0
  %1351 = vmatprep.subr.mxu0 0.0
  %1352 = vmatpush1.msra.mxu0 0.0
  %1353 = vmatprep.subr.mxu0 0.0
  %1354 = vmatpush1.msra.mxu0 0.0
  %1355 = vmatprep.subr.mxu0 0.0
  %1356 = vmatpush1.msra.mxu0 0.0
  %1357 = vmatprep.subr.mxu0 0.0
  %1358 = vmatpush1.msra.mxu0 0.0
  %1359 = vmatprep.subr.mxu0 0.0
  %1360 = vmatpush1.msra.mxu0 0.0
  %1361 = vmatprep.subr.mxu0 0.0
  %1362 = vmatpush1.msra.mxu0 0.0
  %1363 = vmatprep.subr.mxu0 0.0
  %1364 = vmatpush1.msra.mxu0 0.0
  %1365 = vmatprep.subr.mxu0 0.0
  %1366 = vmatpush1.msra.mxu0 0.0
  %1367 = vmatprep.subr.mxu0 0.0
  %1368 = vmatpush1.msra.mxu0 0.0
  %1369 = vmatprep.subr.mxu0 0.0
  %1370 = vmatpush1.msra.mxu0 0.0
  %1371 = vmatprep.subr.mxu0 0.0
  %1372 = vmatpush1.msra.mxu0 0.0
  %1373 = vmatprep.subr.mxu0 0.0
  %1374 = vmatpush1.msra.mxu0 0.0
  %1375 = vmatprep.subr.mxu0 0.0
  %1376 = vmatpush1.msra.mxu0 0.0
  %1377 = vmatprep.mubr.f32.mxu0 0.0
  %1378 = vmatmul.mubr.f32.gmra.mrb[0].mxu0 %v1302
  %v1379 = vpop.f32.mrb[0].mxu0
  %v1380 = vadd.f32 0.0, %v1379
  %v1381 = vpop.f32.mrb[0].mxu0
  %1382 = vmatprep.mubr.f32.mxu0 0.0
  %1383 = vmatmul.mubr.f32.gmra.mrb[0].mxu0 %v1305
  %v1384 = vpop.f32.mrb[0].mxu0
  %v1385 = vadd.f32 0.0, %v1384
  %v1386 = vpop.f32.mrb[0].mxu0
  %1387 = vmatprep.mubr.f32.mxu0 0.0
  %1388 = vmatmul.mubr.f32.gmra.mrb[0].mxu0 %v1308
  %v1389 = vpop.f32.mrb[0].mxu0
  %v1390 = vadd.f32 0.0, %v1389
  %v1391 = vpop.f32.mrb[0].mxu0
  %1392 = vmatprep.mubr.f32.mxu0 0.0
  %1393 = vmatmul.mubr.f32.gmra.mrb[0].mxu0 %v1311
  %v1394 = vpop.f32.mrb[0].mxu0
  %v1395 = vadd.f32 0.0, %v1394
  %v1396 = vpop.f32.mrb[0].mxu0
  %1397 = vdwg.mxu0
  %v1399 = vsel %vm1300, %v1283, 0
  %v1402 = vsel %vm1300, %v1284, 0
  %v1405 = vsel %vm1300, %v1285, 0
  %v1408 = vsel %vm1300, %v1286, 0
  %1410 = vmatprep.subr.mxu0 0.0
  %1411 = vmatpush1.msra.mxu0 %v1269
  %1412 = vmatprep.subr.mxu0 0.0
  %1413 = vmatpush1.msra.mxu0 %v1270
  %1414 = vmatprep.subr.mxu0 0.0
  %1415 = vmatpush1.msra.mxu0 0.0
  %1416 = vmatprep.subr.mxu0 0.0
  %1417 = vmatpush1.msra.mxu0 0.0
  %1418 = vmatprep.subr.mxu0 0.0
  %1419 = vmatpush1.msra.mxu0 0.0
  %1420 = vmatprep.subr.mxu0 0.0
  %1421 = vmatpush1.msra.mxu0 0.0
  %1422 = vmatprep.subr.mxu0 0.0
  %1423 = vmatpush1.msra.mxu0 0.0
  %1424 = vmatprep.subr.mxu0 0.0
  %1425 = vmatpush1.msra.mxu0 0.0
  %1426 = vmatprep.subr.mxu0 0.0
  %1427 = vmatpush1.msra.mxu0 0.0
  %1428 = vmatprep.subr.mxu0 0.0
  %1429 = vmatpush1.msra.mxu0 0.0
  %1430 = vmatprep.subr.mxu0 0.0
  %1431 = vmatpush1.msra.mxu0 0.0
  %1432 = vmatprep.subr.mxu0 0.0
  %1433 = vmatpush1.msra.mxu0 0.0
  %1434 = vmatprep.subr.mxu0 0.0
  %1435 = vmatpush1.msra.mxu0 0.0
  %1436 = vmatprep.subr.mxu0 0.0
  %1437 = vmatpush1.msra.mxu0 0.0
  %1438 = vmatprep.subr.mxu0 0.0
  %1439 = vmatpush1.msra.mxu0 0.0
  %1440 = vmatprep.subr.mxu0 0.0
  %1441 = vmatpush1.msra.mxu0 0.0
  %1442 = vmatprep.subr.mxu0 0.0
  %1443 = vmatpush1.msra.mxu0 0.0
  %1444 = vmatprep.subr.mxu0 0.0
  %1445 = vmatpush1.msra.mxu0 0.0
  %1446 = vmatprep.subr.mxu0 0.0
  %1447 = vmatpush1.msra.mxu0 0.0
  %1448 = vmatprep.subr.mxu0 0.0
  %1449 = vmatpush1.msra.mxu0 0.0
  %1450 = vmatprep.subr.mxu0 0.0
  %1451 = vmatpush1.msra.mxu0 0.0
  %1452 = vmatprep.subr.mxu0 0.0
  %1453 = vmatpush1.msra.mxu0 0.0
  %1454 = vmatprep.subr.mxu0 0.0
  %1455 = vmatpush1.msra.mxu0 0.0
  %1456 = vmatprep.subr.mxu0 0.0
  %1457 = vmatpush1.msra.mxu0 0.0
  %1458 = vmatprep.subr.mxu0 0.0
  %1459 = vmatpush1.msra.mxu0 0.0
  %1460 = vmatprep.subr.mxu0 0.0
  %1461 = vmatpush1.msra.mxu0 0.0
  %1462 = vmatprep.subr.mxu0 0.0
  %1463 = vmatpush1.msra.mxu0 0.0
  %1464 = vmatprep.subr.mxu0 0.0
  %1465 = vmatpush1.msra.mxu0 0.0
  %1466 = vmatprep.subr.mxu0 0.0
  %1467 = vmatpush1.msra.mxu0 0.0
  %1468 = vmatprep.subr.mxu0 0.0
  %1469 = vmatpush1.msra.mxu0 0.0
  %1470 = vmatprep.subr.mxu0 0.0
  %1471 = vmatpush1.msra.mxu0 0.0
  %1472 = vmatprep.subr.mxu0 0.0
  %1473 = vmatpush1.msra.mxu0 0.0
  %1474 = vmatprep.mubr.f32.mxu0 0.0
  %1475 = vmatmul.mubr.f32.gmra.mrb[0].mxu0 %v1399
  %v1476 = vpop.f32.mrb[0].mxu0
  %v1477 = vadd.f32 %v1380, %v1476
  %v1478 = vpop.f32.mrb[0].mxu0
  %1479 = vmatprep.mubr.f32.mxu0 0.0
  %1480 = vmatmul.mubr.f32.gmra.mrb[0].mxu0 %v1402
  %v1481 = vpop.f32.mrb[0].mxu0
  %v1482 = vadd.f32 %v1385, %v1481
  %v1483 = vpop.f32.mrb[0].mxu0
  %1484 = vmatprep.mubr.f32.mxu0 0.0
  %1485 = vmatmul.mubr.f32.gmra.mrb[0].mxu0 %v1405
  %v1486 = vpop.f32.mrb[0].mxu0
  %v1487 = vadd.f32 %v1390, %v1486
  %v1488 = vpop.f32.mrb[0].mxu0
  %1489 = vmatprep.mubr.f32.mxu0 0.0
  %1490 = vmatmul.mubr.f32.gmra.mrb[0].mxu0 %v1408
  %v1491 = vpop.f32.mrb[0].mxu0
  %v1492 = vadd.f32 %v1395, %v1491
  %v1493 = vpop.f32.mrb[0].mxu0
  %1494 = vdwg.mxu0
  %s1495 = scalar_lea.vmem %s19, 64
  %v1496 = vld [vmem:[%s1495] sm:$0xff]
  %v1497 = vld [vmem:[%s1495 + $0x8] sm:$0xff]
  %v1498 = vld [vmem:[%s1495 + $0x10] sm:$0xff]
  %v1499 = vld [vmem:[%s1495 + $0x18] sm:$0xff]
  %1500 = vrot.lane.b32.xlu0 %v1269, 126
  %v1501 = vpop.permute.xlu0 %1500
  %1502 = vrot.lane.b32.xlu0 %v1270, 126
  %v1503 = vpop.permute.xlu0 %1502
  %v1507 = vsel %vm1300, %v1496, 0
  %v1510 = vsel %vm1300, %v1497, 0
  %v1513 = vsel %vm1300, %v1498, 0
  %v1516 = vsel %vm1300, %v1499, 0
  %1518 = vmatprep.subr.mxu0 0.0
  %1519 = vmatpush1.msra.mxu0 %v1501
  %1520 = vmatprep.subr.mxu0 0.0
  %1521 = vmatpush1.msra.mxu0 %v1503
  %1522 = vmatprep.subr.mxu0 0.0
  %1523 = vmatpush1.msra.mxu0 0.0
  %1524 = vmatprep.subr.mxu0 0.0
  %1525 = vmatpush1.msra.mxu0 0.0
  %1526 = vmatprep.subr.mxu0 0.0
  %1527 = vmatpush1.msra.mxu0 0.0
  %1528 = vmatprep.subr.mxu0 0.0
  %1529 = vmatpush1.msra.mxu0 0.0
  %1530 = vmatprep.subr.mxu0 0.0
  %1531 = vmatpush1.msra.mxu0 0.0
  %1532 = vmatprep.subr.mxu0 0.0
  %1533 = vmatpush1.msra.mxu0 0.0
  %1534 = vmatprep.subr.mxu0 0.0
  %1535 = vmatpush1.msra.mxu0 0.0
  %1536 = vmatprep.subr.mxu0 0.0
  %1537 = vmatpush1.msra.mxu0 0.0
  %1538 = vmatprep.subr.mxu0 0.0
  %1539 = vmatpush1.msra.mxu0 0.0
  %1540 = vmatprep.subr.mxu0 0.0
  %1541 = vmatpush1.msra.mxu0 0.0
  %1542 = vmatprep.subr.mxu0 0.0
  %1543 = vmatpush1.msra.mxu0 0.0
  %1544 = vmatprep.subr.mxu0 0.0
  %1545 = vmatpush1.msra.mxu0 0.0
  %1546 = vmatprep.subr.mxu0 0.0
  %1547 = vmatpush1.msra.mxu0 0.0
  %1548 = vmatprep.subr.mxu0 0.0
  %1549 = vmatpush1.msra.mxu0 0.0
  %1550 = vmatprep.subr.mxu0 0.0
  %1551 = vmatpush1.msra.mxu0 0.0
  %1552 = vmatprep.subr.mxu0 0.0
  %1553 = vmatpush1.msra.mxu0 0.0
  %1554 = vmatprep.subr.mxu0 0.0
  %1555 = vmatpush1.msra.mxu0 0.0
  %1556 = vmatprep.subr.mxu0 0.0
  %1557 = vmatpush1.msra.mxu0 0.0
  %1558 = vmatprep.subr.mxu0 0.0
  %1559 = vmatpush1.msra.mxu0 0.0
  %1560 = vmatprep.subr.mxu0 0.0
  %1561 = vmatpush1.msra.mxu0 0.0
  %1562 = vmatprep.subr.mxu0 0.0
  %1563 = vmatpush1.msra.mxu0 0.0
  %1564 = vmatprep.subr.mxu0 0.0
  %1565 = vmatpush1.msra.mxu0 0.0
  %1566 = vmatprep.subr.mxu0 0.0
  %1567 = vmatpush1.msra.mxu0 0.0
  %1568 = vmatprep.subr.mxu0 0.0
  %1569 = vmatpush1.msra.mxu0 0.0
  %1570 = vmatprep.subr.mxu0 0.0
  %1571 = vmatpush1.msra.mxu0 0.0
  %1572 = vmatprep.subr.mxu0 0.0
  %1573 = vmatpush1.msra.mxu0 0.0
  %1574 = vmatprep.subr.mxu0 0.0
  %1575 = vmatpush1.msra.mxu0 0.0
  %1576 = vmatprep.subr.mxu0 0.0
  %1577 = vmatpush1.msra.mxu0 0.0
  %1578 = vmatprep.subr.mxu0 0.0
  %1579 = vmatpush1.msra.mxu0 0.0
  %1580 = vmatprep.subr.mxu0 0.0
  %1581 = vmatpush1.msra.mxu0 0.0
  %1582 = vmatprep.mubr.f32.mxu0 0.0
  %1583 = vmatmul.mubr.f32.gmra.mrb[0].mxu0 %v1507
  %v1584 = vpop.f32.mrb[0].mxu0
  %v1585 = vadd.f32 0.0, %v1584
  %v1586 = vpop.f32.mrb[0].mxu0
  %1587 = vmatprep.mubr.f32.mxu0 0.0
  %1588 = vmatmul.mubr.f32.gmra.mrb[0].mxu0 %v1510
  %v1589 = vpop.f32.mrb[0].mxu0
  %v1590 = vadd.f32 0.0, %v1589
  %v1591 = vpop.f32.mrb[0].mxu0
  %1592 = vmatprep.mubr.f32.mxu0 0.0
  %1593 = vmatmul.mubr.f32.gmra.mrb[0].mxu0 %v1513
  %v1594 = vpop.f32.mrb[0].mxu0
  %v1595 = vadd.f32 0.0, %v1594
  %v1596 = vpop.f32.mrb[0].mxu0
  %1597 = vmatprep.mubr.f32.mxu0 0.0
  %1598 = vmatmul.mubr.f32.gmra.mrb[0].mxu0 %v1516
  %v1599 = vpop.f32.mrb[0].mxu0
  %v1600 = vadd.f32 0.0, %v1599
  %v1601 = vpop.f32.mrb[0].mxu0
  %1602 = vdwg.mxu0
  %v1603 = vadd.f32 %v1477, %v1585
  %v1604 = vadd.f32 %v1482, %v1590
  %v1605 = vadd.f32 %v1487, %v1595
  %v1606 = vadd.f32 %v1492, %v1600
  %s1607 = scalar_lea.vmem %s19, 96
  %v1608 = vld [vmem:[%s1607] sm:$0xff]
  %v1609 = vld [vmem:[%s1607 + $0x8] sm:$0xff]
  %v1610 = vld [vmem:[%s1607 + $0x10] sm:$0xff]
  %v1611 = vld [vmem:[%s1607 + $0x18] sm:$0xff]
  %1612 = vrot.lane.b32.xlu0 %v1269, 125
  %v1613 = vpop.permute.xlu0 %1612
  %1614 = vrot.lane.b32.xlu0 %v1270, 125
  %v1615 = vpop.permute.xlu0 %1614
  %v1619 = vsel %vm1300, %v1608, 0
  %v1622 = vsel %vm1300, %v1609, 0
  %v1625 = vsel %vm1300, %v1610, 0
  %v1628 = vsel %vm1300, %v1611, 0
  %1630 = vmatprep.subr.mxu0 0.0
  %1631 = vmatpush1.msra.mxu0 %v1613
  %1632 = vmatprep.subr.mxu0 0.0
  %1633 = vmatpush1.msra.mxu0 %v1615
  %1634 = vmatprep.subr.mxu0 0.0
  %1635 = vmatpush1.msra.mxu0 0.0
  %1636 = vmatprep.subr.mxu0 0.0
  %1637 = vmatpush1.msra.mxu0 0.0
  %1638 = vmatprep.subr.mxu0 0.0
  %1639 = vmatpush1.msra.mxu0 0.0
  %1640 = vmatprep.subr.mxu0 0.0
  %1641 = vmatpush1.msra.mxu0 0.0
  %1642 = vmatprep.subr.mxu0 0.0
  %1643 = vmatpush1.msra.mxu0 0.0
  %1644 = vmatprep.subr.mxu0 0.0
  %1645 = vmatpush1.msra.mxu0 0.0
  %1646 = vmatprep.subr.mxu0 0.0
  %1647 = vmatpush1.msra.mxu0 0.0
  %1648 = vmatprep.subr.mxu0 0.0
  %1649 = vmatpush1.msra.mxu0 0.0
  %1650 = vmatprep.subr.mxu0 0.0
  %1651 = vmatpush1.msra.mxu0 0.0
  %1652 = vmatprep.subr.mxu0 0.0
  %1653 = vmatpush1.msra.mxu0 0.0
  %1654 = vmatprep.subr.mxu0 0.0
  %1655 = vmatpush1.msra.mxu0 0.0
  %1656 = vmatprep.subr.mxu0 0.0
  %1657 = vmatpush1.msra.mxu0 0.0
  %1658 = vmatprep.subr.mxu0 0.0
  %1659 = vmatpush1.msra.mxu0 0.0
  %1660 = vmatprep.subr.mxu0 0.0
  %1661 = vmatpush1.msra.mxu0 0.0
  %1662 = vmatprep.subr.mxu0 0.0
  %1663 = vmatpush1.msra.mxu0 0.0
  %1664 = vmatprep.subr.mxu0 0.0
  %1665 = vmatpush1.msra.mxu0 0.0
  %1666 = vmatprep.subr.mxu0 0.0
  %1667 = vmatpush1.msra.mxu0 0.0
  %1668 = vmatprep.subr.mxu0 0.0
  %1669 = vmatpush1.msra.mxu0 0.0
  %1670 = vmatprep.subr.mxu0 0.0
  %1671 = vmatpush1.msra.mxu0 0.0
  %1672 = vmatprep.subr.mxu0 0.0
  %1673 = vmatpush1.msra.mxu0 0.0
  %1674 = vmatprep.subr.mxu0 0.0
  %1675 = vmatpush1.msra.mxu0 0.0
  %1676 = vmatprep.subr.mxu0 0.0
  %1677 = vmatpush1.msra.mxu0 0.0
  %1678 = vmatprep.subr.mxu0 0.0
  %1679 = vmatpush1.msra.mxu0 0.0
  %1680 = vmatprep.subr.mxu0 0.0
  %1681 = vmatpush1.msra.mxu0 0.0
  %1682 = vmatprep.subr.mxu0 0.0
  %1683 = vmatpush1.msra.mxu0 0.0
  %1684 = vmatprep.subr.mxu0 0.0
  %1685 = vmatpush1.msra.mxu0 0.0
  %1686 = vmatprep.subr.mxu0 0.0
  %1687 = vmatpush1.msra.mxu0 0.0
  %1688 = vmatprep.subr.mxu0 0.0
  %1689 = vmatpush1.msra.mxu0 0.0
  %1690 = vmatprep.subr.mxu0 0.0
  %1691 = vmatpush1.msra.mxu0 0.0
  %1692 = vmatprep.subr.mxu0 0.0
  %1693 = vmatpush1.msra.mxu0 0.0
  %1694 = vmatprep.mubr.f32.mxu0 0.0
  %1695 = vmatmul.mubr.f32.gmra.mrb[0].mxu0 %v1619
  %v1696 = vpop.f32.mrb[0].mxu0
  %v1697 = vadd.f32 0.0, %v1696
  %v1698 = vpop.f32.mrb[0].mxu0
  %1699 = vmatprep.mubr.f32.mxu0 0.0
  %1700 = vmatmul.mubr.f32.gmra.mrb[0].mxu0 %v1622
  %v1701 = vpop.f32.mrb[0].mxu0
  %v1702 = vadd.f32 0.0, %v1701
  %v1703 = vpop.f32.mrb[0].mxu0
  %1704 = vmatprep.mubr.f32.mxu0 0.0
  %1705 = vmatmul.mubr.f32.gmra.mrb[0].mxu0 %v1625
  %v1706 = vpop.f32.mrb[0].mxu0
  %v1707 = vadd.f32 0.0, %v1706
  %v1708 = vpop.f32.mrb[0].mxu0
  %1709 = vmatprep.mubr.f32.mxu0 0.0
  %1710 = vmatmul.mubr.f32.gmra.mrb[0].mxu0 %v1628
  %v1711 = vpop.f32.mrb[0].mxu0
  %v1712 = vadd.f32 0.0, %v1711
  %v1713 = vpop.f32.mrb[0].mxu0
  %1714 = vdwg.mxu0
  %v1715 = vadd.f32 %v1603, %v1697
  %v1716 = vadd.f32 %v1604, %v1702
  %v1717 = vadd.f32 %v1605, %v1707
  %v1718 = vadd.f32 %v1606, %v1712
  %s1719 = scalar_lea.vmem %s19, 128
  %v1720 = vld [vmem:[%s1719] sm:$0xff]
  %v1721 = vld [vmem:[%s1719 + $0x8] sm:$0xff]
  %v1722 = vld [vmem:[%s1719 + $0x10] sm:$0xff]
  %v1723 = vld [vmem:[%s1719 + $0x18] sm:$0xff]
  %1724 = vrot.lane.b32.xlu0 %v1269, 124
  %v1725 = vpop.permute.xlu0 %1724
  %1726 = vrot.lane.b32.xlu0 %v1270, 124
  %v1727 = vpop.permute.xlu0 %1726
  %v1731 = vsel %vm1300, %v1720, 0
  %v1734 = vsel %vm1300, %v1721, 0
  %v1737 = vsel %vm1300, %v1722, 0
  %v1740 = vsel %vm1300, %v1723, 0
  %1742 = vmatprep.subr.mxu0 0.0
  %1743 = vmatpush1.msra.mxu0 %v1725
  %1744 = vmatprep.subr.mxu0 0.0
  %1745 = vmatpush1.msra.mxu0 %v1727
  %1746 = vmatprep.subr.mxu0 0.0
  %1747 = vmatpush1.msra.mxu0 0.0
  %1748 = vmatprep.subr.mxu0 0.0
  %1749 = vmatpush1.msra.mxu0 0.0
  %1750 = vmatprep.subr.mxu0 0.0
  %1751 = vmatpush1.msra.mxu0 0.0
  %1752 = vmatprep.subr.mxu0 0.0
  %1753 = vmatpush1.msra.mxu0 0.0
  %1754 = vmatprep.subr.mxu0 0.0
  %1755 = vmatpush1.msra.mxu0 0.0
  %1756 = vmatprep.subr.mxu0 0.0
  %1757 = vmatpush1.msra.mxu0 0.0
  %1758 = vmatprep.subr.mxu0 0.0
  %1759 = vmatpush1.msra.mxu0 0.0
  %1760 = vmatprep.subr.mxu0 0.0
  %1761 = vmatpush1.msra.mxu0 0.0
  %1762 = vmatprep.subr.mxu0 0.0
  %1763 = vmatpush1.msra.mxu0 0.0
  %1764 = vmatprep.subr.mxu0 0.0
  %1765 = vmatpush1.msra.mxu0 0.0
  %1766 = vmatprep.subr.mxu0 0.0
  %1767 = vmatpush1.msra.mxu0 0.0
  %1768 = vmatprep.subr.mxu0 0.0
  %1769 = vmatpush1.msra.mxu0 0.0
  %1770 = vmatprep.subr.mxu0 0.0
  %1771 = vmatpush1.msra.mxu0 0.0
  %1772 = vmatprep.subr.mxu0 0.0
  %1773 = vmatpush1.msra.mxu0 0.0
  %1774 = vmatprep.subr.mxu0 0.0
  %1775 = vmatpush1.msra.mxu0 0.0
  %1776 = vmatprep.subr.mxu0 0.0
  %1777 = vmatpush1.msra.mxu0 0.0
  %1778 = vmatprep.subr.mxu0 0.0
  %1779 = vmatpush1.msra.mxu0 0.0
  %1780 = vmatprep.subr.mxu0 0.0
  %1781 = vmatpush1.msra.mxu0 0.0
  %1782 = vmatprep.subr.mxu0 0.0
  %1783 = vmatpush1.msra.mxu0 0.0
  %1784 = vmatprep.subr.mxu0 0.0
  %1785 = vmatpush1.msra.mxu0 0.0
  %1786 = vmatprep.subr.mxu0 0.0
  %1787 = vmatpush1.msra.mxu0 0.0
  %1788 = vmatprep.subr.mxu0 0.0
  %1789 = vmatpush1.msra.mxu0 0.0
  %1790 = vmatprep.subr.mxu0 0.0
  %1791 = vmatpush1.msra.mxu0 0.0
  %1792 = vmatprep.subr.mxu0 0.0
  %1793 = vmatpush1.msra.mxu0 0.0
  %1794 = vmatprep.subr.mxu0 0.0
  %1795 = vmatpush1.msra.mxu0 0.0
  %1796 = vmatprep.subr.mxu0 0.0
  %1797 = vmatpush1.msra.mxu0 0.0
  %1798 = vmatprep.subr.mxu0 0.0
  %1799 = vmatpush1.msra.mxu0 0.0
  %1800 = vmatprep.subr.mxu0 0.0
  %1801 = vmatpush1.msra.mxu0 0.0
  %1802 = vmatprep.subr.mxu0 0.0
  %1803 = vmatpush1.msra.mxu0 0.0
  %1804 = vmatprep.subr.mxu0 0.0
  %1805 = vmatpush1.msra.mxu0 0.0
  %1806 = vmatprep.mubr.f32.mxu0 0.0
  %1807 = vmatmul.mubr.f32.gmra.mrb[0].mxu0 %v1731
  %v1808 = vpop.f32.mrb[0].mxu0
  %v1809 = vadd.f32 0.0, %v1808
  %v1810 = vpop.f32.mrb[0].mxu0
  %1811 = vmatprep.mubr.f32.mxu0 0.0
  %1812 = vmatmul.mubr.f32.gmra.mrb[0].mxu0 %v1734
  %v1813 = vpop.f32.mrb[0].mxu0
  %v1814 = vadd.f32 0.0, %v1813
  %v1815 = vpop.f32.mrb[0].mxu0
  %1816 = vmatprep.mubr.f32.mxu0 0.0
  %1817 = vmatmul.mubr.f32.gmra.mrb[0].mxu0 %v1737
  %v1818 = vpop.f32.mrb[0].mxu0
  %v1819 = vadd.f32 0.0, %v1818
  %v1820 = vpop.f32.mrb[0].mxu0
  %1821 = vmatprep.mubr.f32.mxu0 0.0
  %1822 = vmatmul.mubr.f32.gmra.mrb[0].mxu0 %v1740
  %v1823 = vpop.f32.mrb[0].mxu0
  %v1824 = vadd.f32 0.0, %v1823
  %v1825 = vpop.f32.mrb[0].mxu0
  %1826 = vdwg.mxu0
  %v1827 = vadd.f32 %v1715, %v1809
  %v1828 = vadd.f32 %v1716, %v1814
  %v1829 = vadd.f32 %v1717, %v1819
  %v1830 = vadd.f32 %v1718, %v1824
  %s1831 = scalar_lea.vmem %s19, 160
  %v1832 = vld [vmem:[%s1831] sm:$0xff]
  %v1833 = vld [vmem:[%s1831 + $0x8] sm:$0xff]
  %v1834 = vld [vmem:[%s1831 + $0x10] sm:$0xff]
  %v1835 = vld [vmem:[%s1831 + $0x18] sm:$0xff]
  %1836 = vrot.lane.b32.xlu0 %v1269, 123
  %v1837 = vpop.permute.xlu0 %1836
  %1838 = vrot.lane.b32.xlu0 %v1270, 123
  %v1839 = vpop.permute.xlu0 %1838
  %v1843 = vsel %vm1300, %v1832, 0
  %v1846 = vsel %vm1300, %v1833, 0
  %v1849 = vsel %vm1300, %v1834, 0
  %v1852 = vsel %vm1300, %v1835, 0
  %1854 = vmatprep.subr.mxu0 0.0
  %1855 = vmatpush1.msra.mxu0 %v1837
  %1856 = vmatprep.subr.mxu0 0.0
  %1857 = vmatpush1.msra.mxu0 %v1839
  %1858 = vmatprep.subr.mxu0 0.0
  %1859 = vmatpush1.msra.mxu0 0.0
  %1860 = vmatprep.subr.mxu0 0.0
  %1861 = vmatpush1.msra.mxu0 0.0
  %1862 = vmatprep.subr.mxu0 0.0
  %1863 = vmatpush1.msra.mxu0 0.0
  %1864 = vmatprep.subr.mxu0 0.0
  %1865 = vmatpush1.msra.mxu0 0.0
  %1866 = vmatprep.subr.mxu0 0.0
  %1867 = vmatpush1.msra.mxu0 0.0
  %1868 = vmatprep.subr.mxu0 0.0
  %1869 = vmatpush1.msra.mxu0 0.0
  %1870 = vmatprep.subr.mxu0 0.0
  %1871 = vmatpush1.msra.mxu0 0.0
  %1872 = vmatprep.subr.mxu0 0.0
  %1873 = vmatpush1.msra.mxu0 0.0
  %1874 = vmatprep.subr.mxu0 0.0
  %1875 = vmatpush1.msra.mxu0 0.0
  %1876 = vmatprep.subr.mxu0 0.0
  %1877 = vmatpush1.msra.mxu0 0.0
  %1878 = vmatprep.subr.mxu0 0.0
  %1879 = vmatpush1.msra.mxu0 0.0
  %1880 = vmatprep.subr.mxu0 0.0
  %1881 = vmatpush1.msra.mxu0 0.0
  %1882 = vmatprep.subr.mxu0 0.0
  %1883 = vmatpush1.msra.mxu0 0.0
  %1884 = vmatprep.subr.mxu0 0.0
  %1885 = vmatpush1.msra.mxu0 0.0
  %1886 = vmatprep.subr.mxu0 0.0
  %1887 = vmatpush1.msra.mxu0 0.0
  %1888 = vmatprep.subr.mxu0 0.0
  %1889 = vmatpush1.msra.mxu0 0.0
  %1890 = vmatprep.subr.mxu0 0.0
  %1891 = vmatpush1.msra.mxu0 0.0
  %1892 = vmatprep.subr.mxu0 0.0
  %1893 = vmatpush1.msra.mxu0 0.0
  %1894 = vmatprep.subr.mxu0 0.0
  %1895 = vmatpush1.msra.mxu0 0.0
  %1896 = vmatprep.subr.mxu0 0.0
  %1897 = vmatpush1.msra.mxu0 0.0
  %1898 = vmatprep.subr.mxu0 0.0
  %1899 = vmatpush1.msra.mxu0 0.0
  %1900 = vmatprep.subr.mxu0 0.0
  %1901 = vmatpush1.msra.mxu0 0.0
  %1902 = vmatprep.subr.mxu0 0.0
  %1903 = vmatpush1.msra.mxu0 0.0
  %1904 = vmatprep.subr.mxu0 0.0
  %1905 = vmatpush1.msra.mxu0 0.0
  %1906 = vmatprep.subr.mxu0 0.0
  %1907 = vmatpush1.msra.mxu0 0.0
  %1908 = vmatprep.subr.mxu0 0.0
  %1909 = vmatpush1.msra.mxu0 0.0
  %1910 = vmatprep.subr.mxu0 0.0
  %1911 = vmatpush1.msra.mxu0 0.0
  %1912 = vmatprep.subr.mxu0 0.0
  %1913 = vmatpush1.msra.mxu0 0.0
  %1914 = vmatprep.subr.mxu0 0.0
  %1915 = vmatpush1.msra.mxu0 0.0
  %1916 = vmatprep.subr.mxu0 0.0
  %1917 = vmatpush1.msra.mxu0 0.0
  %1918 = vmatprep.mubr.f32.mxu0 0.0
  %1919 = vmatmul.mubr.f32.gmra.mrb[0].mxu0 %v1843
  %v1920 = vpop.f32.mrb[0].mxu0
  %v1921 = vadd.f32 0.0, %v1920
  %v1922 = vpop.f32.mrb[0].mxu0
  %1923 = vmatprep.mubr.f32.mxu0 0.0
  %1924 = vmatmul.mubr.f32.gmra.mrb[0].mxu0 %v1846
  %v1925 = vpop.f32.mrb[0].mxu0
  %v1926 = vadd.f32 0.0, %v1925
  %v1927 = vpop.f32.mrb[0].mxu0
  %1928 = vmatprep.mubr.f32.mxu0 0.0
  %1929 = vmatmul.mubr.f32.gmra.mrb[0].mxu0 %v1849
  %v1930 = vpop.f32.mrb[0].mxu0
  %v1931 = vadd.f32 0.0, %v1930
  %v1932 = vpop.f32.mrb[0].mxu0
  %1933 = vmatprep.mubr.f32.mxu0 0.0
  %1934 = vmatmul.mubr.f32.gmra.mrb[0].mxu0 %v1852
  %v1935 = vpop.f32.mrb[0].mxu0
  %v1936 = vadd.f32 0.0, %v1935
  %v1937 = vpop.f32.mrb[0].mxu0
  %1938 = vdwg.mxu0
  %v1939 = vadd.f32 %v1827, %v1921
  %v1940 = vadd.f32 %v1828, %v1926
  %v1941 = vadd.f32 %v1829, %v1931
  %v1942 = vadd.f32 %v1830, %v1936
  %s1943 = scalar_lea.vmem %s19, 192
  %v1944 = vld [vmem:[%s1943] sm:$0xff]
  %v1945 = vld [vmem:[%s1943 + $0x8] sm:$0xff]
  %v1946 = vld [vmem:[%s1943 + $0x10] sm:$0xff]
  %v1947 = vld [vmem:[%s1943 + $0x18] sm:$0xff]
  %1948 = vrot.lane.b32.xlu0 %v1269, 122
  %v1949 = vpop.permute.xlu0 %1948
  %1950 = vrot.lane.b32.xlu0 %v1270, 122
  %v1951 = vpop.permute.xlu0 %1950
  %v1955 = vsel %vm1300, %v1944, 0
  %v1958 = vsel %vm1300, %v1945, 0
  %v1961 = vsel %vm1300, %v1946, 0
  %v1964 = vsel %vm1300, %v1947, 0
  %1966 = vmatprep.subr.mxu0 0.0
  %1967 = vmatpush1.msra.mxu0 %v1949
  %1968 = vmatprep.subr.mxu0 0.0
  %1969 = vmatpush1.msra.mxu0 %v1951
  %1970 = vmatprep.subr.mxu0 0.0
  %1971 = vmatpush1.msra.mxu0 0.0
  %1972 = vmatprep.subr.mxu0 0.0
  %1973 = vmatpush1.msra.mxu0 0.0
  %1974 = vmatprep.subr.mxu0 0.0
  %1975 = vmatpush1.msra.mxu0 0.0
  %1976 = vmatprep.subr.mxu0 0.0
  %1977 = vmatpush1.msra.mxu0 0.0
  %1978 = vmatprep.subr.mxu0 0.0
  %1979 = vmatpush1.msra.mxu0 0.0
  %1980 = vmatprep.subr.mxu0 0.0
  %1981 = vmatpush1.msra.mxu0 0.0
  %1982 = vmatprep.subr.mxu0 0.0
  %1983 = vmatpush1.msra.mxu0 0.0
  %1984 = vmatprep.subr.mxu0 0.0
  %1985 = vmatpush1.msra.mxu0 0.0
  %1986 = vmatprep.subr.mxu0 0.0
  %1987 = vmatpush1.msra.mxu0 0.0
  %1988 = vmatprep.subr.mxu0 0.0
  %1989 = vmatpush1.msra.mxu0 0.0
  %1990 = vmatprep.subr.mxu0 0.0
  %1991 = vmatpush1.msra.mxu0 0.0
  %1992 = vmatprep.subr.mxu0 0.0
  %1993 = vmatpush1.msra.mxu0 0.0
  %1994 = vmatprep.subr.mxu0 0.0
  %1995 = vmatpush1.msra.mxu0 0.0
  %1996 = vmatprep.subr.mxu0 0.0
  %1997 = vmatpush1.msra.mxu0 0.0
  %1998 = vmatprep.subr.mxu0 0.0
  %1999 = vmatpush1.msra.mxu0 0.0
  %2000 = vmatprep.subr.mxu0 0.0
  %2001 = vmatpush1.msra.mxu0 0.0
  %2002 = vmatprep.subr.mxu0 0.0
  %2003 = vmatpush1.msra.mxu0 0.0
  %2004 = vmatprep.subr.mxu0 0.0
  %2005 = vmatpush1.msra.mxu0 0.0
  %2006 = vmatprep.subr.mxu0 0.0
  %2007 = vmatpush1.msra.mxu0 0.0
  %2008 = vmatprep.subr.mxu0 0.0
  %2009 = vmatpush1.msra.mxu0 0.0
  %2010 = vmatprep.subr.mxu0 0.0
  %2011 = vmatpush1.msra.mxu0 0.0
  %2012 = vmatprep.subr.mxu0 0.0
  %2013 = vmatpush1.msra.mxu0 0.0
  %2014 = vmatprep.subr.mxu0 0.0
  %2015 = vmatpush1.msra.mxu0 0.0
  %2016 = vmatprep.subr.mxu0 0.0
  %2017 = vmatpush1.msra.mxu0 0.0
  %2018 = vmatprep.subr.mxu0 0.0
  %2019 = vmatpush1.msra.mxu0 0.0
  %2020 = vmatprep.subr.mxu0 0.0
  %2021 = vmatpush1.msra.mxu0 0.0
  %2022 = vmatprep.subr.mxu0 0.0
  %2023 = vmatpush1.msra.mxu0 0.0
  %2024 = vmatprep.subr.mxu0 0.0
  %2025 = vmatpush1.msra.mxu0 0.0
  %2026 = vmatprep.subr.mxu0 0.0
  %2027 = vmatpush1.msra.mxu0 0.0
  %2028 = vmatprep.subr.mxu0 0.0
  %2029 = vmatpush1.msra.mxu0 0.0
  %2030 = vmatprep.mubr.f32.mxu0 0.0
  %2031 = vmatmul.mubr.f32.gmra.mrb[0].mxu0 %v1955
  %v2032 = vpop.f32.mrb[0].mxu0
  %v2033 = vadd.f32 0.0, %v2032
  %v2034 = vpop.f32.mrb[0].mxu0
  %2035 = vmatprep.mubr.f32.mxu0 0.0
  %2036 = vmatmul.mubr.f32.gmra.mrb[0].mxu0 %v1958
  %v2037 = vpop.f32.mrb[0].mxu0
  %v2038 = vadd.f32 0.0, %v2037
  %v2039 = vpop.f32.mrb[0].mxu0
  %2040 = vmatprep.mubr.f32.mxu0 0.0
  %2041 = vmatmul.mubr.f32.gmra.mrb[0].mxu0 %v1961
  %v2042 = vpop.f32.mrb[0].mxu0
  %v2043 = vadd.f32 0.0, %v2042
  %v2044 = vpop.f32.mrb[0].mxu0
  %2045 = vmatprep.mubr.f32.mxu0 0.0
  %2046 = vmatmul.mubr.f32.gmra.mrb[0].mxu0 %v1964
  %v2047 = vpop.f32.mrb[0].mxu0
  %v2048 = vadd.f32 0.0, %v2047
  %v2049 = vpop.f32.mrb[0].mxu0
  %2050 = vdwg.mxu0
  %v2051 = vadd.f32 %v1939, %v2033
  %v2052 = vadd.f32 %v1940, %v2038
  %v2053 = vadd.f32 %v1941, %v2043
  %v2054 = vadd.f32 %v1942, %v2048
  %v2055 = vld [vmem:[%s27] sm:$0xff]
  %v2056 = vld [vmem:[%s27 + $0x8] sm:$0xff]
  %v2057 = vld [vmem:[%s27 + $0x10] sm:$0xff]
  %v2058 = vld [vmem:[%s27 + $0x18] sm:$0xff]
  %v2059 = vld [vmem:[%s27 + $0x20] sm:$0xff]
  %v2060 = vld [vmem:[%s27 + $0x28] sm:$0xff]
  %2062 = vset.pattern.permute.xlu0 0
  %2063 = vperm.xlu0 %2062, %v1271
  %v2064 = vpop.permute.xlu0 %2063
  %2067 = vset.pattern.permute.xlu0 0
  %2068 = vperm.xlu0 %2067, %v1272
  %v2069 = vpop.permute.xlu0 %2068
  %2072 = vset.pattern.permute.xlu0 0
  %2073 = vperm.xlu0 %2072, %v1273
  %v2074 = vpop.permute.xlu0 %2073
  %2077 = vset.pattern.permute.xlu0 0
  %2078 = vperm.xlu0 %2077, %v1274
  %v2079 = vpop.permute.xlu0 %2078
  %vm2081 = vcmask 392192
  %v2083 = vsel %vm2081, %v2051, 0
  %v2086 = vsel %vm2081, %v2052, 0
  %v2089 = vsel %vm2081, %v2053, 0
  %v2092 = vsel %vm2081, %v2054, 0
  %2094 = vmatprep.subr.mxu0 0.0
  %2095 = vmatpush1.msra.mxu0 %v2055
  %2096 = vmatprep.subr.mxu0 0.0
  %2097 = vmatpush1.msra.mxu0 %v2056
  %2098 = vmatprep.subr.mxu0 0.0
  %2099 = vmatpush1.msra.mxu0 %v2057
  %2100 = vmatprep.subr.mxu0 0.0
  %2101 = vmatpush1.msra.mxu0 %v2058
  %2102 = vmatprep.subr.mxu0 0.0
  %2103 = vmatpush1.msra.mxu0 %v2059
  %2104 = vmatprep.subr.mxu0 0.0
  %2105 = vmatpush1.msra.mxu0 %v2060
  %2106 = vmatprep.subr.mxu0 0.0
  %2107 = vmatpush1.msra.mxu0 0.0
  %2108 = vmatprep.subr.mxu0 0.0
  %2109 = vmatpush1.msra.mxu0 0.0
  %2110 = vmatprep.subr.mxu0 0.0
  %2111 = vmatpush1.msra.mxu0 0.0
  %2112 = vmatprep.subr.mxu0 0.0
  %2113 = vmatpush1.msra.mxu0 0.0
  %2114 = vmatprep.subr.mxu0 0.0
  %2115 = vmatpush1.msra.mxu0 0.0
  %2116 = vmatprep.subr.mxu0 0.0
  %2117 = vmatpush1.msra.mxu0 0.0
  %2118 = vmatprep.subr.mxu0 0.0
  %2119 = vmatpush1.msra.mxu0 0.0
  %2120 = vmatprep.subr.mxu0 0.0
  %2121 = vmatpush1.msra.mxu0 0.0
  %2122 = vmatprep.subr.mxu0 0.0
  %2123 = vmatpush1.msra.mxu0 0.0
  %2124 = vmatprep.subr.mxu0 0.0
  %2125 = vmatpush1.msra.mxu0 0.0
  %2126 = vmatprep.subr.mxu0 0.0
  %2127 = vmatpush1.msra.mxu0 0.0
  %2128 = vmatprep.subr.mxu0 0.0
  %2129 = vmatpush1.msra.mxu0 0.0
  %2130 = vmatprep.subr.mxu0 0.0
  %2131 = vmatpush1.msra.mxu0 0.0
  %2132 = vmatprep.subr.mxu0 0.0
  %2133 = vmatpush1.msra.mxu0 0.0
  %2134 = vmatprep.subr.mxu0 0.0
  %2135 = vmatpush1.msra.mxu0 0.0
  %2136 = vmatprep.subr.mxu0 0.0
  %2137 = vmatpush1.msra.mxu0 0.0
  %2138 = vmatprep.subr.mxu0 0.0
  %2139 = vmatpush1.msra.mxu0 0.0
  %2140 = vmatprep.subr.mxu0 0.0
  %2141 = vmatpush1.msra.mxu0 0.0
  %2142 = vmatprep.subr.mxu0 0.0
  %2143 = vmatpush1.msra.mxu0 0.0
  %2144 = vmatprep.subr.mxu0 0.0
  %2145 = vmatpush1.msra.mxu0 0.0
  %2146 = vmatprep.subr.mxu0 0.0
  %2147 = vmatpush1.msra.mxu0 0.0
  %2148 = vmatprep.subr.mxu0 0.0
  %2149 = vmatpush1.msra.mxu0 0.0
  %2150 = vmatprep.subr.mxu0 0.0
  %2151 = vmatpush1.msra.mxu0 0.0
  %2152 = vmatprep.subr.mxu0 0.0
  %2153 = vmatpush1.msra.mxu0 0.0
  %2154 = vmatprep.subr.mxu0 0.0
  %2155 = vmatpush1.msra.mxu0 0.0
  %2156 = vmatprep.subr.mxu0 0.0
  %2157 = vmatpush1.msra.mxu0 0.0
  %2158 = vmatprep.mubr.f32.mxu0 0.0
  %2159 = vmatmul.mubr.f32.gmra.mrb[0].mxu0 %v2083
  %v2160 = vpop.f32.mrb[0].mxu0
  %v2161 = vadd.f32 %v2064, %v2160
  %v2162 = vpop.f32.mrb[0].mxu0
  %2163 = vmatprep.mubr.f32.mxu0 0.0
  %2164 = vmatmul.mubr.f32.gmra.mrb[0].mxu0 %v2086
  %v2165 = vpop.f32.mrb[0].mxu0
  %v2166 = vadd.f32 %v2069, %v2165
  %v2167 = vpop.f32.mrb[0].mxu0
  %2168 = vmatprep.mubr.f32.mxu0 0.0
  %2169 = vmatmul.mubr.f32.gmra.mrb[0].mxu0 %v2089
  %v2170 = vpop.f32.mrb[0].mxu0
  %v2171 = vadd.f32 %v2074, %v2170
  %v2172 = vpop.f32.mrb[0].mxu0
  %2173 = vmatprep.mubr.f32.mxu0 0.0
  %2174 = vmatmul.mubr.f32.gmra.mrb[0].mxu0 %v2092
  %v2175 = vpop.f32.mrb[0].mxu0
  %v2176 = vadd.f32 %v2079, %v2175
  %v2177 = vpop.f32.mrb[0].mxu0
  %2178 = vdwg.mxu0
  %vm2179 = vcmask 179200
  %v2180 = vsel %vm2179, %v2161, 0.0
  %2181 = vadd.xlane.f32.xlu0 %v2180
  %v2182 = vpop.xlane.xlu0 %2181
  %v2183 = vsel %vm2179, %v2166, 0.0
  %2184 = vadd.xlane.f32.xlu0 %v2183
  %v2185 = vpop.xlane.xlu0 %2184
  %v2186 = vsel %vm2179, %v2171, 0.0
  %2187 = vadd.xlane.f32.xlu0 %v2186
  %v2188 = vpop.xlane.xlu0 %2187
  %v2189 = vsel %vm2179, %v2176, 0.0
  %2190 = vadd.xlane.f32.xlu0 %v2189
  %v2191 = vpop.xlane.xlu0 %2190
  %v2192 = vmul.f32 %v2182, 0.045454547
  %v2193 = vmul.f32 %v2185, 0.045454547
  %v2194 = vmul.f32 %v2188, 0.045454547
  %v2195 = vmul.f32 %v2191, 0.045454547
  %v2196 = vsub.f32 %v2161, %v2192
  %v2197 = vsub.f32 %v2166, %v2193
  %v2198 = vsub.f32 %v2171, %v2194
  %v2199 = vsub.f32 %v2176, %v2195
  %v2200 = vmul.f32 %v2196, %v2196
  %v2201 = vmul.f32 %v2197, %v2197
  %v2202 = vmul.f32 %v2198, %v2198
  %v2203 = vmul.f32 %v2199, %v2199
  %v2204 = vsel %vm2179, %v2200, 0.0
  %2205 = vadd.xlane.f32.xlu0 %v2204
  %v2206 = vpop.xlane.xlu0 %2205
  %v2207 = vsel %vm2179, %v2201, 0.0
  %2208 = vadd.xlane.f32.xlu0 %v2207
  %v2209 = vpop.xlane.xlu0 %2208
  %v2210 = vsel %vm2179, %v2202, 0.0
  %2211 = vadd.xlane.f32.xlu0 %v2210
  %v2212 = vpop.xlane.xlu0 %2211
  %v2213 = vsel %vm2179, %v2203, 0.0
  %2214 = vadd.xlane.f32.xlu0 %v2213
  %v2215 = vpop.xlane.xlu0 %2214
  %v2216 = vmul.f32 %v2206, 0.045454547
  %v2217 = vmul.f32 %v2209, 0.045454547
  %v2218 = vmul.f32 %v2212, 0.045454547
  %v2219 = vmul.f32 %v2215, 0.045454547
  %v2220 = vadd.f32 %v2216, 1e-05
  %v2221 = vadd.f32 %v2217, 1e-05
  %v2222 = vadd.f32 %v2218, 1e-05
  %v2223 = vadd.f32 %v2219, 1e-05
  %v2224 = vrsqrt.pop %v2220
  %v2225 = vrsqrt.pop %v2221
  %v2226 = vrsqrt.pop %v2222
  %v2227 = vrsqrt.pop %v2223
  %v2228 = vmul.f32 %v1275, %v2224
  %v2229 = vmul.f32 %v1276, %v2225
  %v2230 = vmul.f32 %v1277, %v2226
  %v2231 = vmul.f32 %v1278, %v2227
  %2233 = vset.pattern.permute.xlu0 0
  %2234 = vperm.xlu0 %2233, %v2228
  %v2235 = vpop.permute.xlu0 %2234
  %2238 = vset.pattern.permute.xlu0 0
  %2239 = vperm.xlu0 %2238, %v2229
  %v2240 = vpop.permute.xlu0 %2239
  %2243 = vset.pattern.permute.xlu0 0
  %2244 = vperm.xlu0 %2243, %v2230
  %v2245 = vpop.permute.xlu0 %2244
  %2248 = vset.pattern.permute.xlu0 0
  %2249 = vperm.xlu0 %2248, %v2231
  %v2250 = vpop.permute.xlu0 %2249
  %v2252 = vmul.f32 %v2196, %v2235
  %v2253 = vmul.f32 %v2197, %v2240
  %v2254 = vmul.f32 %v2198, %v2245
  %v2255 = vmul.f32 %v2199, %v2250
  %2257 = vset.pattern.permute.xlu0 0
  %2258 = vperm.xlu0 %2257, %v1279
  %v2259 = vpop.permute.xlu0 %2258
  %2262 = vset.pattern.permute.xlu0 0
  %2263 = vperm.xlu0 %2262, %v1280
  %v2264 = vpop.permute.xlu0 %2263
  %2267 = vset.pattern.permute.xlu0 0
  %2268 = vperm.xlu0 %2267, %v1281
  %v2269 = vpop.permute.xlu0 %2268
  %2272 = vset.pattern.permute.xlu0 0
  %2273 = vperm.xlu0 %2272, %v1282
  %v2274 = vpop.permute.xlu0 %2273
  %v2276 = vadd.f32 %v2252, %v2259
  %v2277 = vadd.f32 %v2253, %v2264
  %v2278 = vadd.f32 %v2254, %v2269
  %v2279 = vadd.f32 %v2255, %v2274
  %vm2280 = vcmp.ge.f32.partialorder %v2276, 0.0
  %vm2281 = vcmp.ge.f32.partialorder %v2277, 0.0
  %vm2282 = vcmp.ge.f32.partialorder %v2278, 0.0
  %vm2283 = vcmp.ge.f32.partialorder %v2279, 0.0
  %v2284 = vmul.f32 %v2276, 0.2
  %v2285 = vmul.f32 %v2277, 0.2
  %v2286 = vmul.f32 %v2278, 0.2
  %v2287 = vmul.f32 %v2279, 0.2
  %v2288 = vsel %vm2280, %v2276, %v2284
  %v2289 = vsel %vm2281, %v2277, %v2285
  %v2290 = vsel %vm2282, %v2278, %v2286
  %v2291 = vsel %vm2283, %v2279, %v2287
  %v2292 = vld [vmem:[%s31] sm:$0xff]
  %v2293 = vld [vmem:[%s31 + $0x8] sm:$0xff]
  %v2294 = vld [vmem:[%s31 + $0x10] sm:$0xff]
  %v2295 = vld [vmem:[%s31 + $0x18] sm:$0xff]
  %v2296 = vld [vmem:[%s31 + $0x20] sm:$0xff]
  %v2297 = vld [vmem:[%s31 + $0x28] sm:$0xff]
  %v2298 = vld [vmem:[%s31 + $0x30] sm:$0xff]
  %v2299 = vld [vmem:[%s31 + $0x38] sm:$0xff]
  %v2300 = vld [vmem:[%s33] sm:$0xff]
  %v2301 = vld [vmem:[%s33 + $0x8] sm:$0xff]
  %v2302 = vld [vmem:[%s33 + $0x10] sm:$0xff]
  %v2303 = vld [vmem:[%s33 + $0x18] sm:$0xff]
  %v2304 = vld [vmem:[%s33 + $0x20] sm:$0xff]
  %v2305 = vld [vmem:[%s33 + $0x28] sm:$0xff]
  %v2306 = vld [vmem:[%s33 + $0x30] sm:$0xff]
  %v2307 = vld [vmem:[%s33 + $0x38] sm:$0xff]
  %v2308 = vld [vmem:[%s35] sm:$0xff]
  %v2309 = vld [vmem:[%s35 + $0x8] sm:$0xff]
  %v2310 = vld [vmem:[%s35 + $0x10] sm:$0xff]
  %v2311 = vld [vmem:[%s35 + $0x18] sm:$0xff]
  %v2312 = vld [vmem:[%s35 + $0x20] sm:$0xff]
  %v2313 = vld [vmem:[%s35 + $0x28] sm:$0xff]
  %v2314 = vld [vmem:[%s35 + $0x30] sm:$0xff]
  %v2315 = vld [vmem:[%s35 + $0x38] sm:$0xff]
  %v2316 = vld [vmem:[%s29] sm:$0xff]
  %v2317 = vld [vmem:[%s29 + $0x8] sm:$0xff]
  %v2318 = vld [vmem:[%s29 + $0x10] sm:$0xff]
  %v2319 = vld [vmem:[%s29 + $0x18] sm:$0xff]
  %v2320 = vld [vmem:[%s29 + $0x20] sm:$0xff]
  %v2321 = vld [vmem:[%s29 + $0x28] sm:$0xff]
  %v2322 = vld [vmem:[%s29 + $0x30] sm:$0xff]
  %v2323 = vld [vmem:[%s29 + $0x38] sm:$0xff]
  %s2324 = scalar_lea.vmem %s29, 64
  %v2325 = vld [vmem:[%s2324] sm:$0xff]
  %v2326 = vld [vmem:[%s2324 + $0x8] sm:$0xff]
  %v2327 = vld [vmem:[%s2324 + $0x10] sm:$0xff]
  %v2328 = vld [vmem:[%s2324 + $0x18] sm:$0xff]
  %v2329 = vld [vmem:[%s2324 + $0x20] sm:$0xff]
  %v2330 = vld [vmem:[%s2324 + $0x28] sm:$0xff]
  %v2331 = vld [vmem:[%s2324 + $0x30] sm:$0xff]
  %v2332 = vld [vmem:[%s2324 + $0x38] sm:$0xff]
  %2337 = vrot.lane.b32.xlu0 %v2288, 127
  %v2338 = vpop.permute.xlu0 %2337
  %2339 = vrot.lane.b32.xlu0 %v2289, 127
  %v2340 = vpop.permute.xlu0 %2339
  %2341 = vrot.lane.b32.xlu0 %v2290, 127
  %v2342 = vpop.permute.xlu0 %2341
  %2343 = vrot.lane.b32.xlu0 %v2291, 127
  %v2344 = vpop.permute.xlu0 %2343
  %vm2349 = vcmask 261120
  %v2351 = vsel %vm2349, %v2325, 0
  %v2354 = vsel %vm2349, %v2326, 0
  %v2357 = vsel %vm2349, %v2327, 0
  %v2360 = vsel %vm2349, %v2328, 0
  %v2363 = vsel %vm2349, %v2329, 0
  %v2366 = vsel %vm2349, %v2330, 0
  %v2369 = vsel %vm2349, %v2331, 0
  %v2372 = vsel %vm2349, %v2332, 0
  %2374 = vmatprep.subr.mxu0 0.0
  %2375 = vmatpush1.msra.mxu0 %v2338
  %2376 = vmatprep.subr.mxu0 0.0
  %2377 = vmatpush1.msra.mxu0 %v2340
  %2378 = vmatprep.subr.mxu0 0.0
  %2379 = vmatpush1.msra.mxu0 %v2342
  %2380 = vmatprep.subr.mxu0 0.0
  %2381 = vmatpush1.msra.mxu0 %v2344
  %2382 = vmatprep.subr.mxu0 0.0
  %2383 = vmatpush1.msra.mxu0 0.0
  %2384 = vmatprep.subr.mxu0 0.0
  %2385 = vmatpush1.msra.mxu0 0.0
  %2386 = vmatprep.subr.mxu0 0.0
  %2387 = vmatpush1.msra.mxu0 0.0
  %2388 = vmatprep.subr.mxu0 0.0
  %2389 = vmatpush1.msra.mxu0 0.0
  %2390 = vmatprep.subr.mxu0 0.0
  %2391 = vmatpush1.msra.mxu0 0.0
  %2392 = vmatprep.subr.mxu0 0.0
  %2393 = vmatpush1.msra.mxu0 0.0
  %2394 = vmatprep.subr.mxu0 0.0
  %2395 = vmatpush1.msra.mxu0 0.0
  %2396 = vmatprep.subr.mxu0 0.0
  %2397 = vmatpush1.msra.mxu0 0.0
  %2398 = vmatprep.subr.mxu0 0.0
  %2399 = vmatpush1.msra.mxu0 0.0
  %2400 = vmatprep.subr.mxu0 0.0
  %2401 = vmatpush1.msra.mxu0 0.0
  %2402 = vmatprep.subr.mxu0 0.0
  %2403 = vmatpush1.msra.mxu0 0.0
  %2404 = vmatprep.subr.mxu0 0.0
  %2405 = vmatpush1.msra.mxu0 0.0
  %2406 = vmatprep.subr.mxu0 0.0
  %2407 = vmatpush1.msra.mxu0 0.0
  %2408 = vmatprep.subr.mxu0 0.0
  %2409 = vmatpush1.msra.mxu0 0.0
  %2410 = vmatprep.subr.mxu0 0.0
  %2411 = vmatpush1.msra.mxu0 0.0
  %2412 = vmatprep.subr.mxu0 0.0
  %2413 = vmatpush1.msra.mxu0 0.0
  %2414 = vmatprep.subr.mxu0 0.0
  %2415 = vmatpush1.msra.mxu0 0.0
  %2416 = vmatprep.subr.mxu0 0.0
  %2417 = vmatpush1.msra.mxu0 0.0
  %2418 = vmatprep.subr.mxu0 0.0
  %2419 = vmatpush1.msra.mxu0 0.0
  %2420 = vmatprep.subr.mxu0 0.0
  %2421 = vmatpush1.msra.mxu0 0.0
  %2422 = vmatprep.subr.mxu0 0.0
  %2423 = vmatpush1.msra.mxu0 0.0
  %2424 = vmatprep.subr.mxu0 0.0
  %2425 = vmatpush1.msra.mxu0 0.0
  %2426 = vmatprep.subr.mxu0 0.0
  %2427 = vmatpush1.msra.mxu0 0.0
  %2428 = vmatprep.subr.mxu0 0.0
  %2429 = vmatpush1.msra.mxu0 0.0
  %2430 = vmatprep.subr.mxu0 0.0
  %2431 = vmatpush1.msra.mxu0 0.0
  %2432 = vmatprep.subr.mxu0 0.0
  %2433 = vmatpush1.msra.mxu0 0.0
  %2434 = vmatprep.subr.mxu0 0.0
  %2435 = vmatpush1.msra.mxu0 0.0
  %2436 = vmatprep.subr.mxu0 0.0
  %2437 = vmatpush1.msra.mxu0 0.0
  %2438 = vmatprep.mubr.f32.mxu0 0.0
  %2439 = vmatmul.mubr.f32.gmra.mrb[0].mxu0 %v2351
  %v2440 = vpop.f32.mrb[0].mxu0
  %v2441 = vadd.f32 0.0, %v2440
  %v2442 = vpop.f32.mrb[0].mxu0
  %2443 = vmatprep.mubr.f32.mxu0 0.0
  %2444 = vmatmul.mubr.f32.gmra.mrb[0].mxu0 %v2354
  %v2445 = vpop.f32.mrb[0].mxu0
  %v2446 = vadd.f32 0.0, %v2445
  %v2447 = vpop.f32.mrb[0].mxu0
  %2448 = vmatprep.mubr.f32.mxu0 0.0
  %2449 = vmatmul.mubr.f32.gmra.mrb[0].mxu0 %v2357
  %v2450 = vpop.f32.mrb[0].mxu0
  %v2451 = vadd.f32 0.0, %v2450
  %v2452 = vpop.f32.mrb[0].mxu0
  %2453 = vmatprep.mubr.f32.mxu0 0.0
  %2454 = vmatmul.mubr.f32.gmra.mrb[0].mxu0 %v2360
  %v2455 = vpop.f32.mrb[0].mxu0
  %v2456 = vadd.f32 0.0, %v2455
  %v2457 = vpop.f32.mrb[0].mxu0
  %2458 = vmatprep.mubr.f32.mxu0 0.0
  %2459 = vmatmul.mubr.f32.gmra.mrb[0].mxu0 %v2363
  %v2460 = vpop.f32.mrb[0].mxu0
  %v2461 = vadd.f32 0.0, %v2460
  %v2462 = vpop.f32.mrb[0].mxu0
  %2463 = vmatprep.mubr.f32.mxu0 0.0
  %2464 = vmatmul.mubr.f32.gmra.mrb[0].mxu0 %v2366
  %v2465 = vpop.f32.mrb[0].mxu0
  %v2466 = vadd.f32 0.0, %v2465
  %v2467 = vpop.f32.mrb[0].mxu0
  %2468 = vmatprep.mubr.f32.mxu0 0.0
  %2469 = vmatmul.mubr.f32.gmra.mrb[0].mxu0 %v2369
  %v2470 = vpop.f32.mrb[0].mxu0
  %v2471 = vadd.f32 0.0, %v2470
  %v2472 = vpop.f32.mrb[0].mxu0
  %2473 = vmatprep.mubr.f32.mxu0 0.0
  %2474 = vmatmul.mubr.f32.gmra.mrb[0].mxu0 %v2372
  %v2475 = vpop.f32.mrb[0].mxu0
  %v2476 = vadd.f32 0.0, %v2475
  %v2477 = vpop.f32.mrb[0].mxu0
  %2478 = vdwg.mxu0
  %v2480 = vsel %vm2349, %v2316, 0
  %v2483 = vsel %vm2349, %v2317, 0
  %v2486 = vsel %vm2349, %v2318, 0
  %v2489 = vsel %vm2349, %v2319, 0
  %v2492 = vsel %vm2349, %v2320, 0
  %v2495 = vsel %vm2349, %v2321, 0
  %v2498 = vsel %vm2349, %v2322, 0
  %v2501 = vsel %vm2349, %v2323, 0
  %2503 = vmatprep.subr.mxu0 0.0
  %2504 = vmatpush1.msra.mxu0 %v2288
  %2505 = vmatprep.subr.mxu0 0.0
  %2506 = vmatpush1.msra.mxu0 %v2289
  %2507 = vmatprep.subr.mxu0 0.0
  %2508 = vmatpush1.msra.mxu0 %v2290
  %2509 = vmatprep.subr.mxu0 0.0
  %2510 = vmatpush1.msra.mxu0 %v2291
  %2511 = vmatprep.subr.mxu0 0.0
  %2512 = vmatpush1.msra.mxu0 0.0
  %2513 = vmatprep.subr.mxu0 0.0
  %2514 = vmatpush1.msra.mxu0 0.0
  %2515 = vmatprep.subr.mxu0 0.0
  %2516 = vmatpush1.msra.mxu0 0.0
  %2517 = vmatprep.subr.mxu0 0.0
  %2518 = vmatpush1.msra.mxu0 0.0
  %2519 = vmatprep.subr.mxu0 0.0
  %2520 = vmatpush1.msra.mxu0 0.0
  %2521 = vmatprep.subr.mxu0 0.0
  %2522 = vmatpush1.msra.mxu0 0.0
  %2523 = vmatprep.subr.mxu0 0.0
  %2524 = vmatpush1.msra.mxu0 0.0
  %2525 = vmatprep.subr.mxu0 0.0
  %2526 = vmatpush1.msra.mxu0 0.0
  %2527 = vmatprep.subr.mxu0 0.0
  %2528 = vmatpush1.msra.mxu0 0.0
  %2529 = vmatprep.subr.mxu0 0.0
  %2530 = vmatpush1.msra.mxu0 0.0
  %2531 = vmatprep.subr.mxu0 0.0
  %2532 = vmatpush1.msra.mxu0 0.0
  %2533 = vmatprep.subr.mxu0 0.0
  %2534 = vmatpush1.msra.mxu0 0.0
  %2535 = vmatprep.subr.mxu0 0.0
  %2536 = vmatpush1.msra.mxu0 0.0
  %2537 = vmatprep.subr.mxu0 0.0
  %2538 = vmatpush1.msra.mxu0 0.0
  %2539 = vmatprep.subr.mxu0 0.0
  %2540 = vmatpush1.msra.mxu0 0.0
  %2541 = vmatprep.subr.mxu0 0.0
  %2542 = vmatpush1.msra.mxu0 0.0
  %2543 = vmatprep.subr.mxu0 0.0
  %2544 = vmatpush1.msra.mxu0 0.0
  %2545 = vmatprep.subr.mxu0 0.0
  %2546 = vmatpush1.msra.mxu0 0.0
  %2547 = vmatprep.subr.mxu0 0.0
  %2548 = vmatpush1.msra.mxu0 0.0
  %2549 = vmatprep.subr.mxu0 0.0
  %2550 = vmatpush1.msra.mxu0 0.0
  %2551 = vmatprep.subr.mxu0 0.0
  %2552 = vmatpush1.msra.mxu0 0.0
  %2553 = vmatprep.subr.mxu0 0.0
  %2554 = vmatpush1.msra.mxu0 0.0
  %2555 = vmatprep.subr.mxu0 0.0
  %2556 = vmatpush1.msra.mxu0 0.0
  %2557 = vmatprep.subr.mxu0 0.0
  %2558 = vmatpush1.msra.mxu0 0.0
  %2559 = vmatprep.subr.mxu0 0.0
  %2560 = vmatpush1.msra.mxu0 0.0
  %2561 = vmatprep.subr.mxu0 0.0
  %2562 = vmatpush1.msra.mxu0 0.0
  %2563 = vmatprep.subr.mxu0 0.0
  %2564 = vmatpush1.msra.mxu0 0.0
  %2565 = vmatprep.subr.mxu0 0.0
  %2566 = vmatpush1.msra.mxu0 0.0
  %2567 = vmatprep.mubr.f32.mxu0 0.0
  %2568 = vmatmul.mubr.f32.gmra.mrb[0].mxu0 %v2480
  %v2569 = vpop.f32.mrb[0].mxu0
  %v2570 = vadd.f32 %v2441, %v2569
  %v2571 = vpop.f32.mrb[0].mxu0
  %2572 = vmatprep.mubr.f32.mxu0 0.0
  %2573 = vmatmul.mubr.f32.gmra.mrb[0].mxu0 %v2483
  %v2574 = vpop.f32.mrb[0].mxu0
  %v2575 = vadd.f32 %v2446, %v2574
  %v2576 = vpop.f32.mrb[0].mxu0
  %2577 = vmatprep.mubr.f32.mxu0 0.0
  %2578 = vmatmul.mubr.f32.gmra.mrb[0].mxu0 %v2486
  %v2579 = vpop.f32.mrb[0].mxu0
  %v2580 = vadd.f32 %v2451, %v2579
  %v2581 = vpop.f32.mrb[0].mxu0
  %2582 = vmatprep.mubr.f32.mxu0 0.0
  %2583 = vmatmul.mubr.f32.gmra.mrb[0].mxu0 %v2489
  %v2584 = vpop.f32.mrb[0].mxu0
  %v2585 = vadd.f32 %v2456, %v2584
  %v2586 = vpop.f32.mrb[0].mxu0
  %2587 = vmatprep.mubr.f32.mxu0 0.0
  %2588 = vmatmul.mubr.f32.gmra.mrb[0].mxu0 %v2492
  %v2589 = vpop.f32.mrb[0].mxu0
  %v2590 = vadd.f32 %v2461, %v2589
  %v2591 = vpop.f32.mrb[0].mxu0
  %2592 = vmatprep.mubr.f32.mxu0 0.0
  %2593 = vmatmul.mubr.f32.gmra.mrb[0].mxu0 %v2495
  %v2594 = vpop.f32.mrb[0].mxu0
  %v2595 = vadd.f32 %v2466, %v2594
  %v2596 = vpop.f32.mrb[0].mxu0
  %2597 = vmatprep.mubr.f32.mxu0 0.0
  %2598 = vmatmul.mubr.f32.gmra.mrb[0].mxu0 %v2498
  %v2599 = vpop.f32.mrb[0].mxu0
  %v2600 = vadd.f32 %v2471, %v2599
  %v2601 = vpop.f32.mrb[0].mxu0
  %2602 = vmatprep.mubr.f32.mxu0 0.0
  %2603 = vmatmul.mubr.f32.gmra.mrb[0].mxu0 %v2501
  %v2604 = vpop.f32.mrb[0].mxu0
  %v2605 = vadd.f32 %v2476, %v2604
  %v2606 = vpop.f32.mrb[0].mxu0
  %2607 = vdwg.mxu0
  %s2608 = scalar_lea.vmem %s29, 128
  %v2609 = vld [vmem:[%s2608] sm:$0xff]
  %v2610 = vld [vmem:[%s2608 + $0x8] sm:$0xff]
  %v2611 = vld [vmem:[%s2608 + $0x10] sm:$0xff]
  %v2612 = vld [vmem:[%s2608 + $0x18] sm:$0xff]
  %v2613 = vld [vmem:[%s2608 + $0x20] sm:$0xff]
  %v2614 = vld [vmem:[%s2608 + $0x28] sm:$0xff]
  %v2615 = vld [vmem:[%s2608 + $0x30] sm:$0xff]
  %v2616 = vld [vmem:[%s2608 + $0x38] sm:$0xff]
  %2617 = vrot.lane.b32.xlu0 %v2288, 126
  %v2618 = vpop.permute.xlu0 %2617
  %2619 = vrot.lane.b32.xlu0 %v2289, 126
  %v2620 = vpop.permute.xlu0 %2619
  %2621 = vrot.lane.b32.xlu0 %v2290, 126
  %v2622 = vpop.permute.xlu0 %2621
  %2623 = vrot.lane.b32.xlu0 %v2291, 126
  %v2624 = vpop.permute.xlu0 %2623
  %v2630 = vsel %vm2349, %v2609, 0
  %v2633 = vsel %vm2349, %v2610, 0
  %v2636 = vsel %vm2349, %v2611, 0
  %v2639 = vsel %vm2349, %v2612, 0
  %v2642 = vsel %vm2349, %v2613, 0
  %v2645 = vsel %vm2349, %v2614, 0
  %v2648 = vsel %vm2349, %v2615, 0
  %v2651 = vsel %vm2349, %v2616, 0
  %2653 = vmatprep.subr.mxu0 0.0
  %2654 = vmatpush1.msra.mxu0 %v2618
  %2655 = vmatprep.subr.mxu0 0.0
  %2656 = vmatpush1.msra.mxu0 %v2620
  %2657 = vmatprep.subr.mxu0 0.0
  %2658 = vmatpush1.msra.mxu0 %v2622
  %2659 = vmatprep.subr.mxu0 0.0
  %2660 = vmatpush1.msra.mxu0 %v2624
  %2661 = vmatprep.subr.mxu0 0.0
  %2662 = vmatpush1.msra.mxu0 0.0
  %2663 = vmatprep.subr.mxu0 0.0
  %2664 = vmatpush1.msra.mxu0 0.0
  %2665 = vmatprep.subr.mxu0 0.0
  %2666 = vmatpush1.msra.mxu0 0.0
  %2667 = vmatprep.subr.mxu0 0.0
  %2668 = vmatpush1.msra.mxu0 0.0
  %2669 = vmatprep.subr.mxu0 0.0
  %2670 = vmatpush1.msra.mxu0 0.0
  %2671 = vmatprep.subr.mxu0 0.0
  %2672 = vmatpush1.msra.mxu0 0.0
  %2673 = vmatprep.subr.mxu0 0.0
  %2674 = vmatpush1.msra.mxu0 0.0
  %2675 = vmatprep.subr.mxu0 0.0
  %2676 = vmatpush1.msra.mxu0 0.0
  %2677 = vmatprep.subr.mxu0 0.0
  %2678 = vmatpush1.msra.mxu0 0.0
  %2679 = vmatprep.subr.mxu0 0.0
  %2680 = vmatpush1.msra.mxu0 0.0
  %2681 = vmatprep.subr.mxu0 0.0
  %2682 = vmatpush1.msra.mxu0 0.0
  %2683 = vmatprep.subr.mxu0 0.0
  %2684 = vmatpush1.msra.mxu0 0.0
  %2685 = vmatprep.subr.mxu0 0.0
  %2686 = vmatpush1.msra.mxu0 0.0
  %2687 = vmatprep.subr.mxu0 0.0
  %2688 = vmatpush1.msra.mxu0 0.0
  %2689 = vmatprep.subr.mxu0 0.0
  %2690 = vmatpush1.msra.mxu0 0.0
  %2691 = vmatprep.subr.mxu0 0.0
  %2692 = vmatpush1.msra.mxu0 0.0
  %2693 = vmatprep.subr.mxu0 0.0
  %2694 = vmatpush1.msra.mxu0 0.0
  %2695 = vmatprep.subr.mxu0 0.0
  %2696 = vmatpush1.msra.mxu0 0.0
  %2697 = vmatprep.subr.mxu0 0.0
  %2698 = vmatpush1.msra.mxu0 0.0
  %2699 = vmatprep.subr.mxu0 0.0
  %2700 = vmatpush1.msra.mxu0 0.0
  %2701 = vmatprep.subr.mxu0 0.0
  %2702 = vmatpush1.msra.mxu0 0.0
  %2703 = vmatprep.subr.mxu0 0.0
  %2704 = vmatpush1.msra.mxu0 0.0
  %2705 = vmatprep.subr.mxu0 0.0
  %2706 = vmatpush1.msra.mxu0 0.0
  %2707 = vmatprep.subr.mxu0 0.0
  %2708 = vmatpush1.msra.mxu0 0.0
  %2709 = vmatprep.subr.mxu0 0.0
  %2710 = vmatpush1.msra.mxu0 0.0
  %2711 = vmatprep.subr.mxu0 0.0
  %2712 = vmatpush1.msra.mxu0 0.0
  %2713 = vmatprep.subr.mxu0 0.0
  %2714 = vmatpush1.msra.mxu0 0.0
  %2715 = vmatprep.subr.mxu0 0.0
  %2716 = vmatpush1.msra.mxu0 0.0
  %2717 = vmatprep.mubr.f32.mxu0 0.0
  %2718 = vmatmul.mubr.f32.gmra.mrb[0].mxu0 %v2630
  %v2719 = vpop.f32.mrb[0].mxu0
  %v2720 = vadd.f32 0.0, %v2719
  %v2721 = vpop.f32.mrb[0].mxu0
  %2722 = vmatprep.mubr.f32.mxu0 0.0
  %2723 = vmatmul.mubr.f32.gmra.mrb[0].mxu0 %v2633
  %v2724 = vpop.f32.mrb[0].mxu0
  %v2725 = vadd.f32 0.0, %v2724
  %v2726 = vpop.f32.mrb[0].mxu0
  %2727 = vmatprep.mubr.f32.mxu0 0.0
  %2728 = vmatmul.mubr.f32.gmra.mrb[0].mxu0 %v2636
  %v2729 = vpop.f32.mrb[0].mxu0
  %v2730 = vadd.f32 0.0, %v2729
  %v2731 = vpop.f32.mrb[0].mxu0
  %2732 = vmatprep.mubr.f32.mxu0 0.0
  %2733 = vmatmul.mubr.f32.gmra.mrb[0].mxu0 %v2639
  %v2734 = vpop.f32.mrb[0].mxu0
  %v2735 = vadd.f32 0.0, %v2734
  %v2736 = vpop.f32.mrb[0].mxu0
  %2737 = vmatprep.mubr.f32.mxu0 0.0
  %2738 = vmatmul.mubr.f32.gmra.mrb[0].mxu0 %v2642
  %v2739 = vpop.f32.mrb[0].mxu0
  %v2740 = vadd.f32 0.0, %v2739
  %v2741 = vpop.f32.mrb[0].mxu0
  %2742 = vmatprep.mubr.f32.mxu0 0.0
  %2743 = vmatmul.mubr.f32.gmra.mrb[0].mxu0 %v2645
  %v2744 = vpop.f32.mrb[0].mxu0
  %v2745 = vadd.f32 0.0, %v2744
  %v2746 = vpop.f32.mrb[0].mxu0
  %2747 = vmatprep.mubr.f32.mxu0 0.0
  %2748 = vmatmul.mubr.f32.gmra.mrb[0].mxu0 %v2648
  %v2749 = vpop.f32.mrb[0].mxu0
  %v2750 = vadd.f32 0.0, %v2749
  %v2751 = vpop.f32.mrb[0].mxu0
  %2752 = vmatprep.mubr.f32.mxu0 0.0
  %2753 = vmatmul.mubr.f32.gmra.mrb[0].mxu0 %v2651
  %v2754 = vpop.f32.mrb[0].mxu0
  %v2755 = vadd.f32 0.0, %v2754
  %v2756 = vpop.f32.mrb[0].mxu0
  %2757 = vdwg.mxu0
  %v2758 = vadd.f32 %v2570, %v2720
  %v2759 = vadd.f32 %v2575, %v2725
  %v2760 = vadd.f32 %v2580, %v2730
  %v2761 = vadd.f32 %v2585, %v2735
  %v2762 = vadd.f32 %v2590, %v2740
  %v2763 = vadd.f32 %v2595, %v2745
  %v2764 = vadd.f32 %v2600, %v2750
  %v2765 = vadd.f32 %v2605, %v2755
  %s2766 = scalar_lea.vmem %s29, 192
  %v2767 = vld [vmem:[%s2766] sm:$0xff]
  %v2768 = vld [vmem:[%s2766 + $0x8] sm:$0xff]
  %v2769 = vld [vmem:[%s2766 + $0x10] sm:$0xff]
  %v2770 = vld [vmem:[%s2766 + $0x18] sm:$0xff]
  %v2771 = vld [vmem:[%s2766 + $0x20] sm:$0xff]
  %v2772 = vld [vmem:[%s2766 + $0x28] sm:$0xff]
  %v2773 = vld [vmem:[%s2766 + $0x30] sm:$0xff]
  %v2774 = vld [vmem:[%s2766 + $0x38] sm:$0xff]
  %2775 = vrot.lane.b32.xlu0 %v2288, 125
  %v2776 = vpop.permute.xlu0 %2775
  %2777 = vrot.lane.b32.xlu0 %v2289, 125
  %v2778 = vpop.permute.xlu0 %2777
  %2779 = vrot.lane.b32.xlu0 %v2290, 125
  %v2780 = vpop.permute.xlu0 %2779
  %2781 = vrot.lane.b32.xlu0 %v2291, 125
  %v2782 = vpop.permute.xlu0 %2781
  %v2788 = vsel %vm2349, %v2767, 0
  %v2791 = vsel %vm2349, %v2768, 0
  %v2794 = vsel %vm2349, %v2769, 0
  %v2797 = vsel %vm2349, %v2770, 0
  %v2800 = vsel %vm2349, %v2771, 0
  %v2803 = vsel %vm2349, %v2772, 0
  %v2806 = vsel %vm2349, %v2773, 0
  %v2809 = vsel %vm2349, %v2774, 0
  %2811 = vmatprep.subr.mxu0 0.0
  %2812 = vmatpush1.msra.mxu0 %v2776
  %2813 = vmatprep.subr.mxu0 0.0
  %2814 = vmatpush1.msra.mxu0 %v2778
  %2815 = vmatprep.subr.mxu0 0.0
  %2816 = vmatpush1.msra.mxu0 %v2780
  %2817 = vmatprep.subr.mxu0 0.0
  %2818 = vmatpush1.msra.mxu0 %v2782
  %2819 = vmatprep.subr.mxu0 0.0
  %2820 = vmatpush1.msra.mxu0 0.0
  %2821 = vmatprep.subr.mxu0 0.0
  %2822 = vmatpush1.msra.mxu0 0.0
  %2823 = vmatprep.subr.mxu0 0.0
  %2824 = vmatpush1.msra.mxu0 0.0
  %2825 = vmatprep.subr.mxu0 0.0
  %2826 = vmatpush1.msra.mxu0 0.0
  %2827 = vmatprep.subr.mxu0 0.0
  %2828 = vmatpush1.msra.mxu0 0.0
  %2829 = vmatprep.subr.mxu0 0.0
  %2830 = vmatpush1.msra.mxu0 0.0
  %2831 = vmatprep.subr.mxu0 0.0
  %2832 = vmatpush1.msra.mxu0 0.0
  %2833 = vmatprep.subr.mxu0 0.0
  %2834 = vmatpush1.msra.mxu0 0.0
  %2835 = vmatprep.subr.mxu0 0.0
  %2836 = vmatpush1.msra.mxu0 0.0
  %2837 = vmatprep.subr.mxu0 0.0
  %2838 = vmatpush1.msra.mxu0 0.0
  %2839 = vmatprep.subr.mxu0 0.0
  %2840 = vmatpush1.msra.mxu0 0.0
  %2841 = vmatprep.subr.mxu0 0.0
  %2842 = vmatpush1.msra.mxu0 0.0
  %2843 = vmatprep.subr.mxu0 0.0
  %2844 = vmatpush1.msra.mxu0 0.0
  %2845 = vmatprep.subr.mxu0 0.0
  %2846 = vmatpush1.msra.mxu0 0.0
  %2847 = vmatprep.subr.mxu0 0.0
  %2848 = vmatpush1.msra.mxu0 0.0
  %2849 = vmatprep.subr.mxu0 0.0
  %2850 = vmatpush1.msra.mxu0 0.0
  %2851 = vmatprep.subr.mxu0 0.0
  %2852 = vmatpush1.msra.mxu0 0.0
  %2853 = vmatprep.subr.mxu0 0.0
  %2854 = vmatpush1.msra.mxu0 0.0
  %2855 = vmatprep.subr.mxu0 0.0
  %2856 = vmatpush1.msra.mxu0 0.0
  %2857 = vmatprep.subr.mxu0 0.0
  %2858 = vmatpush1.msra.mxu0 0.0
  %2859 = vmatprep.subr.mxu0 0.0
  %2860 = vmatpush1.msra.mxu0 0.0
  %2861 = vmatprep.subr.mxu0 0.0
  %2862 = vmatpush1.msra.mxu0 0.0
  %2863 = vmatprep.subr.mxu0 0.0
  %2864 = vmatpush1.msra.mxu0 0.0
  %2865 = vmatprep.subr.mxu0 0.0
  %2866 = vmatpush1.msra.mxu0 0.0
  %2867 = vmatprep.subr.mxu0 0.0
  %2868 = vmatpush1.msra.mxu0 0.0
  %2869 = vmatprep.subr.mxu0 0.0
  %2870 = vmatpush1.msra.mxu0 0.0
  %2871 = vmatprep.subr.mxu0 0.0
  %2872 = vmatpush1.msra.mxu0 0.0
  %2873 = vmatprep.subr.mxu0 0.0
  %2874 = vmatpush1.msra.mxu0 0.0
  %2875 = vmatprep.mubr.f32.mxu0 0.0
  %2876 = vmatmul.mubr.f32.gmra.mrb[0].mxu0 %v2788
  %v2877 = vpop.f32.mrb[0].mxu0
  %v2878 = vadd.f32 0.0, %v2877
  %v2879 = vpop.f32.mrb[0].mxu0
  %2880 = vmatprep.mubr.f32.mxu0 0.0
  %2881 = vmatmul.mubr.f32.gmra.mrb[0].mxu0 %v2791
  %v2882 = vpop.f32.mrb[0].mxu0
  %v2883 = vadd.f32 0.0, %v2882
  %v2884 = vpop.f32.mrb[0].mxu0
  %2885 = vmatprep.mubr.f32.mxu0 0.0
  %2886 = vmatmul.mubr.f32.gmra.mrb[0].mxu0 %v2794
  %v2887 = vpop.f32.mrb[0].mxu0
  %v2888 = vadd.f32 0.0, %v2887
  %v2889 = vpop.f32.mrb[0].mxu0
  %2890 = vmatprep.mubr.f32.mxu0 0.0
  %2891 = vmatmul.mubr.f32.gmra.mrb[0].mxu0 %v2797
  %v2892 = vpop.f32.mrb[0].mxu0
  %v2893 = vadd.f32 0.0, %v2892
  %v2894 = vpop.f32.mrb[0].mxu0
  %2895 = vmatprep.mubr.f32.mxu0 0.0
  %2896 = vmatmul.mubr.f32.gmra.mrb[0].mxu0 %v2800
  %v2897 = vpop.f32.mrb[0].mxu0
  %v2898 = vadd.f32 0.0, %v2897
  %v2899 = vpop.f32.mrb[0].mxu0
  %2900 = vmatprep.mubr.f32.mxu0 0.0
  %2901 = vmatmul.mubr.f32.gmra.mrb[0].mxu0 %v2803
  %v2902 = vpop.f32.mrb[0].mxu0
  %v2903 = vadd.f32 0.0, %v2902
  %v2904 = vpop.f32.mrb[0].mxu0
  %2905 = vmatprep.mubr.f32.mxu0 0.0
  %2906 = vmatmul.mubr.f32.gmra.mrb[0].mxu0 %v2806
  %v2907 = vpop.f32.mrb[0].mxu0
  %v2908 = vadd.f32 0.0, %v2907
  %v2909 = vpop.f32.mrb[0].mxu0
  %2910 = vmatprep.mubr.f32.mxu0 0.0
  %2911 = vmatmul.mubr.f32.gmra.mrb[0].mxu0 %v2809
  %v2912 = vpop.f32.mrb[0].mxu0
  %v2913 = vadd.f32 0.0, %v2912
  %v2914 = vpop.f32.mrb[0].mxu0
  %2915 = vdwg.mxu0
  %v2916 = vadd.f32 %v2758, %v2878
  %v2917 = vadd.f32 %v2759, %v2883
  %v2918 = vadd.f32 %v2760, %v2888
  %v2919 = vadd.f32 %v2761, %v2893
  %v2920 = vadd.f32 %v2762, %v2898
  %v2921 = vadd.f32 %v2763, %v2903
  %v2922 = vadd.f32 %v2764, %v2908
  %v2923 = vadd.f32 %v2765, %v2913
  %s2924 = scalar_lea.vmem %s29, 256
  %v2925 = vld [vmem:[%s2924] sm:$0xff]
  %v2926 = vld [vmem:[%s2924 + $0x8] sm:$0xff]
  %v2927 = vld [vmem:[%s2924 + $0x10] sm:$0xff]
  %v2928 = vld [vmem:[%s2924 + $0x18] sm:$0xff]
  %v2929 = vld [vmem:[%s2924 + $0x20] sm:$0xff]
  %v2930 = vld [vmem:[%s2924 + $0x28] sm:$0xff]
  %v2931 = vld [vmem:[%s2924 + $0x30] sm:$0xff]
  %v2932 = vld [vmem:[%s2924 + $0x38] sm:$0xff]
  %2933 = vrot.lane.b32.xlu0 %v2288, 124
  %v2934 = vpop.permute.xlu0 %2933
  %2935 = vrot.lane.b32.xlu0 %v2289, 124
  %v2936 = vpop.permute.xlu0 %2935
  %2937 = vrot.lane.b32.xlu0 %v2290, 124
  %v2938 = vpop.permute.xlu0 %2937
  %2939 = vrot.lane.b32.xlu0 %v2291, 124
  %v2940 = vpop.permute.xlu0 %2939
  %v2946 = vsel %vm2349, %v2925, 0
  %v2949 = vsel %vm2349, %v2926, 0
  %v2952 = vsel %vm2349, %v2927, 0
  %v2955 = vsel %vm2349, %v2928, 0
  %v2958 = vsel %vm2349, %v2929, 0
  %v2961 = vsel %vm2349, %v2930, 0
  %v2964 = vsel %vm2349, %v2931, 0
  %v2967 = vsel %vm2349, %v2932, 0
  %2969 = vmatprep.subr.mxu0 0.0
  %2970 = vmatpush1.msra.mxu0 %v2934
  %2971 = vmatprep.subr.mxu0 0.0
  %2972 = vmatpush1.msra.mxu0 %v2936
  %2973 = vmatprep.subr.mxu0 0.0
  %2974 = vmatpush1.msra.mxu0 %v2938
  %2975 = vmatprep.subr.mxu0 0.0
  %2976 = vmatpush1.msra.mxu0 %v2940
  %2977 = vmatprep.subr.mxu0 0.0
  %2978 = vmatpush1.msra.mxu0 0.0
  %2979 = vmatprep.subr.mxu0 0.0
  %2980 = vmatpush1.msra.mxu0 0.0
  %2981 = vmatprep.subr.mxu0 0.0
  %2982 = vmatpush1.msra.mxu0 0.0
  %2983 = vmatprep.subr.mxu0 0.0
  %2984 = vmatpush1.msra.mxu0 0.0
  %2985 = vmatprep.subr.mxu0 0.0
  %2986 = vmatpush1.msra.mxu0 0.0
  %2987 = vmatprep.subr.mxu0 0.0
  %2988 = vmatpush1.msra.mxu0 0.0
  %2989 = vmatprep.subr.mxu0 0.0
  %2990 = vmatpush1.msra.mxu0 0.0
  %2991 = vmatprep.subr.mxu0 0.0
  %2992 = vmatpush1.msra.mxu0 0.0
  %2993 = vmatprep.subr.mxu0 0.0
  %2994 = vmatpush1.msra.mxu0 0.0
  %2995 = vmatprep.subr.mxu0 0.0
  %2996 = vmatpush1.msra.mxu0 0.0
  %2997 = vmatprep.subr.mxu0 0.0
  %2998 = vmatpush1.msra.mxu0 0.0
  %2999 = vmatprep.subr.mxu0 0.0
  %3000 = vmatpush1.msra.mxu0 0.0
  %3001 = vmatprep.subr.mxu0 0.0
  %3002 = vmatpush1.msra.mxu0 0.0
  %3003 = vmatprep.subr.mxu0 0.0
  %3004 = vmatpush1.msra.mxu0 0.0
  %3005 = vmatprep.subr.mxu0 0.0
  %3006 = vmatpush1.msra.mxu0 0.0
  %3007 = vmatprep.subr.mxu0 0.0
  %3008 = vmatpush1.msra.mxu0 0.0
  %3009 = vmatprep.subr.mxu0 0.0
  %3010 = vmatpush1.msra.mxu0 0.0
  %3011 = vmatprep.subr.mxu0 0.0
  %3012 = vmatpush1.msra.mxu0 0.0
  %3013 = vmatprep.subr.mxu0 0.0
  %3014 = vmatpush1.msra.mxu0 0.0
  %3015 = vmatprep.subr.mxu0 0.0
  %3016 = vmatpush1.msra.mxu0 0.0
  %3017 = vmatprep.subr.mxu0 0.0
  %3018 = vmatpush1.msra.mxu0 0.0
  %3019 = vmatprep.subr.mxu0 0.0
  %3020 = vmatpush1.msra.mxu0 0.0
  %3021 = vmatprep.subr.mxu0 0.0
  %3022 = vmatpush1.msra.mxu0 0.0
  %3023 = vmatprep.subr.mxu0 0.0
  %3024 = vmatpush1.msra.mxu0 0.0
  %3025 = vmatprep.subr.mxu0 0.0
  %3026 = vmatpush1.msra.mxu0 0.0
  %3027 = vmatprep.subr.mxu0 0.0
  %3028 = vmatpush1.msra.mxu0 0.0
  %3029 = vmatprep.subr.mxu0 0.0
  %3030 = vmatpush1.msra.mxu0 0.0
  %3031 = vmatprep.subr.mxu0 0.0
  %3032 = vmatpush1.msra.mxu0 0.0
  %3033 = vmatprep.mubr.f32.mxu0 0.0
  %3034 = vmatmul.mubr.f32.gmra.mrb[0].mxu0 %v2946
  %v3035 = vpop.f32.mrb[0].mxu0
  %v3036 = vadd.f32 0.0, %v3035
  %v3037 = vpop.f32.mrb[0].mxu0
  %3038 = vmatprep.mubr.f32.mxu0 0.0
  %3039 = vmatmul.mubr.f32.gmra.mrb[0].mxu0 %v2949
  %v3040 = vpop.f32.mrb[0].mxu0
  %v3041 = vadd.f32 0.0, %v3040
  %v3042 = vpop.f32.mrb[0].mxu0
  %3043 = vmatprep.mubr.f32.mxu0 0.0
  %3044 = vmatmul.mubr.f32.gmra.mrb[0].mxu0 %v2952
  %v3045 = vpop.f32.mrb[0].mxu0
  %v3046 = vadd.f32 0.0, %v3045
  %v3047 = vpop.f32.mrb[0].mxu0
  %3048 = vmatprep.mubr.f32.mxu0 0.0
  %3049 = vmatmul.mubr.f32.gmra.mrb[0].mxu0 %v2955
  %v3050 = vpop.f32.mrb[0].mxu0
  %v3051 = vadd.f32 0.0, %v3050
  %v3052 = vpop.f32.mrb[0].mxu0
  %3053 = vmatprep.mubr.f32.mxu0 0.0
  %3054 = vmatmul.mubr.f32.gmra.mrb[0].mxu0 %v2958
  %v3055 = vpop.f32.mrb[0].mxu0
  %v3056 = vadd.f32 0.0, %v3055
  %v3057 = vpop.f32.mrb[0].mxu0
  %3058 = vmatprep.mubr.f32.mxu0 0.0
  %3059 = vmatmul.mubr.f32.gmra.mrb[0].mxu0 %v2961
  %v3060 = vpop.f32.mrb[0].mxu0
  %v3061 = vadd.f32 0.0, %v3060
  %v3062 = vpop.f32.mrb[0].mxu0
  %3063 = vmatprep.mubr.f32.mxu0 0.0
  %3064 = vmatmul.mubr.f32.gmra.mrb[0].mxu0 %v2964
  %v3065 = vpop.f32.mrb[0].mxu0
  %v3066 = vadd.f32 0.0, %v3065
  %v3067 = vpop.f32.mrb[0].mxu0
  %3068 = vmatprep.mubr.f32.mxu0 0.0
  %3069 = vmatmul.mubr.f32.gmra.mrb[0].mxu0 %v2967
  %v3070 = vpop.f32.mrb[0].mxu0
  %v3071 = vadd.f32 0.0, %v3070
  %v3072 = vpop.f32.mrb[0].mxu0
  %3073 = vdwg.mxu0
  %v3074 = vadd.f32 %v2916, %v3036
  %v3075 = vadd.f32 %v2917, %v3041
  %v3076 = vadd.f32 %v2918, %v3046
  %v3077 = vadd.f32 %v2919, %v3051
  %v3078 = vadd.f32 %v2920, %v3056
  %v3079 = vadd.f32 %v2921, %v3061
  %v3080 = vadd.f32 %v2922, %v3066
  %v3081 = vadd.f32 %v2923, %v3071
  %s3082 = scalar_lea.vmem %s29, 320
  %v3083 = vld [vmem:[%s3082] sm:$0xff]
  %v3084 = vld [vmem:[%s3082 + $0x8] sm:$0xff]
  %v3085 = vld [vmem:[%s3082 + $0x10] sm:$0xff]
  %v3086 = vld [vmem:[%s3082 + $0x18] sm:$0xff]
  %v3087 = vld [vmem:[%s3082 + $0x20] sm:$0xff]
  %v3088 = vld [vmem:[%s3082 + $0x28] sm:$0xff]
  %v3089 = vld [vmem:[%s3082 + $0x30] sm:$0xff]
  %v3090 = vld [vmem:[%s3082 + $0x38] sm:$0xff]
  %3091 = vrot.lane.b32.xlu0 %v2288, 123
  %v3092 = vpop.permute.xlu0 %3091
  %3093 = vrot.lane.b32.xlu0 %v2289, 123
  %v3094 = vpop.permute.xlu0 %3093
  %3095 = vrot.lane.b32.xlu0 %v2290, 123
  %v3096 = vpop.permute.xlu0 %3095
  %3097 = vrot.lane.b32.xlu0 %v2291, 123
  %v3098 = vpop.permute.xlu0 %3097
  %v3104 = vsel %vm2349, %v3083, 0
  %v3107 = vsel %vm2349, %v3084, 0
  %v3110 = vsel %vm2349, %v3085, 0
  %v3113 = vsel %vm2349, %v3086, 0
  %v3116 = vsel %vm2349, %v3087, 0
  %v3119 = vsel %vm2349, %v3088, 0
  %v3122 = vsel %vm2349, %v3089, 0
  %v3125 = vsel %vm2349, %v3090, 0
  %3127 = vmatprep.subr.mxu0 0.0
  %3128 = vmatpush1.msra.mxu0 %v3092
  %3129 = vmatprep.subr.mxu0 0.0
  %3130 = vmatpush1.msra.mxu0 %v3094
  %3131 = vmatprep.subr.mxu0 0.0
  %3132 = vmatpush1.msra.mxu0 %v3096
  %3133 = vmatprep.subr.mxu0 0.0
  %3134 = vmatpush1.msra.mxu0 %v3098
  %3135 = vmatprep.subr.mxu0 0.0
  %3136 = vmatpush1.msra.mxu0 0.0
  %3137 = vmatprep.subr.mxu0 0.0
  %3138 = vmatpush1.msra.mxu0 0.0
  %3139 = vmatprep.subr.mxu0 0.0
  %3140 = vmatpush1.msra.mxu0 0.0
  %3141 = vmatprep.subr.mxu0 0.0
  %3142 = vmatpush1.msra.mxu0 0.0
  %3143 = vmatprep.subr.mxu0 0.0
  %3144 = vmatpush1.msra.mxu0 0.0
  %3145 = vmatprep.subr.mxu0 0.0
  %3146 = vmatpush1.msra.mxu0 0.0
  %3147 = vmatprep.subr.mxu0 0.0
  %3148 = vmatpush1.msra.mxu0 0.0
  %3149 = vmatprep.subr.mxu0 0.0
  %3150 = vmatpush1.msra.mxu0 0.0
  %3151 = vmatprep.subr.mxu0 0.0
  %3152 = vmatpush1.msra.mxu0 0.0
  %3153 = vmatprep.subr.mxu0 0.0
  %3154 = vmatpush1.msra.mxu0 0.0
  %3155 = vmatprep.subr.mxu0 0.0
  %3156 = vmatpush1.msra.mxu0 0.0
  %3157 = vmatprep.subr.mxu0 0.0
  %3158 = vmatpush1.msra.mxu0 0.0
  %3159 = vmatprep.subr.mxu0 0.0
  %3160 = vmatpush1.msra.mxu0 0.0
  %3161 = vmatprep.subr.mxu0 0.0
  %3162 = vmatpush1.msra.mxu0 0.0
  %3163 = vmatprep.subr.mxu0 0.0
  %3164 = vmatpush1.msra.mxu0 0.0
  %3165 = vmatprep.subr.mxu0 0.0
  %3166 = vmatpush1.msra.mxu0 0.0
  %3167 = vmatprep.subr.mxu0 0.0
  %3168 = vmatpush1.msra.mxu0 0.0
  %3169 = vmatprep.subr.mxu0 0.0
  %3170 = vmatpush1.msra.mxu0 0.0
  %3171 = vmatprep.subr.mxu0 0.0
  %3172 = vmatpush1.msra.mxu0 0.0
  %3173 = vmatprep.subr.mxu0 0.0
  %3174 = vmatpush1.msra.mxu0 0.0
  %3175 = vmatprep.subr.mxu0 0.0
  %3176 = vmatpush1.msra.mxu0 0.0
  %3177 = vmatprep.subr.mxu0 0.0
  %3178 = vmatpush1.msra.mxu0 0.0
  %3179 = vmatprep.subr.mxu0 0.0
  %3180 = vmatpush1.msra.mxu0 0.0
  %3181 = vmatprep.subr.mxu0 0.0
  %3182 = vmatpush1.msra.mxu0 0.0
  %3183 = vmatprep.subr.mxu0 0.0
  %3184 = vmatpush1.msra.mxu0 0.0
  %3185 = vmatprep.subr.mxu0 0.0
  %3186 = vmatpush1.msra.mxu0 0.0
  %3187 = vmatprep.subr.mxu0 0.0
  %3188 = vmatpush1.msra.mxu0 0.0
  %3189 = vmatprep.subr.mxu0 0.0
  %3190 = vmatpush1.msra.mxu0 0.0
  %3191 = vmatprep.mubr.f32.mxu0 0.0
  %3192 = vmatmul.mubr.f32.gmra.mrb[0].mxu0 %v3104
  %v3193 = vpop.f32.mrb[0].mxu0
  %v3194 = vadd.f32 0.0, %v3193
  %v3195 = vpop.f32.mrb[0].mxu0
  %3196 = vmatprep.mubr.f32.mxu0 0.0
  %3197 = vmatmul.mubr.f32.gmra.mrb[0].mxu0 %v3107
  %v3198 = vpop.f32.mrb[0].mxu0
  %v3199 = vadd.f32 0.0, %v3198
  %v3200 = vpop.f32.mrb[0].mxu0
  %3201 = vmatprep.mubr.f32.mxu0 0.0
  %3202 = vmatmul.mubr.f32.gmra.mrb[0].mxu0 %v3110
  %v3203 = vpop.f32.mrb[0].mxu0
  %v3204 = vadd.f32 0.0, %v3203
  %v3205 = vpop.f32.mrb[0].mxu0
  %3206 = vmatprep.mubr.f32.mxu0 0.0
  %3207 = vmatmul.mubr.f32.gmra.mrb[0].mxu0 %v3113
  %v3208 = vpop.f32.mrb[0].mxu0
  %v3209 = vadd.f32 0.0, %v3208
  %v3210 = vpop.f32.mrb[0].mxu0
  %3211 = vmatprep.mubr.f32.mxu0 0.0
  %3212 = vmatmul.mubr.f32.gmra.mrb[0].mxu0 %v3116
  %v3213 = vpop.f32.mrb[0].mxu0
  %v3214 = vadd.f32 0.0, %v3213
  %v3215 = vpop.f32.mrb[0].mxu0
  %3216 = vmatprep.mubr.f32.mxu0 0.0
  %3217 = vmatmul.mubr.f32.gmra.mrb[0].mxu0 %v3119
  %v3218 = vpop.f32.mrb[0].mxu0
  %v3219 = vadd.f32 0.0, %v3218
  %v3220 = vpop.f32.mrb[0].mxu0
  %3221 = vmatprep.mubr.f32.mxu0 0.0
  %3222 = vmatmul.mubr.f32.gmra.mrb[0].mxu0 %v3122
  %v3223 = vpop.f32.mrb[0].mxu0
  %v3224 = vadd.f32 0.0, %v3223
  %v3225 = vpop.f32.mrb[0].mxu0
  %3226 = vmatprep.mubr.f32.mxu0 0.0
  %3227 = vmatmul.mubr.f32.gmra.mrb[0].mxu0 %v3125
  %v3228 = vpop.f32.mrb[0].mxu0
  %v3229 = vadd.f32 0.0, %v3228
  %v3230 = vpop.f32.mrb[0].mxu0
  %3231 = vdwg.mxu0
  %v3232 = vadd.f32 %v3074, %v3194
  %v3233 = vadd.f32 %v3075, %v3199
  %v3234 = vadd.f32 %v3076, %v3204
  %v3235 = vadd.f32 %v3077, %v3209
  %v3236 = vadd.f32 %v3078, %v3214
  %v3237 = vadd.f32 %v3079, %v3219
  %v3238 = vadd.f32 %v3080, %v3224
  %v3239 = vadd.f32 %v3081, %v3229
  %s3240 = scalar_lea.vmem %s29, 384
  %v3241 = vld [vmem:[%s3240] sm:$0xff]
  %v3242 = vld [vmem:[%s3240 + $0x8] sm:$0xff]
  %v3243 = vld [vmem:[%s3240 + $0x10] sm:$0xff]
  %v3244 = vld [vmem:[%s3240 + $0x18] sm:$0xff]
  %v3245 = vld [vmem:[%s3240 + $0x20] sm:$0xff]
  %v3246 = vld [vmem:[%s3240 + $0x28] sm:$0xff]
  %v3247 = vld [vmem:[%s3240 + $0x30] sm:$0xff]
  %v3248 = vld [vmem:[%s3240 + $0x38] sm:$0xff]
  %3249 = vrot.lane.b32.xlu0 %v2288, 122
  %v3250 = vpop.permute.xlu0 %3249
  %3251 = vrot.lane.b32.xlu0 %v2289, 122
  %v3252 = vpop.permute.xlu0 %3251
  %3253 = vrot.lane.b32.xlu0 %v2290, 122
  %v3254 = vpop.permute.xlu0 %3253
  %3255 = vrot.lane.b32.xlu0 %v2291, 122
  %v3256 = vpop.permute.xlu0 %3255
  %v3262 = vsel %vm2349, %v3241, 0
  %v3265 = vsel %vm2349, %v3242, 0
  %v3268 = vsel %vm2349, %v3243, 0
  %v3271 = vsel %vm2349, %v3244, 0
  %v3274 = vsel %vm2349, %v3245, 0
  %v3277 = vsel %vm2349, %v3246, 0
  %v3280 = vsel %vm2349, %v3247, 0
  %v3283 = vsel %vm2349, %v3248, 0
  %3285 = vmatprep.subr.mxu0 0.0
  %3286 = vmatpush1.msra.mxu0 %v3250
  %3287 = vmatprep.subr.mxu0 0.0
  %3288 = vmatpush1.msra.mxu0 %v3252
  %3289 = vmatprep.subr.mxu0 0.0
  %3290 = vmatpush1.msra.mxu0 %v3254
  %3291 = vmatprep.subr.mxu0 0.0
  %3292 = vmatpush1.msra.mxu0 %v3256
  %3293 = vmatprep.subr.mxu0 0.0
  %3294 = vmatpush1.msra.mxu0 0.0
  %3295 = vmatprep.subr.mxu0 0.0
  %3296 = vmatpush1.msra.mxu0 0.0
  %3297 = vmatprep.subr.mxu0 0.0
  %3298 = vmatpush1.msra.mxu0 0.0
  %3299 = vmatprep.subr.mxu0 0.0
  %3300 = vmatpush1.msra.mxu0 0.0
  %3301 = vmatprep.subr.mxu0 0.0
  %3302 = vmatpush1.msra.mxu0 0.0
  %3303 = vmatprep.subr.mxu0 0.0
  %3304 = vmatpush1.msra.mxu0 0.0
  %3305 = vmatprep.subr.mxu0 0.0
  %3306 = vmatpush1.msra.mxu0 0.0
  %3307 = vmatprep.subr.mxu0 0.0
  %3308 = vmatpush1.msra.mxu0 0.0
  %3309 = vmatprep.subr.mxu0 0.0
  %3310 = vmatpush1.msra.mxu0 0.0
  %3311 = vmatprep.subr.mxu0 0.0
  %3312 = vmatpush1.msra.mxu0 0.0
  %3313 = vmatprep.subr.mxu0 0.0
  %3314 = vmatpush1.msra.mxu0 0.0
  %3315 = vmatprep.subr.mxu0 0.0
  %3316 = vmatpush1.msra.mxu0 0.0
  %3317 = vmatprep.subr.mxu0 0.0
  %3318 = vmatpush1.msra.mxu0 0.0
  %3319 = vmatprep.subr.mxu0 0.0
  %3320 = vmatpush1.msra.mxu0 0.0
  %3321 = vmatprep.subr.mxu0 0.0
  %3322 = vmatpush1.msra.mxu0 0.0
  %3323 = vmatprep.subr.mxu0 0.0
  %3324 = vmatpush1.msra.mxu0 0.0
  %3325 = vmatprep.subr.mxu0 0.0
  %3326 = vmatpush1.msra.mxu0 0.0
  %3327 = vmatprep.subr.mxu0 0.0
  %3328 = vmatpush1.msra.mxu0 0.0
  %3329 = vmatprep.subr.mxu0 0.0
  %3330 = vmatpush1.msra.mxu0 0.0
  %3331 = vmatprep.subr.mxu0 0.0
  %3332 = vmatpush1.msra.mxu0 0.0
  %3333 = vmatprep.subr.mxu0 0.0
  %3334 = vmatpush1.msra.mxu0 0.0
  %3335 = vmatprep.subr.mxu0 0.0
  %3336 = vmatpush1.msra.mxu0 0.0
  %3337 = vmatprep.subr.mxu0 0.0
  %3338 = vmatpush1.msra.mxu0 0.0
  %3339 = vmatprep.subr.mxu0 0.0
  %3340 = vmatpush1.msra.mxu0 0.0
  %3341 = vmatprep.subr.mxu0 0.0
  %3342 = vmatpush1.msra.mxu0 0.0
  %3343 = vmatprep.subr.mxu0 0.0
  %3344 = vmatpush1.msra.mxu0 0.0
  %3345 = vmatprep.subr.mxu0 0.0
  %3346 = vmatpush1.msra.mxu0 0.0
  %3347 = vmatprep.subr.mxu0 0.0
  %3348 = vmatpush1.msra.mxu0 0.0
  %3349 = vmatprep.mubr.f32.mxu0 0.0
  %3350 = vmatmul.mubr.f32.gmra.mrb[0].mxu0 %v3262
  %v3351 = vpop.f32.mrb[0].mxu0
  %v3352 = vadd.f32 0.0, %v3351
  %v3353 = vpop.f32.mrb[0].mxu0
  %3354 = vmatprep.mubr.f32.mxu0 0.0
  %3355 = vmatmul.mubr.f32.gmra.mrb[0].mxu0 %v3265
  %v3356 = vpop.f32.mrb[0].mxu0
  %v3357 = vadd.f32 0.0, %v3356
  %v3358 = vpop.f32.mrb[0].mxu0
  %3359 = vmatprep.mubr.f32.mxu0 0.0
  %3360 = vmatmul.mubr.f32.gmra.mrb[0].mxu0 %v3268
  %v3361 = vpop.f32.mrb[0].mxu0
  %v3362 = vadd.f32 0.0, %v3361
  %v3363 = vpop.f32.mrb[0].mxu0
  %3364 = vmatprep.mubr.f32.mxu0 0.0
  %3365 = vmatmul.mubr.f32.gmra.mrb[0].mxu0 %v3271
  %v3366 = vpop.f32.mrb[0].mxu0
  %v3367 = vadd.f32 0.0, %v3366
  %v3368 = vpop.f32.mrb[0].mxu0
  %3369 = vmatprep.mubr.f32.mxu0 0.0
  %3370 = vmatmul.mubr.f32.gmra.mrb[0].mxu0 %v3274
  %v3371 = vpop.f32.mrb[0].mxu0
  %v3372 = vadd.f32 0.0, %v3371
  %v3373 = vpop.f32.mrb[0].mxu0
  %3374 = vmatprep.mubr.f32.mxu0 0.0
  %3375 = vmatmul.mubr.f32.gmra.mrb[0].mxu0 %v3277
  %v3376 = vpop.f32.mrb[0].mxu0
  %v3377 = vadd.f32 0.0, %v3376
  %v3378 = vpop.f32.mrb[0].mxu0
  %3379 = vmatprep.mubr.f32.mxu0 0.0
  %3380 = vmatmul.mubr.f32.gmra.mrb[0].mxu0 %v3280
  %v3381 = vpop.f32.mrb[0].mxu0
  %v3382 = vadd.f32 0.0, %v3381
  %v3383 = vpop.f32.mrb[0].mxu0
  %3384 = vmatprep.mubr.f32.mxu0 0.0
  %3385 = vmatmul.mubr.f32.gmra.mrb[0].mxu0 %v3283
  %v3386 = vpop.f32.mrb[0].mxu0
  %v3387 = vadd.f32 0.0, %v3386
  %v3388 = vpop.f32.mrb[0].mxu0
  %3389 = vdwg.mxu0
  %v3390 = vadd.f32 %v3232, %v3352
  %v3391 = vadd.f32 %v3233, %v3357
  %v3392 = vadd.f32 %v3234, %v3362
  %v3393 = vadd.f32 %v3235, %v3367
  %v3394 = vadd.f32 %v3236, %v3372
  %v3395 = vadd.f32 %v3237, %v3377
  %v3396 = vadd.f32 %v3238, %v3382
  %v3397 = vadd.f32 %v3239, %v3387
  %v3398 = vld [vmem:[%s37] sm:$0xff]
  %v3399 = vld [vmem:[%s37 + $0x8] sm:$0xff]
  %3401 = vset.pattern.permute.xlu0 0
  %3402 = vperm.xlu0 %3401, %v2292
  %v3403 = vpop.permute.xlu0 %3402
  %3406 = vset.pattern.permute.xlu0 0
  %3407 = vperm.xlu0 %3406, %v2293
  %v3408 = vpop.permute.xlu0 %3407
  %3411 = vset.pattern.permute.xlu0 0
  %3412 = vperm.xlu0 %3411, %v2294
  %v3413 = vpop.permute.xlu0 %3412
  %3416 = vset.pattern.permute.xlu0 0
  %3417 = vperm.xlu0 %3416, %v2295
  %v3418 = vpop.permute.xlu0 %3417
  %3421 = vset.pattern.permute.xlu0 0
  %3422 = vperm.xlu0 %3421, %v2296
  %v3423 = vpop.permute.xlu0 %3422
  %3426 = vset.pattern.permute.xlu0 0
  %3427 = vperm.xlu0 %3426, %v2297
  %v3428 = vpop.permute.xlu0 %3427
  %3431 = vset.pattern.permute.xlu0 0
  %3432 = vperm.xlu0 %3431, %v2298
  %v3433 = vpop.permute.xlu0 %3432
  %3436 = vset.pattern.permute.xlu0 0
  %3437 = vperm.xlu0 %3436, %v2299
  %v3438 = vpop.permute.xlu0 %3437
  %v3441 = vsel %vm1300, %v3390, 0
  %v3444 = vsel %vm1300, %v3391, 0
  %v3447 = vsel %vm1300, %v3392, 0
  %v3450 = vsel %vm1300, %v3393, 0
  %v3453 = vsel %vm1300, %v3394, 0
  %v3456 = vsel %vm1300, %v3395, 0
  %v3459 = vsel %vm1300, %v3396, 0
  %v3462 = vsel %vm1300, %v3397, 0
  %3464 = vmatprep.subr.mxu0 0.0
  %3465 = vmatpush1.msra.mxu0 %v3398
  %3466 = vmatprep.subr.mxu0 0.0
  %3467 = vmatpush1.msra.mxu0 %v3399
  %3468 = vmatprep.subr.mxu0 0.0
  %3469 = vmatpush1.msra.mxu0 0.0
  %3470 = vmatprep.subr.mxu0 0.0
  %3471 = vmatpush1.msra.mxu0 0.0
  %3472 = vmatprep.subr.mxu0 0.0
  %3473 = vmatpush1.msra.mxu0 0.0
  %3474 = vmatprep.subr.mxu0 0.0
  %3475 = vmatpush1.msra.mxu0 0.0
  %3476 = vmatprep.subr.mxu0 0.0
  %3477 = vmatpush1.msra.mxu0 0.0
  %3478 = vmatprep.subr.mxu0 0.0
  %3479 = vmatpush1.msra.mxu0 0.0
  %3480 = vmatprep.subr.mxu0 0.0
  %3481 = vmatpush1.msra.mxu0 0.0
  %3482 = vmatprep.subr.mxu0 0.0
  %3483 = vmatpush1.msra.mxu0 0.0
  %3484 = vmatprep.subr.mxu0 0.0
  %3485 = vmatpush1.msra.mxu0 0.0
  %3486 = vmatprep.subr.mxu0 0.0
  %3487 = vmatpush1.msra.mxu0 0.0
  %3488 = vmatprep.subr.mxu0 0.0
  %3489 = vmatpush1.msra.mxu0 0.0
  %3490 = vmatprep.subr.mxu0 0.0
  %3491 = vmatpush1.msra.mxu0 0.0
  %3492 = vmatprep.subr.mxu0 0.0
  %3493 = vmatpush1.msra.mxu0 0.0
  %3494 = vmatprep.subr.mxu0 0.0
  %3495 = vmatpush1.msra.mxu0 0.0
  %3496 = vmatprep.subr.mxu0 0.0
  %3497 = vmatpush1.msra.mxu0 0.0
  %3498 = vmatprep.subr.mxu0 0.0
  %3499 = vmatpush1.msra.mxu0 0.0
  %3500 = vmatprep.subr.mxu0 0.0
  %3501 = vmatpush1.msra.mxu0 0.0
  %3502 = vmatprep.subr.mxu0 0.0
  %3503 = vmatpush1.msra.mxu0 0.0
  %3504 = vmatprep.subr.mxu0 0.0
  %3505 = vmatpush1.msra.mxu0 0.0
  %3506 = vmatprep.subr.mxu0 0.0
  %3507 = vmatpush1.msra.mxu0 0.0
  %3508 = vmatprep.subr.mxu0 0.0
  %3509 = vmatpush1.msra.mxu0 0.0
  %3510 = vmatprep.subr.mxu0 0.0
  %3511 = vmatpush1.msra.mxu0 0.0
  %3512 = vmatprep.subr.mxu0 0.0
  %3513 = vmatpush1.msra.mxu0 0.0
  %3514 = vmatprep.subr.mxu0 0.0
  %3515 = vmatpush1.msra.mxu0 0.0
  %3516 = vmatprep.subr.mxu0 0.0
  %3517 = vmatpush1.msra.mxu0 0.0
  %3518 = vmatprep.subr.mxu0 0.0
  %3519 = vmatpush1.msra.mxu0 0.0
  %3520 = vmatprep.subr.mxu0 0.0
  %3521 = vmatpush1.msra.mxu0 0.0
  %3522 = vmatprep.subr.mxu0 0.0
  %3523 = vmatpush1.msra.mxu0 0.0
  %3524 = vmatprep.subr.mxu0 0.0
  %3525 = vmatpush1.msra.mxu0 0.0
  %3526 = vmatprep.subr.mxu0 0.0
  %3527 = vmatpush1.msra.mxu0 0.0
  %3528 = vmatprep.mubr.f32.mxu0 0.0
  %3529 = vmatmul.mubr.f32.gmra.mrb[0].mxu0 %v3441
  %v3530 = vpop.f32.mrb[0].mxu0
  %v3531 = vadd.f32 %v3403, %v3530
  %v3532 = vpop.f32.mrb[0].mxu0
  %3533 = vmatprep.mubr.f32.mxu0 0.0
  %3534 = vmatmul.mubr.f32.gmra.mrb[0].mxu0 %v3444
  %v3535 = vpop.f32.mrb[0].mxu0
  %v3536 = vadd.f32 %v3408, %v3535
  %v3537 = vpop.f32.mrb[0].mxu0
  %3538 = vmatprep.mubr.f32.mxu0 0.0
  %3539 = vmatmul.mubr.f32.gmra.mrb[0].mxu0 %v3447
  %v3540 = vpop.f32.mrb[0].mxu0
  %v3541 = vadd.f32 %v3413, %v3540
  %v3542 = vpop.f32.mrb[0].mxu0
  %3543 = vmatprep.mubr.f32.mxu0 0.0
  %3544 = vmatmul.mubr.f32.gmra.mrb[0].mxu0 %v3450
  %v3545 = vpop.f32.mrb[0].mxu0
  %v3546 = vadd.f32 %v3418, %v3545
  %v3547 = vpop.f32.mrb[0].mxu0
  %3548 = vmatprep.mubr.f32.mxu0 0.0
  %3549 = vmatmul.mubr.f32.gmra.mrb[0].mxu0 %v3453
  %v3550 = vpop.f32.mrb[0].mxu0
  %v3551 = vadd.f32 %v3423, %v3550
  %v3552 = vpop.f32.mrb[0].mxu0
  %3553 = vmatprep.mubr.f32.mxu0 0.0
  %3554 = vmatmul.mubr.f32.gmra.mrb[0].mxu0 %v3456
  %v3555 = vpop.f32.mrb[0].mxu0
  %v3556 = vadd.f32 %v3428, %v3555
  %v3557 = vpop.f32.mrb[0].mxu0
  %3558 = vmatprep.mubr.f32.mxu0 0.0
  %3559 = vmatmul.mubr.f32.gmra.mrb[0].mxu0 %v3459
  %v3560 = vpop.f32.mrb[0].mxu0
  %v3561 = vadd.f32 %v3433, %v3560
  %v3562 = vpop.f32.mrb[0].mxu0
  %3563 = vmatprep.mubr.f32.mxu0 0.0
  %3564 = vmatmul.mubr.f32.gmra.mrb[0].mxu0 %v3462
  %v3565 = vpop.f32.mrb[0].mxu0
  %v3566 = vadd.f32 %v3438, %v3565
  %v3567 = vpop.f32.mrb[0].mxu0
  %3568 = vdwg.mxu0
  %vm3569 = vcmask 48128
  %v3570 = vsel %vm3569, %v3531, 0.0
  %3571 = vadd.xlane.f32.xlu0 %v3570
  %v3572 = vpop.xlane.xlu0 %3571
  %v3573 = vsel %vm3569, %v3536, 0.0
  %3574 = vadd.xlane.f32.xlu0 %v3573
  %v3575 = vpop.xlane.xlu0 %3574
  %v3576 = vsel %vm3569, %v3541, 0.0
  %3577 = vadd.xlane.f32.xlu0 %v3576
  %v3578 = vpop.xlane.xlu0 %3577
  %v3579 = vsel %vm3569, %v3546, 0.0
  %3580 = vadd.xlane.f32.xlu0 %v3579
  %v3581 = vpop.xlane.xlu0 %3580
  %v3582 = vsel %vm3569, %v3551, 0.0
  %3583 = vadd.xlane.f32.xlu0 %v3582
  %v3584 = vpop.xlane.xlu0 %3583
  %v3585 = vsel %vm3569, %v3556, 0.0
  %3586 = vadd.xlane.f32.xlu0 %v3585
  %v3587 = vpop.xlane.xlu0 %3586
  %v3588 = vsel %vm3569, %v3561, 0.0
  %3589 = vadd.xlane.f32.xlu0 %v3588
  %v3590 = vpop.xlane.xlu0 %3589
  %v3591 = vsel %vm3569, %v3566, 0.0
  %3592 = vadd.xlane.f32.xlu0 %v3591
  %v3593 = vpop.xlane.xlu0 %3592
  %v3594 = vmul.f32 %v3572, 0.16666667
  %v3595 = vmul.f32 %v3575, 0.16666667
  %v3596 = vmul.f32 %v3578, 0.16666667
  %v3597 = vmul.f32 %v3581, 0.16666667
  %v3598 = vmul.f32 %v3584, 0.16666667
  %v3599 = vmul.f32 %v3587, 0.16666667
  %v3600 = vmul.f32 %v3590, 0.16666667
  %v3601 = vmul.f32 %v3593, 0.16666667
  %v3602 = vsub.f32 %v3531, %v3594
  %v3603 = vsub.f32 %v3536, %v3595
  %v3604 = vsub.f32 %v3541, %v3596
  %v3605 = vsub.f32 %v3546, %v3597
  %v3606 = vsub.f32 %v3551, %v3598
  %v3607 = vsub.f32 %v3556, %v3599
  %v3608 = vsub.f32 %v3561, %v3600
  %v3609 = vsub.f32 %v3566, %v3601
  %v3610 = vmul.f32 %v3602, %v3602
  %v3611 = vmul.f32 %v3603, %v3603
  %v3612 = vmul.f32 %v3604, %v3604
  %v3613 = vmul.f32 %v3605, %v3605
  %v3614 = vmul.f32 %v3606, %v3606
  %v3615 = vmul.f32 %v3607, %v3607
  %v3616 = vmul.f32 %v3608, %v3608
  %v3617 = vmul.f32 %v3609, %v3609
  %v3618 = vsel %vm3569, %v3610, 0.0
  %3619 = vadd.xlane.f32.xlu0 %v3618
  %v3620 = vpop.xlane.xlu0 %3619
  %v3621 = vsel %vm3569, %v3611, 0.0
  %3622 = vadd.xlane.f32.xlu0 %v3621
  %v3623 = vpop.xlane.xlu0 %3622
  %v3624 = vsel %vm3569, %v3612, 0.0
  %3625 = vadd.xlane.f32.xlu0 %v3624
  %v3626 = vpop.xlane.xlu0 %3625
  %v3627 = vsel %vm3569, %v3613, 0.0
  %3628 = vadd.xlane.f32.xlu0 %v3627
  %v3629 = vpop.xlane.xlu0 %3628
  %v3630 = vsel %vm3569, %v3614, 0.0
  %3631 = vadd.xlane.f32.xlu0 %v3630
  %v3632 = vpop.xlane.xlu0 %3631
  %v3633 = vsel %vm3569, %v3615, 0.0
  %3634 = vadd.xlane.f32.xlu0 %v3633
  %v3635 = vpop.xlane.xlu0 %3634
  %v3636 = vsel %vm3569, %v3616, 0.0
  %3637 = vadd.xlane.f32.xlu0 %v3636
  %v3638 = vpop.xlane.xlu0 %3637
  %v3639 = vsel %vm3569, %v3617, 0.0
  %3640 = vadd.xlane.f32.xlu0 %v3639
  %v3641 = vpop.xlane.xlu0 %3640
  %v3642 = vmul.f32 %v3620, 0.16666667
  %v3643 = vmul.f32 %v3623, 0.16666667
  %v3644 = vmul.f32 %v3626, 0.16666667
  %v3645 = vmul.f32 %v3629, 0.16666667
  %v3646 = vmul.f32 %v3632, 0.16666667
  %v3647 = vmul.f32 %v3635, 0.16666667
  %v3648 = vmul.f32 %v3638, 0.16666667
  %v3649 = vmul.f32 %v3641, 0.16666667
  %v3650 = vadd.f32 %v3642, 1e-05
  %v3651 = vadd.f32 %v3643, 1e-05
  %v3652 = vadd.f32 %v3644, 1e-05
  %v3653 = vadd.f32 %v3645, 1e-05
  %v3654 = vadd.f32 %v3646, 1e-05
  %v3655 = vadd.f32 %v3647, 1e-05
  %v3656 = vadd.f32 %v3648, 1e-05
  %v3657 = vadd.f32 %v3649, 1e-05
  %v3658 = vrsqrt.pop %v3650
  %v3659 = vrsqrt.pop %v3651
  %v3660 = vrsqrt.pop %v3652
  %v3661 = vrsqrt.pop %v3653
  %v3662 = vrsqrt.pop %v3654
  %v3663 = vrsqrt.pop %v3655
  %v3664 = vrsqrt.pop %v3656
  %v3665 = vrsqrt.pop %v3657
  %v3666 = vmul.f32 %v2300, %v3658
  %v3667 = vmul.f32 %v2301, %v3659
  %v3668 = vmul.f32 %v2302, %v3660
  %v3669 = vmul.f32 %v2303, %v3661
  %v3670 = vmul.f32 %v2304, %v3662
  %v3671 = vmul.f32 %v2305, %v3663
  %v3672 = vmul.f32 %v2306, %v3664
  %v3673 = vmul.f32 %v2307, %v3665
  %3675 = vset.pattern.permute.xlu0 0
  %3676 = vperm.xlu0 %3675, %v3666
  %v3677 = vpop.permute.xlu0 %3676
  %3680 = vset.pattern.permute.xlu0 0
  %3681 = vperm.xlu0 %3680, %v3667
  %v3682 = vpop.permute.xlu0 %3681
  %3685 = vset.pattern.permute.xlu0 0
  %3686 = vperm.xlu0 %3685, %v3668
  %v3687 = vpop.permute.xlu0 %3686
  %3690 = vset.pattern.permute.xlu0 0
  %3691 = vperm.xlu0 %3690, %v3669
  %v3692 = vpop.permute.xlu0 %3691
  %3695 = vset.pattern.permute.xlu0 0
  %3696 = vperm.xlu0 %3695, %v3670
  %v3697 = vpop.permute.xlu0 %3696
  %3700 = vset.pattern.permute.xlu0 0
  %3701 = vperm.xlu0 %3700, %v3671
  %v3702 = vpop.permute.xlu0 %3701
  %3705 = vset.pattern.permute.xlu0 0
  %3706 = vperm.xlu0 %3705, %v3672
  %v3707 = vpop.permute.xlu0 %3706
  %3710 = vset.pattern.permute.xlu0 0
  %3711 = vperm.xlu0 %3710, %v3673
  %v3712 = vpop.permute.xlu0 %3711
  %v3714 = vmul.f32 %v3602, %v3677
  %v3715 = vmul.f32 %v3603, %v3682
  %v3716 = vmul.f32 %v3604, %v3687
  %v3717 = vmul.f32 %v3605, %v3692
  %v3718 = vmul.f32 %v3606, %v3697
  %v3719 = vmul.f32 %v3607, %v3702
  %v3720 = vmul.f32 %v3608, %v3707
  %v3721 = vmul.f32 %v3609, %v3712
  %3723 = vset.pattern.permute.xlu0 0
  %3724 = vperm.xlu0 %3723, %v2308
  %v3725 = vpop.permute.xlu0 %3724
  %3728 = vset.pattern.permute.xlu0 0
  %3729 = vperm.xlu0 %3728, %v2309
  %v3730 = vpop.permute.xlu0 %3729
  %3733 = vset.pattern.permute.xlu0 0
  %3734 = vperm.xlu0 %3733, %v2310
  %v3735 = vpop.permute.xlu0 %3734
  %3738 = vset.pattern.permute.xlu0 0
  %3739 = vperm.xlu0 %3738, %v2311
  %v3740 = vpop.permute.xlu0 %3739
  %3743 = vset.pattern.permute.xlu0 0
  %3744 = vperm.xlu0 %3743, %v2312
  %v3745 = vpop.permute.xlu0 %3744
  %3748 = vset.pattern.permute.xlu0 0
  %3749 = vperm.xlu0 %3748, %v2313
  %v3750 = vpop.permute.xlu0 %3749
  %3753 = vset.pattern.permute.xlu0 0
  %3754 = vperm.xlu0 %3753, %v2314
  %v3755 = vpop.permute.xlu0 %3754
  %3758 = vset.pattern.permute.xlu0 0
  %3759 = vperm.xlu0 %3758, %v2315
  %v3760 = vpop.permute.xlu0 %3759
  %v3762 = vadd.f32 %v3714, %v3725
  %v3763 = vadd.f32 %v3715, %v3730
  %v3764 = vadd.f32 %v3716, %v3735
  %v3765 = vadd.f32 %v3717, %v3740
  %v3766 = vadd.f32 %v3718, %v3745
  %v3767 = vadd.f32 %v3719, %v3750
  %v3768 = vadd.f32 %v3720, %v3755
  %v3769 = vadd.f32 %v3721, %v3760
  %vm3770 = vcmp.ge.f32.partialorder %v3762, 0.0
  %vm3771 = vcmp.ge.f32.partialorder %v3763, 0.0
  %vm3772 = vcmp.ge.f32.partialorder %v3764, 0.0
  %vm3773 = vcmp.ge.f32.partialorder %v3765, 0.0
  %vm3774 = vcmp.ge.f32.partialorder %v3766, 0.0
  %vm3775 = vcmp.ge.f32.partialorder %v3767, 0.0
  %vm3776 = vcmp.ge.f32.partialorder %v3768, 0.0
  %vm3777 = vcmp.ge.f32.partialorder %v3769, 0.0
  %v3778 = vmul.f32 %v3762, 0.2
  %v3779 = vmul.f32 %v3763, 0.2
  %v3780 = vmul.f32 %v3764, 0.2
  %v3781 = vmul.f32 %v3765, 0.2
  %v3782 = vmul.f32 %v3766, 0.2
  %v3783 = vmul.f32 %v3767, 0.2
  %v3784 = vmul.f32 %v3768, 0.2
  %v3785 = vmul.f32 %v3769, 0.2
  %v3786 = vsel %vm3770, %v3762, %v3778
  %v3787 = vsel %vm3771, %v3763, %v3779
  %v3788 = vsel %vm3772, %v3764, %v3780
  %v3789 = vsel %vm3773, %v3765, %v3781
  %v3790 = vsel %vm3774, %v3766, %v3782
  %v3791 = vsel %vm3775, %v3767, %v3783
  %v3792 = vsel %vm3776, %v3768, %v3784
  %v3793 = vsel %vm3777, %v3769, %v3785
  %v3794 = vld [vmem:[%s41] sm:$0xff]
  %v3795 = vld [vmem:[%s41 + $0x8] sm:$0xff]
  %v3796 = vld [vmem:[%s41 + $0x10] sm:$0xff]
  %v3797 = vld [vmem:[%s41 + $0x18] sm:$0xff]
  %v3798 = vld [vmem:[%s41 + $0x20] sm:$0xff]
  %v3799 = vld [vmem:[%s41 + $0x28] sm:$0xff]
  %v3800 = vld [vmem:[%s41 + $0x30] sm:$0xff]
  %v3801 = vld [vmem:[%s41 + $0x38] sm:$0xff]
  %v3802 = vld [vmem:[%s41 + $0x40] sm:$0xff]
  %v3803 = vld [vmem:[%s41 + $0x48] sm:$0xff]
  %v3804 = vld [vmem:[%s41 + $0x50] sm:$0xff]
  %v3805 = vld [vmem:[%s41 + $0x58] sm:$0xff]
  %v3806 = vld [vmem:[%s41 + $0x60] sm:$0xff]
  %v3807 = vld [vmem:[%s41 + $0x68] sm:$0xff]
  %v3808 = vld [vmem:[%s41 + $0x70] sm:$0xff]
  %v3809 = vld [vmem:[%s41 + $0x78] sm:$0xff]
  %v3810 = vld [vmem:[%s39] sm:$0xff]
  %v3811 = vld [vmem:[%s39 + $0x8] sm:$0xff]
  %v3812 = vld [vmem:[%s39 + $0x10] sm:$0xff]
  %v3813 = vld [vmem:[%s39 + $0x18] sm:$0xff]
  %v3814 = vld [vmem:[%s39 + $0x20] sm:$0xff]
  %v3815 = vld [vmem:[%s39 + $0x28] sm:$0xff]
  %v3816 = vld [vmem:[%s39 + $0x30] sm:$0xff]
  %v3817 = vld [vmem:[%s39 + $0x38] sm:$0xff]
  %v3818 = vld [vmem:[%s39 + $0x40] sm:$0xff]
  %v3819 = vld [vmem:[%s39 + $0x48] sm:$0xff]
  %v3820 = vld [vmem:[%s39 + $0x50] sm:$0xff]
  %v3821 = vld [vmem:[%s39 + $0x58] sm:$0xff]
  %v3822 = vld [vmem:[%s39 + $0x60] sm:$0xff]
  %v3823 = vld [vmem:[%s39 + $0x68] sm:$0xff]
  %v3824 = vld [vmem:[%s39 + $0x70] sm:$0xff]
  %v3825 = vld [vmem:[%s39 + $0x78] sm:$0xff]
  %s3826 = scalar_lea.vmem %s39, 128
  %v3827 = vld [vmem:[%s3826] sm:$0xff]
  %v3828 = vld [vmem:[%s3826 + $0x8] sm:$0xff]
  %v3829 = vld [vmem:[%s3826 + $0x10] sm:$0xff]
  %v3830 = vld [vmem:[%s3826 + $0x18] sm:$0xff]
  %v3831 = vld [vmem:[%s3826 + $0x20] sm:$0xff]
  %v3832 = vld [vmem:[%s3826 + $0x28] sm:$0xff]
  %v3833 = vld [vmem:[%s3826 + $0x30] sm:$0xff]
  %v3834 = vld [vmem:[%s3826 + $0x38] sm:$0xff]
  %v3835 = vld [vmem:[%s3826 + $0x40] sm:$0xff]
  %v3836 = vld [vmem:[%s3826 + $0x48] sm:$0xff]
  %v3837 = vld [vmem:[%s3826 + $0x50] sm:$0xff]
  %v3838 = vld [vmem:[%s3826 + $0x58] sm:$0xff]
  %v3839 = vld [vmem:[%s3826 + $0x60] sm:$0xff]
  %v3840 = vld [vmem:[%s3826 + $0x68] sm:$0xff]
  %v3841 = vld [vmem:[%s3826 + $0x70] sm:$0xff]
  %v3842 = vld [vmem:[%s3826 + $0x78] sm:$0xff]
  %3851 = vrot.lane.b32.xlu0 %v3786, 127
  %v3852 = vpop.permute.xlu0 %3851
  %3853 = vrot.lane.b32.xlu0 %v3787, 127
  %v3854 = vpop.permute.xlu0 %3853
  %3855 = vrot.lane.b32.xlu0 %v3788, 127
  %v3856 = vpop.permute.xlu0 %3855
  %3857 = vrot.lane.b32.xlu0 %v3789, 127
  %v3858 = vpop.permute.xlu0 %3857
  %3859 = vrot.lane.b32.xlu0 %v3790, 127
  %v3860 = vpop.permute.xlu0 %3859
  %3861 = vrot.lane.b32.xlu0 %v3791, 127
  %v3862 = vpop.permute.xlu0 %3861
  %3863 = vrot.lane.b32.xlu0 %v3792, 127
  %v3864 = vpop.permute.xlu0 %3863
  %3865 = vrot.lane.b32.xlu0 %v3793, 127
  %v3866 = vpop.permute.xlu0 %3865
  %vm3875 = vcmask 523264
  %v3877 = vsel %vm3875, %v3827, 0
  %v3880 = vsel %vm3875, %v3828, 0
  %v3883 = vsel %vm3875, %v3829, 0
  %v3886 = vsel %vm3875, %v3830, 0
  %v3889 = vsel %vm3875, %v3831, 0
  %v3892 = vsel %vm3875, %v3832, 0
  %v3895 = vsel %vm3875, %v3833, 0
  %v3898 = vsel %vm3875, %v3834, 0
  %v3901 = vsel %vm3875, %v3835, 0
  %v3904 = vsel %vm3875, %v3836, 0
  %v3907 = vsel %vm3875, %v3837, 0
  %v3910 = vsel %vm3875, %v3838, 0
  %v3913 = vsel %vm3875, %v3839, 0
  %v3916 = vsel %vm3875, %v3840, 0
  %v3919 = vsel %vm3875, %v3841, 0
  %v3922 = vsel %vm3875, %v3842, 0
  %3924 = vmatprep.subr.mxu0 0.0
  %3925 = vmatpush1.msra.mxu0 %v3852
  %3926 = vmatprep.subr.mxu0 0.0
  %3927 = vmatpush1.msra.mxu0 %v3854
  %3928 = vmatprep.subr.mxu0 0.0
  %3929 = vmatpush1.msra.mxu0 %v3856
  %3930 = vmatprep.subr.mxu0 0.0
  %3931 = vmatpush1.msra.mxu0 %v3858
  %3932 = vmatprep.subr.mxu0 0.0
  %3933 = vmatpush1.msra.mxu0 %v3860
  %3934 = vmatprep.subr.mxu0 0.0
  %3935 = vmatpush1.msra.mxu0 %v3862
  %3936 = vmatprep.subr.mxu0 0.0
  %3937 = vmatpush1.msra.mxu0 %v3864
  %3938 = vmatprep.subr.mxu0 0.0
  %3939 = vmatpush1.msra.mxu0 %v3866
  %3940 = vmatprep.subr.mxu0 0.0
  %3941 = vmatpush1.msra.mxu0 0.0
  %3942 = vmatprep.subr.mxu0 0.0
  %3943 = vmatpush1.msra.mxu0 0.0
  %3944 = vmatprep.subr.mxu0 0.0
  %3945 = vmatpush1.msra.mxu0 0.0
  %3946 = vmatprep.subr.mxu0 0.0
  %3947 = vmatpush1.msra.mxu0 0.0
  %3948 = vmatprep.subr.mxu0 0.0
  %3949 = vmatpush1.msra.mxu0 0.0
  %3950 = vmatprep.subr.mxu0 0.0
  %3951 = vmatpush1.msra.mxu0 0.0
  %3952 = vmatprep.subr.mxu0 0.0
  %3953 = vmatpush1.msra.mxu0 0.0
  %3954 = vmatprep.subr.mxu0 0.0
  %3955 = vmatpush1.msra.mxu0 0.0
  %3956 = vmatprep.subr.mxu0 0.0
  %3957 = vmatpush1.msra.mxu0 0.0
  %3958 = vmatprep.subr.mxu0 0.0
  %3959 = vmatpush1.msra.mxu0 0.0
  %3960 = vmatprep.subr.mxu0 0.0
  %3961 = vmatpush1.msra.mxu0 0.0
  %3962 = vmatprep.subr.mxu0 0.0
  %3963 = vmatpush1.msra.mxu0 0.0
  %3964 = vmatprep.subr.mxu0 0.0
  %3965 = vmatpush1.msra.mxu0 0.0
  %3966 = vmatprep.subr.mxu0 0.0
  %3967 = vmatpush1.msra.mxu0 0.0
  %3968 = vmatprep.subr.mxu0 0.0
  %3969 = vmatpush1.msra.mxu0 0.0
  %3970 = vmatprep.subr.mxu0 0.0
  %3971 = vmatpush1.msra.mxu0 0.0
  %3972 = vmatprep.subr.mxu0 0.0
  %3973 = vmatpush1.msra.mxu0 0.0
  %3974 = vmatprep.subr.mxu0 0.0
  %3975 = vmatpush1.msra.mxu0 0.0
  %3976 = vmatprep.subr.mxu0 0.0
  %3977 = vmatpush1.msra.mxu0 0.0
  %3978 = vmatprep.subr.mxu0 0.0
  %3979 = vmatpush1.msra.mxu0 0.0
  %3980 = vmatprep.subr.mxu0 0.0
  %3981 = vmatpush1.msra.mxu0 0.0
  %3982 = vmatprep.subr.mxu0 0.0
  %3983 = vmatpush1.msra.mxu0 0.0
  %3984 = vmatprep.subr.mxu0 0.0
  %3985 = vmatpush1.msra.mxu0 0.0
  %3986 = vmatprep.subr.mxu0 0.0
  %3987 = vmatpush1.msra.mxu0 0.0
  %3988 = vmatprep.mubr.f32.mxu0 0.0
  %3989 = vmatmul.mubr.f32.gmra.mrb[0].mxu0 %v3877
  %v3990 = vpop.f32.mrb[0].mxu0
  %v3991 = vadd.f32 0.0, %v3990
  %v3992 = vpop.f32.mrb[0].mxu0
  %3993 = vmatprep.mubr.f32.mxu0 0.0
  %3994 = vmatmul.mubr.f32.gmra.mrb[0].mxu0 %v3880
  %v3995 = vpop.f32.mrb[0].mxu0
  %v3996 = vadd.f32 0.0, %v3995
  %v3997 = vpop.f32.mrb[0].mxu0
  %3998 = vmatprep.mubr.f32.mxu0 0.0
  %3999 = vmatmul.mubr.f32.gmra.mrb[0].mxu0 %v3883
  %v4000 = vpop.f32.mrb[0].mxu0
  %v4001 = vadd.f32 0.0, %v4000
  %v4002 = vpop.f32.mrb[0].mxu0
  %4003 = vmatprep.mubr.f32.mxu0 0.0
  %4004 = vmatmul.mubr.f32.gmra.mrb[0].mxu0 %v3886
  %v4005 = vpop.f32.mrb[0].mxu0
  %v4006 = vadd.f32 0.0, %v4005
  %v4007 = vpop.f32.mrb[0].mxu0
  %4008 = vmatprep.mubr.f32.mxu0 0.0
  %4009 = vmatmul.mubr.f32.gmra.mrb[0].mxu0 %v3889
  %v4010 = vpop.f32.mrb[0].mxu0
  %v4011 = vadd.f32 0.0, %v4010
  %v4012 = vpop.f32.mrb[0].mxu0
  %4013 = vmatprep.mubr.f32.mxu0 0.0
  %4014 = vmatmul.mubr.f32.gmra.mrb[0].mxu0 %v3892
  %v4015 = vpop.f32.mrb[0].mxu0
  %v4016 = vadd.f32 0.0, %v4015
  %v4017 = vpop.f32.mrb[0].mxu0
  %4018 = vmatprep.mubr.f32.mxu0 0.0
  %4019 = vmatmul.mubr.f32.gmra.mrb[0].mxu0 %v3895
  %v4020 = vpop.f32.mrb[0].mxu0
  %v4021 = vadd.f32 0.0, %v4020
  %v4022 = vpop.f32.mrb[0].mxu0
  %4023 = vmatprep.mubr.f32.mxu0 0.0
  %4024 = vmatmul.mubr.f32.gmra.mrb[0].mxu0 %v3898
  %v4025 = vpop.f32.mrb[0].mxu0
  %v4026 = vadd.f32 0.0, %v4025
  %v4027 = vpop.f32.mrb[0].mxu0
  %4028 = vmatprep.mubr.f32.mxu0 0.0
  %4029 = vmatmul.mubr.f32.gmra.mrb[0].mxu0 %v3901
  %v4030 = vpop.f32.mrb[0].mxu0
  %v4031 = vadd.f32 0.0, %v4030
  %v4032 = vpop.f32.mrb[0].mxu0
  %4033 = vmatprep.mubr.f32.mxu0 0.0
  %4034 = vmatmul.mubr.f32.gmra.mrb[0].mxu0 %v3904
  %v4035 = vpop.f32.mrb[0].mxu0
  %v4036 = vadd.f32 0.0, %v4035
  %v4037 = vpop.f32.mrb[0].mxu0
  %4038 = vmatprep.mubr.f32.mxu0 0.0
  %4039 = vmatmul.mubr.f32.gmra.mrb[0].mxu0 %v3907
  %v4040 = vpop.f32.mrb[0].mxu0
  %v4041 = vadd.f32 0.0, %v4040
  %v4042 = vpop.f32.mrb[0].mxu0
  %4043 = vmatprep.mubr.f32.mxu0 0.0
  %4044 = vmatmul.mubr.f32.gmra.mrb[0].mxu0 %v3910
  %v4045 = vpop.f32.mrb[0].mxu0
  %v4046 = vadd.f32 0.0, %v4045
  %v4047 = vpop.f32.mrb[0].mxu0
  %4048 = vmatprep.mubr.f32.mxu0 0.0
  %4049 = vmatmul.mubr.f32.gmra.mrb[0].mxu0 %v3913
  %v4050 = vpop.f32.mrb[0].mxu0
  %v4051 = vadd.f32 0.0, %v4050
  %v4052 = vpop.f32.mrb[0].mxu0
  %4053 = vmatprep.mubr.f32.mxu0 0.0
  %4054 = vmatmul.mubr.f32.gmra.mrb[0].mxu0 %v3916
  %v4055 = vpop.f32.mrb[0].mxu0
  %v4056 = vadd.f32 0.0, %v4055
  %v4057 = vpop.f32.mrb[0].mxu0
  %4058 = vmatprep.mubr.f32.mxu0 0.0
  %4059 = vmatmul.mubr.f32.gmra.mrb[0].mxu0 %v3919
  %v4060 = vpop.f32.mrb[0].mxu0
  %v4061 = vadd.f32 0.0, %v4060
  %v4062 = vpop.f32.mrb[0].mxu0
  %4063 = vmatprep.mubr.f32.mxu0 0.0
  %4064 = vmatmul.mubr.f32.gmra.mrb[0].mxu0 %v3922
  %v4065 = vpop.f32.mrb[0].mxu0
  %v4066 = vadd.f32 0.0, %v4065
  %v4067 = vpop.f32.mrb[0].mxu0
  %4068 = vdwg.mxu0
  %v4070 = vsel %vm3875, %v3810, 0
  %v4073 = vsel %vm3875, %v3811, 0
  %v4076 = vsel %vm3875, %v3812, 0
  %v4079 = vsel %vm3875, %v3813, 0
  %v4082 = vsel %vm3875, %v3814, 0
  %v4085 = vsel %vm3875, %v3815, 0
  %v4088 = vsel %vm3875, %v3816, 0
  %v4091 = vsel %vm3875, %v3817, 0
  %v4094 = vsel %vm3875, %v3818, 0
  %v4097 = vsel %vm3875, %v3819, 0
  %v4100 = vsel %vm3875, %v3820, 0
  %v4103 = vsel %vm3875, %v3821, 0
  %v4106 = vsel %vm3875, %v3822, 0
  %v4109 = vsel %vm3875, %v3823, 0
  %v4112 = vsel %vm3875, %v3824, 0
  %v4115 = vsel %vm3875, %v3825, 0
  %4117 = vmatprep.subr.mxu0 0.0
  %4118 = vmatpush1.msra.mxu0 %v3786
  %4119 = vmatprep.subr.mxu0 0.0
  %4120 = vmatpush1.msra.mxu0 %v3787
  %4121 = vmatprep.subr.mxu0 0.0
  %4122 = vmatpush1.msra.mxu0 %v3788
  %4123 = vmatprep.subr.mxu0 0.0
  %4124 = vmatpush1.msra.mxu0 %v3789
  %4125 = vmatprep.subr.mxu0 0.0
  %4126 = vmatpush1.msra.mxu0 %v3790
  %4127 = vmatprep.subr.mxu0 0.0
  %4128 = vmatpush1.msra.mxu0 %v3791
  %4129 = vmatprep.subr.mxu0 0.0
  %4130 = vmatpush1.msra.mxu0 %v3792
  %4131 = vmatprep.subr.mxu0 0.0
  %4132 = vmatpush1.msra.mxu0 %v3793
  %4133 = vmatprep.subr.mxu0 0.0
  %4134 = vmatpush1.msra.mxu0 0.0
  %4135 = vmatprep.subr.mxu0 0.0
  %4136 = vmatpush1.msra.mxu0 0.0
  %4137 = vmatprep.subr.mxu0 0.0
  %4138 = vmatpush1.msra.mxu0 0.0
  %4139 = vmatprep.subr.mxu0 0.0
  %4140 = vmatpush1.msra.mxu0 0.0
  %4141 = vmatprep.subr.mxu0 0.0
  %4142 = vmatpush1.msra.mxu0 0.0
  %4143 = vmatprep.subr.mxu0 0.0
  %4144 = vmatpush1.msra.mxu0 0.0
  %4145 = vmatprep.subr.mxu0 0.0
  %4146 = vmatpush1.msra.mxu0 0.0
  %4147 = vmatprep.subr.mxu0 0.0
  %4148 = vmatpush1.msra.mxu0 0.0
  %4149 = vmatprep.subr.mxu0 0.0
  %4150 = vmatpush1.msra.mxu0 0.0
  %4151 = vmatprep.subr.mxu0 0.0
  %4152 = vmatpush1.msra.mxu0 0.0
  %4153 = vmatprep.subr.mxu0 0.0
  %4154 = vmatpush1.msra.mxu0 0.0
  %4155 = vmatprep.subr.mxu0 0.0
  %4156 = vmatpush1.msra.mxu0 0.0
  %4157 = vmatprep.subr.mxu0 0.0
  %4158 = vmatpush1.msra.mxu0 0.0
  %4159 = vmatprep.subr.mxu0 0.0
  %4160 = vmatpush1.msra.mxu0 0.0
  %4161 = vmatprep.subr.mxu0 0.0
  %4162 = vmatpush1.msra.mxu0 0.0
  %4163 = vmatprep.subr.mxu0 0.0
  %4164 = vmatpush1.msra.mxu0 0.0
  %4165 = vmatprep.subr.mxu0 0.0
  %4166 = vmatpush1.msra.mxu0 0.0
  %4167 = vmatprep.subr.mxu0 0.0
  %4168 = vmatpush1.msra.mxu0 0.0
  %4169 = vmatprep.subr.mxu0 0.0
  %4170 = vmatpush1.msra.mxu0 0.0
  %4171 = vmatprep.subr.mxu0 0.0
  %4172 = vmatpush1.msra.mxu0 0.0
  %4173 = vmatprep.subr.mxu0 0.0
  %4174 = vmatpush1.msra.mxu0 0.0
  %4175 = vmatprep.subr.mxu0 0.0
  %4176 = vmatpush1.msra.mxu0 0.0
  %4177 = vmatprep.subr.mxu0 0.0
  %4178 = vmatpush1.msra.mxu0 0.0
  %4179 = vmatprep.subr.mxu0 0.0
  %4180 = vmatpush1.msra.mxu0 0.0
  %4181 = vmatprep.mubr.f32.mxu0 0.0
  %4182 = vmatmul.mubr.f32.gmra.mrb[0].mxu0 %v4070
  %v4183 = vpop.f32.mrb[0].mxu0
  %v4184 = vadd.f32 %v3991, %v4183
  %v4185 = vpop.f32.mrb[0].mxu0
  %4186 = vmatprep.mubr.f32.mxu0 0.0
  %4187 = vmatmul.mubr.f32.gmra.mrb[0].mxu0 %v4073
  %v4188 = vpop.f32.mrb[0].mxu0
  %v4189 = vadd.f32 %v3996, %v4188
  %v4190 = vpop.f32.mrb[0].mxu0
  %4191 = vmatprep.mubr.f32.mxu0 0.0
  %4192 = vmatmul.mubr.f32.gmra.mrb[0].mxu0 %v4076
  %v4193 = vpop.f32.mrb[0].mxu0
  %v4194 = vadd.f32 %v4001, %v4193
  %v4195 = vpop.f32.mrb[0].mxu0
  %4196 = vmatprep.mubr.f32.mxu0 0.0
  %4197 = vmatmul.mubr.f32.gmra.mrb[0].mxu0 %v4079
  %v4198 = vpop.f32.mrb[0].mxu0
  %v4199 = vadd.f32 %v4006, %v4198
  %v4200 = vpop.f32.mrb[0].mxu0
  %4201 = vmatprep.mubr.f32.mxu0 0.0
  %4202 = vmatmul.mubr.f32.gmra.mrb[0].mxu0 %v4082
  %v4203 = vpop.f32.mrb[0].mxu0
  %v4204 = vadd.f32 %v4011, %v4203
  %v4205 = vpop.f32.mrb[0].mxu0
  %4206 = vmatprep.mubr.f32.mxu0 0.0
  %4207 = vmatmul.mubr.f32.gmra.mrb[0].mxu0 %v4085
  %v4208 = vpop.f32.mrb[0].mxu0
  %v4209 = vadd.f32 %v4016, %v4208
  %v4210 = vpop.f32.mrb[0].mxu0
  %4211 = vmatprep.mubr.f32.mxu0 0.0
  %4212 = vmatmul.mubr.f32.gmra.mrb[0].mxu0 %v4088
  %v4213 = vpop.f32.mrb[0].mxu0
  %v4214 = vadd.f32 %v4021, %v4213
  %v4215 = vpop.f32.mrb[0].mxu0
  %4216 = vmatprep.mubr.f32.mxu0 0.0
  %4217 = vmatmul.mubr.f32.gmra.mrb[0].mxu0 %v4091
  %v4218 = vpop.f32.mrb[0].mxu0
  %v4219 = vadd.f32 %v4026, %v4218
  %v4220 = vpop.f32.mrb[0].mxu0
  %4221 = vmatprep.mubr.f32.mxu0 0.0
  %4222 = vmatmul.mubr.f32.gmra.mrb[0].mxu0 %v4094
  %v4223 = vpop.f32.mrb[0].mxu0
  %v4224 = vadd.f32 %v4031, %v4223
  %v4225 = vpop.f32.mrb[0].mxu0
  %4226 = vmatprep.mubr.f32.mxu0 0.0
  %4227 = vmatmul.mubr.f32.gmra.mrb[0].mxu0 %v4097
  %v4228 = vpop.f32.mrb[0].mxu0
  %v4229 = vadd.f32 %v4036, %v4228
  %v4230 = vpop.f32.mrb[0].mxu0
  %4231 = vmatprep.mubr.f32.mxu0 0.0
  %4232 = vmatmul.mubr.f32.gmra.mrb[0].mxu0 %v4100
  %v4233 = vpop.f32.mrb[0].mxu0
  %v4234 = vadd.f32 %v4041, %v4233
  %v4235 = vpop.f32.mrb[0].mxu0
  %4236 = vmatprep.mubr.f32.mxu0 0.0
  %4237 = vmatmul.mubr.f32.gmra.mrb[0].mxu0 %v4103
  %v4238 = vpop.f32.mrb[0].mxu0
  %v4239 = vadd.f32 %v4046, %v4238
  %v4240 = vpop.f32.mrb[0].mxu0
  %4241 = vmatprep.mubr.f32.mxu0 0.0
  %4242 = vmatmul.mubr.f32.gmra.mrb[0].mxu0 %v4106
  %v4243 = vpop.f32.mrb[0].mxu0
  %v4244 = vadd.f32 %v4051, %v4243
  %v4245 = vpop.f32.mrb[0].mxu0
  %4246 = vmatprep.mubr.f32.mxu0 0.0
  %4247 = vmatmul.mubr.f32.gmra.mrb[0].mxu0 %v4109
  %v4248 = vpop.f32.mrb[0].mxu0
  %v4249 = vadd.f32 %v4056, %v4248
  %v4250 = vpop.f32.mrb[0].mxu0
  %4251 = vmatprep.mubr.f32.mxu0 0.0
  %4252 = vmatmul.mubr.f32.gmra.mrb[0].mxu0 %v4112
  %v4253 = vpop.f32.mrb[0].mxu0
  %v4254 = vadd.f32 %v4061, %v4253
  %v4255 = vpop.f32.mrb[0].mxu0
  %4256 = vmatprep.mubr.f32.mxu0 0.0
  %4257 = vmatmul.mubr.f32.gmra.mrb[0].mxu0 %v4115
  %v4258 = vpop.f32.mrb[0].mxu0
  %v4259 = vadd.f32 %v4066, %v4258
  %v4260 = vpop.f32.mrb[0].mxu0
  %4261 = vdwg.mxu0
  %s4262 = scalar_lea.vmem %s39, 256
  %v4263 = vld [vmem:[%s4262] sm:$0xff]
  %v4264 = vld [vmem:[%s4262 + $0x8] sm:$0xff]
  %v4265 = vld [vmem:[%s4262 + $0x10] sm:$0xff]
  %v4266 = vld [vmem:[%s4262 + $0x18] sm:$0xff]
  %v4267 = vld [vmem:[%s4262 + $0x20] sm:$0xff]
  %v4268 = vld [vmem:[%s4262 + $0x28] sm:$0xff]
  %v4269 = vld [vmem:[%s4262 + $0x30] sm:$0xff]
  %v4270 = vld [vmem:[%s4262 + $0x38] sm:$0xff]
  %v4271 = vld [vmem:[%s4262 + $0x40] sm:$0xff]
  %v4272 = vld [vmem:[%s4262 + $0x48] sm:$0xff]
  %v4273 = vld [vmem:[%s4262 + $0x50] sm:$0xff]
  %v4274 = vld [vmem:[%s4262 + $0x58] sm:$0xff]
  %v4275 = vld [vmem:[%s4262 + $0x60] sm:$0xff]
  %v4276 = vld [vmem:[%s4262 + $0x68] sm:$0xff]
  %v4277 = vld [vmem:[%s4262 + $0x70] sm:$0xff]
  %v4278 = vld [vmem:[%s4262 + $0x78] sm:$0xff]
  %4279 = vrot.lane.b32.xlu0 %v3786, 126
  %v4280 = vpop.permute.xlu0 %4279
  %4281 = vrot.lane.b32.xlu0 %v3787, 126
  %v4282 = vpop.permute.xlu0 %4281
  %4283 = vrot.lane.b32.xlu0 %v3788, 126
  %v4284 = vpop.permute.xlu0 %4283
  %4285 = vrot.lane.b32.xlu0 %v3789, 126
  %v4286 = vpop.permute.xlu0 %4285
  %4287 = vrot.lane.b32.xlu0 %v3790, 126
  %v4288 = vpop.permute.xlu0 %4287
  %4289 = vrot.lane.b32.xlu0 %v3791, 126
  %v4290 = vpop.permute.xlu0 %4289
  %4291 = vrot.lane.b32.xlu0 %v3792, 126
  %v4292 = vpop.permute.xlu0 %4291
  %4293 = vrot.lane.b32.xlu0 %v3793, 126
  %v4294 = vpop.permute.xlu0 %4293
  %v4304 = vsel %vm3875, %v4263, 0
  %v4307 = vsel %vm3875, %v4264, 0
  %v4310 = vsel %vm3875, %v4265, 0
  %v4313 = vsel %vm3875, %v4266, 0
  %v4316 = vsel %vm3875, %v4267, 0
  %v4319 = vsel %vm3875, %v4268, 0
  %v4322 = vsel %vm3875, %v4269, 0
  %v4325 = vsel %vm3875, %v4270, 0
  %v4328 = vsel %vm3875, %v4271, 0
  %v4331 = vsel %vm3875, %v4272, 0
  %v4334 = vsel %vm3875, %v4273, 0
  %v4337 = vsel %vm3875, %v4274, 0
  %v4340 = vsel %vm3875, %v4275, 0
  %v4343 = vsel %vm3875, %v4276, 0
  %v4346 = vsel %vm3875, %v4277, 0
  %v4349 = vsel %vm3875, %v4278, 0
  %4351 = vmatprep.subr.mxu0 0.0
  %4352 = vmatpush1.msra.mxu0 %v4280
  %4353 = vmatprep.subr.mxu0 0.0
  %4354 = vmatpush1.msra.mxu0 %v4282
  %4355 = vmatprep.subr.mxu0 0.0
  %4356 = vmatpush1.msra.mxu0 %v4284
  %4357 = vmatprep.subr.mxu0 0.0
  %4358 = vmatpush1.msra.mxu0 %v4286
  %4359 = vmatprep.subr.mxu0 0.0
  %4360 = vmatpush1.msra.mxu0 %v4288
  %4361 = vmatprep.subr.mxu0 0.0
  %4362 = vmatpush1.msra.mxu0 %v4290
  %4363 = vmatprep.subr.mxu0 0.0
  %4364 = vmatpush1.msra.mxu0 %v4292
  %4365 = vmatprep.subr.mxu0 0.0
  %4366 = vmatpush1.msra.mxu0 %v4294
  %4367 = vmatprep.subr.mxu0 0.0
  %4368 = vmatpush1.msra.mxu0 0.0
  %4369 = vmatprep.subr.mxu0 0.0
  %4370 = vmatpush1.msra.mxu0 0.0
  %4371 = vmatprep.subr.mxu0 0.0
  %4372 = vmatpush1.msra.mxu0 0.0
  %4373 = vmatprep.subr.mxu0 0.0
  %4374 = vmatpush1.msra.mxu0 0.0
  %4375 = vmatprep.subr.mxu0 0.0
  %4376 = vmatpush1.msra.mxu0 0.0
  %4377 = vmatprep.subr.mxu0 0.0
  %4378 = vmatpush1.msra.mxu0 0.0
  %4379 = vmatprep.subr.mxu0 0.0
  %4380 = vmatpush1.msra.mxu0 0.0
  %4381 = vmatprep.subr.mxu0 0.0
  %4382 = vmatpush1.msra.mxu0 0.0
  %4383 = vmatprep.subr.mxu0 0.0
  %4384 = vmatpush1.msra.mxu0 0.0
  %4385 = vmatprep.subr.mxu0 0.0
  %4386 = vmatpush1.msra.mxu0 0.0
  %4387 = vmatprep.subr.mxu0 0.0
  %4388 = vmatpush1.msra.mxu0 0.0
  %4389 = vmatprep.subr.mxu0 0.0
  %4390 = vmatpush1.msra.mxu0 0.0
  %4391 = vmatprep.subr.mxu0 0.0
  %4392 = vmatpush1.msra.mxu0 0.0
  %4393 = vmatprep.subr.mxu0 0.0
  %4394 = vmatpush1.msra.mxu0 0.0
  %4395 = vmatprep.subr.mxu0 0.0
  %4396 = vmatpush1.msra.mxu0 0.0
  %4397 = vmatprep.subr.mxu0 0.0
  %4398 = vmatpush1.msra.mxu0 0.0
  %4399 = vmatprep.subr.mxu0 0.0
  %4400 = vmatpush1.msra.mxu0 0.0
  %4401 = vmatprep.subr.mxu0 0.0
  %4402 = vmatpush1.msra.mxu0 0.0
  %4403 = vmatprep.subr.mxu0 0.0
  %4404 = vmatpush1.msra.mxu0 0.0
  %4405 = vmatprep.subr.mxu0 0.0
  %4406 = vmatpush1.msra.mxu0 0.0
  %4407 = vmatprep.subr.mxu0 0.0
  %4408 = vmatpush1.msra.mxu0 0.0
  %4409 = vmatprep.subr.mxu0 0.0
  %4410 = vmatpush1.msra.mxu0 0.0
  %4411 = vmatprep.subr.mxu0 0.0
  %4412 = vmatpush1.msra.mxu0 0.0
  %4413 = vmatprep.subr.mxu0 0.0
  %4414 = vmatpush1.msra.mxu0 0.0
  %4415 = vmatprep.mubr.f32.mxu0 0.0
  %4416 = vmatmul.mubr.f32.gmra.mrb[0].mxu0 %v4304
  %v4417 = vpop.f32.mrb[0].mxu0
  %v4418 = vadd.f32 0.0, %v4417
  %v4419 = vpop.f32.mrb[0].mxu0
  %4420 = vmatprep.mubr.f32.mxu0 0.0
  %4421 = vmatmul.mubr.f32.gmra.mrb[0].mxu0 %v4307
  %v4422 = vpop.f32.mrb[0].mxu0
  %v4423 = vadd.f32 0.0, %v4422
  %v4424 = vpop.f32.mrb[0].mxu0
  %4425 = vmatprep.mubr.f32.mxu0 0.0
  %4426 = vmatmul.mubr.f32.gmra.mrb[0].mxu0 %v4310
  %v4427 = vpop.f32.mrb[0].mxu0
  %v4428 = vadd.f32 0.0, %v4427
  %v4429 = vpop.f32.mrb[0].mxu0
  %4430 = vmatprep.mubr.f32.mxu0 0.0
  %4431 = vmatmul.mubr.f32.gmra.mrb[0].mxu0 %v4313
  %v4432 = vpop.f32.mrb[0].mxu0
  %v4433 = vadd.f32 0.0, %v4432
  %v4434 = vpop.f32.mrb[0].mxu0
  %4435 = vmatprep.mubr.f32.mxu0 0.0
  %4436 = vmatmul.mubr.f32.gmra.mrb[0].mxu0 %v4316
  %v4437 = vpop.f32.mrb[0].mxu0
  %v4438 = vadd.f32 0.0, %v4437
  %v4439 = vpop.f32.mrb[0].mxu0
  %4440 = vmatprep.mubr.f32.mxu0 0.0
  %4441 = vmatmul.mubr.f32.gmra.mrb[0].mxu0 %v4319
  %v4442 = vpop.f32.mrb[0].mxu0
  %v4443 = vadd.f32 0.0, %v4442
  %v4444 = vpop.f32.mrb[0].mxu0
  %4445 = vmatprep.mubr.f32.mxu0 0.0
  %4446 = vmatmul.mubr.f32.gmra.mrb[0].mxu0 %v4322
  %v4447 = vpop.f32.mrb[0].mxu0
  %v4448 = vadd.f32 0.0, %v4447
  %v4449 = vpop.f32.mrb[0].mxu0
  %4450 = vmatprep.mubr.f32.mxu0 0.0
  %4451 = vmatmul.mubr.f32.gmra.mrb[0].mxu0 %v4325
  %v4452 = vpop.f32.mrb[0].mxu0
  %v4453 = vadd.f32 0.0, %v4452
  %v4454 = vpop.f32.mrb[0].mxu0
  %4455 = vmatprep.mubr.f32.mxu0 0.0
  %4456 = vmatmul.mubr.f32.gmra.mrb[0].mxu0 %v4328
  %v4457 = vpop.f32.mrb[0].mxu0
  %v4458 = vadd.f32 0.0, %v4457
  %v4459 = vpop.f32.mrb[0].mxu0
  %4460 = vmatprep.mubr.f32.mxu0 0.0
  %4461 = vmatmul.mubr.f32.gmra.mrb[0].mxu0 %v4331
  %v4462 = vpop.f32.mrb[0].mxu0
  %v4463 = vadd.f32 0.0, %v4462
  %v4464 = vpop.f32.mrb[0].mxu0
  %4465 = vmatprep.mubr.f32.mxu0 0.0
  %4466 = vmatmul.mubr.f32.gmra.mrb[0].mxu0 %v4334
  %v4467 = vpop.f32.mrb[0].mxu0
  %v4468 = vadd.f32 0.0, %v4467
  %v4469 = vpop.f32.mrb[0].mxu0
  %4470 = vmatprep.mubr.f32.mxu0 0.0
  %4471 = vmatmul.mubr.f32.gmra.mrb[0].mxu0 %v4337
  %v4472 = vpop.f32.mrb[0].mxu0
  %v4473 = vadd.f32 0.0, %v4472
  %v4474 = vpop.f32.mrb[0].mxu0
  %4475 = vmatprep.mubr.f32.mxu0 0.0
  %4476 = vmatmul.mubr.f32.gmra.mrb[0].mxu0 %v4340
  %v4477 = vpop.f32.mrb[0].mxu0
  %v4478 = vadd.f32 0.0, %v4477
  %v4479 = vpop.f32.mrb[0].mxu0
  %4480 = vmatprep.mubr.f32.mxu0 0.0
  %4481 = vmatmul.mubr.f32.gmra.mrb[0].mxu0 %v4343
  %v4482 = vpop.f32.mrb[0].mxu0
  %v4483 = vadd.f32 0.0, %v4482
  %v4484 = vpop.f32.mrb[0].mxu0
  %4485 = vmatprep.mubr.f32.mxu0 0.0
  %4486 = vmatmul.mubr.f32.gmra.mrb[0].mxu0 %v4346
  %v4487 = vpop.f32.mrb[0].mxu0
  %v4488 = vadd.f32 0.0, %v4487
  %v4489 = vpop.f32.mrb[0].mxu0
  %4490 = vmatprep.mubr.f32.mxu0 0.0
  %4491 = vmatmul.mubr.f32.gmra.mrb[0].mxu0 %v4349
  %v4492 = vpop.f32.mrb[0].mxu0
  %v4493 = vadd.f32 0.0, %v4492
  %v4494 = vpop.f32.mrb[0].mxu0
  %4495 = vdwg.mxu0
  %v4496 = vadd.f32 %v4184, %v4418
  %v4497 = vadd.f32 %v4189, %v4423
  %v4498 = vadd.f32 %v4194, %v4428
  %v4499 = vadd.f32 %v4199, %v4433
  %v4500 = vadd.f32 %v4204, %v4438
  %v4501 = vadd.f32 %v4209, %v4443
  %v4502 = vadd.f32 %v4214, %v4448
  %v4503 = vadd.f32 %v4219, %v4453
  %v4504 = vadd.f32 %v4224, %v4458
  %v4505 = vadd.f32 %v4229, %v4463
  %v4506 = vadd.f32 %v4234, %v4468
  %v4507 = vadd.f32 %v4239, %v4473
  %v4508 = vadd.f32 %v4244, %v4478
  %v4509 = vadd.f32 %v4249, %v4483
  %v4510 = vadd.f32 %v4254, %v4488
  %v4511 = vadd.f32 %v4259, %v4493
  %v4512 = vld [vmem:[%s43] sm:$0xf]
  %4514 = vset.pattern.permute.xlu0 0
  %4515 = vperm.xlu0 %4514, %v3794
  %v4516 = vpop.permute.xlu0 %4515
  %4519 = vset.pattern.permute.xlu0 0
  %4520 = vperm.xlu0 %4519, %v3795
  %v4521 = vpop.permute.xlu0 %4520
  %4524 = vset.pattern.permute.xlu0 0
  %4525 = vperm.xlu0 %4524, %v3796
  %v4526 = vpop.permute.xlu0 %4525
  %4529 = vset.pattern.permute.xlu0 0
  %4530 = vperm.xlu0 %4529, %v3797
  %v4531 = vpop.permute.xlu0 %4530
  %4534 = vset.pattern.permute.xlu0 0
  %4535 = vperm.xlu0 %4534, %v3798
  %v4536 = vpop.permute.xlu0 %4535
  %4539 = vset.pattern.permute.xlu0 0
  %4540 = vperm.xlu0 %4539, %v3799
  %v4541 = vpop.permute.xlu0 %4540
  %4544 = vset.pattern.permute.xlu0 0
  %4545 = vperm.xlu0 %4544, %v3800
  %v4546 = vpop.permute.xlu0 %4545
  %4549 = vset.pattern.permute.xlu0 0
  %4550 = vperm.xlu0 %4549, %v3801
  %v4551 = vpop.permute.xlu0 %4550
  %4554 = vset.pattern.permute.xlu0 0
  %4555 = vperm.xlu0 %4554, %v3802
  %v4556 = vpop.permute.xlu0 %4555
  %4559 = vset.pattern.permute.xlu0 0
  %4560 = vperm.xlu0 %4559, %v3803
  %v4561 = vpop.permute.xlu0 %4560
  %4564 = vset.pattern.permute.xlu0 0
  %4565 = vperm.xlu0 %4564, %v3804
  %v4566 = vpop.permute.xlu0 %4565
  %4569 = vset.pattern.permute.xlu0 0
  %4570 = vperm.xlu0 %4569, %v3805
  %v4571 = vpop.permute.xlu0 %4570
  %4574 = vset.pattern.permute.xlu0 0
  %4575 = vperm.xlu0 %4574, %v3806
  %v4576 = vpop.permute.xlu0 %4575
  %4579 = vset.pattern.permute.xlu0 0
  %4580 = vperm.xlu0 %4579, %v3807
  %v4581 = vpop.permute.xlu0 %4580
  %4584 = vset.pattern.permute.xlu0 0
  %4585 = vperm.xlu0 %4584, %v3808
  %v4586 = vpop.permute.xlu0 %4585
  %4589 = vset.pattern.permute.xlu0 0
  %4590 = vperm.xlu0 %4589, %v3809
  %v4591 = vpop.permute.xlu0 %4590
  %vm4593 = vcmask 31744
  %v4595 = vsel %vm4593, %v4496, 0
  %v4598 = vsel %vm4593, %v4497, 0
  %v4601 = vsel %vm4593, %v4498, 0
  %v4604 = vsel %vm4593, %v4499, 0
  %v4607 = vsel %vm4593, %v4500, 0
  %v4610 = vsel %vm4593, %v4501, 0
  %v4613 = vsel %vm4593, %v4502, 0
  %v4616 = vsel %vm4593, %v4503, 0
  %v4619 = vsel %vm4593, %v4504, 0
  %v4622 = vsel %vm4593, %v4505, 0
  %v4625 = vsel %vm4593, %v4506, 0
  %v4628 = vsel %vm4593, %v4507, 0
  %v4631 = vsel %vm4593, %v4508, 0
  %v4634 = vsel %vm4593, %v4509, 0
  %v4637 = vsel %vm4593, %v4510, 0
  %v4640 = vsel %vm4593, %v4511, 0
  %vm4642 = vcmask 1043456
  %v4644 = vsel %vm4642, %v4512, 0
  %4646 = vmatprep.subr.mxu0 0.0
  %4647 = vmatpush1.msra.mxu0 %v4644
  %4648 = vmatprep.subr.mxu0 0.0
  %4649 = vmatpush1.msra.mxu0 0.0
  %4650 = vmatprep.subr.mxu0 0.0
  %4651 = vmatpush1.msra.mxu0 0.0
  %4652 = vmatprep.subr.mxu0 0.0
  %4653 = vmatpush1.msra.mxu0 0.0
  %4654 = vmatprep.subr.mxu0 0.0
  %4655 = vmatpush1.msra.mxu0 0.0
  %4656 = vmatprep.subr.mxu0 0.0
  %4657 = vmatpush1.msra.mxu0 0.0
  %4658 = vmatprep.subr.mxu0 0.0
  %4659 = vmatpush1.msra.mxu0 0.0
  %4660 = vmatprep.subr.mxu0 0.0
  %4661 = vmatpush1.msra.mxu0 0.0
  %4662 = vmatprep.subr.mxu0 0.0
  %4663 = vmatpush1.msra.mxu0 0.0
  %4664 = vmatprep.subr.mxu0 0.0
  %4665 = vmatpush1.msra.mxu0 0.0
  %4666 = vmatprep.subr.mxu0 0.0
  %4667 = vmatpush1.msra.mxu0 0.0
  %4668 = vmatprep.subr.mxu0 0.0
  %4669 = vmatpush1.msra.mxu0 0.0
  %4670 = vmatprep.subr.mxu0 0.0
  %4671 = vmatpush1.msra.mxu0 0.0
  %4672 = vmatprep.subr.mxu0 0.0
  %4673 = vmatpush1.msra.mxu0 0.0
  %4674 = vmatprep.subr.mxu0 0.0
  %4675 = vmatpush1.msra.mxu0 0.0
  %4676 = vmatprep.subr.mxu0 0.0
  %4677 = vmatpush1.msra.mxu0 0.0
  %4678 = vmatprep.subr.mxu0 0.0
  %4679 = vmatpush1.msra.mxu0 0.0
  %4680 = vmatprep.subr.mxu0 0.0
  %4681 = vmatpush1.msra.mxu0 0.0
  %4682 = vmatprep.subr.mxu0 0.0
  %4683 = vmatpush1.msra.mxu0 0.0
  %4684 = vmatprep.subr.mxu0 0.0
  %4685 = vmatpush1.msra.mxu0 0.0
  %4686 = vmatprep.subr.mxu0 0.0
  %4687 = vmatpush1.msra.mxu0 0.0
  %4688 = vmatprep.subr.mxu0 0.0
  %4689 = vmatpush1.msra.mxu0 0.0
  %4690 = vmatprep.subr.mxu0 0.0
  %4691 = vmatpush1.msra.mxu0 0.0
  %4692 = vmatprep.subr.mxu0 0.0
  %4693 = vmatpush1.msra.mxu0 0.0
  %4694 = vmatprep.subr.mxu0 0.0
  %4695 = vmatpush1.msra.mxu0 0.0
  %4696 = vmatprep.subr.mxu0 0.0
  %4697 = vmatpush1.msra.mxu0 0.0
  %4698 = vmatprep.subr.mxu0 0.0
  %4699 = vmatpush1.msra.mxu0 0.0
  %4700 = vmatprep.subr.mxu0 0.0
  %4701 = vmatpush1.msra.mxu0 0.0
  %4702 = vmatprep.subr.mxu0 0.0
  %4703 = vmatpush1.msra.mxu0 0.0
  %4704 = vmatprep.subr.mxu0 0.0
  %4705 = vmatpush1.msra.mxu0 0.0
  %4706 = vmatprep.subr.mxu0 0.0
  %4707 = vmatpush1.msra.mxu0 0.0
  %4708 = vmatprep.subr.mxu0 0.0
  %4709 = vmatpush1.msra.mxu0 0.0
  %4710 = vmatprep.mubr.f32.mxu0 0.0
  %4711 = vmatmul.mubr.f32.gmra.mrb[0].mxu0 %v4595
  %v4712 = vpop.f32.mrb[0].mxu0
  %v4713 = vadd.f32 %v4516, %v4712
  %v4714 = vpop.f32.mrb[0].mxu0
  %4715 = vmatprep.mubr.f32.mxu0 0.0
  %4716 = vmatmul.mubr.f32.gmra.mrb[0].mxu0 %v4598
  %v4717 = vpop.f32.mrb[0].mxu0
  %v4718 = vadd.f32 %v4521, %v4717
  %v4719 = vpop.f32.mrb[0].mxu0
  %4720 = vmatprep.mubr.f32.mxu0 0.0
  %4721 = vmatmul.mubr.f32.gmra.mrb[0].mxu0 %v4601
  %v4722 = vpop.f32.mrb[0].mxu0
  %v4723 = vadd.f32 %v4526, %v4722
  %v4724 = vpop.f32.mrb[0].mxu0
  %4725 = vmatprep.mubr.f32.mxu0 0.0
  %4726 = vmatmul.mubr.f32.gmra.mrb[0].mxu0 %v4604
  %v4727 = vpop.f32.mrb[0].mxu0
  %v4728 = vadd.f32 %v4531, %v4727
  %v4729 = vpop.f32.mrb[0].mxu0
  %4730 = vmatprep.mubr.f32.mxu0 0.0
  %4731 = vmatmul.mubr.f32.gmra.mrb[0].mxu0 %v4607
  %v4732 = vpop.f32.mrb[0].mxu0
  %v4733 = vadd.f32 %v4536, %v4732
  %v4734 = vpop.f32.mrb[0].mxu0
  %4735 = vmatprep.mubr.f32.mxu0 0.0
  %4736 = vmatmul.mubr.f32.gmra.mrb[0].mxu0 %v4610
  %v4737 = vpop.f32.mrb[0].mxu0
  %v4738 = vadd.f32 %v4541, %v4737
  %v4739 = vpop.f32.mrb[0].mxu0
  %4740 = vmatprep.mubr.f32.mxu0 0.0
  %4741 = vmatmul.mubr.f32.gmra.mrb[0].mxu0 %v4613
  %v4742 = vpop.f32.mrb[0].mxu0
  %v4743 = vadd.f32 %v4546, %v4742
  %v4744 = vpop.f32.mrb[0].mxu0
  %4745 = vmatprep.mubr.f32.mxu0 0.0
  %4746 = vmatmul.mubr.f32.gmra.mrb[0].mxu0 %v4616
  %v4747 = vpop.f32.mrb[0].mxu0
  %v4748 = vadd.f32 %v4551, %v4747
  %v4749 = vpop.f32.mrb[0].mxu0
  %4750 = vmatprep.mubr.f32.mxu0 0.0
  %4751 = vmatmul.mubr.f32.gmra.mrb[0].mxu0 %v4619
  %v4752 = vpop.f32.mrb[0].mxu0
  %v4753 = vadd.f32 %v4556, %v4752
  %v4754 = vpop.f32.mrb[0].mxu0
  %4755 = vmatprep.mubr.f32.mxu0 0.0
  %4756 = vmatmul.mubr.f32.gmra.mrb[0].mxu0 %v4622
  %v4757 = vpop.f32.mrb[0].mxu0
  %v4758 = vadd.f32 %v4561, %v4757
  %v4759 = vpop.f32.mrb[0].mxu0
  %4760 = vmatprep.mubr.f32.mxu0 0.0
  %4761 = vmatmul.mubr.f32.gmra.mrb[0].mxu0 %v4625
  %v4762 = vpop.f32.mrb[0].mxu0
  %v4763 = vadd.f32 %v4566, %v4762
  %v4764 = vpop.f32.mrb[0].mxu0
  %4765 = vmatprep.mubr.f32.mxu0 0.0
  %4766 = vmatmul.mubr.f32.gmra.mrb[0].mxu0 %v4628
  %v4767 = vpop.f32.mrb[0].mxu0
  %v4768 = vadd.f32 %v4571, %v4767
  %v4769 = vpop.f32.mrb[0].mxu0
  %4770 = vmatprep.mubr.f32.mxu0 0.0
  %4771 = vmatmul.mubr.f32.gmra.mrb[0].mxu0 %v4631
  %v4772 = vpop.f32.mrb[0].mxu0
  %v4773 = vadd.f32 %v4576, %v4772
  %v4774 = vpop.f32.mrb[0].mxu0
  %4775 = vmatprep.mubr.f32.mxu0 0.0
  %4776 = vmatmul.mubr.f32.gmra.mrb[0].mxu0 %v4634
  %v4777 = vpop.f32.mrb[0].mxu0
  %v4778 = vadd.f32 %v4581, %v4777
  %v4779 = vpop.f32.mrb[0].mxu0
  %4780 = vmatprep.mubr.f32.mxu0 0.0
  %4781 = vmatmul.mubr.f32.gmra.mrb[0].mxu0 %v4637
  %v4782 = vpop.f32.mrb[0].mxu0
  %v4783 = vadd.f32 %v4586, %v4782
  %v4784 = vpop.f32.mrb[0].mxu0
  %4785 = vmatprep.mubr.f32.mxu0 0.0
  %4786 = vmatmul.mubr.f32.gmra.mrb[0].mxu0 %v4640
  %v4787 = vpop.f32.mrb[0].mxu0
  %v4788 = vadd.f32 %v4591, %v4787
  %v4789 = vpop.f32.mrb[0].mxu0
  %4790 = vdwg.mxu0
  %v4791 = vtanh.pop %v4713
  %v4792 = vtanh.pop %v4718
  %v4793 = vtanh.pop %v4723
  %v4794 = vtanh.pop %v4728
  %v4795 = vtanh.pop %v4733
  %v4796 = vtanh.pop %v4738
  %v4797 = vtanh.pop %v4743
  %v4798 = vtanh.pop %v4748
  %v4799 = vtanh.pop %v4753
  %v4800 = vtanh.pop %v4758
  %v4801 = vtanh.pop %v4763
  %v4802 = vtanh.pop %v4768
  %v4803 = vtanh.pop %v4773
  %v4804 = vtanh.pop %v4778
  %v4805 = vtanh.pop %v4783
  %v4806 = vtanh.pop %v4788
  %v4807 = vld [vmem:[%s47] sm:$0xff]
  %v4808 = vld [vmem:[%s47 + $0x8] sm:$0xff]
  %v4809 = vld [vmem:[%s47 + $0x10] sm:$0xff]
  %v4810 = vld [vmem:[%s47 + $0x18] sm:$0xff]
  %v4811 = vld [vmem:[%s47 + $0x20] sm:$0xff]
  %v4812 = vld [vmem:[%s47 + $0x28] sm:$0xff]
  %v4813 = vld [vmem:[%s47 + $0x30] sm:$0xff]
  %v4814 = vld [vmem:[%s47 + $0x38] sm:$0xff]
  %v4815 = vld [vmem:[%s49] sm:$0x3]
  %vm4816 = vcmask 15360
  %v4818 = vsel %vm4816, %v4791, 0
  %v4821 = vsel %vm4816, %v4792, 0
  %v4824 = vsel %vm4816, %v4793, 0
  %v4827 = vsel %vm4816, %v4794, 0
  %v4830 = vsel %vm4816, %v4795, 0
  %v4833 = vsel %vm4816, %v4796, 0
  %v4836 = vsel %vm4816, %v4797, 0
  %v4839 = vsel %vm4816, %v4798, 0
  %v4842 = vsel %vm4816, %v4799, 0
  %v4845 = vsel %vm4816, %v4800, 0
  %v4848 = vsel %vm4816, %v4801, 0
  %v4851 = vsel %vm4816, %v4802, 0
  %v4854 = vsel %vm4816, %v4803, 0
  %v4857 = vsel %vm4816, %v4804, 0
  %v4860 = vsel %vm4816, %v4805, 0
  %v4863 = vsel %vm4816, %v4806, 0
  %vm4865 = vcmask 1041408
  %v4867 = vsel %vm4865, %v4815, 0
  %4869 = vmatprep.subr.mxu0 0.0
  %4870 = vmatpush1.msra.mxu0 %v4867
  %4871 = vmatprep.subr.mxu0 0.0
  %4872 = vmatpush1.msra.mxu0 0.0
  %4873 = vmatprep.subr.mxu0 0.0
  %4874 = vmatpush1.msra.mxu0 0.0
  %4875 = vmatprep.subr.mxu0 0.0
  %4876 = vmatpush1.msra.mxu0 0.0
  %4877 = vmatprep.subr.mxu0 0.0
  %4878 = vmatpush1.msra.mxu0 0.0
  %4879 = vmatprep.subr.mxu0 0.0
  %4880 = vmatpush1.msra.mxu0 0.0
  %4881 = vmatprep.subr.mxu0 0.0
  %4882 = vmatpush1.msra.mxu0 0.0
  %4883 = vmatprep.subr.mxu0 0.0
  %4884 = vmatpush1.msra.mxu0 0.0
  %4885 = vmatprep.subr.mxu0 0.0
  %4886 = vmatpush1.msra.mxu0 0.0
  %4887 = vmatprep.subr.mxu0 0.0
  %4888 = vmatpush1.msra.mxu0 0.0
  %4889 = vmatprep.subr.mxu0 0.0
  %4890 = vmatpush1.msra.mxu0 0.0
  %4891 = vmatprep.subr.mxu0 0.0
  %4892 = vmatpush1.msra.mxu0 0.0
  %4893 = vmatprep.subr.mxu0 0.0
  %4894 = vmatpush1.msra.mxu0 0.0
  %4895 = vmatprep.subr.mxu0 0.0
  %4896 = vmatpush1.msra.mxu0 0.0
  %4897 = vmatprep.subr.mxu0 0.0
  %4898 = vmatpush1.msra.mxu0 0.0
  %4899 = vmatprep.subr.mxu0 0.0
  %4900 = vmatpush1.msra.mxu0 0.0
  %4901 = vmatprep.subr.mxu0 0.0
  %4902 = vmatpush1.msra.mxu0 0.0
  %4903 = vmatprep.subr.mxu0 0.0
  %4904 = vmatpush1.msra.mxu0 0.0
  %4905 = vmatprep.subr.mxu0 0.0
  %4906 = vmatpush1.msra.mxu0 0.0
  %4907 = vmatprep.subr.mxu0 0.0
  %4908 = vmatpush1.msra.mxu0 0.0
  %4909 = vmatprep.subr.mxu0 0.0
  %4910 = vmatpush1.msra.mxu0 0.0
  %4911 = vmatprep.subr.mxu0 0.0
  %4912 = vmatpush1.msra.mxu0 0.0
  %4913 = vmatprep.subr.mxu0 0.0
  %4914 = vmatpush1.msra.mxu0 0.0
  %4915 = vmatprep.subr.mxu0 0.0
  %4916 = vmatpush1.msra.mxu0 0.0
  %4917 = vmatprep.subr.mxu0 0.0
  %4918 = vmatpush1.msra.mxu0 0.0
  %4919 = vmatprep.subr.mxu0 0.0
  %4920 = vmatpush1.msra.mxu0 0.0
  %4921 = vmatprep.subr.mxu0 0.0
  %4922 = vmatpush1.msra.mxu0 0.0
  %4923 = vmatprep.subr.mxu0 0.0
  %4924 = vmatpush1.msra.mxu0 0.0
  %4925 = vmatprep.subr.mxu0 0.0
  %4926 = vmatpush1.msra.mxu0 0.0
  %4927 = vmatprep.subr.mxu0 0.0
  %4928 = vmatpush1.msra.mxu0 0.0
  %4929 = vmatprep.subr.mxu0 0.0
  %4930 = vmatpush1.msra.mxu0 0.0
  %4931 = vmatprep.subr.mxu0 0.0
  %4932 = vmatpush1.msra.mxu0 0.0
  %4933 = vmatprep.mubr.f32.mxu0 0.0
  %4934 = vmatmul.mubr.f32.gmra.mrb[0].mxu0 %v4818
  %v4935 = vpop.f32.mrb[0].mxu0
  %v4936 = vadd.f32 0.0, %v4935
  %v4937 = vpop.f32.mrb[0].mxu0
  %4938 = vmatprep.mubr.f32.mxu0 0.0
  %4939 = vmatmul.mubr.f32.gmra.mrb[0].mxu0 %v4821
  %v4940 = vpop.f32.mrb[0].mxu0
  %v4941 = vadd.f32 0.0, %v4940
  %v4942 = vpop.f32.mrb[0].mxu0
  %4943 = vmatprep.mubr.f32.mxu0 0.0
  %4944 = vmatmul.mubr.f32.gmra.mrb[0].mxu0 %v4824
  %v4945 = vpop.f32.mrb[0].mxu0
  %v4946 = vadd.f32 0.0, %v4945
  %v4947 = vpop.f32.mrb[0].mxu0
  %4948 = vmatprep.mubr.f32.mxu0 0.0
  %4949 = vmatmul.mubr.f32.gmra.mrb[0].mxu0 %v4827
  %v4950 = vpop.f32.mrb[0].mxu0
  %v4951 = vadd.f32 0.0, %v4950
  %v4952 = vpop.f32.mrb[0].mxu0
  %4953 = vmatprep.mubr.f32.mxu0 0.0
  %4954 = vmatmul.mubr.f32.gmra.mrb[0].mxu0 %v4830
  %v4955 = vpop.f32.mrb[0].mxu0
  %v4956 = vadd.f32 0.0, %v4955
  %v4957 = vpop.f32.mrb[0].mxu0
  %4958 = vmatprep.mubr.f32.mxu0 0.0
  %4959 = vmatmul.mubr.f32.gmra.mrb[0].mxu0 %v4833
  %v4960 = vpop.f32.mrb[0].mxu0
  %v4961 = vadd.f32 0.0, %v4960
  %v4962 = vpop.f32.mrb[0].mxu0
  %4963 = vmatprep.mubr.f32.mxu0 0.0
  %4964 = vmatmul.mubr.f32.gmra.mrb[0].mxu0 %v4836
  %v4965 = vpop.f32.mrb[0].mxu0
  %v4966 = vadd.f32 0.0, %v4965
  %v4967 = vpop.f32.mrb[0].mxu0
  %4968 = vmatprep.mubr.f32.mxu0 0.0
  %4969 = vmatmul.mubr.f32.gmra.mrb[0].mxu0 %v4839
  %v4970 = vpop.f32.mrb[0].mxu0
  %v4971 = vadd.f32 0.0, %v4970
  %v4972 = vpop.f32.mrb[0].mxu0
  %4973 = vmatprep.mubr.f32.mxu0 0.0
  %4974 = vmatmul.mubr.f32.gmra.mrb[0].mxu0 %v4842
  %v4975 = vpop.f32.mrb[0].mxu0
  %v4976 = vadd.f32 0.0, %v4975
  %v4977 = vpop.f32.mrb[0].mxu0
  %4978 = vmatprep.mubr.f32.mxu0 0.0
  %4979 = vmatmul.mubr.f32.gmra.mrb[0].mxu0 %v4845
  %v4980 = vpop.f32.mrb[0].mxu0
  %v4981 = vadd.f32 0.0, %v4980
  %v4982 = vpop.f32.mrb[0].mxu0
  %4983 = vmatprep.mubr.f32.mxu0 0.0
  %4984 = vmatmul.mubr.f32.gmra.mrb[0].mxu0 %v4848
  %v4985 = vpop.f32.mrb[0].mxu0
  %v4986 = vadd.f32 0.0, %v4985
  %v4987 = vpop.f32.mrb[0].mxu0
  %4988 = vmatprep.mubr.f32.mxu0 0.0
  %4989 = vmatmul.mubr.f32.gmra.mrb[0].mxu0 %v4851
  %v4990 = vpop.f32.mrb[0].mxu0
  %v4991 = vadd.f32 0.0, %v4990
  %v4992 = vpop.f32.mrb[0].mxu0
  %4993 = vmatprep.mubr.f32.mxu0 0.0
  %4994 = vmatmul.mubr.f32.gmra.mrb[0].mxu0 %v4854
  %v4995 = vpop.f32.mrb[0].mxu0
  %v4996 = vadd.f32 0.0, %v4995
  %v4997 = vpop.f32.mrb[0].mxu0
  %4998 = vmatprep.mubr.f32.mxu0 0.0
  %4999 = vmatmul.mubr.f32.gmra.mrb[0].mxu0 %v4857
  %v5000 = vpop.f32.mrb[0].mxu0
  %v5001 = vadd.f32 0.0, %v5000
  %v5002 = vpop.f32.mrb[0].mxu0
  %5003 = vmatprep.mubr.f32.mxu0 0.0
  %5004 = vmatmul.mubr.f32.gmra.mrb[0].mxu0 %v4860
  %v5005 = vpop.f32.mrb[0].mxu0
  %v5006 = vadd.f32 0.0, %v5005
  %v5007 = vpop.f32.mrb[0].mxu0
  %5008 = vmatprep.mubr.f32.mxu0 0.0
  %5009 = vmatmul.mubr.f32.gmra.mrb[0].mxu0 %v4863
  %v5010 = vpop.f32.mrb[0].mxu0
  %v5011 = vadd.f32 0.0, %v5010
  %v5012 = vpop.f32.mrb[0].mxu0
  %5013 = vdwg.mxu0
  %v5014 = vld [vmem:[%s45] sm:$0xff]
  %v5015 = vld [vmem:[%s45 + $0x8] sm:$0xff]
  %v5016 = vld [vmem:[%s45 + $0x10] sm:$0xff]
  %v5017 = vld [vmem:[%s45 + $0x18] sm:$0xff]
  %v5018 = vld [vmem:[%s45 + $0x20] sm:$0xff]
  %v5019 = vld [vmem:[%s45 + $0x28] sm:$0xff]
  %v5020 = vld [vmem:[%s45 + $0x30] sm:$0xff]
  %v5021 = vld [vmem:[%s45 + $0x38] sm:$0xff]
  %s5022 = scalar_lea.vmem %s45, 64
  %v5023 = vld [vmem:[%s5022] sm:$0xff]
  %v5024 = vld [vmem:[%s5022 + $0x8] sm:$0xff]
  %v5025 = vld [vmem:[%s5022 + $0x10] sm:$0xff]
  %v5026 = vld [vmem:[%s5022 + $0x18] sm:$0xff]
  %v5027 = vld [vmem:[%s5022 + $0x20] sm:$0xff]
  %v5028 = vld [vmem:[%s5022 + $0x28] sm:$0xff]
  %v5029 = vld [vmem:[%s5022 + $0x30] sm:$0xff]
  %v5030 = vld [vmem:[%s5022 + $0x38] sm:$0xff]
  %5047 = vrot.lane.b32.xlu0 %v4936, 127
  %v5048 = vpop.permute.xlu0 %5047
  %5049 = vrot.lane.b32.xlu0 %v4941, 127
  %v5050 = vpop.permute.xlu0 %5049
  %5051 = vrot.lane.b32.xlu0 %v4946, 127
  %v5052 = vpop.permute.xlu0 %5051
  %5053 = vrot.lane.b32.xlu0 %v4951, 127
  %v5054 = vpop.permute.xlu0 %5053
  %5055 = vrot.lane.b32.xlu0 %v4956, 127
  %v5056 = vpop.permute.xlu0 %5055
  %5057 = vrot.lane.b32.xlu0 %v4961, 127
  %v5058 = vpop.permute.xlu0 %5057
  %5059 = vrot.lane.b32.xlu0 %v4966, 127
  %v5060 = vpop.permute.xlu0 %5059
  %5061 = vrot.lane.b32.xlu0 %v4971, 127
  %v5062 = vpop.permute.xlu0 %5061
  %5063 = vrot.lane.b32.xlu0 %v4976, 127
  %v5064 = vpop.permute.xlu0 %5063
  %5065 = vrot.lane.b32.xlu0 %v4981, 127
  %v5066 = vpop.permute.xlu0 %5065
  %5067 = vrot.lane.b32.xlu0 %v4986, 127
  %v5068 = vpop.permute.xlu0 %5067
  %5069 = vrot.lane.b32.xlu0 %v4991, 127
  %v5070 = vpop.permute.xlu0 %5069
  %5071 = vrot.lane.b32.xlu0 %v4996, 127
  %v5072 = vpop.permute.xlu0 %5071
  %5073 = vrot.lane.b32.xlu0 %v5001, 127
  %v5074 = vpop.permute.xlu0 %5073
  %5075 = vrot.lane.b32.xlu0 %v5006, 127
  %v5076 = vpop.permute.xlu0 %5075
  %5077 = vrot.lane.b32.xlu0 %v5011, 127
  %v5078 = vpop.permute.xlu0 %5077
  %5095 = vmatprep.subr.mxu0 0.0
  %5096 = vmatpush1.msra.mxu0 %v5048
  %5097 = vmatprep.subr.mxu0 0.0
  %5098 = vmatpush1.msra.mxu0 %v5050
  %5099 = vmatprep.subr.mxu0 0.0
  %5100 = vmatpush1.msra.mxu0 %v5052
  %5101 = vmatprep.subr.mxu0 0.0
  %5102 = vmatpush1.msra.mxu0 %v5054
  %5103 = vmatprep.subr.mxu0 0.0
  %5104 = vmatpush1.msra.mxu0 %v5056
  %5105 = vmatprep.subr.mxu0 0.0
  %5106 = vmatpush1.msra.mxu0 %v5058
  %5107 = vmatprep.subr.mxu0 0.0
  %5108 = vmatpush1.msra.mxu0 %v5060
  %5109 = vmatprep.subr.mxu0 0.0
  %5110 = vmatpush1.msra.mxu0 %v5062
  %5111 = vmatprep.subr.mxu0 0.0
  %5112 = vmatpush1.msra.mxu0 %v5064
  %5113 = vmatprep.subr.mxu0 0.0
  %5114 = vmatpush1.msra.mxu0 %v5066
  %5115 = vmatprep.subr.mxu0 0.0
  %5116 = vmatpush1.msra.mxu0 %v5068
  %5117 = vmatprep.subr.mxu0 0.0
  %5118 = vmatpush1.msra.mxu0 %v5070
  %5119 = vmatprep.subr.mxu0 0.0
  %5120 = vmatpush1.msra.mxu0 %v5072
  %5121 = vmatprep.subr.mxu0 0.0
  %5122 = vmatpush1.msra.mxu0 %v5074
  %5123 = vmatprep.subr.mxu0 0.0
  %5124 = vmatpush1.msra.mxu0 %v5076
  %5125 = vmatprep.subr.mxu0 0.0
  %5126 = vmatpush1.msra.mxu0 %v5078
  %5127 = vmatprep.subr.mxu0 0.0
  %5128 = vmatpush1.msra.mxu0 0.0
  %5129 = vmatprep.subr.mxu0 0.0
  %5130 = vmatpush1.msra.mxu0 0.0
  %5131 = vmatprep.subr.mxu0 0.0
  %5132 = vmatpush1.msra.mxu0 0.0
  %5133 = vmatprep.subr.mxu0 0.0
  %5134 = vmatpush1.msra.mxu0 0.0
  %5135 = vmatprep.subr.mxu0 0.0
  %5136 = vmatpush1.msra.mxu0 0.0
  %5137 = vmatprep.subr.mxu0 0.0
  %5138 = vmatpush1.msra.mxu0 0.0
  %5139 = vmatprep.subr.mxu0 0.0
  %5140 = vmatpush1.msra.mxu0 0.0
  %5141 = vmatprep.subr.mxu0 0.0
  %5142 = vmatpush1.msra.mxu0 0.0
  %5143 = vmatprep.subr.mxu0 0.0
  %5144 = vmatpush1.msra.mxu0 0.0
  %5145 = vmatprep.subr.mxu0 0.0
  %5146 = vmatpush1.msra.mxu0 0.0
  %5147 = vmatprep.subr.mxu0 0.0
  %5148 = vmatpush1.msra.mxu0 0.0
  %5149 = vmatprep.subr.mxu0 0.0
  %5150 = vmatpush1.msra.mxu0 0.0
  %5151 = vmatprep.subr.mxu0 0.0
  %5152 = vmatpush1.msra.mxu0 0.0
  %5153 = vmatprep.subr.mxu0 0.0
  %5154 = vmatpush1.msra.mxu0 0.0
  %5155 = vmatprep.subr.mxu0 0.0
  %5156 = vmatpush1.msra.mxu0 0.0
  %5157 = vmatprep.subr.mxu0 0.0
  %5158 = vmatpush1.msra.mxu0 0.0
  %5159 = vmatprep.mubr.f32.mxu0 0.0
  %5160 = vmatmul.mubr.f32.gmra.mrb[0].mxu0 %v5023
  %v5161 = vpop.f32.mrb[0].mxu0
  %v5162 = vadd.f32 0.0, %v5161
  %v5163 = vpop.f32.mrb[0].mxu0
  %5164 = vmatprep.mubr.f32.mxu0 0.0
  %5165 = vmatmul.mubr.f32.gmra.mrb[0].mxu0 %v5024
  %v5166 = vpop.f32.mrb[0].mxu0
  %v5167 = vadd.f32 0.0, %v5166
  %v5168 = vpop.f32.mrb[0].mxu0
  %5169 = vmatprep.mubr.f32.mxu0 0.0
  %5170 = vmatmul.mubr.f32.gmra.mrb[0].mxu0 %v5025
  %v5171 = vpop.f32.mrb[0].mxu0
  %v5172 = vadd.f32 0.0, %v5171
  %v5173 = vpop.f32.mrb[0].mxu0
  %5174 = vmatprep.mubr.f32.mxu0 0.0
  %5175 = vmatmul.mubr.f32.gmra.mrb[0].mxu0 %v5026
  %v5176 = vpop.f32.mrb[0].mxu0
  %v5177 = vadd.f32 0.0, %v5176
  %v5178 = vpop.f32.mrb[0].mxu0
  %5179 = vmatprep.mubr.f32.mxu0 0.0
  %5180 = vmatmul.mubr.f32.gmra.mrb[0].mxu0 %v5027
  %v5181 = vpop.f32.mrb[0].mxu0
  %v5182 = vadd.f32 0.0, %v5181
  %v5183 = vpop.f32.mrb[0].mxu0
  %5184 = vmatprep.mubr.f32.mxu0 0.0
  %5185 = vmatmul.mubr.f32.gmra.mrb[0].mxu0 %v5028
  %v5186 = vpop.f32.mrb[0].mxu0
  %v5187 = vadd.f32 0.0, %v5186
  %v5188 = vpop.f32.mrb[0].mxu0
  %5189 = vmatprep.mubr.f32.mxu0 0.0
  %5190 = vmatmul.mubr.f32.gmra.mrb[0].mxu0 %v5029
  %v5191 = vpop.f32.mrb[0].mxu0
  %v5192 = vadd.f32 0.0, %v5191
  %v5193 = vpop.f32.mrb[0].mxu0
  %5194 = vmatprep.mubr.f32.mxu0 0.0
  %5195 = vmatmul.mubr.f32.gmra.mrb[0].mxu0 %v5030
  %v5196 = vpop.f32.mrb[0].mxu0
  %v5197 = vadd.f32 0.0, %v5196
  %v5198 = vpop.f32.mrb[0].mxu0
  %5199 = vdwg.mxu0
  %5200 = vmatprep.subr.mxu0 0.0
  %5201 = vmatpush1.msra.mxu0 %v4936
  %5202 = vmatprep.subr.mxu0 0.0
  %5203 = vmatpush1.msra.mxu0 %v4941
  %5204 = vmatprep.subr.mxu0 0.0
  %5205 = vmatpush1.msra.mxu0 %v4946
  %5206 = vmatprep.subr.mxu0 0.0
  %5207 = vmatpush1.msra.mxu0 %v4951
  %5208 = vmatprep.subr.mxu0 0.0
  %5209 = vmatpush1.msra.mxu0 %v4956
  %5210 = vmatprep.subr.mxu0 0.0
  %5211 = vmatpush1.msra.mxu0 %v4961
  %5212 = vmatprep.subr.mxu0 0.0
  %5213 = vmatpush1.msra.mxu0 %v4966
  %5214 = vmatprep.subr.mxu0 0.0
  %5215 = vmatpush1.msra.mxu0 %v4971
  %5216 = vmatprep.subr.mxu0 0.0
  %5217 = vmatpush1.msra.mxu0 %v4976
  %5218 = vmatprep.subr.mxu0 0.0
  %5219 = vmatpush1.msra.mxu0 %v4981
  %5220 = vmatprep.subr.mxu0 0.0
  %5221 = vmatpush1.msra.mxu0 %v4986
  %5222 = vmatprep.subr.mxu0 0.0
  %5223 = vmatpush1.msra.mxu0 %v4991
  %5224 = vmatprep.subr.mxu0 0.0
  %5225 = vmatpush1.msra.mxu0 %v4996
  %5226 = vmatprep.subr.mxu0 0.0
  %5227 = vmatpush1.msra.mxu0 %v5001
  %5228 = vmatprep.subr.mxu0 0.0
  %5229 = vmatpush1.msra.mxu0 %v5006
  %5230 = vmatprep.subr.mxu0 0.0
  %5231 = vmatpush1.msra.mxu0 %v5011
  %5232 = vmatprep.subr.mxu0 0.0
  %5233 = vmatpush1.msra.mxu0 0.0
  %5234 = vmatprep.subr.mxu0 0.0
  %5235 = vmatpush1.msra.mxu0 0.0
  %5236 = vmatprep.subr.mxu0 0.0
  %5237 = vmatpush1.msra.mxu0 0.0
  %5238 = vmatprep.subr.mxu0 0.0
  %5239 = vmatpush1.msra.mxu0 0.0
  %5240 = vmatprep.subr.mxu0 0.0
  %5241 = vmatpush1.msra.mxu0 0.0
  %5242 = vmatprep.subr.mxu0 0.0
  %5243 = vmatpush1.msra.mxu0 0.0
  %5244 = vmatprep.subr.mxu0 0.0
  %5245 = vmatpush1.msra.mxu0 0.0
  %5246 = vmatprep.subr.mxu0 0.0
  %5247 = vmatpush1.msra.mxu0 0.0
  %5248 = vmatprep.subr.mxu0 0.0
  %5249 = vmatpush1.msra.mxu0 0.0
  %5250 = vmatprep.subr.mxu0 0.0
  %5251 = vmatpush1.msra.mxu0 0.0
  %5252 = vmatprep.subr.mxu0 0.0
  %5253 = vmatpush1.msra.mxu0 0.0
  %5254 = vmatprep.subr.mxu0 0.0
  %5255 = vmatpush1.msra.mxu0 0.0
  %5256 = vmatprep.subr.mxu0 0.0
  %5257 = vmatpush1.msra.mxu0 0.0
  %5258 = vmatprep.subr.mxu0 0.0
  %5259 = vmatpush1.msra.mxu0 0.0
  %5260 = vmatprep.subr.mxu0 0.0
  %5261 = vmatpush1.msra.mxu0 0.0
  %5262 = vmatprep.subr.mxu0 0.0
  %5263 = vmatpush1.msra.mxu0 0.0
  %5264 = vmatprep.mubr.f32.mxu0 0.0
  %5265 = vmatmul.mubr.f32.gmra.mrb[0].mxu0 %v5014
  %v5266 = vpop.f32.mrb[0].mxu0
  %v5267 = vadd.f32 %v5162, %v5266
  %v5268 = vpop.f32.mrb[0].mxu0
  %5269 = vmatprep.mubr.f32.mxu0 0.0
  %5270 = vmatmul.mubr.f32.gmra.mrb[0].mxu0 %v5015
  %v5271 = vpop.f32.mrb[0].mxu0
  %v5272 = vadd.f32 %v5167, %v5271
  %v5273 = vpop.f32.mrb[0].mxu0
  %5274 = vmatprep.mubr.f32.mxu0 0.0
  %5275 = vmatmul.mubr.f32.gmra.mrb[0].mxu0 %v5016
  %v5276 = vpop.f32.mrb[0].mxu0
  %v5277 = vadd.f32 %v5172, %v5276
  %v5278 = vpop.f32.mrb[0].mxu0
  %5279 = vmatprep.mubr.f32.mxu0 0.0
  %5280 = vmatmul.mubr.f32.gmra.mrb[0].mxu0 %v5017
  %v5281 = vpop.f32.mrb[0].mxu0
  %v5282 = vadd.f32 %v5177, %v5281
  %v5283 = vpop.f32.mrb[0].mxu0
  %5284 = vmatprep.mubr.f32.mxu0 0.0
  %5285 = vmatmul.mubr.f32.gmra.mrb[0].mxu0 %v5018
  %v5286 = vpop.f32.mrb[0].mxu0
  %v5287 = vadd.f32 %v5182, %v5286
  %v5288 = vpop.f32.mrb[0].mxu0
  %5289 = vmatprep.mubr.f32.mxu0 0.0
  %5290 = vmatmul.mubr.f32.gmra.mrb[0].mxu0 %v5019
  %v5291 = vpop.f32.mrb[0].mxu0
  %v5292 = vadd.f32 %v5187, %v5291
  %v5293 = vpop.f32.mrb[0].mxu0
  %5294 = vmatprep.mubr.f32.mxu0 0.0
  %5295 = vmatmul.mubr.f32.gmra.mrb[0].mxu0 %v5020
  %v5296 = vpop.f32.mrb[0].mxu0
  %v5297 = vadd.f32 %v5192, %v5296
  %v5298 = vpop.f32.mrb[0].mxu0
  %5299 = vmatprep.mubr.f32.mxu0 0.0
  %5300 = vmatmul.mubr.f32.gmra.mrb[0].mxu0 %v5021
  %v5301 = vpop.f32.mrb[0].mxu0
  %v5302 = vadd.f32 %v5197, %v5301
  %v5303 = vpop.f32.mrb[0].mxu0
  %5304 = vdwg.mxu0
  %s5305 = scalar_lea.vmem %s45, 128
  %v5306 = vld [vmem:[%s5305] sm:$0xff]
  %v5307 = vld [vmem:[%s5305 + $0x8] sm:$0xff]
  %v5308 = vld [vmem:[%s5305 + $0x10] sm:$0xff]
  %v5309 = vld [vmem:[%s5305 + $0x18] sm:$0xff]
  %v5310 = vld [vmem:[%s5305 + $0x20] sm:$0xff]
  %v5311 = vld [vmem:[%s5305 + $0x28] sm:$0xff]
  %v5312 = vld [vmem:[%s5305 + $0x30] sm:$0xff]
  %v5313 = vld [vmem:[%s5305 + $0x38] sm:$0xff]
  %5314 = vrot.lane.b32.xlu0 %v4936, 126
  %v5315 = vpop.permute.xlu0 %5314
  %5316 = vrot.lane.b32.xlu0 %v4941, 126
  %v5317 = vpop.permute.xlu0 %5316
  %5318 = vrot.lane.b32.xlu0 %v4946, 126
  %v5319 = vpop.permute.xlu0 %5318
  %5320 = vrot.lane.b32.xlu0 %v4951, 126
  %v5321 = vpop.permute.xlu0 %5320
  %5322 = vrot.lane.b32.xlu0 %v4956, 126
  %v5323 = vpop.permute.xlu0 %5322
  %5324 = vrot.lane.b32.xlu0 %v4961, 126
  %v5325 = vpop.permute.xlu0 %5324
  %5326 = vrot.lane.b32.xlu0 %v4966, 126
  %v5327 = vpop.permute.xlu0 %5326
  %5328 = vrot.lane.b32.xlu0 %v4971, 126
  %v5329 = vpop.permute.xlu0 %5328
  %5330 = vrot.lane.b32.xlu0 %v4976, 126
  %v5331 = vpop.permute.xlu0 %5330
  %5332 = vrot.lane.b32.xlu0 %v4981, 126
  %v5333 = vpop.permute.xlu0 %5332
  %5334 = vrot.lane.b32.xlu0 %v4986, 126
  %v5335 = vpop.permute.xlu0 %5334
  %5336 = vrot.lane.b32.xlu0 %v4991, 126
  %v5337 = vpop.permute.xlu0 %5336
  %5338 = vrot.lane.b32.xlu0 %v4996, 126
  %v5339 = vpop.permute.xlu0 %5338
  %5340 = vrot.lane.b32.xlu0 %v5001, 126
  %v5341 = vpop.permute.xlu0 %5340
  %5342 = vrot.lane.b32.xlu0 %v5006, 126
  %v5343 = vpop.permute.xlu0 %5342
  %5344 = vrot.lane.b32.xlu0 %v5011, 126
  %v5345 = vpop.permute.xlu0 %5344
  %5362 = vmatprep.subr.mxu0 0.0
  %5363 = vmatpush1.msra.mxu0 %v5315
  %5364 = vmatprep.subr.mxu0 0.0
  %5365 = vmatpush1.msra.mxu0 %v5317
  %5366 = vmatprep.subr.mxu0 0.0
  %5367 = vmatpush1.msra.mxu0 %v5319
  %5368 = vmatprep.subr.mxu0 0.0
  %5369 = vmatpush1.msra.mxu0 %v5321
  %5370 = vmatprep.subr.mxu0 0.0
  %5371 = vmatpush1.msra.mxu0 %v5323
  %5372 = vmatprep.subr.mxu0 0.0
  %5373 = vmatpush1.msra.mxu0 %v5325
  %5374 = vmatprep.subr.mxu0 0.0
  %5375 = vmatpush1.msra.mxu0 %v5327
  %5376 = vmatprep.subr.mxu0 0.0
  %5377 = vmatpush1.msra.mxu0 %v5329
  %5378 = vmatprep.subr.mxu0 0.0
  %5379 = vmatpush1.msra.mxu0 %v5331
  %5380 = vmatprep.subr.mxu0 0.0
  %5381 = vmatpush1.msra.mxu0 %v5333
  %5382 = vmatprep.subr.mxu0 0.0
  %5383 = vmatpush1.msra.mxu0 %v5335
  %5384 = vmatprep.subr.mxu0 0.0
  %5385 = vmatpush1.msra.mxu0 %v5337
  %5386 = vmatprep.subr.mxu0 0.0
  %5387 = vmatpush1.msra.mxu0 %v5339
  %5388 = vmatprep.subr.mxu0 0.0
  %5389 = vmatpush1.msra.mxu0 %v5341
  %5390 = vmatprep.subr.mxu0 0.0
  %5391 = vmatpush1.msra.mxu0 %v5343
  %5392 = vmatprep.subr.mxu0 0.0
  %5393 = vmatpush1.msra.mxu0 %v5345
  %5394 = vmatprep.subr.mxu0 0.0
  %5395 = vmatpush1.msra.mxu0 0.0
  %5396 = vmatprep.subr.mxu0 0.0
  %5397 = vmatpush1.msra.mxu0 0.0
  %5398 = vmatprep.subr.mxu0 0.0
  %5399 = vmatpush1.msra.mxu0 0.0
  %5400 = vmatprep.subr.mxu0 0.0
  %5401 = vmatpush1.msra.mxu0 0.0
  %5402 = vmatprep.subr.mxu0 0.0
  %5403 = vmatpush1.msra.mxu0 0.0
  %5404 = vmatprep.subr.mxu0 0.0
  %5405 = vmatpush1.msra.mxu0 0.0
  %5406 = vmatprep.subr.mxu0 0.0
  %5407 = vmatpush1.msra.mxu0 0.0
  %5408 = vmatprep.subr.mxu0 0.0
  %5409 = vmatpush1.msra.mxu0 0.0
  %5410 = vmatprep.subr.mxu0 0.0
  %5411 = vmatpush1.msra.mxu0 0.0
  %5412 = vmatprep.subr.mxu0 0.0
  %5413 = vmatpush1.msra.mxu0 0.0
  %5414 = vmatprep.subr.mxu0 0.0
  %5415 = vmatpush1.msra.mxu0 0.0
  %5416 = vmatprep.subr.mxu0 0.0
  %5417 = vmatpush1.msra.mxu0 0.0
  %5418 = vmatprep.subr.mxu0 0.0
  %5419 = vmatpush1.msra.mxu0 0.0
  %5420 = vmatprep.subr.mxu0 0.0
  %5421 = vmatpush1.msra.mxu0 0.0
  %5422 = vmatprep.subr.mxu0 0.0
  %5423 = vmatpush1.msra.mxu0 0.0
  %5424 = vmatprep.subr.mxu0 0.0
  %5425 = vmatpush1.msra.mxu0 0.0
  %5426 = vmatprep.mubr.f32.mxu0 0.0
  %5427 = vmatmul.mubr.f32.gmra.mrb[0].mxu0 %v5306
  %v5428 = vpop.f32.mrb[0].mxu0
  %v5429 = vadd.f32 0.0, %v5428
  %v5430 = vpop.f32.mrb[0].mxu0
  %5431 = vmatprep.mubr.f32.mxu0 0.0
  %5432 = vmatmul.mubr.f32.gmra.mrb[0].mxu0 %v5307
  %v5433 = vpop.f32.mrb[0].mxu0
  %v5434 = vadd.f32 0.0, %v5433
  %v5435 = vpop.f32.mrb[0].mxu0
  %5436 = vmatprep.mubr.f32.mxu0 0.0
  %5437 = vmatmul.mubr.f32.gmra.mrb[0].mxu0 %v5308
  %v5438 = vpop.f32.mrb[0].mxu0
  %v5439 = vadd.f32 0.0, %v5438
  %v5440 = vpop.f32.mrb[0].mxu0
  %5441 = vmatprep.mubr.f32.mxu0 0.0
  %5442 = vmatmul.mubr.f32.gmra.mrb[0].mxu0 %v5309
  %v5443 = vpop.f32.mrb[0].mxu0
  %v5444 = vadd.f32 0.0, %v5443
  %v5445 = vpop.f32.mrb[0].mxu0
  %5446 = vmatprep.mubr.f32.mxu0 0.0
  %5447 = vmatmul.mubr.f32.gmra.mrb[0].mxu0 %v5310
  %v5448 = vpop.f32.mrb[0].mxu0
  %v5449 = vadd.f32 0.0, %v5448
  %v5450 = vpop.f32.mrb[0].mxu0
  %5451 = vmatprep.mubr.f32.mxu0 0.0
  %5452 = vmatmul.mubr.f32.gmra.mrb[0].mxu0 %v5311
  %v5453 = vpop.f32.mrb[0].mxu0
  %v5454 = vadd.f32 0.0, %v5453
  %v5455 = vpop.f32.mrb[0].mxu0
  %5456 = vmatprep.mubr.f32.mxu0 0.0
  %5457 = vmatmul.mubr.f32.gmra.mrb[0].mxu0 %v5312
  %v5458 = vpop.f32.mrb[0].mxu0
  %v5459 = vadd.f32 0.0, %v5458
  %v5460 = vpop.f32.mrb[0].mxu0
  %5461 = vmatprep.mubr.f32.mxu0 0.0
  %5462 = vmatmul.mubr.f32.gmra.mrb[0].mxu0 %v5313
  %v5463 = vpop.f32.mrb[0].mxu0
  %v5464 = vadd.f32 0.0, %v5463
  %v5465 = vpop.f32.mrb[0].mxu0
  %5466 = vdwg.mxu0
  %v5467 = vadd.f32 %v5267, %v5429
  %v5468 = vadd.f32 %v5272, %v5434
  %v5469 = vadd.f32 %v5277, %v5439
  %v5470 = vadd.f32 %v5282, %v5444
  %v5471 = vadd.f32 %v5287, %v5449
  %v5472 = vadd.f32 %v5292, %v5454
  %v5473 = vadd.f32 %v5297, %v5459
  %v5474 = vadd.f32 %v5302, %v5464
  %s5475 = scalar_lea.vmem %s45, 192
  %v5476 = vld [vmem:[%s5475] sm:$0xff]
  %v5477 = vld [vmem:[%s5475 + $0x8] sm:$0xff]
  %v5478 = vld [vmem:[%s5475 + $0x10] sm:$0xff]
  %v5479 = vld [vmem:[%s5475 + $0x18] sm:$0xff]
  %v5480 = vld [vmem:[%s5475 + $0x20] sm:$0xff]
  %v5481 = vld [vmem:[%s5475 + $0x28] sm:$0xff]
  %v5482 = vld [vmem:[%s5475 + $0x30] sm:$0xff]
  %v5483 = vld [vmem:[%s5475 + $0x38] sm:$0xff]
  %5484 = vrot.lane.b32.xlu0 %v4936, 125
  %v5485 = vpop.permute.xlu0 %5484
  %5486 = vrot.lane.b32.xlu0 %v4941, 125
  %v5487 = vpop.permute.xlu0 %5486
  %5488 = vrot.lane.b32.xlu0 %v4946, 125
  %v5489 = vpop.permute.xlu0 %5488
  %5490 = vrot.lane.b32.xlu0 %v4951, 125
  %v5491 = vpop.permute.xlu0 %5490
  %5492 = vrot.lane.b32.xlu0 %v4956, 125
  %v5493 = vpop.permute.xlu0 %5492
  %5494 = vrot.lane.b32.xlu0 %v4961, 125
  %v5495 = vpop.permute.xlu0 %5494
  %5496 = vrot.lane.b32.xlu0 %v4966, 125
  %v5497 = vpop.permute.xlu0 %5496
  %5498 = vrot.lane.b32.xlu0 %v4971, 125
  %v5499 = vpop.permute.xlu0 %5498
  %5500 = vrot.lane.b32.xlu0 %v4976, 125
  %v5501 = vpop.permute.xlu0 %5500
  %5502 = vrot.lane.b32.xlu0 %v4981, 125
  %v5503 = vpop.permute.xlu0 %5502
  %5504 = vrot.lane.b32.xlu0 %v4986, 125
  %v5505 = vpop.permute.xlu0 %5504
  %5506 = vrot.lane.b32.xlu0 %v4991, 125
  %v5507 = vpop.permute.xlu0 %5506
  %5508 = vrot.lane.b32.xlu0 %v4996, 125
  %v5509 = vpop.permute.xlu0 %5508
  %5510 = vrot.lane.b32.xlu0 %v5001, 125
  %v5511 = vpop.permute.xlu0 %5510
  %5512 = vrot.lane.b32.xlu0 %v5006, 125
  %v5513 = vpop.permute.xlu0 %5512
  %5514 = vrot.lane.b32.xlu0 %v5011, 125
  %v5515 = vpop.permute.xlu0 %5514
  %5532 = vmatprep.subr.mxu0 0.0
  %5533 = vmatpush1.msra.mxu0 %v5485
  %5534 = vmatprep.subr.mxu0 0.0
  %5535 = vmatpush1.msra.mxu0 %v5487
  %5536 = vmatprep.subr.mxu0 0.0
  %5537 = vmatpush1.msra.mxu0 %v5489
  %5538 = vmatprep.subr.mxu0 0.0
  %5539 = vmatpush1.msra.mxu0 %v5491
  %5540 = vmatprep.subr.mxu0 0.0
  %5541 = vmatpush1.msra.mxu0 %v5493
  %5542 = vmatprep.subr.mxu0 0.0
  %5543 = vmatpush1.msra.mxu0 %v5495
  %5544 = vmatprep.subr.mxu0 0.0
  %5545 = vmatpush1.msra.mxu0 %v5497
  %5546 = vmatprep.subr.mxu0 0.0
  %5547 = vmatpush1.msra.mxu0 %v5499
  %5548 = vmatprep.subr.mxu0 0.0
  %5549 = vmatpush1.msra.mxu0 %v5501
  %5550 = vmatprep.subr.mxu0 0.0
  %5551 = vmatpush1.msra.mxu0 %v5503
  %5552 = vmatprep.subr.mxu0 0.0
  %5553 = vmatpush1.msra.mxu0 %v5505
  %5554 = vmatprep.subr.mxu0 0.0
  %5555 = vmatpush1.msra.mxu0 %v5507
  %5556 = vmatprep.subr.mxu0 0.0
  %5557 = vmatpush1.msra.mxu0 %v5509
  %5558 = vmatprep.subr.mxu0 0.0
  %5559 = vmatpush1.msra.mxu0 %v5511
  %5560 = vmatprep.subr.mxu0 0.0
  %5561 = vmatpush1.msra.mxu0 %v5513
  %5562 = vmatprep.subr.mxu0 0.0
  %5563 = vmatpush1.msra.mxu0 %v5515
  %5564 = vmatprep.subr.mxu0 0.0
  %5565 = vmatpush1.msra.mxu0 0.0
  %5566 = vmatprep.subr.mxu0 0.0
  %5567 = vmatpush1.msra.mxu0 0.0
  %5568 = vmatprep.subr.mxu0 0.0
  %5569 = vmatpush1.msra.mxu0 0.0
  %5570 = vmatprep.subr.mxu0 0.0
  %5571 = vmatpush1.msra.mxu0 0.0
  %5572 = vmatprep.subr.mxu0 0.0
  %5573 = vmatpush1.msra.mxu0 0.0
  %5574 = vmatprep.subr.mxu0 0.0
  %5575 = vmatpush1.msra.mxu0 0.0
  %5576 = vmatprep.subr.mxu0 0.0
  %5577 = vmatpush1.msra.mxu0 0.0
  %5578 = vmatprep.subr.mxu0 0.0
  %5579 = vmatpush1.msra.mxu0 0.0
  %5580 = vmatprep.subr.mxu0 0.0
  %5581 = vmatpush1.msra.mxu0 0.0
  %5582 = vmatprep.subr.mxu0 0.0
  %5583 = vmatpush1.msra.mxu0 0.0
  %5584 = vmatprep.subr.mxu0 0.0
  %5585 = vmatpush1.msra.mxu0 0.0
  %5586 = vmatprep.subr.mxu0 0.0
  %5587 = vmatpush1.msra.mxu0 0.0
  %5588 = vmatprep.subr.mxu0 0.0
  %5589 = vmatpush1.msra.mxu0 0.0
  %5590 = vmatprep.subr.mxu0 0.0
  %5591 = vmatpush1.msra.mxu0 0.0
  %5592 = vmatprep.subr.mxu0 0.0
  %5593 = vmatpush1.msra.mxu0 0.0
  %5594 = vmatprep.subr.mxu0 0.0
  %5595 = vmatpush1.msra.mxu0 0.0
  %5596 = vmatprep.mubr.f32.mxu0 0.0
  %5597 = vmatmul.mubr.f32.gmra.mrb[0].mxu0 %v5476
  %v5598 = vpop.f32.mrb[0].mxu0
  %v5599 = vadd.f32 0.0, %v5598
  %v5600 = vpop.f32.mrb[0].mxu0
  %5601 = vmatprep.mubr.f32.mxu0 0.0
  %5602 = vmatmul.mubr.f32.gmra.mrb[0].mxu0 %v5477
  %v5603 = vpop.f32.mrb[0].mxu0
  %v5604 = vadd.f32 0.0, %v5603
  %v5605 = vpop.f32.mrb[0].mxu0
  %5606 = vmatprep.mubr.f32.mxu0 0.0
  %5607 = vmatmul.mubr.f32.gmra.mrb[0].mxu0 %v5478
  %v5608 = vpop.f32.mrb[0].mxu0
  %v5609 = vadd.f32 0.0, %v5608
  %v5610 = vpop.f32.mrb[0].mxu0
  %5611 = vmatprep.mubr.f32.mxu0 0.0
  %5612 = vmatmul.mubr.f32.gmra.mrb[0].mxu0 %v5479
  %v5613 = vpop.f32.mrb[0].mxu0
  %v5614 = vadd.f32 0.0, %v5613
  %v5615 = vpop.f32.mrb[0].mxu0
  %5616 = vmatprep.mubr.f32.mxu0 0.0
  %5617 = vmatmul.mubr.f32.gmra.mrb[0].mxu0 %v5480
  %v5618 = vpop.f32.mrb[0].mxu0
  %v5619 = vadd.f32 0.0, %v5618
  %v5620 = vpop.f32.mrb[0].mxu0
  %5621 = vmatprep.mubr.f32.mxu0 0.0
  %5622 = vmatmul.mubr.f32.gmra.mrb[0].mxu0 %v5481
  %v5623 = vpop.f32.mrb[0].mxu0
  %v5624 = vadd.f32 0.0, %v5623
  %v5625 = vpop.f32.mrb[0].mxu0
  %5626 = vmatprep.mubr.f32.mxu0 0.0
  %5627 = vmatmul.mubr.f32.gmra.mrb[0].mxu0 %v5482
  %v5628 = vpop.f32.mrb[0].mxu0
  %v5629 = vadd.f32 0.0, %v5628
  %v5630 = vpop.f32.mrb[0].mxu0
  %5631 = vmatprep.mubr.f32.mxu0 0.0
  %5632 = vmatmul.mubr.f32.gmra.mrb[0].mxu0 %v5483
  %v5633 = vpop.f32.mrb[0].mxu0
  %v5634 = vadd.f32 0.0, %v5633
  %v5635 = vpop.f32.mrb[0].mxu0
  %5636 = vdwg.mxu0
  %v5637 = vadd.f32 %v5467, %v5599
  %v5638 = vadd.f32 %v5468, %v5604
  %v5639 = vadd.f32 %v5469, %v5609
  %v5640 = vadd.f32 %v5470, %v5614
  %v5641 = vadd.f32 %v5471, %v5619
  %v5642 = vadd.f32 %v5472, %v5624
  %v5643 = vadd.f32 %v5473, %v5629
  %v5644 = vadd.f32 %v5474, %v5634
  %s5645 = scalar_lea.vmem %s45, 256
  %v5646 = vld [vmem:[%s5645] sm:$0xff]
  %v5647 = vld [vmem:[%s5645 + $0x8] sm:$0xff]
  %v5648 = vld [vmem:[%s5645 + $0x10] sm:$0xff]
  %v5649 = vld [vmem:[%s5645 + $0x18] sm:$0xff]
  %v5650 = vld [vmem:[%s5645 + $0x20] sm:$0xff]
  %v5651 = vld [vmem:[%s5645 + $0x28] sm:$0xff]
  %v5652 = vld [vmem:[%s5645 + $0x30] sm:$0xff]
  %v5653 = vld [vmem:[%s5645 + $0x38] sm:$0xff]
  %5654 = vrot.lane.b32.xlu0 %v4936, 124
  %v5655 = vpop.permute.xlu0 %5654
  %5656 = vrot.lane.b32.xlu0 %v4941, 124
  %v5657 = vpop.permute.xlu0 %5656
  %5658 = vrot.lane.b32.xlu0 %v4946, 124
  %v5659 = vpop.permute.xlu0 %5658
  %5660 = vrot.lane.b32.xlu0 %v4951, 124
  %v5661 = vpop.permute.xlu0 %5660
  %5662 = vrot.lane.b32.xlu0 %v4956, 124
  %v5663 = vpop.permute.xlu0 %5662
  %5664 = vrot.lane.b32.xlu0 %v4961, 124
  %v5665 = vpop.permute.xlu0 %5664
  %5666 = vrot.lane.b32.xlu0 %v4966, 124
  %v5667 = vpop.permute.xlu0 %5666
  %5668 = vrot.lane.b32.xlu0 %v4971, 124
  %v5669 = vpop.permute.xlu0 %5668
  %5670 = vrot.lane.b32.xlu0 %v4976, 124
  %v5671 = vpop.permute.xlu0 %5670
  %5672 = vrot.lane.b32.xlu0 %v4981, 124
  %v5673 = vpop.permute.xlu0 %5672
  %5674 = vrot.lane.b32.xlu0 %v4986, 124
  %v5675 = vpop.permute.xlu0 %5674
  %5676 = vrot.lane.b32.xlu0 %v4991, 124
  %v5677 = vpop.permute.xlu0 %5676
  %5678 = vrot.lane.b32.xlu0 %v4996, 124
  %v5679 = vpop.permute.xlu0 %5678
  %5680 = vrot.lane.b32.xlu0 %v5001, 124
  %v5681 = vpop.permute.xlu0 %5680
  %5682 = vrot.lane.b32.xlu0 %v5006, 124
  %v5683 = vpop.permute.xlu0 %5682
  %5684 = vrot.lane.b32.xlu0 %v5011, 124
  %v5685 = vpop.permute.xlu0 %5684
  %5702 = vmatprep.subr.mxu0 0.0
  %5703 = vmatpush1.msra.mxu0 %v5655
  %5704 = vmatprep.subr.mxu0 0.0
  %5705 = vmatpush1.msra.mxu0 %v5657
  %5706 = vmatprep.subr.mxu0 0.0
  %5707 = vmatpush1.msra.mxu0 %v5659
  %5708 = vmatprep.subr.mxu0 0.0
  %5709 = vmatpush1.msra.mxu0 %v5661
  %5710 = vmatprep.subr.mxu0 0.0
  %5711 = vmatpush1.msra.mxu0 %v5663
  %5712 = vmatprep.subr.mxu0 0.0
  %5713 = vmatpush1.msra.mxu0 %v5665
  %5714 = vmatprep.subr.mxu0 0.0
  %5715 = vmatpush1.msra.mxu0 %v5667
  %5716 = vmatprep.subr.mxu0 0.0
  %5717 = vmatpush1.msra.mxu0 %v5669
  %5718 = vmatprep.subr.mxu0 0.0
  %5719 = vmatpush1.msra.mxu0 %v5671
  %5720 = vmatprep.subr.mxu0 0.0
  %5721 = vmatpush1.msra.mxu0 %v5673
  %5722 = vmatprep.subr.mxu0 0.0
  %5723 = vmatpush1.msra.mxu0 %v5675
  %5724 = vmatprep.subr.mxu0 0.0
  %5725 = vmatpush1.msra.mxu0 %v5677
  %5726 = vmatprep.subr.mxu0 0.0
  %5727 = vmatpush1.msra.mxu0 %v5679
  %5728 = vmatprep.subr.mxu0 0.0
  %5729 = vmatpush1.msra.mxu0 %v5681
  %5730 = vmatprep.subr.mxu0 0.0
  %5731 = vmatpush1.msra.mxu0 %v5683
  %5732 = vmatprep.subr.mxu0 0.0
  %5733 = vmatpush1.msra.mxu0 %v5685
  %5734 = vmatprep.subr.mxu0 0.0
  %5735 = vmatpush1.msra.mxu0 0.0
  %5736 = vmatprep.subr.mxu0 0.0
  %5737 = vmatpush1.msra.mxu0 0.0
  %5738 = vmatprep.subr.mxu0 0.0
  %5739 = vmatpush1.msra.mxu0 0.0
  %5740 = vmatprep.subr.mxu0 0.0
  %5741 = vmatpush1.msra.mxu0 0.0
  %5742 = vmatprep.subr.mxu0 0.0
  %5743 = vmatpush1.msra.mxu0 0.0
  %5744 = vmatprep.subr.mxu0 0.0
  %5745 = vmatpush1.msra.mxu0 0.0
  %5746 = vmatprep.subr.mxu0 0.0
  %5747 = vmatpush1.msra.mxu0 0.0
  %5748 = vmatprep.subr.mxu0 0.0
  %5749 = vmatpush1.msra.mxu0 0.0
  %5750 = vmatprep.subr.mxu0 0.0
  %5751 = vmatpush1.msra.mxu0 0.0
  %5752 = vmatprep.subr.mxu0 0.0
  %5753 = vmatpush1.msra.mxu0 0.0
  %5754 = vmatprep.subr.mxu0 0.0
  %5755 = vmatpush1.msra.mxu0 0.0
  %5756 = vmatprep.subr.mxu0 0.0
  %5757 = vmatpush1.msra.mxu0 0.0
  %5758 = vmatprep.subr.mxu0 0.0
  %5759 = vmatpush1.msra.mxu0 0.0
  %5760 = vmatprep.subr.mxu0 0.0
  %5761 = vmatpush1.msra.mxu0 0.0
  %5762 = vmatprep.subr.mxu0 0.0
  %5763 = vmatpush1.msra.mxu0 0.0
  %5764 = vmatprep.subr.mxu0 0.0
  %5765 = vmatpush1.msra.mxu0 0.0
  %5766 = vmatprep.mubr.f32.mxu0 0.0
  %5767 = vmatmul.mubr.f32.gmra.mrb[0].mxu0 %v5646
  %v5768 = vpop.f32.mrb[0].mxu0
  %v5769 = vadd.f32 0.0, %v5768
  %v5770 = vpop.f32.mrb[0].mxu0
  %5771 = vmatprep.mubr.f32.mxu0 0.0
  %5772 = vmatmul.mubr.f32.gmra.mrb[0].mxu0 %v5647
  %v5773 = vpop.f32.mrb[0].mxu0
  %v5774 = vadd.f32 0.0, %v5773
  %v5775 = vpop.f32.mrb[0].mxu0
  %5776 = vmatprep.mubr.f32.mxu0 0.0
  %5777 = vmatmul.mubr.f32.gmra.mrb[0].mxu0 %v5648
  %v5778 = vpop.f32.mrb[0].mxu0
  %v5779 = vadd.f32 0.0, %v5778
  %v5780 = vpop.f32.mrb[0].mxu0
  %5781 = vmatprep.mubr.f32.mxu0 0.0
  %5782 = vmatmul.mubr.f32.gmra.mrb[0].mxu0 %v5649
  %v5783 = vpop.f32.mrb[0].mxu0
  %v5784 = vadd.f32 0.0, %v5783
  %v5785 = vpop.f32.mrb[0].mxu0
  %5786 = vmatprep.mubr.f32.mxu0 0.0
  %5787 = vmatmul.mubr.f32.gmra.mrb[0].mxu0 %v5650
  %v5788 = vpop.f32.mrb[0].mxu0
  %v5789 = vadd.f32 0.0, %v5788
  %v5790 = vpop.f32.mrb[0].mxu0
  %5791 = vmatprep.mubr.f32.mxu0 0.0
  %5792 = vmatmul.mubr.f32.gmra.mrb[0].mxu0 %v5651
  %v5793 = vpop.f32.mrb[0].mxu0
  %v5794 = vadd.f32 0.0, %v5793
  %v5795 = vpop.f32.mrb[0].mxu0
  %5796 = vmatprep.mubr.f32.mxu0 0.0
  %5797 = vmatmul.mubr.f32.gmra.mrb[0].mxu0 %v5652
  %v5798 = vpop.f32.mrb[0].mxu0
  %v5799 = vadd.f32 0.0, %v5798
  %v5800 = vpop.f32.mrb[0].mxu0
  %5801 = vmatprep.mubr.f32.mxu0 0.0
  %5802 = vmatmul.mubr.f32.gmra.mrb[0].mxu0 %v5653
  %v5803 = vpop.f32.mrb[0].mxu0
  %v5804 = vadd.f32 0.0, %v5803
  %v5805 = vpop.f32.mrb[0].mxu0
  %5806 = vdwg.mxu0
  %v5807 = vadd.f32 %v5637, %v5769
  %v5808 = vadd.f32 %v5638, %v5774
  %v5809 = vadd.f32 %v5639, %v5779
  %v5810 = vadd.f32 %v5640, %v5784
  %v5811 = vadd.f32 %v5641, %v5789
  %v5812 = vadd.f32 %v5642, %v5794
  %v5813 = vadd.f32 %v5643, %v5799
  %v5814 = vadd.f32 %v5644, %v5804
  %s5815 = scalar_lea.vmem %s45, 320
  %v5816 = vld [vmem:[%s5815] sm:$0xff]
  %v5817 = vld [vmem:[%s5815 + $0x8] sm:$0xff]
  %v5818 = vld [vmem:[%s5815 + $0x10] sm:$0xff]
  %v5819 = vld [vmem:[%s5815 + $0x18] sm:$0xff]
  %v5820 = vld [vmem:[%s5815 + $0x20] sm:$0xff]
  %v5821 = vld [vmem:[%s5815 + $0x28] sm:$0xff]
  %v5822 = vld [vmem:[%s5815 + $0x30] sm:$0xff]
  %v5823 = vld [vmem:[%s5815 + $0x38] sm:$0xff]
  %5824 = vrot.lane.b32.xlu0 %v4936, 123
  %v5825 = vpop.permute.xlu0 %5824
  %5826 = vrot.lane.b32.xlu0 %v4941, 123
  %v5827 = vpop.permute.xlu0 %5826
  %5828 = vrot.lane.b32.xlu0 %v4946, 123
  %v5829 = vpop.permute.xlu0 %5828
  %5830 = vrot.lane.b32.xlu0 %v4951, 123
  %v5831 = vpop.permute.xlu0 %5830
  %5832 = vrot.lane.b32.xlu0 %v4956, 123
  %v5833 = vpop.permute.xlu0 %5832
  %5834 = vrot.lane.b32.xlu0 %v4961, 123
  %v5835 = vpop.permute.xlu0 %5834
  %5836 = vrot.lane.b32.xlu0 %v4966, 123
  %v5837 = vpop.permute.xlu0 %5836
  %5838 = vrot.lane.b32.xlu0 %v4971, 123
  %v5839 = vpop.permute.xlu0 %5838
  %5840 = vrot.lane.b32.xlu0 %v4976, 123
  %v5841 = vpop.permute.xlu0 %5840
  %5842 = vrot.lane.b32.xlu0 %v4981, 123
  %v5843 = vpop.permute.xlu0 %5842
  %5844 = vrot.lane.b32.xlu0 %v4986, 123
  %v5845 = vpop.permute.xlu0 %5844
  %5846 = vrot.lane.b32.xlu0 %v4991, 123
  %v5847 = vpop.permute.xlu0 %5846
  %5848 = vrot.lane.b32.xlu0 %v4996, 123
  %v5849 = vpop.permute.xlu0 %5848
  %5850 = vrot.lane.b32.xlu0 %v5001, 123
  %v5851 = vpop.permute.xlu0 %5850
  %5852 = vrot.lane.b32.xlu0 %v5006, 123
  %v5853 = vpop.permute.xlu0 %5852
  %5854 = vrot.lane.b32.xlu0 %v5011, 123
  %v5855 = vpop.permute.xlu0 %5854
  %5872 = vmatprep.subr.mxu0 0.0
  %5873 = vmatpush1.msra.mxu0 %v5825
  %5874 = vmatprep.subr.mxu0 0.0
  %5875 = vmatpush1.msra.mxu0 %v5827
  %5876 = vmatprep.subr.mxu0 0.0
  %5877 = vmatpush1.msra.mxu0 %v5829
  %5878 = vmatprep.subr.mxu0 0.0
  %5879 = vmatpush1.msra.mxu0 %v5831
  %5880 = vmatprep.subr.mxu0 0.0
  %5881 = vmatpush1.msra.mxu0 %v5833
  %5882 = vmatprep.subr.mxu0 0.0
  %5883 = vmatpush1.msra.mxu0 %v5835
  %5884 = vmatprep.subr.mxu0 0.0
  %5885 = vmatpush1.msra.mxu0 %v5837
  %5886 = vmatprep.subr.mxu0 0.0
  %5887 = vmatpush1.msra.mxu0 %v5839
  %5888 = vmatprep.subr.mxu0 0.0
  %5889 = vmatpush1.msra.mxu0 %v5841
  %5890 = vmatprep.subr.mxu0 0.0
  %5891 = vmatpush1.msra.mxu0 %v5843
  %5892 = vmatprep.subr.mxu0 0.0
  %5893 = vmatpush1.msra.mxu0 %v5845
  %5894 = vmatprep.subr.mxu0 0.0
  %5895 = vmatpush1.msra.mxu0 %v5847
  %5896 = vmatprep.subr.mxu0 0.0
  %5897 = vmatpush1.msra.mxu0 %v5849
  %5898 = vmatprep.subr.mxu0 0.0
  %5899 = vmatpush1.msra.mxu0 %v5851
  %5900 = vmatprep.subr.mxu0 0.0
  %5901 = vmatpush1.msra.mxu0 %v5853
  %5902 = vmatprep.subr.mxu0 0.0
  %5903 = vmatpush1.msra.mxu0 %v5855
  %5904 = vmatprep.subr.mxu0 0.0
  %5905 = vmatpush1.msra.mxu0 0.0
  %5906 = vmatprep.subr.mxu0 0.0
  %5907 = vmatpush1.msra.mxu0 0.0
  %5908 = vmatprep.subr.mxu0 0.0
  %5909 = vmatpush1.msra.mxu0 0.0
  %5910 = vmatprep.subr.mxu0 0.0
  %5911 = vmatpush1.msra.mxu0 0.0
  %5912 = vmatprep.subr.mxu0 0.0
  %5913 = vmatpush1.msra.mxu0 0.0
  %5914 = vmatprep.subr.mxu0 0.0
  %5915 = vmatpush1.msra.mxu0 0.0
  %5916 = vmatprep.subr.mxu0 0.0
  %5917 = vmatpush1.msra.mxu0 0.0
  %5918 = vmatprep.subr.mxu0 0.0
  %5919 = vmatpush1.msra.mxu0 0.0
  %5920 = vmatprep.subr.mxu0 0.0
  %5921 = vmatpush1.msra.mxu0 0.0
  %5922 = vmatprep.subr.mxu0 0.0
  %5923 = vmatpush1.msra.mxu0 0.0
  %5924 = vmatprep.subr.mxu0 0.0
  %5925 = vmatpush1.msra.mxu0 0.0
  %5926 = vmatprep.subr.mxu0 0.0
  %5927 = vmatpush1.msra.mxu0 0.0
  %5928 = vmatprep.subr.mxu0 0.0
  %5929 = vmatpush1.msra.mxu0 0.0
  %5930 = vmatprep.subr.mxu0 0.0
  %5931 = vmatpush1.msra.mxu0 0.0
  %5932 = vmatprep.subr.mxu0 0.0
  %5933 = vmatpush1.msra.mxu0 0.0
  %5934 = vmatprep.subr.mxu0 0.0
  %5935 = vmatpush1.msra.mxu0 0.0
  %5936 = vmatprep.mubr.f32.mxu0 0.0
  %5937 = vmatmul.mubr.f32.gmra.mrb[0].mxu0 %v5816
  %v5938 = vpop.f32.mrb[0].mxu0
  %v5939 = vadd.f32 0.0, %v5938
  %v5940 = vpop.f32.mrb[0].mxu0
  %5941 = vmatprep.mubr.f32.mxu0 0.0
  %5942 = vmatmul.mubr.f32.gmra.mrb[0].mxu0 %v5817
  %v5943 = vpop.f32.mrb[0].mxu0
  %v5944 = vadd.f32 0.0, %v5943
  %v5945 = vpop.f32.mrb[0].mxu0
  %5946 = vmatprep.mubr.f32.mxu0 0.0
  %5947 = vmatmul.mubr.f32.gmra.mrb[0].mxu0 %v5818
  %v5948 = vpop.f32.mrb[0].mxu0
  %v5949 = vadd.f32 0.0, %v5948
  %v5950 = vpop.f32.mrb[0].mxu0
  %5951 = vmatprep.mubr.f32.mxu0 0.0
  %5952 = vmatmul.mubr.f32.gmra.mrb[0].mxu0 %v5819
  %v5953 = vpop.f32.mrb[0].mxu0
  %v5954 = vadd.f32 0.0, %v5953
  %v5955 = vpop.f32.mrb[0].mxu0
  %5956 = vmatprep.mubr.f32.mxu0 0.0
  %5957 = vmatmul.mubr.f32.gmra.mrb[0].mxu0 %v5820
  %v5958 = vpop.f32.mrb[0].mxu0
  %v5959 = vadd.f32 0.0, %v5958
  %v5960 = vpop.f32.mrb[0].mxu0
  %5961 = vmatprep.mubr.f32.mxu0 0.0
  %5962 = vmatmul.mubr.f32.gmra.mrb[0].mxu0 %v5821
  %v5963 = vpop.f32.mrb[0].mxu0
  %v5964 = vadd.f32 0.0, %v5963
  %v5965 = vpop.f32.mrb[0].mxu0
  %5966 = vmatprep.mubr.f32.mxu0 0.0
  %5967 = vmatmul.mubr.f32.gmra.mrb[0].mxu0 %v5822
  %v5968 = vpop.f32.mrb[0].mxu0
  %v5969 = vadd.f32 0.0, %v5968
  %v5970 = vpop.f32.mrb[0].mxu0
  %5971 = vmatprep.mubr.f32.mxu0 0.0
  %5972 = vmatmul.mubr.f32.gmra.mrb[0].mxu0 %v5823
  %v5973 = vpop.f32.mrb[0].mxu0
  %v5974 = vadd.f32 0.0, %v5973
  %v5975 = vpop.f32.mrb[0].mxu0
  %5976 = vdwg.mxu0
  %v5977 = vadd.f32 %v5807, %v5939
  %v5978 = vadd.f32 %v5808, %v5944
  %v5979 = vadd.f32 %v5809, %v5949
  %v5980 = vadd.f32 %v5810, %v5954
  %v5981 = vadd.f32 %v5811, %v5959
  %v5982 = vadd.f32 %v5812, %v5964
  %v5983 = vadd.f32 %v5813, %v5969
  %v5984 = vadd.f32 %v5814, %v5974
  %s5985 = scalar_lea.vmem %s45, 384
  %v5986 = vld [vmem:[%s5985] sm:$0xff]
  %v5987 = vld [vmem:[%s5985 + $0x8] sm:$0xff]
  %v5988 = vld [vmem:[%s5985 + $0x10] sm:$0xff]
  %v5989 = vld [vmem:[%s5985 + $0x18] sm:$0xff]
  %v5990 = vld [vmem:[%s5985 + $0x20] sm:$0xff]
  %v5991 = vld [vmem:[%s5985 + $0x28] sm:$0xff]
  %v5992 = vld [vmem:[%s5985 + $0x30] sm:$0xff]
  %v5993 = vld [vmem:[%s5985 + $0x38] sm:$0xff]
  %5994 = vrot.lane.b32.xlu0 %v4936, 122
  %v5995 = vpop.permute.xlu0 %5994
  %5996 = vrot.lane.b32.xlu0 %v4941, 122
  %v5997 = vpop.permute.xlu0 %5996
  %5998 = vrot.lane.b32.xlu0 %v4946, 122
  %v5999 = vpop.permute.xlu0 %5998
  %6000 = vrot.lane.b32.xlu0 %v4951, 122
  %v6001 = vpop.permute.xlu0 %6000
  %6002 = vrot.lane.b32.xlu0 %v4956, 122
  %v6003 = vpop.permute.xlu0 %6002
  %6004 = vrot.lane.b32.xlu0 %v4961, 122
  %v6005 = vpop.permute.xlu0 %6004
  %6006 = vrot.lane.b32.xlu0 %v4966, 122
  %v6007 = vpop.permute.xlu0 %6006
  %6008 = vrot.lane.b32.xlu0 %v4971, 122
  %v6009 = vpop.permute.xlu0 %6008
  %6010 = vrot.lane.b32.xlu0 %v4976, 122
  %v6011 = vpop.permute.xlu0 %6010
  %6012 = vrot.lane.b32.xlu0 %v4981, 122
  %v6013 = vpop.permute.xlu0 %6012
  %6014 = vrot.lane.b32.xlu0 %v4986, 122
  %v6015 = vpop.permute.xlu0 %6014
  %6016 = vrot.lane.b32.xlu0 %v4991, 122
  %v6017 = vpop.permute.xlu0 %6016
  %6018 = vrot.lane.b32.xlu0 %v4996, 122
  %v6019 = vpop.permute.xlu0 %6018
  %6020 = vrot.lane.b32.xlu0 %v5001, 122
  %v6021 = vpop.permute.xlu0 %6020
  %6022 = vrot.lane.b32.xlu0 %v5006, 122
  %v6023 = vpop.permute.xlu0 %6022
  %6024 = vrot.lane.b32.xlu0 %v5011, 122
  %v6025 = vpop.permute.xlu0 %6024
  %6042 = vmatprep.subr.mxu0 0.0
  %6043 = vmatpush1.msra.mxu0 %v5995
  %6044 = vmatprep.subr.mxu0 0.0
  %6045 = vmatpush1.msra.mxu0 %v5997
  %6046 = vmatprep.subr.mxu0 0.0
  %6047 = vmatpush1.msra.mxu0 %v5999
  %6048 = vmatprep.subr.mxu0 0.0
  %6049 = vmatpush1.msra.mxu0 %v6001
  %6050 = vmatprep.subr.mxu0 0.0
  %6051 = vmatpush1.msra.mxu0 %v6003
  %6052 = vmatprep.subr.mxu0 0.0
  %6053 = vmatpush1.msra.mxu0 %v6005
  %6054 = vmatprep.subr.mxu0 0.0
  %6055 = vmatpush1.msra.mxu0 %v6007
  %6056 = vmatprep.subr.mxu0 0.0
  %6057 = vmatpush1.msra.mxu0 %v6009
  %6058 = vmatprep.subr.mxu0 0.0
  %6059 = vmatpush1.msra.mxu0 %v6011
  %6060 = vmatprep.subr.mxu0 0.0
  %6061 = vmatpush1.msra.mxu0 %v6013
  %6062 = vmatprep.subr.mxu0 0.0
  %6063 = vmatpush1.msra.mxu0 %v6015
  %6064 = vmatprep.subr.mxu0 0.0
  %6065 = vmatpush1.msra.mxu0 %v6017
  %6066 = vmatprep.subr.mxu0 0.0
  %6067 = vmatpush1.msra.mxu0 %v6019
  %6068 = vmatprep.subr.mxu0 0.0
  %6069 = vmatpush1.msra.mxu0 %v6021
  %6070 = vmatprep.subr.mxu0 0.0
  %6071 = vmatpush1.msra.mxu0 %v6023
  %6072 = vmatprep.subr.mxu0 0.0
  %6073 = vmatpush1.msra.mxu0 %v6025
  %6074 = vmatprep.subr.mxu0 0.0
  %6075 = vmatpush1.msra.mxu0 0.0
  %6076 = vmatprep.subr.mxu0 0.0
  %6077 = vmatpush1.msra.mxu0 0.0
  %6078 = vmatprep.subr.mxu0 0.0
  %6079 = vmatpush1.msra.mxu0 0.0
  %6080 = vmatprep.subr.mxu0 0.0
  %6081 = vmatpush1.msra.mxu0 0.0
  %6082 = vmatprep.subr.mxu0 0.0
  %6083 = vmatpush1.msra.mxu0 0.0
  %6084 = vmatprep.subr.mxu0 0.0
  %6085 = vmatpush1.msra.mxu0 0.0
  %6086 = vmatprep.subr.mxu0 0.0
  %6087 = vmatpush1.msra.mxu0 0.0
  %6088 = vmatprep.subr.mxu0 0.0
  %6089 = vmatpush1.msra.mxu0 0.0
  %6090 = vmatprep.subr.mxu0 0.0
  %6091 = vmatpush1.msra.mxu0 0.0
  %6092 = vmatprep.subr.mxu0 0.0
  %6093 = vmatpush1.msra.mxu0 0.0
  %6094 = vmatprep.subr.mxu0 0.0
  %6095 = vmatpush1.msra.mxu0 0.0
  %6096 = vmatprep.subr.mxu0 0.0
  %6097 = vmatpush1.msra.mxu0 0.0
  %6098 = vmatprep.subr.mxu0 0.0
  %6099 = vmatpush1.msra.mxu0 0.0
  %6100 = vmatprep.subr.mxu0 0.0
  %6101 = vmatpush1.msra.mxu0 0.0
  %6102 = vmatprep.subr.mxu0 0.0
  %6103 = vmatpush1.msra.mxu0 0.0
  %6104 = vmatprep.subr.mxu0 0.0
  %6105 = vmatpush1.msra.mxu0 0.0
  %6106 = vmatprep.mubr.f32.mxu0 0.0
  %6107 = vmatmul.mubr.f32.gmra.mrb[0].mxu0 %v5986
  %v6108 = vpop.f32.mrb[0].mxu0
  %v6109 = vadd.f32 0.0, %v6108
  %v6110 = vpop.f32.mrb[0].mxu0
  %6111 = vmatprep.mubr.f32.mxu0 0.0
  %6112 = vmatmul.mubr.f32.gmra.mrb[0].mxu0 %v5987
  %v6113 = vpop.f32.mrb[0].mxu0
  %v6114 = vadd.f32 0.0, %v6113
  %v6115 = vpop.f32.mrb[0].mxu0
  %6116 = vmatprep.mubr.f32.mxu0 0.0
  %6117 = vmatmul.mubr.f32.gmra.mrb[0].mxu0 %v5988
  %v6118 = vpop.f32.mrb[0].mxu0
  %v6119 = vadd.f32 0.0, %v6118
  %v6120 = vpop.f32.mrb[0].mxu0
  %6121 = vmatprep.mubr.f32.mxu0 0.0
  %6122 = vmatmul.mubr.f32.gmra.mrb[0].mxu0 %v5989
  %v6123 = vpop.f32.mrb[0].mxu0
  %v6124 = vadd.f32 0.0, %v6123
  %v6125 = vpop.f32.mrb[0].mxu0
  %6126 = vmatprep.mubr.f32.mxu0 0.0
  %6127 = vmatmul.mubr.f32.gmra.mrb[0].mxu0 %v5990
  %v6128 = vpop.f32.mrb[0].mxu0
  %v6129 = vadd.f32 0.0, %v6128
  %v6130 = vpop.f32.mrb[0].mxu0
  %6131 = vmatprep.mubr.f32.mxu0 0.0
  %6132 = vmatmul.mubr.f32.gmra.mrb[0].mxu0 %v5991
  %v6133 = vpop.f32.mrb[0].mxu0
  %v6134 = vadd.f32 0.0, %v6133
  %v6135 = vpop.f32.mrb[0].mxu0
  %6136 = vmatprep.mubr.f32.mxu0 0.0
  %6137 = vmatmul.mubr.f32.gmra.mrb[0].mxu0 %v5992
  %v6138 = vpop.f32.mrb[0].mxu0
  %v6139 = vadd.f32 0.0, %v6138
  %v6140 = vpop.f32.mrb[0].mxu0
  %6141 = vmatprep.mubr.f32.mxu0 0.0
  %6142 = vmatmul.mubr.f32.gmra.mrb[0].mxu0 %v5993
  %v6143 = vpop.f32.mrb[0].mxu0
  %v6144 = vadd.f32 0.0, %v6143
  %v6145 = vpop.f32.mrb[0].mxu0
  %6146 = vdwg.mxu0
  %v6147 = vadd.f32 %v5977, %v6109
  %v6148 = vadd.f32 %v5978, %v6114
  %v6149 = vadd.f32 %v5979, %v6119
  %v6150 = vadd.f32 %v5980, %v6124
  %v6151 = vadd.f32 %v5981, %v6129
  %v6152 = vadd.f32 %v5982, %v6134
  %v6153 = vadd.f32 %v5983, %v6139
  %v6154 = vadd.f32 %v5984, %v6144
  %v6155 = vld [vmem:[%s51] sm:$0xff]
  %v6156 = vld [vmem:[%s51 + $0x8] sm:$0xff]
  %v6157 = vld [vmem:[%s51 + $0x10] sm:$0xf]
  %6159 = vset.pattern.permute.xlu0 0
  %6160 = vperm.xlu0 %6159, %v4807
  %v6161 = vpop.permute.xlu0 %6160
  %6164 = vset.pattern.permute.xlu0 0
  %6165 = vperm.xlu0 %6164, %v4808
  %v6166 = vpop.permute.xlu0 %6165
  %6169 = vset.pattern.permute.xlu0 0
  %6170 = vperm.xlu0 %6169, %v4809
  %v6171 = vpop.permute.xlu0 %6170
  %6174 = vset.pattern.permute.xlu0 0
  %6175 = vperm.xlu0 %6174, %v4810
  %v6176 = vpop.permute.xlu0 %6175
  %6179 = vset.pattern.permute.xlu0 0
  %6180 = vperm.xlu0 %6179, %v4811
  %v6181 = vpop.permute.xlu0 %6180
  %6184 = vset.pattern.permute.xlu0 0
  %6185 = vperm.xlu0 %6184, %v4812
  %v6186 = vpop.permute.xlu0 %6185
  %6189 = vset.pattern.permute.xlu0 0
  %6190 = vperm.xlu0 %6189, %v4813
  %v6191 = vpop.permute.xlu0 %6190
  %6194 = vset.pattern.permute.xlu0 0
  %6195 = vperm.xlu0 %6194, %v4814
  %v6196 = vpop.permute.xlu0 %6195
  %vm6198 = vcmask 162816
  %v6200 = vsel %vm6198, %v6147, 0
  %v6203 = vsel %vm6198, %v6148, 0
  %v6206 = vsel %vm6198, %v6149, 0
  %v6209 = vsel %vm6198, %v6150, 0
  %v6212 = vsel %vm6198, %v6151, 0
  %v6215 = vsel %vm6198, %v6152, 0
  %v6218 = vsel %vm6198, %v6153, 0
  %v6221 = vsel %vm6198, %v6154, 0
  %v6224 = vsel %vm4642, %v6157, 0
  %6226 = vmatprep.subr.mxu0 0.0
  %6227 = vmatpush1.msra.mxu0 %v6155
  %6228 = vmatprep.subr.mxu0 0.0
  %6229 = vmatpush1.msra.mxu0 %v6156
  %6230 = vmatprep.subr.mxu0 0.0
  %6231 = vmatpush1.msra.mxu0 %v6224
  %6232 = vmatprep.subr.mxu0 0.0
  %6233 = vmatpush1.msra.mxu0 0.0
  %6234 = vmatprep.subr.mxu0 0.0
  %6235 = vmatpush1.msra.mxu0 0.0
  %6236 = vmatprep.subr.mxu0 0.0
  %6237 = vmatpush1.msra.mxu0 0.0
  %6238 = vmatprep.subr.mxu0 0.0
  %6239 = vmatpush1.msra.mxu0 0.0
  %6240 = vmatprep.subr.mxu0 0.0
  %6241 = vmatpush1.msra.mxu0 0.0
  %6242 = vmatprep.subr.mxu0 0.0
  %6243 = vmatpush1.msra.mxu0 0.0
  %6244 = vmatprep.subr.mxu0 0.0
  %6245 = vmatpush1.msra.mxu0 0.0
  %6246 = vmatprep.subr.mxu0 0.0
  %6247 = vmatpush1.msra.mxu0 0.0
  %6248 = vmatprep.subr.mxu0 0.0
  %6249 = vmatpush1.msra.mxu0 0.0
  %6250 = vmatprep.subr.mxu0 0.0
  %6251 = vmatpush1.msra.mxu0 0.0
  %6252 = vmatprep.subr.mxu0 0.0
  %6253 = vmatpush1.msra.mxu0 0.0
  %6254 = vmatprep.subr.mxu0 0.0
  %6255 = vmatpush1.msra.mxu0 0.0
  %6256 = vmatprep.subr.mxu0 0.0
  %6257 = vmatpush1.msra.mxu0 0.0
  %6258 = vmatprep.subr.mxu0 0.0
  %6259 = vmatpush1.msra.mxu0 0.0
  %6260 = vmatprep.subr.mxu0 0.0
  %6261 = vmatpush1.msra.mxu0 0.0
  %6262 = vmatprep.subr.mxu0 0.0
  %6263 = vmatpush1.msra.mxu0 0.0
  %6264 = vmatprep.subr.mxu0 0.0
  %6265 = vmatpush1.msra.mxu0 0.0
  %6266 = vmatprep.subr.mxu0 0.0
  %6267 = vmatpush1.msra.mxu0 0.0
  %6268 = vmatprep.subr.mxu0 0.0
  %6269 = vmatpush1.msra.mxu0 0.0
  %6270 = vmatprep.subr.mxu0 0.0
  %6271 = vmatpush1.msra.mxu0 0.0
  %6272 = vmatprep.subr.mxu0 0.0
  %6273 = vmatpush1.msra.mxu0 0.0
  %6274 = vmatprep.subr.mxu0 0.0
  %6275 = vmatpush1.msra.mxu0 0.0
  %6276 = vmatprep.subr.mxu0 0.0
  %6277 = vmatpush1.msra.mxu0 0.0
  %6278 = vmatprep.subr.mxu0 0.0
  %6279 = vmatpush1.msra.mxu0 0.0
  %6280 = vmatprep.subr.mxu0 0.0
  %6281 = vmatpush1.msra.mxu0 0.0
  %6282 = vmatprep.subr.mxu0 0.0
  %6283 = vmatpush1.msra.mxu0 0.0
  %6284 = vmatprep.subr.mxu0 0.0
  %6285 = vmatpush1.msra.mxu0 0.0
  %6286 = vmatprep.subr.mxu0 0.0
  %6287 = vmatpush1.msra.mxu0 0.0
  %6288 = vmatprep.subr.mxu0 0.0
  %6289 = vmatpush1.msra.mxu0 0.0
  %6290 = vmatprep.mubr.f32.mxu0 0.0
  %6291 = vmatmul.mubr.f32.gmra.mrb[0].mxu0 %v6200
  %v6292 = vpop.f32.mrb[0].mxu0
  %v6293 = vadd.f32 %v6161, %v6292
  %v6294 = vpop.f32.mrb[0].mxu0
  %6295 = vmatprep.mubr.f32.mxu0 0.0
  %6296 = vmatmul.mubr.f32.gmra.mrb[0].mxu0 %v6203
  %v6297 = vpop.f32.mrb[0].mxu0
  %v6298 = vadd.f32 %v6166, %v6297
  %v6299 = vpop.f32.mrb[0].mxu0
  %6300 = vmatprep.mubr.f32.mxu0 0.0
  %6301 = vmatmul.mubr.f32.gmra.mrb[0].mxu0 %v6206
  %v6302 = vpop.f32.mrb[0].mxu0
  %v6303 = vadd.f32 %v6171, %v6302
  %v6304 = vpop.f32.mrb[0].mxu0
  %6305 = vmatprep.mubr.f32.mxu0 0.0
  %6306 = vmatmul.mubr.f32.gmra.mrb[0].mxu0 %v6209
  %v6307 = vpop.f32.mrb[0].mxu0
  %v6308 = vadd.f32 %v6176, %v6307
  %v6309 = vpop.f32.mrb[0].mxu0
  %6310 = vmatprep.mubr.f32.mxu0 0.0
  %6311 = vmatmul.mubr.f32.gmra.mrb[0].mxu0 %v6212
  %v6312 = vpop.f32.mrb[0].mxu0
  %v6313 = vadd.f32 %v6181, %v6312
  %v6314 = vpop.f32.mrb[0].mxu0
  %6315 = vmatprep.mubr.f32.mxu0 0.0
  %6316 = vmatmul.mubr.f32.gmra.mrb[0].mxu0 %v6215
  %v6317 = vpop.f32.mrb[0].mxu0
  %v6318 = vadd.f32 %v6186, %v6317
  %v6319 = vpop.f32.mrb[0].mxu0
  %6320 = vmatprep.mubr.f32.mxu0 0.0
  %6321 = vmatmul.mubr.f32.gmra.mrb[0].mxu0 %v6218
  %v6322 = vpop.f32.mrb[0].mxu0
  %v6323 = vadd.f32 %v6191, %v6322
  %v6324 = vpop.f32.mrb[0].mxu0
  %6325 = vmatprep.mubr.f32.mxu0 0.0
  %6326 = vmatmul.mubr.f32.gmra.mrb[0].mxu0 %v6221
  %v6327 = vpop.f32.mrb[0].mxu0
  %v6328 = vadd.f32 %v6196, %v6327
  %v6329 = vpop.f32.mrb[0].mxu0
  %6330 = vdwg.mxu0
  %vm6331 = vcmp.ge.f32.partialorder %v6293, 0.0
  %vm6332 = vcmp.ge.f32.partialorder %v6298, 0.0
  %vm6333 = vcmp.ge.f32.partialorder %v6303, 0.0
  %vm6334 = vcmp.ge.f32.partialorder %v6308, 0.0
  %vm6335 = vcmp.ge.f32.partialorder %v6313, 0.0
  %vm6336 = vcmp.ge.f32.partialorder %v6318, 0.0
  %vm6337 = vcmp.ge.f32.partialorder %v6323, 0.0
  %vm6338 = vcmp.ge.f32.partialorder %v6328, 0.0
  %v6339 = vmul.f32 %v6293, 0.2
  %v6340 = vmul.f32 %v6298, 0.2
  %v6341 = vmul.f32 %v6303, 0.2
  %v6342 = vmul.f32 %v6308, 0.2
  %v6343 = vmul.f32 %v6313, 0.2
  %v6344 = vmul.f32 %v6318, 0.2
  %v6345 = vmul.f32 %v6323, 0.2
  %v6346 = vmul.f32 %v6328, 0.2
  %v6347 = vsel %vm6331, %v6293, %v6339
  %v6348 = vsel %vm6332, %v6298, %v6340
  %v6349 = vsel %vm6333, %v6303, %v6341
  %v6350 = vsel %vm6334, %v6308, %v6342
  %v6351 = vsel %vm6335, %v6313, %v6343
  %v6352 = vsel %vm6336, %v6318, %v6344
  %v6353 = vsel %vm6337, %v6323, %v6345
  %v6354 = vsel %vm6338, %v6328, %v6346
  %v6355 = vld [vmem:[%s55] sm:$0xff]
  %v6356 = vld [vmem:[%s55 + $0x8] sm:$0xff]
  %v6357 = vld [vmem:[%s55 + $0x10] sm:$0xff]
  %v6358 = vld [vmem:[%s55 + $0x18] sm:$0xff]
  %v6359 = vld [vmem:[%s57] sm:$0xff]
  %v6360 = vld [vmem:[%s57 + $0x8] sm:$0xff]
  %v6361 = vld [vmem:[%s57 + $0x10] sm:$0xff]
  %v6362 = vld [vmem:[%s57 + $0x18] sm:$0xff]
  %v6363 = vld [vmem:[%s59] sm:$0xff]
  %v6364 = vld [vmem:[%s59 + $0x8] sm:$0xff]
  %v6365 = vld [vmem:[%s59 + $0x10] sm:$0xff]
  %v6366 = vld [vmem:[%s59 + $0x18] sm:$0xff]
  %v6367 = vld [vmem:[%s61] sm:$0xff]
  %v6368 = vld [vmem:[%s61 + $0x8] sm:$0x3f]
  %vm6369 = vcmask 113664
  %v6371 = vsel %vm6369, %v6347, 0
  %v6374 = vsel %vm6369, %v6348, 0
  %v6377 = vsel %vm6369, %v6349, 0
  %v6380 = vsel %vm6369, %v6350, 0
  %v6383 = vsel %vm6369, %v6351, 0
  %v6386 = vsel %vm6369, %v6352, 0
  %v6389 = vsel %vm6369, %v6353, 0
  %v6392 = vsel %vm6369, %v6354, 0
  %vm6394 = vcmask 1045504
  %v6396 = vsel %vm6394, %v6368, 0
  %6398 = vmatprep.subr.mxu0 0.0
  %6399 = vmatpush1.msra.mxu0 %v6367
  %6400 = vmatprep.subr.mxu0 0.0
  %6401 = vmatpush1.msra.mxu0 %v6396
  %6402 = vmatprep.subr.mxu0 0.0
  %6403 = vmatpush1.msra.mxu0 0.0
  %6404 = vmatprep.subr.mxu0 0.0
  %6405 = vmatpush1.msra.mxu0 0.0
  %6406 = vmatprep.subr.mxu0 0.0
  %6407 = vmatpush1.msra.mxu0 0.0
  %6408 = vmatprep.subr.mxu0 0.0
  %6409 = vmatpush1.msra.mxu0 0.0
  %6410 = vmatprep.subr.mxu0 0.0
  %6411 = vmatpush1.msra.mxu0 0.0
  %6412 = vmatprep.subr.mxu0 0.0
  %6413 = vmatpush1.msra.mxu0 0.0
  %6414 = vmatprep.subr.mxu0 0.0
  %6415 = vmatpush1.msra.mxu0 0.0
  %6416 = vmatprep.subr.mxu0 0.0
  %6417 = vmatpush1.msra.mxu0 0.0
  %6418 = vmatprep.subr.mxu0 0.0
  %6419 = vmatpush1.msra.mxu0 0.0
  %6420 = vmatprep.subr.mxu0 0.0
  %6421 = vmatpush1.msra.mxu0 0.0
  %6422 = vmatprep.subr.mxu0 0.0
  %6423 = vmatpush1.msra.mxu0 0.0
  %6424 = vmatprep.subr.mxu0 0.0
  %6425 = vmatpush1.msra.mxu0 0.0
  %6426 = vmatprep.subr.mxu0 0.0
  %6427 = vmatpush1.msra.mxu0 0.0
  %6428 = vmatprep.subr.mxu0 0.0
  %6429 = vmatpush1.msra.mxu0 0.0
  %6430 = vmatprep.subr.mxu0 0.0
  %6431 = vmatpush1.msra.mxu0 0.0
  %6432 = vmatprep.subr.mxu0 0.0
  %6433 = vmatpush1.msra.mxu0 0.0
  %6434 = vmatprep.subr.mxu0 0.0
  %6435 = vmatpush1.msra.mxu0 0.0
  %6436 = vmatprep.subr.mxu0 0.0
  %6437 = vmatpush1.msra.mxu0 0.0
  %6438 = vmatprep.subr.mxu0 0.0
  %6439 = vmatpush1.msra.mxu0 0.0
  %6440 = vmatprep.subr.mxu0 0.0
  %6441 = vmatpush1.msra.mxu0 0.0
  %6442 = vmatprep.subr.mxu0 0.0
  %6443 = vmatpush1.msra.mxu0 0.0
  %6444 = vmatprep.subr.mxu0 0.0
  %6445 = vmatpush1.msra.mxu0 0.0
  %6446 = vmatprep.subr.mxu0 0.0
  %6447 = vmatpush1.msra.mxu0 0.0
  %6448 = vmatprep.subr.mxu0 0.0
  %6449 = vmatpush1.msra.mxu0 0.0
  %6450 = vmatprep.subr.mxu0 0.0
  %6451 = vmatpush1.msra.mxu0 0.0
  %6452 = vmatprep.subr.mxu0 0.0
  %6453 = vmatpush1.msra.mxu0 0.0
  %6454 = vmatprep.subr.mxu0 0.0
  %6455 = vmatpush1.msra.mxu0 0.0
  %6456 = vmatprep.subr.mxu0 0.0
  %6457 = vmatpush1.msra.mxu0 0.0
  %6458 = vmatprep.subr.mxu0 0.0
  %6459 = vmatpush1.msra.mxu0 0.0
  %6460 = vmatprep.subr.mxu0 0.0
  %6461 = vmatpush1.msra.mxu0 0.0
  %6462 = vmatprep.mubr.f32.mxu0 0.0
  %6463 = vmatmul.mubr.f32.gmra.mrb[0].mxu0 %v6371
  %v6464 = vpop.f32.mrb[0].mxu0
  %v6465 = vadd.f32 0.0, %v6464
  %v6466 = vpop.f32.mrb[0].mxu0
  %6467 = vmatprep.mubr.f32.mxu0 0.0
  %6468 = vmatmul.mubr.f32.gmra.mrb[0].mxu0 %v6374
  %v6469 = vpop.f32.mrb[0].mxu0
  %v6470 = vadd.f32 0.0, %v6469
  %v6471 = vpop.f32.mrb[0].mxu0
  %6472 = vmatprep.mubr.f32.mxu0 0.0
  %6473 = vmatmul.mubr.f32.gmra.mrb[0].mxu0 %v6377
  %v6474 = vpop.f32.mrb[0].mxu0
  %v6475 = vadd.f32 0.0, %v6474
  %v6476 = vpop.f32.mrb[0].mxu0
  %6477 = vmatprep.mubr.f32.mxu0 0.0
  %6478 = vmatmul.mubr.f32.gmra.mrb[0].mxu0 %v6380
  %v6479 = vpop.f32.mrb[0].mxu0
  %v6480 = vadd.f32 0.0, %v6479
  %v6481 = vpop.f32.mrb[0].mxu0
  %6482 = vmatprep.mubr.f32.mxu0 0.0
  %6483 = vmatmul.mubr.f32.gmra.mrb[0].mxu0 %v6383
  %v6484 = vpop.f32.mrb[0].mxu0
  %v6485 = vadd.f32 0.0, %v6484
  %v6486 = vpop.f32.mrb[0].mxu0
  %6487 = vmatprep.mubr.f32.mxu0 0.0
  %6488 = vmatmul.mubr.f32.gmra.mrb[0].mxu0 %v6386
  %v6489 = vpop.f32.mrb[0].mxu0
  %v6490 = vadd.f32 0.0, %v6489
  %v6491 = vpop.f32.mrb[0].mxu0
  %6492 = vmatprep.mubr.f32.mxu0 0.0
  %6493 = vmatmul.mubr.f32.gmra.mrb[0].mxu0 %v6389
  %v6494 = vpop.f32.mrb[0].mxu0
  %v6495 = vadd.f32 0.0, %v6494
  %v6496 = vpop.f32.mrb[0].mxu0
  %6497 = vmatprep.mubr.f32.mxu0 0.0
  %6498 = vmatmul.mubr.f32.gmra.mrb[0].mxu0 %v6392
  %v6499 = vpop.f32.mrb[0].mxu0
  %v6500 = vadd.f32 0.0, %v6499
  %v6501 = vpop.f32.mrb[0].mxu0
  %6502 = vdwg.mxu0
  %v6503 = vld [vmem:[%s53] sm:$0xff]
  %v6504 = vld [vmem:[%s53 + $0x8] sm:$0xff]
  %v6505 = vld [vmem:[%s53 + $0x10] sm:$0xff]
  %v6506 = vld [vmem:[%s53 + $0x18] sm:$0xff]
  %s6507 = scalar_lea.vmem %s53, 32
  %v6508 = vld [vmem:[%s6507] sm:$0xff]
  %v6509 = vld [vmem:[%s6507 + $0x8] sm:$0xff]
  %v6510 = vld [vmem:[%s6507 + $0x10] sm:$0xff]
  %v6511 = vld [vmem:[%s6507 + $0x18] sm:$0xff]
  %6520 = vrot.lane.b32.xlu0 %v6465, 127
  %v6521 = vpop.permute.xlu0 %6520
  %6522 = vrot.lane.b32.xlu0 %v6470, 127
  %v6523 = vpop.permute.xlu0 %6522
  %6524 = vrot.lane.b32.xlu0 %v6475, 127
  %v6525 = vpop.permute.xlu0 %6524
  %6526 = vrot.lane.b32.xlu0 %v6480, 127
  %v6527 = vpop.permute.xlu0 %6526
  %6528 = vrot.lane.b32.xlu0 %v6485, 127
  %v6529 = vpop.permute.xlu0 %6528
  %6530 = vrot.lane.b32.xlu0 %v6490, 127
  %v6531 = vpop.permute.xlu0 %6530
  %6532 = vrot.lane.b32.xlu0 %v6495, 127
  %v6533 = vpop.permute.xlu0 %6532
  %6534 = vrot.lane.b32.xlu0 %v6500, 127
  %v6535 = vpop.permute.xlu0 %6534
  %v6545 = vsel %vm3875, %v6508, 0
  %v6548 = vsel %vm3875, %v6509, 0
  %v6551 = vsel %vm3875, %v6510, 0
  %v6554 = vsel %vm3875, %v6511, 0
  %6556 = vmatprep.subr.mxu0 0.0
  %6557 = vmatpush1.msra.mxu0 %v6521
  %6558 = vmatprep.subr.mxu0 0.0
  %6559 = vmatpush1.msra.mxu0 %v6523
  %6560 = vmatprep.subr.mxu0 0.0
  %6561 = vmatpush1.msra.mxu0 %v6525
  %6562 = vmatprep.subr.mxu0 0.0
  %6563 = vmatpush1.msra.mxu0 %v6527
  %6564 = vmatprep.subr.mxu0 0.0
  %6565 = vmatpush1.msra.mxu0 %v6529
  %6566 = vmatprep.subr.mxu0 0.0
  %6567 = vmatpush1.msra.mxu0 %v6531
  %6568 = vmatprep.subr.mxu0 0.0
  %6569 = vmatpush1.msra.mxu0 %v6533
  %6570 = vmatprep.subr.mxu0 0.0
  %6571 = vmatpush1.msra.mxu0 %v6535
  %6572 = vmatprep.subr.mxu0 0.0
  %6573 = vmatpush1.msra.mxu0 0.0
  %6574 = vmatprep.subr.mxu0 0.0
  %6575 = vmatpush1.msra.mxu0 0.0
  %6576 = vmatprep.subr.mxu0 0.0
  %6577 = vmatpush1.msra.mxu0 0.0
  %6578 = vmatprep.subr.mxu0 0.0
  %6579 = vmatpush1.msra.mxu0 0.0
  %6580 = vmatprep.subr.mxu0 0.0
  %6581 = vmatpush1.msra.mxu0 0.0
  %6582 = vmatprep.subr.mxu0 0.0
  %6583 = vmatpush1.msra.mxu0 0.0
  %6584 = vmatprep.subr.mxu0 0.0
  %6585 = vmatpush1.msra.mxu0 0.0
  %6586 = vmatprep.subr.mxu0 0.0
  %6587 = vmatpush1.msra.mxu0 0.0
  %6588 = vmatprep.subr.mxu0 0.0
  %6589 = vmatpush1.msra.mxu0 0.0
  %6590 = vmatprep.subr.mxu0 0.0
  %6591 = vmatpush1.msra.mxu0 0.0
  %6592 = vmatprep.subr.mxu0 0.0
  %6593 = vmatpush1.msra.mxu0 0.0
  %6594 = vmatprep.subr.mxu0 0.0
  %6595 = vmatpush1.msra.mxu0 0.0
  %6596 = vmatprep.subr.mxu0 0.0
  %6597 = vmatpush1.msra.mxu0 0.0
  %6598 = vmatprep.subr.mxu0 0.0
  %6599 = vmatpush1.msra.mxu0 0.0
  %6600 = vmatprep.subr.mxu0 0.0
  %6601 = vmatpush1.msra.mxu0 0.0
  %6602 = vmatprep.subr.mxu0 0.0
  %6603 = vmatpush1.msra.mxu0 0.0
  %6604 = vmatprep.subr.mxu0 0.0
  %6605 = vmatpush1.msra.mxu0 0.0
  %6606 = vmatprep.subr.mxu0 0.0
  %6607 = vmatpush1.msra.mxu0 0.0
  %6608 = vmatprep.subr.mxu0 0.0
  %6609 = vmatpush1.msra.mxu0 0.0
  %6610 = vmatprep.subr.mxu0 0.0
  %6611 = vmatpush1.msra.mxu0 0.0
  %6612 = vmatprep.subr.mxu0 0.0
  %6613 = vmatpush1.msra.mxu0 0.0
  %6614 = vmatprep.subr.mxu0 0.0
  %6615 = vmatpush1.msra.mxu0 0.0
  %6616 = vmatprep.subr.mxu0 0.0
  %6617 = vmatpush1.msra.mxu0 0.0
  %6618 = vmatprep.subr.mxu0 0.0
  %6619 = vmatpush1.msra.mxu0 0.0
  %6620 = vmatprep.mubr.f32.mxu0 0.0
  %6621 = vmatmul.mubr.f32.gmra.mrb[0].mxu0 %v6545
  %v6622 = vpop.f32.mrb[0].mxu0
  %v6623 = vadd.f32 0.0, %v6622
  %v6624 = vpop.f32.mrb[0].mxu0
  %6625 = vmatprep.mubr.f32.mxu0 0.0
  %6626 = vmatmul.mubr.f32.gmra.mrb[0].mxu0 %v6548
  %v6627 = vpop.f32.mrb[0].mxu0
  %v6628 = vadd.f32 0.0, %v6627
  %v6629 = vpop.f32.mrb[0].mxu0
  %6630 = vmatprep.mubr.f32.mxu0 0.0
  %6631 = vmatmul.mubr.f32.gmra.mrb[0].mxu0 %v6551
  %v6632 = vpop.f32.mrb[0].mxu0
  %v6633 = vadd.f32 0.0, %v6632
  %v6634 = vpop.f32.mrb[0].mxu0
  %6635 = vmatprep.mubr.f32.mxu0 0.0
  %6636 = vmatmul.mubr.f32.gmra.mrb[0].mxu0 %v6554
  %v6637 = vpop.f32.mrb[0].mxu0
  %v6638 = vadd.f32 0.0, %v6637
  %v6639 = vpop.f32.mrb[0].mxu0
  %6640 = vdwg.mxu0
  %v6642 = vsel %vm3875, %v6503, 0
  %v6645 = vsel %vm3875, %v6504, 0
  %v6648 = vsel %vm3875, %v6505, 0
  %v6651 = vsel %vm3875, %v6506, 0
  %6653 = vmatprep.subr.mxu0 0.0
  %6654 = vmatpush1.msra.mxu0 %v6465
  %6655 = vmatprep.subr.mxu0 0.0
  %6656 = vmatpush1.msra.mxu0 %v6470
  %6657 = vmatprep.subr.mxu0 0.0
  %6658 = vmatpush1.msra.mxu0 %v6475
  %6659 = vmatprep.subr.mxu0 0.0
  %6660 = vmatpush1.msra.mxu0 %v6480
  %6661 = vmatprep.subr.mxu0 0.0
  %6662 = vmatpush1.msra.mxu0 %v6485
  %6663 = vmatprep.subr.mxu0 0.0
  %6664 = vmatpush1.msra.mxu0 %v6490
  %6665 = vmatprep.subr.mxu0 0.0
  %6666 = vmatpush1.msra.mxu0 %v6495
  %6667 = vmatprep.subr.mxu0 0.0
  %6668 = vmatpush1.msra.mxu0 %v6500
  %6669 = vmatprep.subr.mxu0 0.0
  %6670 = vmatpush1.msra.mxu0 0.0
  %6671 = vmatprep.subr.mxu0 0.0
  %6672 = vmatpush1.msra.mxu0 0.0
  %6673 = vmatprep.subr.mxu0 0.0
  %6674 = vmatpush1.msra.mxu0 0.0
  %6675 = vmatprep.subr.mxu0 0.0
  %6676 = vmatpush1.msra.mxu0 0.0
  %6677 = vmatprep.subr.mxu0 0.0
  %6678 = vmatpush1.msra.mxu0 0.0
  %6679 = vmatprep.subr.mxu0 0.0
  %6680 = vmatpush1.msra.mxu0 0.0
  %6681 = vmatprep.subr.mxu0 0.0
  %6682 = vmatpush1.msra.mxu0 0.0
  %6683 = vmatprep.subr.mxu0 0.0
  %6684 = vmatpush1.msra.mxu0 0.0
  %6685 = vmatprep.subr.mxu0 0.0
  %6686 = vmatpush1.msra.mxu0 0.0
  %6687 = vmatprep.subr.mxu0 0.0
  %6688 = vmatpush1.msra.mxu0 0.0
  %6689 = vmatprep.subr.mxu0 0.0
  %6690 = vmatpush1.msra.mxu0 0.0
  %6691 = vmatprep.subr.mxu0 0.0
  %6692 = vmatpush1.msra.mxu0 0.0
  %6693 = vmatprep.subr.mxu0 0.0
  %6694 = vmatpush1.msra.mxu0 0.0
  %6695 = vmatprep.subr.mxu0 0.0
  %6696 = vmatpush1.msra.mxu0 0.0
  %6697 = vmatprep.subr.mxu0 0.0
  %6698 = vmatpush1.msra.mxu0 0.0
  %6699 = vmatprep.subr.mxu0 0.0
  %6700 = vmatpush1.msra.mxu0 0.0
  %6701 = vmatprep.subr.mxu0 0.0
  %6702 = vmatpush1.msra.mxu0 0.0
  %6703 = vmatprep.subr.mxu0 0.0
  %6704 = vmatpush1.msra.mxu0 0.0
  %6705 = vmatprep.subr.mxu0 0.0
  %6706 = vmatpush1.msra.mxu0 0.0
  %6707 = vmatprep.subr.mxu0 0.0
  %6708 = vmatpush1.msra.mxu0 0.0
  %6709 = vmatprep.subr.mxu0 0.0
  %6710 = vmatpush1.msra.mxu0 0.0
  %6711 = vmatprep.subr.mxu0 0.0
  %6712 = vmatpush1.msra.mxu0 0.0
  %6713 = vmatprep.subr.mxu0 0.0
  %6714 = vmatpush1.msra.mxu0 0.0
  %6715 = vmatprep.subr.mxu0 0.0
  %6716 = vmatpush1.msra.mxu0 0.0
  %6717 = vmatprep.mubr.f32.mxu0 0.0
  %6718 = vmatmul.mubr.f32.gmra.mrb[0].mxu0 %v6642
  %v6719 = vpop.f32.mrb[0].mxu0
  %v6720 = vadd.f32 %v6623, %v6719
  %v6721 = vpop.f32.mrb[0].mxu0
  %6722 = vmatprep.mubr.f32.mxu0 0.0
  %6723 = vmatmul.mubr.f32.gmra.mrb[0].mxu0 %v6645
  %v6724 = vpop.f32.mrb[0].mxu0
  %v6725 = vadd.f32 %v6628, %v6724
  %v6726 = vpop.f32.mrb[0].mxu0
  %6727 = vmatprep.mubr.f32.mxu0 0.0
  %6728 = vmatmul.mubr.f32.gmra.mrb[0].mxu0 %v6648
  %v6729 = vpop.f32.mrb[0].mxu0
  %v6730 = vadd.f32 %v6633, %v6729
  %v6731 = vpop.f32.mrb[0].mxu0
  %6732 = vmatprep.mubr.f32.mxu0 0.0
  %6733 = vmatmul.mubr.f32.gmra.mrb[0].mxu0 %v6651
  %v6734 = vpop.f32.mrb[0].mxu0
  %v6735 = vadd.f32 %v6638, %v6734
  %v6736 = vpop.f32.mrb[0].mxu0
  %6737 = vdwg.mxu0
  %s6738 = scalar_lea.vmem %s53, 64
  %v6739 = vld [vmem:[%s6738] sm:$0xff]
  %v6740 = vld [vmem:[%s6738 + $0x8] sm:$0xff]
  %v6741 = vld [vmem:[%s6738 + $0x10] sm:$0xff]
  %v6742 = vld [vmem:[%s6738 + $0x18] sm:$0xff]
  %6743 = vrot.lane.b32.xlu0 %v6465, 126
  %v6744 = vpop.permute.xlu0 %6743
  %6745 = vrot.lane.b32.xlu0 %v6470, 126
  %v6746 = vpop.permute.xlu0 %6745
  %6747 = vrot.lane.b32.xlu0 %v6475, 126
  %v6748 = vpop.permute.xlu0 %6747
  %6749 = vrot.lane.b32.xlu0 %v6480, 126
  %v6750 = vpop.permute.xlu0 %6749
  %6751 = vrot.lane.b32.xlu0 %v6485, 126
  %v6752 = vpop.permute.xlu0 %6751
  %6753 = vrot.lane.b32.xlu0 %v6490, 126
  %v6754 = vpop.permute.xlu0 %6753
  %6755 = vrot.lane.b32.xlu0 %v6495, 126
  %v6756 = vpop.permute.xlu0 %6755
  %6757 = vrot.lane.b32.xlu0 %v6500, 126
  %v6758 = vpop.permute.xlu0 %6757
  %v6768 = vsel %vm3875, %v6739, 0
  %v6771 = vsel %vm3875, %v6740, 0
  %v6774 = vsel %vm3875, %v6741, 0
  %v6777 = vsel %vm3875, %v6742, 0
  %6779 = vmatprep.subr.mxu0 0.0
  %6780 = vmatpush1.msra.mxu0 %v6744
  %6781 = vmatprep.subr.mxu0 0.0
  %6782 = vmatpush1.msra.mxu0 %v6746
  %6783 = vmatprep.subr.mxu0 0.0
  %6784 = vmatpush1.msra.mxu0 %v6748
  %6785 = vmatprep.subr.mxu0 0.0
  %6786 = vmatpush1.msra.mxu0 %v6750
  %6787 = vmatprep.subr.mxu0 0.0
  %6788 = vmatpush1.msra.mxu0 %v6752
  %6789 = vmatprep.subr.mxu0 0.0
  %6790 = vmatpush1.msra.mxu0 %v6754
  %6791 = vmatprep.subr.mxu0 0.0
  %6792 = vmatpush1.msra.mxu0 %v6756
  %6793 = vmatprep.subr.mxu0 0.0
  %6794 = vmatpush1.msra.mxu0 %v6758
  %6795 = vmatprep.subr.mxu0 0.0
  %6796 = vmatpush1.msra.mxu0 0.0
  %6797 = vmatprep.subr.mxu0 0.0
  %6798 = vmatpush1.msra.mxu0 0.0
  %6799 = vmatprep.subr.mxu0 0.0
  %6800 = vmatpush1.msra.mxu0 0.0
  %6801 = vmatprep.subr.mxu0 0.0
  %6802 = vmatpush1.msra.mxu0 0.0
  %6803 = vmatprep.subr.mxu0 0.0
  %6804 = vmatpush1.msra.mxu0 0.0
  %6805 = vmatprep.subr.mxu0 0.0
  %6806 = vmatpush1.msra.mxu0 0.0
  %6807 = vmatprep.subr.mxu0 0.0
  %6808 = vmatpush1.msra.mxu0 0.0
  %6809 = vmatprep.subr.mxu0 0.0
  %6810 = vmatpush1.msra.mxu0 0.0
  %6811 = vmatprep.subr.mxu0 0.0
  %6812 = vmatpush1.msra.mxu0 0.0
  %6813 = vmatprep.subr.mxu0 0.0
  %6814 = vmatpush1.msra.mxu0 0.0
  %6815 = vmatprep.subr.mxu0 0.0
  %6816 = vmatpush1.msra.mxu0 0.0
  %6817 = vmatprep.subr.mxu0 0.0
  %6818 = vmatpush1.msra.mxu0 0.0
  %6819 = vmatprep.subr.mxu0 0.0
  %6820 = vmatpush1.msra.mxu0 0.0
  %6821 = vmatprep.subr.mxu0 0.0
  %6822 = vmatpush1.msra.mxu0 0.0
  %6823 = vmatprep.subr.mxu0 0.0
  %6824 = vmatpush1.msra.mxu0 0.0
  %6825 = vmatprep.subr.mxu0 0.0
  %6826 = vmatpush1.msra.mxu0 0.0
  %6827 = vmatprep.subr.mxu0 0.0
  %6828 = vmatpush1.msra.mxu0 0.0
  %6829 = vmatprep.subr.mxu0 0.0
  %6830 = vmatpush1.msra.mxu0 0.0
  %6831 = vmatprep.subr.mxu0 0.0
  %6832 = vmatpush1.msra.mxu0 0.0
  %6833 = vmatprep.subr.mxu0 0.0
  %6834 = vmatpush1.msra.mxu0 0.0
  %6835 = vmatprep.subr.mxu0 0.0
  %6836 = vmatpush1.msra.mxu0 0.0
  %6837 = vmatprep.subr.mxu0 0.0
  %6838 = vmatpush1.msra.mxu0 0.0
  %6839 = vmatprep.subr.mxu0 0.0
  %6840 = vmatpush1.msra.mxu0 0.0
  %6841 = vmatprep.subr.mxu0 0.0
  %6842 = vmatpush1.msra.mxu0 0.0
  %6843 = vmatprep.mubr.f32.mxu0 0.0
  %6844 = vmatmul.mubr.f32.gmra.mrb[0].mxu0 %v6768
  %v6845 = vpop.f32.mrb[0].mxu0
  %v6846 = vadd.f32 0.0, %v6845
  %v6847 = vpop.f32.mrb[0].mxu0
  %6848 = vmatprep.mubr.f32.mxu0 0.0
  %6849 = vmatmul.mubr.f32.gmra.mrb[0].mxu0 %v6771
  %v6850 = vpop.f32.mrb[0].mxu0
  %v6851 = vadd.f32 0.0, %v6850
  %v6852 = vpop.f32.mrb[0].mxu0
  %6853 = vmatprep.mubr.f32.mxu0 0.0
  %6854 = vmatmul.mubr.f32.gmra.mrb[0].mxu0 %v6774
  %v6855 = vpop.f32.mrb[0].mxu0
  %v6856 = vadd.f32 0.0, %v6855
  %v6857 = vpop.f32.mrb[0].mxu0
  %6858 = vmatprep.mubr.f32.mxu0 0.0
  %6859 = vmatmul.mubr.f32.gmra.mrb[0].mxu0 %v6777
  %v6860 = vpop.f32.mrb[0].mxu0
  %v6861 = vadd.f32 0.0, %v6860
  %v6862 = vpop.f32.mrb[0].mxu0
  %6863 = vdwg.mxu0
  %v6864 = vadd.f32 %v6720, %v6846
  %v6865 = vadd.f32 %v6725, %v6851
  %v6866 = vadd.f32 %v6730, %v6856
  %v6867 = vadd.f32 %v6735, %v6861
  %s6868 = scalar_lea.vmem %s53, 96
  %v6869 = vld [vmem:[%s6868] sm:$0xff]
  %v6870 = vld [vmem:[%s6868 + $0x8] sm:$0xff]
  %v6871 = vld [vmem:[%s6868 + $0x10] sm:$0xff]
  %v6872 = vld [vmem:[%s6868 + $0x18] sm:$0xff]
  %6873 = vrot.lane.b32.xlu0 %v6465, 125
  %v6874 = vpop.permute.xlu0 %6873
  %6875 = vrot.lane.b32.xlu0 %v6470, 125
  %v6876 = vpop.permute.xlu0 %6875
  %6877 = vrot.lane.b32.xlu0 %v6475, 125
  %v6878 = vpop.permute.xlu0 %6877
  %6879 = vrot.lane.b32.xlu0 %v6480, 125
  %v6880 = vpop.permute.xlu0 %6879
  %6881 = vrot.lane.b32.xlu0 %v6485, 125
  %v6882 = vpop.permute.xlu0 %6881
  %6883 = vrot.lane.b32.xlu0 %v6490, 125
  %v6884 = vpop.permute.xlu0 %6883
  %6885 = vrot.lane.b32.xlu0 %v6495, 125
  %v6886 = vpop.permute.xlu0 %6885
  %6887 = vrot.lane.b32.xlu0 %v6500, 125
  %v6888 = vpop.permute.xlu0 %6887
  %v6898 = vsel %vm3875, %v6869, 0
  %v6901 = vsel %vm3875, %v6870, 0
  %v6904 = vsel %vm3875, %v6871, 0
  %v6907 = vsel %vm3875, %v6872, 0
  %6909 = vmatprep.subr.mxu0 0.0
  %6910 = vmatpush1.msra.mxu0 %v6874
  %6911 = vmatprep.subr.mxu0 0.0
  %6912 = vmatpush1.msra.mxu0 %v6876
  %6913 = vmatprep.subr.mxu0 0.0
  %6914 = vmatpush1.msra.mxu0 %v6878
  %6915 = vmatprep.subr.mxu0 0.0
  %6916 = vmatpush1.msra.mxu0 %v6880
  %6917 = vmatprep.subr.mxu0 0.0
  %6918 = vmatpush1.msra.mxu0 %v6882
  %6919 = vmatprep.subr.mxu0 0.0
  %6920 = vmatpush1.msra.mxu0 %v6884
  %6921 = vmatprep.subr.mxu0 0.0
  %6922 = vmatpush1.msra.mxu0 %v6886
  %6923 = vmatprep.subr.mxu0 0.0
  %6924 = vmatpush1.msra.mxu0 %v6888
  %6925 = vmatprep.subr.mxu0 0.0
  %6926 = vmatpush1.msra.mxu0 0.0
  %6927 = vmatprep.subr.mxu0 0.0
  %6928 = vmatpush1.msra.mxu0 0.0
  %6929 = vmatprep.subr.mxu0 0.0
  %6930 = vmatpush1.msra.mxu0 0.0
  %6931 = vmatprep.subr.mxu0 0.0
  %6932 = vmatpush1.msra.mxu0 0.0
  %6933 = vmatprep.subr.mxu0 0.0
  %6934 = vmatpush1.msra.mxu0 0.0
  %6935 = vmatprep.subr.mxu0 0.0
  %6936 = vmatpush1.msra.mxu0 0.0
  %6937 = vmatprep.subr.mxu0 0.0
  %6938 = vmatpush1.msra.mxu0 0.0
  %6939 = vmatprep.subr.mxu0 0.0
  %6940 = vmatpush1.msra.mxu0 0.0
  %6941 = vmatprep.subr.mxu0 0.0
  %6942 = vmatpush1.msra.mxu0 0.0
  %6943 = vmatprep.subr.mxu0 0.0
  %6944 = vmatpush1.msra.mxu0 0.0
  %6945 = vmatprep.subr.mxu0 0.0
  %6946 = vmatpush1.msra.mxu0 0.0
  %6947 = vmatprep.subr.mxu0 0.0
  %6948 = vmatpush1.msra.mxu0 0.0
  %6949 = vmatprep.subr.mxu0 0.0
  %6950 = vmatpush1.msra.mxu0 0.0
  %6951 = vmatprep.subr.mxu0 0.0
  %6952 = vmatpush1.msra.mxu0 0.0
  %6953 = vmatprep.subr.mxu0 0.0
  %6954 = vmatpush1.msra.mxu0 0.0
  %6955 = vmatprep.subr.mxu0 0.0
  %6956 = vmatpush1.msra.mxu0 0.0
  %6957 = vmatprep.subr.mxu0 0.0
  %6958 = vmatpush1.msra.mxu0 0.0
  %6959 = vmatprep.subr.mxu0 0.0
  %6960 = vmatpush1.msra.mxu0 0.0
  %6961 = vmatprep.subr.mxu0 0.0
  %6962 = vmatpush1.msra.mxu0 0.0
  %6963 = vmatprep.subr.mxu0 0.0
  %6964 = vmatpush1.msra.mxu0 0.0
  %6965 = vmatprep.subr.mxu0 0.0
  %6966 = vmatpush1.msra.mxu0 0.0
  %6967 = vmatprep.subr.mxu0 0.0
  %6968 = vmatpush1.msra.mxu0 0.0
  %6969 = vmatprep.subr.mxu0 0.0
  %6970 = vmatpush1.msra.mxu0 0.0
  %6971 = vmatprep.subr.mxu0 0.0
  %6972 = vmatpush1.msra.mxu0 0.0
  %6973 = vmatprep.mubr.f32.mxu0 0.0
  %6974 = vmatmul.mubr.f32.gmra.mrb[0].mxu0 %v6898
  %v6975 = vpop.f32.mrb[0].mxu0
  %v6976 = vadd.f32 0.0, %v6975
  %v6977 = vpop.f32.mrb[0].mxu0
  %6978 = vmatprep.mubr.f32.mxu0 0.0
  %6979 = vmatmul.mubr.f32.gmra.mrb[0].mxu0 %v6901
  %v6980 = vpop.f32.mrb[0].mxu0
  %v6981 = vadd.f32 0.0, %v6980
  %v6982 = vpop.f32.mrb[0].mxu0
  %6983 = vmatprep.mubr.f32.mxu0 0.0
  %6984 = vmatmul.mubr.f32.gmra.mrb[0].mxu0 %v6904
  %v6985 = vpop.f32.mrb[0].mxu0
  %v6986 = vadd.f32 0.0, %v6985
  %v6987 = vpop.f32.mrb[0].mxu0
  %6988 = vmatprep.mubr.f32.mxu0 0.0
  %6989 = vmatmul.mubr.f32.gmra.mrb[0].mxu0 %v6907
  %v6990 = vpop.f32.mrb[0].mxu0
  %v6991 = vadd.f32 0.0, %v6990
  %v6992 = vpop.f32.mrb[0].mxu0
  %6993 = vdwg.mxu0
  %v6994 = vadd.f32 %v6864, %v6976
  %v6995 = vadd.f32 %v6865, %v6981
  %v6996 = vadd.f32 %v6866, %v6986
  %v6997 = vadd.f32 %v6867, %v6991
  %s6998 = scalar_lea.vmem %s53, 128
  %v6999 = vld [vmem:[%s6998] sm:$0xff]
  %v7000 = vld [vmem:[%s6998 + $0x8] sm:$0xff]
  %v7001 = vld [vmem:[%s6998 + $0x10] sm:$0xff]
  %v7002 = vld [vmem:[%s6998 + $0x18] sm:$0xff]
  %7003 = vrot.lane.b32.xlu0 %v6465, 124
  %v7004 = vpop.permute.xlu0 %7003
  %7005 = vrot.lane.b32.xlu0 %v6470, 124
  %v7006 = vpop.permute.xlu0 %7005
  %7007 = vrot.lane.b32.xlu0 %v6475, 124
  %v7008 = vpop.permute.xlu0 %7007
  %7009 = vrot.lane.b32.xlu0 %v6480, 124
  %v7010 = vpop.permute.xlu0 %7009
  %7011 = vrot.lane.b32.xlu0 %v6485, 124
  %v7012 = vpop.permute.xlu0 %7011
  %7013 = vrot.lane.b32.xlu0 %v6490, 124
  %v7014 = vpop.permute.xlu0 %7013
  %7015 = vrot.lane.b32.xlu0 %v6495, 124
  %v7016 = vpop.permute.xlu0 %7015
  %7017 = vrot.lane.b32.xlu0 %v6500, 124
  %v7018 = vpop.permute.xlu0 %7017
  %v7028 = vsel %vm3875, %v6999, 0
  %v7031 = vsel %vm3875, %v7000, 0
  %v7034 = vsel %vm3875, %v7001, 0
  %v7037 = vsel %vm3875, %v7002, 0
  %7039 = vmatprep.subr.mxu0 0.0
  %7040 = vmatpush1.msra.mxu0 %v7004
  %7041 = vmatprep.subr.mxu0 0.0
  %7042 = vmatpush1.msra.mxu0 %v7006
  %7043 = vmatprep.subr.mxu0 0.0
  %7044 = vmatpush1.msra.mxu0 %v7008
  %7045 = vmatprep.subr.mxu0 0.0
  %7046 = vmatpush1.msra.mxu0 %v7010
  %7047 = vmatprep.subr.mxu0 0.0
  %7048 = vmatpush1.msra.mxu0 %v7012
  %7049 = vmatprep.subr.mxu0 0.0
  %7050 = vmatpush1.msra.mxu0 %v7014
  %7051 = vmatprep.subr.mxu0 0.0
  %7052 = vmatpush1.msra.mxu0 %v7016
  %7053 = vmatprep.subr.mxu0 0.0
  %7054 = vmatpush1.msra.mxu0 %v7018
  %7055 = vmatprep.subr.mxu0 0.0
  %7056 = vmatpush1.msra.mxu0 0.0
  %7057 = vmatprep.subr.mxu0 0.0
  %7058 = vmatpush1.msra.mxu0 0.0
  %7059 = vmatprep.subr.mxu0 0.0
  %7060 = vmatpush1.msra.mxu0 0.0
  %7061 = vmatprep.subr.mxu0 0.0
  %7062 = vmatpush1.msra.mxu0 0.0
  %7063 = vmatprep.subr.mxu0 0.0
  %7064 = vmatpush1.msra.mxu0 0.0
  %7065 = vmatprep.subr.mxu0 0.0
  %7066 = vmatpush1.msra.mxu0 0.0
  %7067 = vmatprep.subr.mxu0 0.0
  %7068 = vmatpush1.msra.mxu0 0.0
  %7069 = vmatprep.subr.mxu0 0.0
  %7070 = vmatpush1.msra.mxu0 0.0
  %7071 = vmatprep.subr.mxu0 0.0
  %7072 = vmatpush1.msra.mxu0 0.0
  %7073 = vmatprep.subr.mxu0 0.0
  %7074 = vmatpush1.msra.mxu0 0.0
  %7075 = vmatprep.subr.mxu0 0.0
  %7076 = vmatpush1.msra.mxu0 0.0
  %7077 = vmatprep.subr.mxu0 0.0
  %7078 = vmatpush1.msra.mxu0 0.0
  %7079 = vmatprep.subr.mxu0 0.0
  %7080 = vmatpush1.msra.mxu0 0.0
  %7081 = vmatprep.subr.mxu0 0.0
  %7082 = vmatpush1.msra.mxu0 0.0
  %7083 = vmatprep.subr.mxu0 0.0
  %7084 = vmatpush1.msra.mxu0 0.0
  %7085 = vmatprep.subr.mxu0 0.0
  %7086 = vmatpush1.msra.mxu0 0.0
  %7087 = vmatprep.subr.mxu0 0.0
  %7088 = vmatpush1.msra.mxu0 0.0
  %7089 = vmatprep.subr.mxu0 0.0
  %7090 = vmatpush1.msra.mxu0 0.0
  %7091 = vmatprep.subr.mxu0 0.0
  %7092 = vmatpush1.msra.mxu0 0.0
  %7093 = vmatprep.subr.mxu0 0.0
  %7094 = vmatpush1.msra.mxu0 0.0
  %7095 = vmatprep.subr.mxu0 0.0
  %7096 = vmatpush1.msra.mxu0 0.0
  %7097 = vmatprep.subr.mxu0 0.0
  %7098 = vmatpush1.msra.mxu0 0.0
  %7099 = vmatprep.subr.mxu0 0.0
  %7100 = vmatpush1.msra.mxu0 0.0
  %7101 = vmatprep.subr.mxu0 0.0
  %7102 = vmatpush1.msra.mxu0 0.0
  %7103 = vmatprep.mubr.f32.mxu0 0.0
  %7104 = vmatmul.mubr.f32.gmra.mrb[0].mxu0 %v7028
  %v7105 = vpop.f32.mrb[0].mxu0
  %v7106 = vadd.f32 0.0, %v7105
  %v7107 = vpop.f32.mrb[0].mxu0
  %7108 = vmatprep.mubr.f32.mxu0 0.0
  %7109 = vmatmul.mubr.f32.gmra.mrb[0].mxu0 %v7031
  %v7110 = vpop.f32.mrb[0].mxu0
  %v7111 = vadd.f32 0.0, %v7110
  %v7112 = vpop.f32.mrb[0].mxu0
  %7113 = vmatprep.mubr.f32.mxu0 0.0
  %7114 = vmatmul.mubr.f32.gmra.mrb[0].mxu0 %v7034
  %v7115 = vpop.f32.mrb[0].mxu0
  %v7116 = vadd.f32 0.0, %v7115
  %v7117 = vpop.f32.mrb[0].mxu0
  %7118 = vmatprep.mubr.f32.mxu0 0.0
  %7119 = vmatmul.mubr.f32.gmra.mrb[0].mxu0 %v7037
  %v7120 = vpop.f32.mrb[0].mxu0
  %v7121 = vadd.f32 0.0, %v7120
  %v7122 = vpop.f32.mrb[0].mxu0
  %7123 = vdwg.mxu0
  %v7124 = vadd.f32 %v6994, %v7106
  %v7125 = vadd.f32 %v6995, %v7111
  %v7126 = vadd.f32 %v6996, %v7116
  %v7127 = vadd.f32 %v6997, %v7121
  %s7128 = scalar_lea.vmem %s53, 160
  %v7129 = vld [vmem:[%s7128] sm:$0xff]
  %v7130 = vld [vmem:[%s7128 + $0x8] sm:$0xff]
  %v7131 = vld [vmem:[%s7128 + $0x10] sm:$0xff]
  %v7132 = vld [vmem:[%s7128 + $0x18] sm:$0xff]
  %7133 = vrot.lane.b32.xlu0 %v6465, 123
  %v7134 = vpop.permute.xlu0 %7133
  %7135 = vrot.lane.b32.xlu0 %v6470, 123
  %v7136 = vpop.permute.xlu0 %7135
  %7137 = vrot.lane.b32.xlu0 %v6475, 123
  %v7138 = vpop.permute.xlu0 %7137
  %7139 = vrot.lane.b32.xlu0 %v6480, 123
  %v7140 = vpop.permute.xlu0 %7139
  %7141 = vrot.lane.b32.xlu0 %v6485, 123
  %v7142 = vpop.permute.xlu0 %7141
  %7143 = vrot.lane.b32.xlu0 %v6490, 123
  %v7144 = vpop.permute.xlu0 %7143
  %7145 = vrot.lane.b32.xlu0 %v6495, 123
  %v7146 = vpop.permute.xlu0 %7145
  %7147 = vrot.lane.b32.xlu0 %v6500, 123
  %v7148 = vpop.permute.xlu0 %7147
  %v7158 = vsel %vm3875, %v7129, 0
  %v7161 = vsel %vm3875, %v7130, 0
  %v7164 = vsel %vm3875, %v7131, 0
  %v7167 = vsel %vm3875, %v7132, 0
  %7169 = vmatprep.subr.mxu0 0.0
  %7170 = vmatpush1.msra.mxu0 %v7134
  %7171 = vmatprep.subr.mxu0 0.0
  %7172 = vmatpush1.msra.mxu0 %v7136
  %7173 = vmatprep.subr.mxu0 0.0
  %7174 = vmatpush1.msra.mxu0 %v7138
  %7175 = vmatprep.subr.mxu0 0.0
  %7176 = vmatpush1.msra.mxu0 %v7140
  %7177 = vmatprep.subr.mxu0 0.0
  %7178 = vmatpush1.msra.mxu0 %v7142
  %7179 = vmatprep.subr.mxu0 0.0
  %7180 = vmatpush1.msra.mxu0 %v7144
  %7181 = vmatprep.subr.mxu0 0.0
  %7182 = vmatpush1.msra.mxu0 %v7146
  %7183 = vmatprep.subr.mxu0 0.0
  %7184 = vmatpush1.msra.mxu0 %v7148
  %7185 = vmatprep.subr.mxu0 0.0
  %7186 = vmatpush1.msra.mxu0 0.0
  %7187 = vmatprep.subr.mxu0 0.0
  %7188 = vmatpush1.msra.mxu0 0.0
  %7189 = vmatprep.subr.mxu0 0.0
  %7190 = vmatpush1.msra.mxu0 0.0
  %7191 = vmatprep.subr.mxu0 0.0
  %7192 = vmatpush1.msra.mxu0 0.0
  %7193 = vmatprep.subr.mxu0 0.0
  %7194 = vmatpush1.msra.mxu0 0.0
  %7195 = vmatprep.subr.mxu0 0.0
  %7196 = vmatpush1.msra.mxu0 0.0
  %7197 = vmatprep.subr.mxu0 0.0
  %7198 = vmatpush1.msra.mxu0 0.0
  %7199 = vmatprep.subr.mxu0 0.0
  %7200 = vmatpush1.msra.mxu0 0.0
  %7201 = vmatprep.subr.mxu0 0.0
  %7202 = vmatpush1.msra.mxu0 0.0
  %7203 = vmatprep.subr.mxu0 0.0
  %7204 = vmatpush1.msra.mxu0 0.0
  %7205 = vmatprep.subr.mxu0 0.0
  %7206 = vmatpush1.msra.mxu0 0.0
  %7207 = vmatprep.subr.mxu0 0.0
  %7208 = vmatpush1.msra.mxu0 0.0
  %7209 = vmatprep.subr.mxu0 0.0
  %7210 = vmatpush1.msra.mxu0 0.0
  %7211 = vmatprep.subr.mxu0 0.0
  %7212 = vmatpush1.msra.mxu0 0.0
  %7213 = vmatprep.subr.mxu0 0.0
  %7214 = vmatpush1.msra.mxu0 0.0
  %7215 = vmatprep.subr.mxu0 0.0
  %7216 = vmatpush1.msra.mxu0 0.0
  %7217 = vmatprep.subr.mxu0 0.0
  %7218 = vmatpush1.msra.mxu0 0.0
  %7219 = vmatprep.subr.mxu0 0.0
  %7220 = vmatpush1.msra.mxu0 0.0
  %7221 = vmatprep.subr.mxu0 0.0
  %7222 = vmatpush1.msra.mxu0 0.0
  %7223 = vmatprep.subr.mxu0 0.0
  %7224 = vmatpush1.msra.mxu0 0.0
  %7225 = vmatprep.subr.mxu0 0.0
  %7226 = vmatpush1.msra.mxu0 0.0
  %7227 = vmatprep.subr.mxu0 0.0
  %7228 = vmatpush1.msra.mxu0 0.0
  %7229 = vmatprep.subr.mxu0 0.0
  %7230 = vmatpush1.msra.mxu0 0.0
  %7231 = vmatprep.subr.mxu0 0.0
  %7232 = vmatpush1.msra.mxu0 0.0
  %7233 = vmatprep.mubr.f32.mxu0 0.0
  %7234 = vmatmul.mubr.f32.gmra.mrb[0].mxu0 %v7158
  %v7235 = vpop.f32.mrb[0].mxu0
  %v7236 = vadd.f32 0.0, %v7235
  %v7237 = vpop.f32.mrb[0].mxu0
  %7238 = vmatprep.mubr.f32.mxu0 0.0
  %7239 = vmatmul.mubr.f32.gmra.mrb[0].mxu0 %v7161
  %v7240 = vpop.f32.mrb[0].mxu0
  %v7241 = vadd.f32 0.0, %v7240
  %v7242 = vpop.f32.mrb[0].mxu0
  %7243 = vmatprep.mubr.f32.mxu0 0.0
  %7244 = vmatmul.mubr.f32.gmra.mrb[0].mxu0 %v7164
  %v7245 = vpop.f32.mrb[0].mxu0
  %v7246 = vadd.f32 0.0, %v7245
  %v7247 = vpop.f32.mrb[0].mxu0
  %7248 = vmatprep.mubr.f32.mxu0 0.0
  %7249 = vmatmul.mubr.f32.gmra.mrb[0].mxu0 %v7167
  %v7250 = vpop.f32.mrb[0].mxu0
  %v7251 = vadd.f32 0.0, %v7250
  %v7252 = vpop.f32.mrb[0].mxu0
  %7253 = vdwg.mxu0
  %v7254 = vadd.f32 %v7124, %v7236
  %v7255 = vadd.f32 %v7125, %v7241
  %v7256 = vadd.f32 %v7126, %v7246
  %v7257 = vadd.f32 %v7127, %v7251
  %s7258 = scalar_lea.vmem %s53, 192
  %v7259 = vld [vmem:[%s7258] sm:$0xff]
  %v7260 = vld [vmem:[%s7258 + $0x8] sm:$0xff]
  %v7261 = vld [vmem:[%s7258 + $0x10] sm:$0xff]
  %v7262 = vld [vmem:[%s7258 + $0x18] sm:$0xff]
  %7263 = vrot.lane.b32.xlu0 %v6465, 122
  %v7264 = vpop.permute.xlu0 %7263
  %7265 = vrot.lane.b32.xlu0 %v6470, 122
  %v7266 = vpop.permute.xlu0 %7265
  %7267 = vrot.lane.b32.xlu0 %v6475, 122
  %v7268 = vpop.permute.xlu0 %7267
  %7269 = vrot.lane.b32.xlu0 %v6480, 122
  %v7270 = vpop.permute.xlu0 %7269
  %7271 = vrot.lane.b32.xlu0 %v6485, 122
  %v7272 = vpop.permute.xlu0 %7271
  %7273 = vrot.lane.b32.xlu0 %v6490, 122
  %v7274 = vpop.permute.xlu0 %7273
  %7275 = vrot.lane.b32.xlu0 %v6495, 122
  %v7276 = vpop.permute.xlu0 %7275
  %7277 = vrot.lane.b32.xlu0 %v6500, 122
  %v7278 = vpop.permute.xlu0 %7277
  %v7288 = vsel %vm3875, %v7259, 0
  %v7291 = vsel %vm3875, %v7260, 0
  %v7294 = vsel %vm3875, %v7261, 0
  %v7297 = vsel %vm3875, %v7262, 0
  %7299 = vmatprep.subr.mxu0 0.0
  %7300 = vmatpush1.msra.mxu0 %v7264
  %7301 = vmatprep.subr.mxu0 0.0
  %7302 = vmatpush1.msra.mxu0 %v7266
  %7303 = vmatprep.subr.mxu0 0.0
  %7304 = vmatpush1.msra.mxu0 %v7268
  %7305 = vmatprep.subr.mxu0 0.0
  %7306 = vmatpush1.msra.mxu0 %v7270
  %7307 = vmatprep.subr.mxu0 0.0
  %7308 = vmatpush1.msra.mxu0 %v7272
  %7309 = vmatprep.subr.mxu0 0.0
  %7310 = vmatpush1.msra.mxu0 %v7274
  %7311 = vmatprep.subr.mxu0 0.0
  %7312 = vmatpush1.msra.mxu0 %v7276
  %7313 = vmatprep.subr.mxu0 0.0
  %7314 = vmatpush1.msra.mxu0 %v7278
  %7315 = vmatprep.subr.mxu0 0.0
  %7316 = vmatpush1.msra.mxu0 0.0
  %7317 = vmatprep.subr.mxu0 0.0
  %7318 = vmatpush1.msra.mxu0 0.0
  %7319 = vmatprep.subr.mxu0 0.0
  %7320 = vmatpush1.msra.mxu0 0.0
  %7321 = vmatprep.subr.mxu0 0.0
  %7322 = vmatpush1.msra.mxu0 0.0
  %7323 = vmatprep.subr.mxu0 0.0
  %7324 = vmatpush1.msra.mxu0 0.0
  %7325 = vmatprep.subr.mxu0 0.0
  %7326 = vmatpush1.msra.mxu0 0.0
  %7327 = vmatprep.subr.mxu0 0.0
  %7328 = vmatpush1.msra.mxu0 0.0
  %7329 = vmatprep.subr.mxu0 0.0
  %7330 = vmatpush1.msra.mxu0 0.0
  %7331 = vmatprep.subr.mxu0 0.0
  %7332 = vmatpush1.msra.mxu0 0.0
  %7333 = vmatprep.subr.mxu0 0.0
  %7334 = vmatpush1.msra.mxu0 0.0
  %7335 = vmatprep.subr.mxu0 0.0
  %7336 = vmatpush1.msra.mxu0 0.0
  %7337 = vmatprep.subr.mxu0 0.0
  %7338 = vmatpush1.msra.mxu0 0.0
  %7339 = vmatprep.subr.mxu0 0.0
  %7340 = vmatpush1.msra.mxu0 0.0
  %7341 = vmatprep.subr.mxu0 0.0
  %7342 = vmatpush1.msra.mxu0 0.0
  %7343 = vmatprep.subr.mxu0 0.0
  %7344 = vmatpush1.msra.mxu0 0.0
  %7345 = vmatprep.subr.mxu0 0.0
  %7346 = vmatpush1.msra.mxu0 0.0
  %7347 = vmatprep.subr.mxu0 0.0
  %7348 = vmatpush1.msra.mxu0 0.0
  %7349 = vmatprep.subr.mxu0 0.0
  %7350 = vmatpush1.msra.mxu0 0.0
  %7351 = vmatprep.subr.mxu0 0.0
  %7352 = vmatpush1.msra.mxu0 0.0
  %7353 = vmatprep.subr.mxu0 0.0
  %7354 = vmatpush1.msra.mxu0 0.0
  %7355 = vmatprep.subr.mxu0 0.0
  %7356 = vmatpush1.msra.mxu0 0.0
  %7357 = vmatprep.subr.mxu0 0.0
  %7358 = vmatpush1.msra.mxu0 0.0
  %7359 = vmatprep.subr.mxu0 0.0
  %7360 = vmatpush1.msra.mxu0 0.0
  %7361 = vmatprep.subr.mxu0 0.0
  %7362 = vmatpush1.msra.mxu0 0.0
  %7363 = vmatprep.mubr.f32.mxu0 0.0
  %7364 = vmatmul.mubr.f32.gmra.mrb[0].mxu0 %v7288
  %v7365 = vpop.f32.mrb[0].mxu0
  %v7366 = vadd.f32 0.0, %v7365
  %v7367 = vpop.f32.mrb[0].mxu0
  %7368 = vmatprep.mubr.f32.mxu0 0.0
  %7369 = vmatmul.mubr.f32.gmra.mrb[0].mxu0 %v7291
  %v7370 = vpop.f32.mrb[0].mxu0
  %v7371 = vadd.f32 0.0, %v7370
  %v7372 = vpop.f32.mrb[0].mxu0
  %7373 = vmatprep.mubr.f32.mxu0 0.0
  %7374 = vmatmul.mubr.f32.gmra.mrb[0].mxu0 %v7294
  %v7375 = vpop.f32.mrb[0].mxu0
  %v7376 = vadd.f32 0.0, %v7375
  %v7377 = vpop.f32.mrb[0].mxu0
  %7378 = vmatprep.mubr.f32.mxu0 0.0
  %7379 = vmatmul.mubr.f32.gmra.mrb[0].mxu0 %v7297
  %v7380 = vpop.f32.mrb[0].mxu0
  %v7381 = vadd.f32 0.0, %v7380
  %v7382 = vpop.f32.mrb[0].mxu0
  %7383 = vdwg.mxu0
  %v7384 = vadd.f32 %v7254, %v7366
  %v7385 = vadd.f32 %v7255, %v7371
  %v7386 = vadd.f32 %v7256, %v7376
  %v7387 = vadd.f32 %v7257, %v7381
  %s7388 = scalar_lea.vmem %s53, 224
  %v7389 = vld [vmem:[%s7388] sm:$0xff]
  %v7390 = vld [vmem:[%s7388 + $0x8] sm:$0xff]
  %v7391 = vld [vmem:[%s7388 + $0x10] sm:$0xff]
  %v7392 = vld [vmem:[%s7388 + $0x18] sm:$0xff]
  %7393 = vrot.lane.b32.xlu0 %v6465, 121
  %v7394 = vpop.permute.xlu0 %7393
  %7395 = vrot.lane.b32.xlu0 %v6470, 121
  %v7396 = vpop.permute.xlu0 %7395
  %7397 = vrot.lane.b32.xlu0 %v6475, 121
  %v7398 = vpop.permute.xlu0 %7397
  %7399 = vrot.lane.b32.xlu0 %v6480, 121
  %v7400 = vpop.permute.xlu0 %7399
  %7401 = vrot.lane.b32.xlu0 %v6485, 121
  %v7402 = vpop.permute.xlu0 %7401
  %7403 = vrot.lane.b32.xlu0 %v6490, 121
  %v7404 = vpop.permute.xlu0 %7403
  %7405 = vrot.lane.b32.xlu0 %v6495, 121
  %v7406 = vpop.permute.xlu0 %7405
  %7407 = vrot.lane.b32.xlu0 %v6500, 121
  %v7408 = vpop.permute.xlu0 %7407
  %v7418 = vsel %vm3875, %v7389, 0
  %v7421 = vsel %vm3875, %v7390, 0
  %v7424 = vsel %vm3875, %v7391, 0
  %v7427 = vsel %vm3875, %v7392, 0
  %7429 = vmatprep.subr.mxu0 0.0
  %7430 = vmatpush1.msra.mxu0 %v7394
  %7431 = vmatprep.subr.mxu0 0.0
  %7432 = vmatpush1.msra.mxu0 %v7396
  %7433 = vmatprep.subr.mxu0 0.0
  %7434 = vmatpush1.msra.mxu0 %v7398
  %7435 = vmatprep.subr.mxu0 0.0
  %7436 = vmatpush1.msra.mxu0 %v7400
  %7437 = vmatprep.subr.mxu0 0.0
  %7438 = vmatpush1.msra.mxu0 %v7402
  %7439 = vmatprep.subr.mxu0 0.0
  %7440 = vmatpush1.msra.mxu0 %v7404
  %7441 = vmatprep.subr.mxu0 0.0
  %7442 = vmatpush1.msra.mxu0 %v7406
  %7443 = vmatprep.subr.mxu0 0.0
  %7444 = vmatpush1.msra.mxu0 %v7408
  %7445 = vmatprep.subr.mxu0 0.0
  %7446 = vmatpush1.msra.mxu0 0.0
  %7447 = vmatprep.subr.mxu0 0.0
  %7448 = vmatpush1.msra.mxu0 0.0
  %7449 = vmatprep.subr.mxu0 0.0
  %7450 = vmatpush1.msra.mxu0 0.0
  %7451 = vmatprep.subr.mxu0 0.0
  %7452 = vmatpush1.msra.mxu0 0.0
  %7453 = vmatprep.subr.mxu0 0.0
  %7454 = vmatpush1.msra.mxu0 0.0
  %7455 = vmatprep.subr.mxu0 0.0
  %7456 = vmatpush1.msra.mxu0 0.0
  %7457 = vmatprep.subr.mxu0 0.0
  %7458 = vmatpush1.msra.mxu0 0.0
  %7459 = vmatprep.subr.mxu0 0.0
  %7460 = vmatpush1.msra.mxu0 0.0
  %7461 = vmatprep.subr.mxu0 0.0
  %7462 = vmatpush1.msra.mxu0 0.0
  %7463 = vmatprep.subr.mxu0 0.0
  %7464 = vmatpush1.msra.mxu0 0.0
  %7465 = vmatprep.subr.mxu0 0.0
  %7466 = vmatpush1.msra.mxu0 0.0
  %7467 = vmatprep.subr.mxu0 0.0
  %7468 = vmatpush1.msra.mxu0 0.0
  %7469 = vmatprep.subr.mxu0 0.0
  %7470 = vmatpush1.msra.mxu0 0.0
  %7471 = vmatprep.subr.mxu0 0.0
  %7472 = vmatpush1.msra.mxu0 0.0
  %7473 = vmatprep.subr.mxu0 0.0
  %7474 = vmatpush1.msra.mxu0 0.0
  %7475 = vmatprep.subr.mxu0 0.0
  %7476 = vmatpush1.msra.mxu0 0.0
  %7477 = vmatprep.subr.mxu0 0.0
  %7478 = vmatpush1.msra.mxu0 0.0
  %7479 = vmatprep.subr.mxu0 0.0
  %7480 = vmatpush1.msra.mxu0 0.0
  %7481 = vmatprep.subr.mxu0 0.0
  %7482 = vmatpush1.msra.mxu0 0.0
  %7483 = vmatprep.subr.mxu0 0.0
  %7484 = vmatpush1.msra.mxu0 0.0
  %7485 = vmatprep.subr.mxu0 0.0
  %7486 = vmatpush1.msra.mxu0 0.0
  %7487 = vmatprep.subr.mxu0 0.0
  %7488 = vmatpush1.msra.mxu0 0.0
  %7489 = vmatprep.subr.mxu0 0.0
  %7490 = vmatpush1.msra.mxu0 0.0
  %7491 = vmatprep.subr.mxu0 0.0
  %7492 = vmatpush1.msra.mxu0 0.0
  %7493 = vmatprep.mubr.f32.mxu0 0.0
  %7494 = vmatmul.mubr.f32.gmra.mrb[0].mxu0 %v7418
  %v7495 = vpop.f32.mrb[0].mxu0
  %v7496 = vadd.f32 0.0, %v7495
  %v7497 = vpop.f32.mrb[0].mxu0
  %7498 = vmatprep.mubr.f32.mxu0 0.0
  %7499 = vmatmul.mubr.f32.gmra.mrb[0].mxu0 %v7421
  %v7500 = vpop.f32.mrb[0].mxu0
  %v7501 = vadd.f32 0.0, %v7500
  %v7502 = vpop.f32.mrb[0].mxu0
  %7503 = vmatprep.mubr.f32.mxu0 0.0
  %7504 = vmatmul.mubr.f32.gmra.mrb[0].mxu0 %v7424
  %v7505 = vpop.f32.mrb[0].mxu0
  %v7506 = vadd.f32 0.0, %v7505
  %v7507 = vpop.f32.mrb[0].mxu0
  %7508 = vmatprep.mubr.f32.mxu0 0.0
  %7509 = vmatmul.mubr.f32.gmra.mrb[0].mxu0 %v7427
  %v7510 = vpop.f32.mrb[0].mxu0
  %v7511 = vadd.f32 0.0, %v7510
  %v7512 = vpop.f32.mrb[0].mxu0
  %7513 = vdwg.mxu0
  %v7514 = vadd.f32 %v7384, %v7496
  %v7515 = vadd.f32 %v7385, %v7501
  %v7516 = vadd.f32 %v7386, %v7506
  %v7517 = vadd.f32 %v7387, %v7511
  %v7518 = vld [vmem:[%s63] sm:$0xff]
  %v7519 = vld [vmem:[%s63 + $0x8] sm:$0xff]
  %v7520 = vld [vmem:[%s63 + $0x10] sm:$0xff]
  %v7521 = vld [vmem:[%s63 + $0x18] sm:$0xff]
  %v7522 = vld [vmem:[%s63 + $0x20] sm:$0xff]
  %v7523 = vld [vmem:[%s63 + $0x28] sm:$0x7f]
  %7525 = vset.pattern.permute.xlu0 0
  %7526 = vperm.xlu0 %7525, %v6355
  %v7527 = vpop.permute.xlu0 %7526
  %7530 = vset.pattern.permute.xlu0 0
  %7531 = vperm.xlu0 %7530, %v6356
  %v7532 = vpop.permute.xlu0 %7531
  %7535 = vset.pattern.permute.xlu0 0
  %7536 = vperm.xlu0 %7535, %v6357
  %v7537 = vpop.permute.xlu0 %7536
  %7540 = vset.pattern.permute.xlu0 0
  %7541 = vperm.xlu0 %7540, %v6358
  %v7542 = vpop.permute.xlu0 %7541
  %vm7544 = vcmask 384000
  %v7546 = vsel %vm7544, %v7514, 0
  %v7549 = vsel %vm7544, %v7515, 0
  %v7552 = vsel %vm7544, %v7516, 0
  %v7555 = vsel %vm7544, %v7517, 0
  %vm7557 = vcmask 1046528
  %v7559 = vsel %vm7557, %v7523, 0
  %7561 = vmatprep.subr.mxu0 0.0
  %7562 = vmatpush1.msra.mxu0 %v7518
  %7563 = vmatprep.subr.mxu0 0.0
  %7564 = vmatpush1.msra.mxu0 %v7519
  %7565 = vmatprep.subr.mxu0 0.0
  %7566 = vmatpush1.msra.mxu0 %v7520
  %7567 = vmatprep.subr.mxu0 0.0
  %7568 = vmatpush1.msra.mxu0 %v7521
  %7569 = vmatprep.subr.mxu0 0.0
  %7570 = vmatpush1.msra.mxu0 %v7522
  %7571 = vmatprep.subr.mxu0 0.0
  %7572 = vmatpush1.msra.mxu0 %v7559
  %7573 = vmatprep.subr.mxu0 0.0
  %7574 = vmatpush1.msra.mxu0 0.0
  %7575 = vmatprep.subr.mxu0 0.0
  %7576 = vmatpush1.msra.mxu0 0.0
  %7577 = vmatprep.subr.mxu0 0.0
  %7578 = vmatpush1.msra.mxu0 0.0
  %7579 = vmatprep.subr.mxu0 0.0
  %7580 = vmatpush1.msra.mxu0 0.0
  %7581 = vmatprep.subr.mxu0 0.0
  %7582 = vmatpush1.msra.mxu0 0.0
  %7583 = vmatprep.subr.mxu0 0.0
  %7584 = vmatpush1.msra.mxu0 0.0
  %7585 = vmatprep.subr.mxu0 0.0
  %7586 = vmatpush1.msra.mxu0 0.0
  %7587 = vmatprep.subr.mxu0 0.0
  %7588 = vmatpush1.msra.mxu0 0.0
  %7589 = vmatprep.subr.mxu0 0.0
  %7590 = vmatpush1.msra.mxu0 0.0
  %7591 = vmatprep.subr.mxu0 0.0
  %7592 = vmatpush1.msra.mxu0 0.0
  %7593 = vmatprep.subr.mxu0 0.0
  %7594 = vmatpush1.msra.mxu0 0.0
  %7595 = vmatprep.subr.mxu0 0.0
  %7596 = vmatpush1.msra.mxu0 0.0
  %7597 = vmatprep.subr.mxu0 0.0
  %7598 = vmatpush1.msra.mxu0 0.0
  %7599 = vmatprep.subr.mxu0 0.0
  %7600 = vmatpush1.msra.mxu0 0.0
  %7601 = vmatprep.subr.mxu0 0.0
  %7602 = vmatpush1.msra.mxu0 0.0
  %7603 = vmatprep.subr.mxu0 0.0
  %7604 = vmatpush1.msra.mxu0 0.0
  %7605 = vmatprep.subr.mxu0 0.0
  %7606 = vmatpush1.msra.mxu0 0.0
  %7607 = vmatprep.subr.mxu0 0.0
  %7608 = vmatpush1.msra.mxu0 0.0
  %7609 = vmatprep.subr.mxu0 0.0
  %7610 = vmatpush1.msra.mxu0 0.0
  %7611 = vmatprep.subr.mxu0 0.0
  %7612 = vmatpush1.msra.mxu0 0.0
  %7613 = vmatprep.subr.mxu0 0.0
  %7614 = vmatpush1.msra.mxu0 0.0
  %7615 = vmatprep.subr.mxu0 0.0
  %7616 = vmatpush1.msra.mxu0 0.0
  %7617 = vmatprep.subr.mxu0 0.0
  %7618 = vmatpush1.msra.mxu0 0.0
  %7619 = vmatprep.subr.mxu0 0.0
  %7620 = vmatpush1.msra.mxu0 0.0
  %7621 = vmatprep.subr.mxu0 0.0
  %7622 = vmatpush1.msra.mxu0 0.0
  %7623 = vmatprep.subr.mxu0 0.0
  %7624 = vmatpush1.msra.mxu0 0.0
  %7625 = vmatprep.mubr.f32.mxu0 0.0
  %7626 = vmatmul.mubr.f32.gmra.mrb[0].mxu0 %v7546
  %v7627 = vpop.f32.mrb[0].mxu0
  %v7628 = vadd.f32 %v7527, %v7627
  %v7629 = vpop.f32.mrb[0].mxu0
  %7630 = vmatprep.mubr.f32.mxu0 0.0
  %7631 = vmatmul.mubr.f32.gmra.mrb[0].mxu0 %v7549
  %v7632 = vpop.f32.mrb[0].mxu0
  %v7633 = vadd.f32 %v7532, %v7632
  %v7634 = vpop.f32.mrb[0].mxu0
  %7635 = vmatprep.mubr.f32.mxu0 0.0
  %7636 = vmatmul.mubr.f32.gmra.mrb[0].mxu0 %v7552
  %v7637 = vpop.f32.mrb[0].mxu0
  %v7638 = vadd.f32 %v7537, %v7637
  %v7639 = vpop.f32.mrb[0].mxu0
  %7640 = vmatprep.mubr.f32.mxu0 0.0
  %7641 = vmatmul.mubr.f32.gmra.mrb[0].mxu0 %v7555
  %v7642 = vpop.f32.mrb[0].mxu0
  %v7643 = vadd.f32 %v7542, %v7642
  %v7644 = vpop.f32.mrb[0].mxu0
  %7645 = vdwg.mxu0
  %vm7646 = vcmask 326656
  %v7647 = vsel %vm7646, %v7628, 0.0
  %7648 = vadd.xlane.f32.xlu0 %v7647
  %v7649 = vpop.xlane.xlu0 %7648
  %v7650 = vsel %vm7646, %v7633, 0.0
  %7651 = vadd.xlane.f32.xlu0 %v7650
  %v7652 = vpop.xlane.xlu0 %7651
  %v7653 = vsel %vm7646, %v7638, 0.0
  %7654 = vadd.xlane.f32.xlu0 %v7653
  %v7655 = vpop.xlane.xlu0 %7654
  %v7656 = vsel %vm7646, %v7643, 0.0
  %7657 = vadd.xlane.f32.xlu0 %v7656
  %v7658 = vpop.xlane.xlu0 %7657
  %v7659 = vmul.f32 %v7649, 0.025
  %v7660 = vmul.f32 %v7652, 0.025
  %v7661 = vmul.f32 %v7655, 0.025
  %v7662 = vmul.f32 %v7658, 0.025
  %v7663 = vsub.f32 %v7628, %v7659
  %v7664 = vsub.f32 %v7633, %v7660
  %v7665 = vsub.f32 %v7638, %v7661
  %v7666 = vsub.f32 %v7643, %v7662
  %v7667 = vmul.f32 %v7663, %v7663
  %v7668 = vmul.f32 %v7664, %v7664
  %v7669 = vmul.f32 %v7665, %v7665
  %v7670 = vmul.f32 %v7666, %v7666
  %v7671 = vsel %vm7646, %v7667, 0.0
  %7672 = vadd.xlane.f32.xlu0 %v7671
  %v7673 = vpop.xlane.xlu0 %7672
  %v7674 = vsel %vm7646, %v7668, 0.0
  %7675 = vadd.xlane.f32.xlu0 %v7674
  %v7676 = vpop.xlane.xlu0 %7675
  %v7677 = vsel %vm7646, %v7669, 0.0
  %7678 = vadd.xlane.f32.xlu0 %v7677
  %v7679 = vpop.xlane.xlu0 %7678
  %v7680 = vsel %vm7646, %v7670, 0.0
  %7681 = vadd.xlane.f32.xlu0 %v7680
  %v7682 = vpop.xlane.xlu0 %7681
  %v7683 = vmul.f32 %v7673, 0.025
  %v7684 = vmul.f32 %v7676, 0.025
  %v7685 = vmul.f32 %v7679, 0.025
  %v7686 = vmul.f32 %v7682, 0.025
  %v7687 = vadd.f32 %v7683, 1e-05
  %v7688 = vadd.f32 %v7684, 1e-05
  %v7689 = vadd.f32 %v7685, 1e-05
  %v7690 = vadd.f32 %v7686, 1e-05
  %v7691 = vrsqrt.pop %v7687
  %v7692 = vrsqrt.pop %v7688
  %v7693 = vrsqrt.pop %v7689
  %v7694 = vrsqrt.pop %v7690
  %v7695 = vmul.f32 %v6359, %v7691
  %v7696 = vmul.f32 %v6360, %v7692
  %v7697 = vmul.f32 %v6361, %v7693
  %v7698 = vmul.f32 %v6362, %v7694
  %7700 = vset.pattern.permute.xlu0 0
  %7701 = vperm.xlu0 %7700, %v7695
  %v7702 = vpop.permute.xlu0 %7701
  %7705 = vset.pattern.permute.xlu0 0
  %7706 = vperm.xlu0 %7705, %v7696
  %v7707 = vpop.permute.xlu0 %7706
  %7710 = vset.pattern.permute.xlu0 0
  %7711 = vperm.xlu0 %7710, %v7697
  %v7712 = vpop.permute.xlu0 %7711
  %7715 = vset.pattern.permute.xlu0 0
  %7716 = vperm.xlu0 %7715, %v7698
  %v7717 = vpop.permute.xlu0 %7716
  %v7719 = vmul.f32 %v7663, %v7702
  %v7720 = vmul.f32 %v7664, %v7707
  %v7721 = vmul.f32 %v7665, %v7712
  %v7722 = vmul.f32 %v7666, %v7717
  %7724 = vset.pattern.permute.xlu0 0
  %7725 = vperm.xlu0 %7724, %v6363
  %v7726 = vpop.permute.xlu0 %7725
  %7729 = vset.pattern.permute.xlu0 0
  %7730 = vperm.xlu0 %7729, %v6364
  %v7731 = vpop.permute.xlu0 %7730
  %7734 = vset.pattern.permute.xlu0 0
  %7735 = vperm.xlu0 %7734, %v6365
  %v7736 = vpop.permute.xlu0 %7735
  %7739 = vset.pattern.permute.xlu0 0
  %7740 = vperm.xlu0 %7739, %v6366
  %v7741 = vpop.permute.xlu0 %7740
  %v7743 = vadd.f32 %v7719, %v7726
  %v7744 = vadd.f32 %v7720, %v7731
  %v7745 = vadd.f32 %v7721, %v7736
  %v7746 = vadd.f32 %v7722, %v7741
  %vm7747 = vcmp.ge.f32.partialorder %v7743, 0.0
  %vm7748 = vcmp.ge.f32.partialorder %v7744, 0.0
  %vm7749 = vcmp.ge.f32.partialorder %v7745, 0.0
  %vm7750 = vcmp.ge.f32.partialorder %v7746, 0.0
  %v7751 = vmul.f32 %v7743, 0.2
  %v7752 = vmul.f32 %v7744, 0.2
  %v7753 = vmul.f32 %v7745, 0.2
  %v7754 = vmul.f32 %v7746, 0.2
  %v7755 = vsel %vm7747, %v7743, %v7751
  %v7756 = vsel %vm7748, %v7744, %v7752
  %v7757 = vsel %vm7749, %v7745, %v7753
  %v7758 = vsel %vm7750, %v7746, %v7754
  %v7759 = vld [vmem:[%s67] sm:$0xff]
  %v7760 = vld [vmem:[%s67 + $0x8] sm:$0xff]
  %v7761 = vld [vmem:[%s69] sm:$0xff]
  %v7762 = vld [vmem:[%s69 + $0x8] sm:$0xff]
  %v7763 = vld [vmem:[%s71] sm:$0xff]
  %v7764 = vld [vmem:[%s71 + $0x8] sm:$0xff]
  %v7765 = vld [vmem:[%s73] sm:$0xff]
  %v7766 = vld [vmem:[%s73 + $0x8] sm:$0xff]
  %v7767 = vld [vmem:[%s73 + $0x10] sm:$0xff]
  %v7768 = vld [vmem:[%s73 + $0x18] sm:$0xff]
  %v7769 = vld [vmem:[%s73 + $0x20] sm:$0xff]
  %v7770 = vld [vmem:[%s73 + $0x28] sm:$0xff]
  %v7771 = vld [vmem:[%s73 + $0x30] sm:$0xff]
  %v7772 = vld [vmem:[%s73 + $0x38] sm:$0xff]
  %v7773 = vld [vmem:[%s73 + $0x40] sm:$0xff]
  %v7774 = vld [vmem:[%s73 + $0x48] sm:$0xff]
  %v7776 = vsel %vm7646, %v7755, 0
  %v7779 = vsel %vm7646, %v7756, 0
  %v7782 = vsel %vm7646, %v7757, 0
  %v7785 = vsel %vm7646, %v7758, 0
  %7787 = vmatprep.subr.mxu0 %v7766
  %7788 = vmatpush1.msra.mxu0 %v7765
  %7789 = vmatprep.subr.mxu0 %v7768
  %7790 = vmatpush1.msra.mxu0 %v7767
  %7791 = vmatprep.subr.mxu0 %v7770
  %7792 = vmatpush1.msra.mxu0 %v7769
  %7793 = vmatprep.subr.mxu0 %v7772
  %7794 = vmatpush1.msra.mxu0 %v7771
  %7795 = vmatprep.subr.mxu0 %v7774
  %7796 = vmatpush1.msra.mxu0 %v7773
  %7797 = vmatprep.subr.mxu0 0.0
  %7798 = vmatpush1.msra.mxu0 0.0
  %7799 = vmatprep.subr.mxu0 0.0
  %7800 = vmatpush1.msra.mxu0 0.0
  %7801 = vmatprep.subr.mxu0 0.0
  %7802 = vmatpush1.msra.mxu0 0.0
  %7803 = vmatprep.subr.mxu0 0.0
  %7804 = vmatpush1.msra.mxu0 0.0
  %7805 = vmatprep.subr.mxu0 0.0
  %7806 = vmatpush1.msra.mxu0 0.0
  %7807 = vmatprep.subr.mxu0 0.0
  %7808 = vmatpush1.msra.mxu0 0.0
  %7809 = vmatprep.subr.mxu0 0.0
  %7810 = vmatpush1.msra.mxu0 0.0
  %7811 = vmatprep.subr.mxu0 0.0
  %7812 = vmatpush1.msra.mxu0 0.0
  %7813 = vmatprep.subr.mxu0 0.0
  %7814 = vmatpush1.msra.mxu0 0.0
  %7815 = vmatprep.subr.mxu0 0.0
  %7816 = vmatpush1.msra.mxu0 0.0
  %7817 = vmatprep.subr.mxu0 0.0
  %7818 = vmatpush1.msra.mxu0 0.0
  %7819 = vmatprep.subr.mxu0 0.0
  %7820 = vmatpush1.msra.mxu0 0.0
  %7821 = vmatprep.subr.mxu0 0.0
  %7822 = vmatpush1.msra.mxu0 0.0
  %7823 = vmatprep.subr.mxu0 0.0
  %7824 = vmatpush1.msra.mxu0 0.0
  %7825 = vmatprep.subr.mxu0 0.0
  %7826 = vmatpush1.msra.mxu0 0.0
  %7827 = vmatprep.subr.mxu0 0.0
  %7828 = vmatpush1.msra.mxu0 0.0
  %7829 = vmatprep.subr.mxu0 0.0
  %7830 = vmatpush1.msra.mxu0 0.0
  %7831 = vmatprep.subr.mxu0 0.0
  %7832 = vmatpush1.msra.mxu0 0.0
  %7833 = vmatprep.subr.mxu0 0.0
  %7834 = vmatpush1.msra.mxu0 0.0
  %7835 = vmatprep.subr.mxu0 0.0
  %7836 = vmatpush1.msra.mxu0 0.0
  %7837 = vmatprep.subr.mxu0 0.0
  %7838 = vmatpush1.msra.mxu0 0.0
  %7839 = vmatprep.subr.mxu0 0.0
  %7840 = vmatpush1.msra.mxu0 0.0
  %7841 = vmatprep.subr.mxu0 0.0
  %7842 = vmatpush1.msra.mxu0 0.0
  %7843 = vmatprep.subr.mxu0 0.0
  %7844 = vmatpush1.msra.mxu0 0.0
  %7845 = vmatprep.subr.mxu0 0.0
  %7846 = vmatpush1.msra.mxu0 0.0
  %7847 = vmatprep.subr.mxu0 0.0
  %7848 = vmatpush1.msra.mxu0 0.0
  %7849 = vmatprep.subr.mxu0 0.0
  %7850 = vmatpush1.msra.mxu0 0.0
  %7851 = vmatprep.mubr.f32.mxu0 0.0
  %7852 = vmatmul.mubr.f32.gmra.mrb[0].mxu0 %v7776
  %v7853 = vpop.f32.mrb[0].mxu0
  %v7854 = vadd.f32 0.0, %v7853
  %v7855 = vpop.f32.mrb[0].mxu0
  %v7856 = vadd.f32 0.0, %v7855
  %7857 = vmatprep.mubr.f32.mxu0 0.0
  %7858 = vmatmul.mubr.f32.gmra.mrb[0].mxu0 %v7779
  %v7859 = vpop.f32.mrb[0].mxu0
  %v7860 = vadd.f32 0.0, %v7859
  %v7861 = vpop.f32.mrb[0].mxu0
  %v7862 = vadd.f32 0.0, %v7861
  %7863 = vmatprep.mubr.f32.mxu0 0.0
  %7864 = vmatmul.mubr.f32.gmra.mrb[0].mxu0 %v7782
  %v7865 = vpop.f32.mrb[0].mxu0
  %v7866 = vadd.f32 0.0, %v7865
  %v7867 = vpop.f32.mrb[0].mxu0
  %v7868 = vadd.f32 0.0, %v7867
  %7869 = vmatprep.mubr.f32.mxu0 0.0
  %7870 = vmatmul.mubr.f32.gmra.mrb[0].mxu0 %v7785
  %v7871 = vpop.f32.mrb[0].mxu0
  %v7872 = vadd.f32 0.0, %v7871
  %v7873 = vpop.f32.mrb[0].mxu0
  %v7874 = vadd.f32 0.0, %v7873
  %7875 = vdwg.mxu0
  %v7876 = vld [vmem:[%s65] sm:$0xff]
  %v7877 = vld [vmem:[%s65 + $0x8] sm:$0xff]
  %s7878 = scalar_lea.vmem %s65, 16
  %v7879 = vld [vmem:[%s7878] sm:$0xff]
  %v7880 = vld [vmem:[%s7878 + $0x8] sm:$0xff]
  %7889 = vrot.lane.b32.xlu0 %v7854, 127
  %v7890 = vpop.permute.xlu0 %7889
  %7891 = vrot.lane.b32.xlu0 %v7856, 127
  %v7892 = vpop.permute.xlu0 %7891
  %7893 = vrot.lane.b32.xlu0 %v7860, 127
  %v7894 = vpop.permute.xlu0 %7893
  %7895 = vrot.lane.b32.xlu0 %v7862, 127
  %v7896 = vpop.permute.xlu0 %7895
  %7897 = vrot.lane.b32.xlu0 %v7866, 127
  %v7898 = vpop.permute.xlu0 %7897
  %7899 = vrot.lane.b32.xlu0 %v7868, 127
  %v7900 = vpop.permute.xlu0 %7899
  %7901 = vrot.lane.b32.xlu0 %v7872, 127
  %v7902 = vpop.permute.xlu0 %7901
  %7903 = vrot.lane.b32.xlu0 %v7874, 127
  %v7904 = vpop.permute.xlu0 %7903
  %v7905 = vsel %vm236, %v7890, %v7892
  %v7906 = vsel %vm236, %v7894, %v7896
  %v7907 = vsel %vm236, %v7898, %v7900
  %v7908 = vsel %vm236, %v7902, %v7904
  %v7918 = vsel %vm2349, %v7879, 0
  %v7921 = vsel %vm2349, %v7880, 0
  %7923 = vmatprep.subr.mxu0 %v7892
  %7924 = vmatpush1.msra.mxu0 %v7905
  %7925 = vmatprep.subr.mxu0 %v7896
  %7926 = vmatpush1.msra.mxu0 %v7906
  %7927 = vmatprep.subr.mxu0 %v7900
  %7928 = vmatpush1.msra.mxu0 %v7907
  %7929 = vmatprep.subr.mxu0 %v7904
  %7930 = vmatpush1.msra.mxu0 %v7908
  %7931 = vmatprep.subr.mxu0 0.0
  %7932 = vmatpush1.msra.mxu0 0.0
  %7933 = vmatprep.subr.mxu0 0.0
  %7934 = vmatpush1.msra.mxu0 0.0
  %7935 = vmatprep.subr.mxu0 0.0
  %7936 = vmatpush1.msra.mxu0 0.0
  %7937 = vmatprep.subr.mxu0 0.0
  %7938 = vmatpush1.msra.mxu0 0.0
  %7939 = vmatprep.subr.mxu0 0.0
  %7940 = vmatpush1.msra.mxu0 0.0
  %7941 = vmatprep.subr.mxu0 0.0
  %7942 = vmatpush1.msra.mxu0 0.0
  %7943 = vmatprep.subr.mxu0 0.0
  %7944 = vmatpush1.msra.mxu0 0.0
  %7945 = vmatprep.subr.mxu0 0.0
  %7946 = vmatpush1.msra.mxu0 0.0
  %7947 = vmatprep.subr.mxu0 0.0
  %7948 = vmatpush1.msra.mxu0 0.0
  %7949 = vmatprep.subr.mxu0 0.0
  %7950 = vmatpush1.msra.mxu0 0.0
  %7951 = vmatprep.subr.mxu0 0.0
  %7952 = vmatpush1.msra.mxu0 0.0
  %7953 = vmatprep.subr.mxu0 0.0
  %7954 = vmatpush1.msra.mxu0 0.0
  %7955 = vmatprep.subr.mxu0 0.0
  %7956 = vmatpush1.msra.mxu0 0.0
  %7957 = vmatprep.subr.mxu0 0.0
  %7958 = vmatpush1.msra.mxu0 0.0
  %7959 = vmatprep.subr.mxu0 0.0
  %7960 = vmatpush1.msra.mxu0 0.0
  %7961 = vmatprep.subr.mxu0 0.0
  %7962 = vmatpush1.msra.mxu0 0.0
  %7963 = vmatprep.subr.mxu0 0.0
  %7964 = vmatpush1.msra.mxu0 0.0
  %7965 = vmatprep.subr.mxu0 0.0
  %7966 = vmatpush1.msra.mxu0 0.0
  %7967 = vmatprep.subr.mxu0 0.0
  %7968 = vmatpush1.msra.mxu0 0.0
  %7969 = vmatprep.subr.mxu0 0.0
  %7970 = vmatpush1.msra.mxu0 0.0
  %7971 = vmatprep.subr.mxu0 0.0
  %7972 = vmatpush1.msra.mxu0 0.0
  %7973 = vmatprep.subr.mxu0 0.0
  %7974 = vmatpush1.msra.mxu0 0.0
  %7975 = vmatprep.subr.mxu0 0.0
  %7976 = vmatpush1.msra.mxu0 0.0
  %7977 = vmatprep.subr.mxu0 0.0
  %7978 = vmatpush1.msra.mxu0 0.0
  %7979 = vmatprep.subr.mxu0 0.0
  %7980 = vmatpush1.msra.mxu0 0.0
  %7981 = vmatprep.subr.mxu0 0.0
  %7982 = vmatpush1.msra.mxu0 0.0
  %7983 = vmatprep.subr.mxu0 0.0
  %7984 = vmatpush1.msra.mxu0 0.0
  %7985 = vmatprep.subr.mxu0 0.0
  %7986 = vmatpush1.msra.mxu0 0.0
  %7987 = vmatprep.mubr.f32.mxu0 0.0
  %7988 = vmatmul.mubr.f32.gmra.mrb[0].mxu0 %v7918
  %v7989 = vpop.f32.mrb[0].mxu0
  %v7990 = vadd.f32 0.0, %v7989
  %v7991 = vpop.f32.mrb[0].mxu0
  %v7992 = vadd.f32 0.0, %v7991
  %7993 = vmatprep.mubr.f32.mxu0 0.0
  %7994 = vmatmul.mubr.f32.gmra.mrb[0].mxu0 %v7921
  %v7995 = vpop.f32.mrb[0].mxu0
  %v7996 = vadd.f32 0.0, %v7995
  %v7997 = vpop.f32.mrb[0].mxu0
  %v7998 = vadd.f32 0.0, %v7997
  %7999 = vdwg.mxu0
  %v8001 = vsel %vm2349, %v7876, 0
  %v8004 = vsel %vm2349, %v7877, 0
  %8006 = vmatprep.subr.mxu0 %v7856
  %8007 = vmatpush1.msra.mxu0 %v7854
  %8008 = vmatprep.subr.mxu0 %v7862
  %8009 = vmatpush1.msra.mxu0 %v7860
  %8010 = vmatprep.subr.mxu0 %v7868
  %8011 = vmatpush1.msra.mxu0 %v7866
  %8012 = vmatprep.subr.mxu0 %v7874
  %8013 = vmatpush1.msra.mxu0 %v7872
  %8014 = vmatprep.subr.mxu0 0.0
  %8015 = vmatpush1.msra.mxu0 0.0
  %8016 = vmatprep.subr.mxu0 0.0
  %8017 = vmatpush1.msra.mxu0 0.0
  %8018 = vmatprep.subr.mxu0 0.0
  %8019 = vmatpush1.msra.mxu0 0.0
  %8020 = vmatprep.subr.mxu0 0.0
  %8021 = vmatpush1.msra.mxu0 0.0
  %8022 = vmatprep.subr.mxu0 0.0
  %8023 = vmatpush1.msra.mxu0 0.0
  %8024 = vmatprep.subr.mxu0 0.0
  %8025 = vmatpush1.msra.mxu0 0.0
  %8026 = vmatprep.subr.mxu0 0.0
  %8027 = vmatpush1.msra.mxu0 0.0
  %8028 = vmatprep.subr.mxu0 0.0
  %8029 = vmatpush1.msra.mxu0 0.0
  %8030 = vmatprep.subr.mxu0 0.0
  %8031 = vmatpush1.msra.mxu0 0.0
  %8032 = vmatprep.subr.mxu0 0.0
  %8033 = vmatpush1.msra.mxu0 0.0
  %8034 = vmatprep.subr.mxu0 0.0
  %8035 = vmatpush1.msra.mxu0 0.0
  %8036 = vmatprep.subr.mxu0 0.0
  %8037 = vmatpush1.msra.mxu0 0.0
  %8038 = vmatprep.subr.mxu0 0.0
  %8039 = vmatpush1.msra.mxu0 0.0
  %8040 = vmatprep.subr.mxu0 0.0
  %8041 = vmatpush1.msra.mxu0 0.0
  %8042 = vmatprep.subr.mxu0 0.0
  %8043 = vmatpush1.msra.mxu0 0.0
  %8044 = vmatprep.subr.mxu0 0.0
  %8045 = vmatpush1.msra.mxu0 0.0
  %8046 = vmatprep.subr.mxu0 0.0
  %8047 = vmatpush1.msra.mxu0 0.0
  %8048 = vmatprep.subr.mxu0 0.0
  %8049 = vmatpush1.msra.mxu0 0.0
  %8050 = vmatprep.subr.mxu0 0.0
  %8051 = vmatpush1.msra.mxu0 0.0
  %8052 = vmatprep.subr.mxu0 0.0
  %8053 = vmatpush1.msra.mxu0 0.0
  %8054 = vmatprep.subr.mxu0 0.0
  %8055 = vmatpush1.msra.mxu0 0.0
  %8056 = vmatprep.subr.mxu0 0.0
  %8057 = vmatpush1.msra.mxu0 0.0
  %8058 = vmatprep.subr.mxu0 0.0
  %8059 = vmatpush1.msra.mxu0 0.0
  %8060 = vmatprep.subr.mxu0 0.0
  %8061 = vmatpush1.msra.mxu0 0.0
  %8062 = vmatprep.subr.mxu0 0.0
  %8063 = vmatpush1.msra.mxu0 0.0
  %8064 = vmatprep.subr.mxu0 0.0
  %8065 = vmatpush1.msra.mxu0 0.0
  %8066 = vmatprep.subr.mxu0 0.0
  %8067 = vmatpush1.msra.mxu0 0.0
  %8068 = vmatprep.subr.mxu0 0.0
  %8069 = vmatpush1.msra.mxu0 0.0
  %8070 = vmatprep.mubr.f32.mxu0 0.0
  %8071 = vmatmul.mubr.f32.gmra.mrb[0].mxu0 %v8001
  %v8072 = vpop.f32.mrb[0].mxu0
  %v8073 = vadd.f32 %v7990, %v8072
  %v8074 = vpop.f32.mrb[0].mxu0
  %v8075 = vadd.f32 %v7992, %v8074
  %8076 = vmatprep.mubr.f32.mxu0 0.0
  %8077 = vmatmul.mubr.f32.gmra.mrb[0].mxu0 %v8004
  %v8078 = vpop.f32.mrb[0].mxu0
  %v8079 = vadd.f32 %v7996, %v8078
  %v8080 = vpop.f32.mrb[0].mxu0
  %v8081 = vadd.f32 %v7998, %v8080
  %8082 = vdwg.mxu0
  %s8083 = scalar_lea.vmem %s65, 32
  %v8084 = vld [vmem:[%s8083] sm:$0xff]
  %v8085 = vld [vmem:[%s8083 + $0x8] sm:$0xff]
  %8086 = vrot.lane.b32.xlu0 %v7854, 126
  %v8087 = vpop.permute.xlu0 %8086
  %8088 = vrot.lane.b32.xlu0 %v7856, 126
  %v8089 = vpop.permute.xlu0 %8088
  %8090 = vrot.lane.b32.xlu0 %v7860, 126
  %v8091 = vpop.permute.xlu0 %8090
  %8092 = vrot.lane.b32.xlu0 %v7862, 126
  %v8093 = vpop.permute.xlu0 %8092
  %8094 = vrot.lane.b32.xlu0 %v7866, 126
  %v8095 = vpop.permute.xlu0 %8094
  %8096 = vrot.lane.b32.xlu0 %v7868, 126
  %v8097 = vpop.permute.xlu0 %8096
  %8098 = vrot.lane.b32.xlu0 %v7872, 126
  %v8099 = vpop.permute.xlu0 %8098
  %8100 = vrot.lane.b32.xlu0 %v7874, 126
  %v8101 = vpop.permute.xlu0 %8100
  %v8102 = vsel %vm257, %v8087, %v8089
  %v8103 = vsel %vm257, %v8091, %v8093
  %v8104 = vsel %vm257, %v8095, %v8097
  %v8105 = vsel %vm257, %v8099, %v8101
  %v8115 = vsel %vm2349, %v8084, 0
  %v8118 = vsel %vm2349, %v8085, 0
  %8120 = vmatprep.subr.mxu0 %v8089
  %8121 = vmatpush1.msra.mxu0 %v8102
  %8122 = vmatprep.subr.mxu0 %v8093
  %8123 = vmatpush1.msra.mxu0 %v8103
  %8124 = vmatprep.subr.mxu0 %v8097
  %8125 = vmatpush1.msra.mxu0 %v8104
  %8126 = vmatprep.subr.mxu0 %v8101
  %8127 = vmatpush1.msra.mxu0 %v8105
  %8128 = vmatprep.subr.mxu0 0.0
  %8129 = vmatpush1.msra.mxu0 0.0
  %8130 = vmatprep.subr.mxu0 0.0
  %8131 = vmatpush1.msra.mxu0 0.0
  %8132 = vmatprep.subr.mxu0 0.0
  %8133 = vmatpush1.msra.mxu0 0.0
  %8134 = vmatprep.subr.mxu0 0.0
  %8135 = vmatpush1.msra.mxu0 0.0
  %8136 = vmatprep.subr.mxu0 0.0
  %8137 = vmatpush1.msra.mxu0 0.0
  %8138 = vmatprep.subr.mxu0 0.0
  %8139 = vmatpush1.msra.mxu0 0.0
  %8140 = vmatprep.subr.mxu0 0.0
  %8141 = vmatpush1.msra.mxu0 0.0
  %8142 = vmatprep.subr.mxu0 0.0
  %8143 = vmatpush1.msra.mxu0 0.0
  %8144 = vmatprep.subr.mxu0 0.0
  %8145 = vmatpush1.msra.mxu0 0.0
  %8146 = vmatprep.subr.mxu0 0.0
  %8147 = vmatpush1.msra.mxu0 0.0
  %8148 = vmatprep.subr.mxu0 0.0
  %8149 = vmatpush1.msra.mxu0 0.0
  %8150 = vmatprep.subr.mxu0 0.0
  %8151 = vmatpush1.msra.mxu0 0.0
  %8152 = vmatprep.subr.mxu0 0.0
  %8153 = vmatpush1.msra.mxu0 0.0
  %8154 = vmatprep.subr.mxu0 0.0
  %8155 = vmatpush1.msra.mxu0 0.0
  %8156 = vmatprep.subr.mxu0 0.0
  %8157 = vmatpush1.msra.mxu0 0.0
  %8158 = vmatprep.subr.mxu0 0.0
  %8159 = vmatpush1.msra.mxu0 0.0
  %8160 = vmatprep.subr.mxu0 0.0
  %8161 = vmatpush1.msra.mxu0 0.0
  %8162 = vmatprep.subr.mxu0 0.0
  %8163 = vmatpush1.msra.mxu0 0.0
  %8164 = vmatprep.subr.mxu0 0.0
  %8165 = vmatpush1.msra.mxu0 0.0
  %8166 = vmatprep.subr.mxu0 0.0
  %8167 = vmatpush1.msra.mxu0 0.0
  %8168 = vmatprep.subr.mxu0 0.0
  %8169 = vmatpush1.msra.mxu0 0.0
  %8170 = vmatprep.subr.mxu0 0.0
  %8171 = vmatpush1.msra.mxu0 0.0
  %8172 = vmatprep.subr.mxu0 0.0
  %8173 = vmatpush1.msra.mxu0 0.0
  %8174 = vmatprep.subr.mxu0 0.0
  %8175 = vmatpush1.msra.mxu0 0.0
  %8176 = vmatprep.subr.mxu0 0.0
  %8177 = vmatpush1.msra.mxu0 0.0
  %8178 = vmatprep.subr.mxu0 0.0
  %8179 = vmatpush1.msra.mxu0 0.0
  %8180 = vmatprep.subr.mxu0 0.0
  %8181 = vmatpush1.msra.mxu0 0.0
  %8182 = vmatprep.subr.mxu0 0.0
  %8183 = vmatpush1.msra.mxu0 0.0
  %8184 = vmatprep.mubr.f32.mxu0 0.0
  %8185 = vmatmul.mubr.f32.gmra.mrb[0].mxu0 %v8115
  %v8186 = vpop.f32.mrb[0].mxu0
  %v8187 = vadd.f32 0.0, %v8186
  %v8188 = vpop.f32.mrb[0].mxu0
  %v8189 = vadd.f32 0.0, %v8188
  %8190 = vmatprep.mubr.f32.mxu0 0.0
  %8191 = vmatmul.mubr.f32.gmra.mrb[0].mxu0 %v8118
  %v8192 = vpop.f32.mrb[0].mxu0
  %v8193 = vadd.f32 0.0, %v8192
  %v8194 = vpop.f32.mrb[0].mxu0
  %v8195 = vadd.f32 0.0, %v8194
  %8196 = vdwg.mxu0
  %v8197 = vadd.f32 %v8073, %v8187
  %v8198 = vadd.f32 %v8075, %v8189
  %v8199 = vadd.f32 %v8079, %v8193
  %v8200 = vadd.f32 %v8081, %v8195
  %s8201 = scalar_lea.vmem %s65, 48
  %v8202 = vld [vmem:[%s8201] sm:$0xff]
  %v8203 = vld [vmem:[%s8201 + $0x8] sm:$0xff]
  %8204 = vrot.lane.b32.xlu0 %v7854, 125
  %v8205 = vpop.permute.xlu0 %8204
  %8206 = vrot.lane.b32.xlu0 %v7856, 125
  %v8207 = vpop.permute.xlu0 %8206
  %8208 = vrot.lane.b32.xlu0 %v7860, 125
  %v8209 = vpop.permute.xlu0 %8208
  %8210 = vrot.lane.b32.xlu0 %v7862, 125
  %v8211 = vpop.permute.xlu0 %8210
  %8212 = vrot.lane.b32.xlu0 %v7866, 125
  %v8213 = vpop.permute.xlu0 %8212
  %8214 = vrot.lane.b32.xlu0 %v7868, 125
  %v8215 = vpop.permute.xlu0 %8214
  %8216 = vrot.lane.b32.xlu0 %v7872, 125
  %v8217 = vpop.permute.xlu0 %8216
  %8218 = vrot.lane.b32.xlu0 %v7874, 125
  %v8219 = vpop.permute.xlu0 %8218
  %v8220 = vsel %vm278, %v8205, %v8207
  %v8221 = vsel %vm278, %v8209, %v8211
  %v8222 = vsel %vm278, %v8213, %v8215
  %v8223 = vsel %vm278, %v8217, %v8219
  %v8233 = vsel %vm2349, %v8202, 0
  %v8236 = vsel %vm2349, %v8203, 0
  %8238 = vmatprep.subr.mxu0 %v8207
  %8239 = vmatpush1.msra.mxu0 %v8220
  %8240 = vmatprep.subr.mxu0 %v8211
  %8241 = vmatpush1.msra.mxu0 %v8221
  %8242 = vmatprep.subr.mxu0 %v8215
  %8243 = vmatpush1.msra.mxu0 %v8222
  %8244 = vmatprep.subr.mxu0 %v8219
  %8245 = vmatpush1.msra.mxu0 %v8223
  %8246 = vmatprep.subr.mxu0 0.0
  %8247 = vmatpush1.msra.mxu0 0.0
  %8248 = vmatprep.subr.mxu0 0.0
  %8249 = vmatpush1.msra.mxu0 0.0
  %8250 = vmatprep.subr.mxu0 0.0
  %8251 = vmatpush1.msra.mxu0 0.0
  %8252 = vmatprep.subr.mxu0 0.0
  %8253 = vmatpush1.msra.mxu0 0.0
  %8254 = vmatprep.subr.mxu0 0.0
  %8255 = vmatpush1.msra.mxu0 0.0
  %8256 = vmatprep.subr.mxu0 0.0
  %8257 = vmatpush1.msra.mxu0 0.0
  %8258 = vmatprep.subr.mxu0 0.0
  %8259 = vmatpush1.msra.mxu0 0.0
  %8260 = vmatprep.subr.mxu0 0.0
  %8261 = vmatpush1.msra.mxu0 0.0
  %8262 = vmatprep.subr.mxu0 0.0
  %8263 = vmatpush1.msra.mxu0 0.0
  %8264 = vmatprep.subr.mxu0 0.0
  %8265 = vmatpush1.msra.mxu0 0.0
  %8266 = vmatprep.subr.mxu0 0.0
  %8267 = vmatpush1.msra.mxu0 0.0
  %8268 = vmatprep.subr.mxu0 0.0
  %8269 = vmatpush1.msra.mxu0 0.0
  %8270 = vmatprep.subr.mxu0 0.0
  %8271 = vmatpush1.msra.mxu0 0.0
  %8272 = vmatprep.subr.mxu0 0.0
  %8273 = vmatpush1.msra.mxu0 0.0
  %8274 = vmatprep.subr.mxu0 0.0
  %8275 = vmatpush1.msra.mxu0 0.0
  %8276 = vmatprep.subr.mxu0 0.0
  %8277 = vmatpush1.msra.mxu0 0.0
  %8278 = vmatprep.subr.mxu0 0.0
  %8279 = vmatpush1.msra.mxu0 0.0
  %8280 = vmatprep.subr.mxu0 0.0
  %8281 = vmatpush1.msra.mxu0 0.0
  %8282 = vmatprep.subr.mxu0 0.0
  %8283 = vmatpush1.msra.mxu0 0.0
  %8284 = vmatprep.subr.mxu0 0.0
  %8285 = vmatpush1.msra.mxu0 0.0
  %8286 = vmatprep.subr.mxu0 0.0
  %8287 = vmatpush1.msra.mxu0 0.0
  %8288 = vmatprep.subr.mxu0 0.0
  %8289 = vmatpush1.msra.mxu0 0.0
  %8290 = vmatprep.subr.mxu0 0.0
  %8291 = vmatpush1.msra.mxu0 0.0
  %8292 = vmatprep.subr.mxu0 0.0
  %8293 = vmatpush1.msra.mxu0 0.0
  %8294 = vmatprep.subr.mxu0 0.0
  %8295 = vmatpush1.msra.mxu0 0.0
  %8296 = vmatprep.subr.mxu0 0.0
  %8297 = vmatpush1.msra.mxu0 0.0
  %8298 = vmatprep.subr.mxu0 0.0
  %8299 = vmatpush1.msra.mxu0 0.0
  %8300 = vmatprep.subr.mxu0 0.0
  %8301 = vmatpush1.msra.mxu0 0.0
  %8302 = vmatprep.mubr.f32.mxu0 0.0
  %8303 = vmatmul.mubr.f32.gmra.mrb[0].mxu0 %v8233
  %v8304 = vpop.f32.mrb[0].mxu0
  %v8305 = vadd.f32 0.0, %v8304
  %v8306 = vpop.f32.mrb[0].mxu0
  %v8307 = vadd.f32 0.0, %v8306
  %8308 = vmatprep.mubr.f32.mxu0 0.0
  %8309 = vmatmul.mubr.f32.gmra.mrb[0].mxu0 %v8236
  %v8310 = vpop.f32.mrb[0].mxu0
  %v8311 = vadd.f32 0.0, %v8310
  %v8312 = vpop.f32.mrb[0].mxu0
  %v8313 = vadd.f32 0.0, %v8312
  %8314 = vdwg.mxu0
  %v8315 = vadd.f32 %v8197, %v8305
  %v8316 = vadd.f32 %v8198, %v8307
  %v8317 = vadd.f32 %v8199, %v8311
  %v8318 = vadd.f32 %v8200, %v8313
  %s8319 = scalar_lea.vmem %s65, 64
  %v8320 = vld [vmem:[%s8319] sm:$0xff]
  %v8321 = vld [vmem:[%s8319 + $0x8] sm:$0xff]
  %8322 = vrot.lane.b32.xlu0 %v7854, 124
  %v8323 = vpop.permute.xlu0 %8322
  %8324 = vrot.lane.b32.xlu0 %v7856, 124
  %v8325 = vpop.permute.xlu0 %8324
  %8326 = vrot.lane.b32.xlu0 %v7860, 124
  %v8327 = vpop.permute.xlu0 %8326
  %8328 = vrot.lane.b32.xlu0 %v7862, 124
  %v8329 = vpop.permute.xlu0 %8328
  %8330 = vrot.lane.b32.xlu0 %v7866, 124
  %v8331 = vpop.permute.xlu0 %8330
  %8332 = vrot.lane.b32.xlu0 %v7868, 124
  %v8333 = vpop.permute.xlu0 %8332
  %8334 = vrot.lane.b32.xlu0 %v7872, 124
  %v8335 = vpop.permute.xlu0 %8334
  %8336 = vrot.lane.b32.xlu0 %v7874, 124
  %v8337 = vpop.permute.xlu0 %8336
  %v8338 = vsel %vm299, %v8323, %v8325
  %v8339 = vsel %vm299, %v8327, %v8329
  %v8340 = vsel %vm299, %v8331, %v8333
  %v8341 = vsel %vm299, %v8335, %v8337
  %v8351 = vsel %vm2349, %v8320, 0
  %v8354 = vsel %vm2349, %v8321, 0
  %8356 = vmatprep.subr.mxu0 %v8325
  %8357 = vmatpush1.msra.mxu0 %v8338
  %8358 = vmatprep.subr.mxu0 %v8329
  %8359 = vmatpush1.msra.mxu0 %v8339
  %8360 = vmatprep.subr.mxu0 %v8333
  %8361 = vmatpush1.msra.mxu0 %v8340
  %8362 = vmatprep.subr.mxu0 %v8337
  %8363 = vmatpush1.msra.mxu0 %v8341
  %8364 = vmatprep.subr.mxu0 0.0
  %8365 = vmatpush1.msra.mxu0 0.0
  %8366 = vmatprep.subr.mxu0 0.0
  %8367 = vmatpush1.msra.mxu0 0.0
  %8368 = vmatprep.subr.mxu0 0.0
  %8369 = vmatpush1.msra.mxu0 0.0
  %8370 = vmatprep.subr.mxu0 0.0
  %8371 = vmatpush1.msra.mxu0 0.0
  %8372 = vmatprep.subr.mxu0 0.0
  %8373 = vmatpush1.msra.mxu0 0.0
  %8374 = vmatprep.subr.mxu0 0.0
  %8375 = vmatpush1.msra.mxu0 0.0
  %8376 = vmatprep.subr.mxu0 0.0
  %8377 = vmatpush1.msra.mxu0 0.0
  %8378 = vmatprep.subr.mxu0 0.0
  %8379 = vmatpush1.msra.mxu0 0.0
  %8380 = vmatprep.subr.mxu0 0.0
  %8381 = vmatpush1.msra.mxu0 0.0
  %8382 = vmatprep.subr.mxu0 0.0
  %8383 = vmatpush1.msra.mxu0 0.0
  %8384 = vmatprep.subr.mxu0 0.0
  %8385 = vmatpush1.msra.mxu0 0.0
  %8386 = vmatprep.subr.mxu0 0.0
  %8387 = vmatpush1.msra.mxu0 0.0
  %8388 = vmatprep.subr.mxu0 0.0
  %8389 = vmatpush1.msra.mxu0 0.0
  %8390 = vmatprep.subr.mxu0 0.0
  %8391 = vmatpush1.msra.mxu0 0.0
  %8392 = vmatprep.subr.mxu0 0.0
  %8393 = vmatpush1.msra.mxu0 0.0
  %8394 = vmatprep.subr.mxu0 0.0
  %8395 = vmatpush1.msra.mxu0 0.0
  %8396 = vmatprep.subr.mxu0 0.0
  %8397 = vmatpush1.msra.mxu0 0.0
  %8398 = vmatprep.subr.mxu0 0.0
  %8399 = vmatpush1.msra.mxu0 0.0
  %8400 = vmatprep.subr.mxu0 0.0
  %8401 = vmatpush1.msra.mxu0 0.0
  %8402 = vmatprep.subr.mxu0 0.0
  %8403 = vmatpush1.msra.mxu0 0.0
  %8404 = vmatprep.subr.mxu0 0.0
  %8405 = vmatpush1.msra.mxu0 0.0
  %8406 = vmatprep.subr.mxu0 0.0
  %8407 = vmatpush1.msra.mxu0 0.0
  %8408 = vmatprep.subr.mxu0 0.0
  %8409 = vmatpush1.msra.mxu0 0.0
  %8410 = vmatprep.subr.mxu0 0.0
  %8411 = vmatpush1.msra.mxu0 0.0
  %8412 = vmatprep.subr.mxu0 0.0
  %8413 = vmatpush1.msra.mxu0 0.0
  %8414 = vmatprep.subr.mxu0 0.0
  %8415 = vmatpush1.msra.mxu0 0.0
  %8416 = vmatprep.subr.mxu0 0.0
  %8417 = vmatpush1.msra.mxu0 0.0
  %8418 = vmatprep.subr.mxu0 0.0
  %8419 = vmatpush1.msra.mxu0 0.0
  %8420 = vmatprep.mubr.f32.mxu0 0.0
  %8421 = vmatmul.mubr.f32.gmra.mrb[0].mxu0 %v8351
  %v8422 = vpop.f32.mrb[0].mxu0
  %v8423 = vadd.f32 0.0, %v8422
  %v8424 = vpop.f32.mrb[0].mxu0
  %v8425 = vadd.f32 0.0, %v8424
  %8426 = vmatprep.mubr.f32.mxu0 0.0
  %8427 = vmatmul.mubr.f32.gmra.mrb[0].mxu0 %v8354
  %v8428 = vpop.f32.mrb[0].mxu0
  %v8429 = vadd.f32 0.0, %v8428
  %v8430 = vpop.f32.mrb[0].mxu0
  %v8431 = vadd.f32 0.0, %v8430
  %8432 = vdwg.mxu0
  %v8433 = vadd.f32 %v8315, %v8423
  %v8434 = vadd.f32 %v8316, %v8425
  %v8435 = vadd.f32 %v8317, %v8429
  %v8436 = vadd.f32 %v8318, %v8431
  %s8437 = scalar_lea.vmem %s65, 80
  %v8438 = vld [vmem:[%s8437] sm:$0xff]
  %v8439 = vld [vmem:[%s8437 + $0x8] sm:$0xff]
  %8440 = vrot.lane.b32.xlu0 %v7854, 123
  %v8441 = vpop.permute.xlu0 %8440
  %8442 = vrot.lane.b32.xlu0 %v7856, 123
  %v8443 = vpop.permute.xlu0 %8442
  %8444 = vrot.lane.b32.xlu0 %v7860, 123
  %v8445 = vpop.permute.xlu0 %8444
  %8446 = vrot.lane.b32.xlu0 %v7862, 123
  %v8447 = vpop.permute.xlu0 %8446
  %8448 = vrot.lane.b32.xlu0 %v7866, 123
  %v8449 = vpop.permute.xlu0 %8448
  %8450 = vrot.lane.b32.xlu0 %v7868, 123
  %v8451 = vpop.permute.xlu0 %8450
  %8452 = vrot.lane.b32.xlu0 %v7872, 123
  %v8453 = vpop.permute.xlu0 %8452
  %8454 = vrot.lane.b32.xlu0 %v7874, 123
  %v8455 = vpop.permute.xlu0 %8454
  %v8456 = vsel %vm320, %v8441, %v8443
  %v8457 = vsel %vm320, %v8445, %v8447
  %v8458 = vsel %vm320, %v8449, %v8451
  %v8459 = vsel %vm320, %v8453, %v8455
  %v8469 = vsel %vm2349, %v8438, 0
  %v8472 = vsel %vm2349, %v8439, 0
  %8474 = vmatprep.subr.mxu0 %v8443
  %8475 = vmatpush1.msra.mxu0 %v8456
  %8476 = vmatprep.subr.mxu0 %v8447
  %8477 = vmatpush1.msra.mxu0 %v8457
  %8478 = vmatprep.subr.mxu0 %v8451
  %8479 = vmatpush1.msra.mxu0 %v8458
  %8480 = vmatprep.subr.mxu0 %v8455
  %8481 = vmatpush1.msra.mxu0 %v8459
  %8482 = vmatprep.subr.mxu0 0.0
  %8483 = vmatpush1.msra.mxu0 0.0
  %8484 = vmatprep.subr.mxu0 0.0
  %8485 = vmatpush1.msra.mxu0 0.0
  %8486 = vmatprep.subr.mxu0 0.0
  %8487 = vmatpush1.msra.mxu0 0.0
  %8488 = vmatprep.subr.mxu0 0.0
  %8489 = vmatpush1.msra.mxu0 0.0
  %8490 = vmatprep.subr.mxu0 0.0
  %8491 = vmatpush1.msra.mxu0 0.0
  %8492 = vmatprep.subr.mxu0 0.0
  %8493 = vmatpush1.msra.mxu0 0.0
  %8494 = vmatprep.subr.mxu0 0.0
  %8495 = vmatpush1.msra.mxu0 0.0
  %8496 = vmatprep.subr.mxu0 0.0
  %8497 = vmatpush1.msra.mxu0 0.0
  %8498 = vmatprep.subr.mxu0 0.0
  %8499 = vmatpush1.msra.mxu0 0.0
  %8500 = vmatprep.subr.mxu0 0.0
  %8501 = vmatpush1.msra.mxu0 0.0
  %8502 = vmatprep.subr.mxu0 0.0
  %8503 = vmatpush1.msra.mxu0 0.0
  %8504 = vmatprep.subr.mxu0 0.0
  %8505 = vmatpush1.msra.mxu0 0.0
  %8506 = vmatprep.subr.mxu0 0.0
  %8507 = vmatpush1.msra.mxu0 0.0
  %8508 = vmatprep.subr.mxu0 0.0
  %8509 = vmatpush1.msra.mxu0 0.0
  %8510 = vmatprep.subr.mxu0 0.0
  %8511 = vmatpush1.msra.mxu0 0.0
  %8512 = vmatprep.subr.mxu0 0.0
  %8513 = vmatpush1.msra.mxu0 0.0
  %8514 = vmatprep.subr.mxu0 0.0
  %8515 = vmatpush1.msra.mxu0 0.0
  %8516 = vmatprep.subr.mxu0 0.0
  %8517 = vmatpush1.msra.mxu0 0.0
  %8518 = vmatprep.subr.mxu0 0.0
  %8519 = vmatpush1.msra.mxu0 0.0
  %8520 = vmatprep.subr.mxu0 0.0
  %8521 = vmatpush1.msra.mxu0 0.0
  %8522 = vmatprep.subr.mxu0 0.0
  %8523 = vmatpush1.msra.mxu0 0.0
  %8524 = vmatprep.subr.mxu0 0.0
  %8525 = vmatpush1.msra.mxu0 0.0
  %8526 = vmatprep.subr.mxu0 0.0
  %8527 = vmatpush1.msra.mxu0 0.0
  %8528 = vmatprep.subr.mxu0 0.0
  %8529 = vmatpush1.msra.mxu0 0.0
  %8530 = vmatprep.subr.mxu0 0.0
  %8531 = vmatpush1.msra.mxu0 0.0
  %8532 = vmatprep.subr.mxu0 0.0
  %8533 = vmatpush1.msra.mxu0 0.0
  %8534 = vmatprep.subr.mxu0 0.0
  %8535 = vmatpush1.msra.mxu0 0.0
  %8536 = vmatprep.subr.mxu0 0.0
  %8537 = vmatpush1.msra.mxu0 0.0
  %8538 = vmatprep.mubr.f32.mxu0 0.0
  %8539 = vmatmul.mubr.f32.gmra.mrb[0].mxu0 %v8469
  %v8540 = vpop.f32.mrb[0].mxu0
  %v8541 = vadd.f32 0.0, %v8540
  %v8542 = vpop.f32.mrb[0].mxu0
  %v8543 = vadd.f32 0.0, %v8542
  %8544 = vmatprep.mubr.f32.mxu0 0.0
  %8545 = vmatmul.mubr.f32.gmra.mrb[0].mxu0 %v8472
  %v8546 = vpop.f32.mrb[0].mxu0
  %v8547 = vadd.f32 0.0, %v8546
  %v8548 = vpop.f32.mrb[0].mxu0
  %v8549 = vadd.f32 0.0, %v8548
  %8550 = vdwg.mxu0
  %v8551 = vadd.f32 %v8433, %v8541
  %v8552 = vadd.f32 %v8434, %v8543
  %v8553 = vadd.f32 %v8435, %v8547
  %v8554 = vadd.f32 %v8436, %v8549
  %s8555 = scalar_lea.vmem %s65, 96
  %v8556 = vld [vmem:[%s8555] sm:$0xff]
  %v8557 = vld [vmem:[%s8555 + $0x8] sm:$0xff]
  %8558 = vrot.lane.b32.xlu0 %v7854, 122
  %v8559 = vpop.permute.xlu0 %8558
  %8560 = vrot.lane.b32.xlu0 %v7856, 122
  %v8561 = vpop.permute.xlu0 %8560
  %8562 = vrot.lane.b32.xlu0 %v7860, 122
  %v8563 = vpop.permute.xlu0 %8562
  %8564 = vrot.lane.b32.xlu0 %v7862, 122
  %v8565 = vpop.permute.xlu0 %8564
  %8566 = vrot.lane.b32.xlu0 %v7866, 122
  %v8567 = vpop.permute.xlu0 %8566
  %8568 = vrot.lane.b32.xlu0 %v7868, 122
  %v8569 = vpop.permute.xlu0 %8568
  %8570 = vrot.lane.b32.xlu0 %v7872, 122
  %v8571 = vpop.permute.xlu0 %8570
  %8572 = vrot.lane.b32.xlu0 %v7874, 122
  %v8573 = vpop.permute.xlu0 %8572
  %v8574 = vsel %vm341, %v8559, %v8561
  %v8575 = vsel %vm341, %v8563, %v8565
  %v8576 = vsel %vm341, %v8567, %v8569
  %v8577 = vsel %vm341, %v8571, %v8573
  %v8587 = vsel %vm2349, %v8556, 0
  %v8590 = vsel %vm2349, %v8557, 0
  %8592 = vmatprep.subr.mxu0 %v8561
  %8593 = vmatpush1.msra.mxu0 %v8574
  %8594 = vmatprep.subr.mxu0 %v8565
  %8595 = vmatpush1.msra.mxu0 %v8575
  %8596 = vmatprep.subr.mxu0 %v8569
  %8597 = vmatpush1.msra.mxu0 %v8576
  %8598 = vmatprep.subr.mxu0 %v8573
  %8599 = vmatpush1.msra.mxu0 %v8577
  %8600 = vmatprep.subr.mxu0 0.0
  %8601 = vmatpush1.msra.mxu0 0.0
  %8602 = vmatprep.subr.mxu0 0.0
  %8603 = vmatpush1.msra.mxu0 0.0
  %8604 = vmatprep.subr.mxu0 0.0
  %8605 = vmatpush1.msra.mxu0 0.0
  %8606 = vmatprep.subr.mxu0 0.0
  %8607 = vmatpush1.msra.mxu0 0.0
  %8608 = vmatprep.subr.mxu0 0.0
  %8609 = vmatpush1.msra.mxu0 0.0
  %8610 = vmatprep.subr.mxu0 0.0
  %8611 = vmatpush1.msra.mxu0 0.0
  %8612 = vmatprep.subr.mxu0 0.0
  %8613 = vmatpush1.msra.mxu0 0.0
  %8614 = vmatprep.subr.mxu0 0.0
  %8615 = vmatpush1.msra.mxu0 0.0
  %8616 = vmatprep.subr.mxu0 0.0
  %8617 = vmatpush1.msra.mxu0 0.0
  %8618 = vmatprep.subr.mxu0 0.0
  %8619 = vmatpush1.msra.mxu0 0.0
  %8620 = vmatprep.subr.mxu0 0.0
  %8621 = vmatpush1.msra.mxu0 0.0
  %8622 = vmatprep.subr.mxu0 0.0
  %8623 = vmatpush1.msra.mxu0 0.0
  %8624 = vmatprep.subr.mxu0 0.0
  %8625 = vmatpush1.msra.mxu0 0.0
  %8626 = vmatprep.subr.mxu0 0.0
  %8627 = vmatpush1.msra.mxu0 0.0
  %8628 = vmatprep.subr.mxu0 0.0
  %8629 = vmatpush1.msra.mxu0 0.0
  %8630 = vmatprep.subr.mxu0 0.0
  %8631 = vmatpush1.msra.mxu0 0.0
  %8632 = vmatprep.subr.mxu0 0.0
  %8633 = vmatpush1.msra.mxu0 0.0
  %8634 = vmatprep.subr.mxu0 0.0
  %8635 = vmatpush1.msra.mxu0 0.0
  %8636 = vmatprep.subr.mxu0 0.0
  %8637 = vmatpush1.msra.mxu0 0.0
  %8638 = vmatprep.subr.mxu0 0.0
  %8639 = vmatpush1.msra.mxu0 0.0
  %8640 = vmatprep.subr.mxu0 0.0
  %8641 = vmatpush1.msra.mxu0 0.0
  %8642 = vmatprep.subr.mxu0 0.0
  %8643 = vmatpush1.msra.mxu0 0.0
  %8644 = vmatprep.subr.mxu0 0.0
  %8645 = vmatpush1.msra.mxu0 0.0
  %8646 = vmatprep.subr.mxu0 0.0
  %8647 = vmatpush1.msra.mxu0 0.0
  %8648 = vmatprep.subr.mxu0 0.0
  %8649 = vmatpush1.msra.mxu0 0.0
  %8650 = vmatprep.subr.mxu0 0.0
  %8651 = vmatpush1.msra.mxu0 0.0
  %8652 = vmatprep.subr.mxu0 0.0
  %8653 = vmatpush1.msra.mxu0 0.0
  %8654 = vmatprep.subr.mxu0 0.0
  %8655 = vmatpush1.msra.mxu0 0.0
  %8656 = vmatprep.mubr.f32.mxu0 0.0
  %8657 = vmatmul.mubr.f32.gmra.mrb[0].mxu0 %v8587
  %v8658 = vpop.f32.mrb[0].mxu0
  %v8659 = vadd.f32 0.0, %v8658
  %v8660 = vpop.f32.mrb[0].mxu0
  %v8661 = vadd.f32 0.0, %v8660
  %8662 = vmatprep.mubr.f32.mxu0 0.0
  %8663 = vmatmul.mubr.f32.gmra.mrb[0].mxu0 %v8590
  %v8664 = vpop.f32.mrb[0].mxu0
  %v8665 = vadd.f32 0.0, %v8664
  %v8666 = vpop.f32.mrb[0].mxu0
  %v8667 = vadd.f32 0.0, %v8666
  %8668 = vdwg.mxu0
  %v8669 = vadd.f32 %v8551, %v8659
  %v8670 = vadd.f32 %v8552, %v8661
  %v8671 = vadd.f32 %v8553, %v8665
  %v8672 = vadd.f32 %v8554, %v8667
  %v8673 = vld [vmem:[%s75] sm:$0xff]
  %v8674 = vld [vmem:[%s75 + $0x8] sm:$0xff]
  %v8675 = vld [vmem:[%s75 + $0x10] sm:$0xff]
  %v8676 = vld [vmem:[%s75 + $0x18] sm:$0xff]
  %v8677 = vld [vmem:[%s75 + $0x20] sm:$0xff]
  %v8678 = vld [vmem:[%s75 + $0x28] sm:$0xff]
  %v8679 = vld [vmem:[%s75 + $0x30] sm:$0xff]
  %v8680 = vld [vmem:[%s75 + $0x38] sm:$0xff]
  %v8681 = vld [vmem:[%s75 + $0x40] sm:$0xff]
  %v8682 = vld [vmem:[%s75 + $0x48] sm:$0xff]
  %v8683 = vld [vmem:[%s75 + $0x50] sm:$0xff]
  %v8684 = vld [vmem:[%s75 + $0x58] sm:$0xff]
  %v8685 = vld [vmem:[%s75 + $0x60] sm:$0xff]
  %v8686 = vld [vmem:[%s75 + $0x68] sm:$0xff]
  %v8687 = vld [vmem:[%s75 + $0x70] sm:$0xff]
  %v8688 = vld [vmem:[%s75 + $0x78] sm:$0xff]
  %v8689 = vld [vmem:[%s75 + $0x80] sm:$0x3f]
  %8691 = vset.pattern.permute.xlu0 0
  %8692 = vperm.xlu0 %8691, %v7759
  %v8693 = vpop.permute.xlu0 %8692
  %8696 = vset.pattern.permute.xlu0 0
  %8697 = vperm.xlu0 %8696, %v7760
  %v8698 = vpop.permute.xlu0 %8697
  %v8701 = vsel %vm3569, %v8670, 0
  %v8704 = vsel %vm3569, %v8672, 0
  %v8707 = vsel %vm6394, %v8689, 0
  %8709 = vmatprep.subr.mxu0 0.0
  %8710 = vmatpush1.msra.mxu0 %v8673
  %8711 = vmatprep.subr.mxu0 0.0
  %8712 = vmatpush1.msra.mxu0 %v8674
  %8713 = vmatprep.subr.mxu0 0.0
  %8714 = vmatpush1.msra.mxu0 %v8675
  %8715 = vmatprep.subr.mxu0 0.0
  %8716 = vmatpush1.msra.mxu0 %v8676
  %8717 = vmatprep.subr.mxu0 0.0
  %8718 = vmatpush1.msra.mxu0 %v8677
  %8719 = vmatprep.subr.mxu0 0.0
  %8720 = vmatpush1.msra.mxu0 %v8678
  %8721 = vmatprep.subr.mxu0 0.0
  %8722 = vmatpush1.msra.mxu0 %v8679
  %8723 = vmatprep.subr.mxu0 0.0
  %8724 = vmatpush1.msra.mxu0 %v8680
  %8725 = vmatprep.subr.mxu0 0.0
  %8726 = vmatpush1.msra.mxu0 %v8681
  %8727 = vmatprep.subr.mxu0 0.0
  %8728 = vmatpush1.msra.mxu0 %v8682
  %8729 = vmatprep.subr.mxu0 0.0
  %8730 = vmatpush1.msra.mxu0 %v8683
  %8731 = vmatprep.subr.mxu0 0.0
  %8732 = vmatpush1.msra.mxu0 %v8684
  %8733 = vmatprep.subr.mxu0 0.0
  %8734 = vmatpush1.msra.mxu0 %v8685
  %8735 = vmatprep.subr.mxu0 0.0
  %8736 = vmatpush1.msra.mxu0 %v8686
  %8737 = vmatprep.subr.mxu0 0.0
  %8738 = vmatpush1.msra.mxu0 %v8687
  %8739 = vmatprep.subr.mxu0 0.0
  %8740 = vmatpush1.msra.mxu0 %v8688
  %8741 = vmatprep.subr.mxu0 0.0
  %8742 = vmatpush1.msra.mxu0 %v8707
  %8743 = vmatprep.subr.mxu0 0.0
  %8744 = vmatpush1.msra.mxu0 0.0
  %8745 = vmatprep.subr.mxu0 0.0
  %8746 = vmatpush1.msra.mxu0 0.0
  %8747 = vmatprep.subr.mxu0 0.0
  %8748 = vmatpush1.msra.mxu0 0.0
  %8749 = vmatprep.subr.mxu0 0.0
  %8750 = vmatpush1.msra.mxu0 0.0
  %8751 = vmatprep.subr.mxu0 0.0
  %8752 = vmatpush1.msra.mxu0 0.0
  %8753 = vmatprep.subr.mxu0 0.0
  %8754 = vmatpush1.msra.mxu0 0.0
  %8755 = vmatprep.subr.mxu0 0.0
  %8756 = vmatpush1.msra.mxu0 0.0
  %8757 = vmatprep.subr.mxu0 0.0
  %8758 = vmatpush1.msra.mxu0 0.0
  %8759 = vmatprep.subr.mxu0 0.0
  %8760 = vmatpush1.msra.mxu0 0.0
  %8761 = vmatprep.subr.mxu0 0.0
  %8762 = vmatpush1.msra.mxu0 0.0
  %8763 = vmatprep.subr.mxu0 0.0
  %8764 = vmatpush1.msra.mxu0 0.0
  %8765 = vmatprep.subr.mxu0 0.0
  %8766 = vmatpush1.msra.mxu0 0.0
  %8767 = vmatprep.subr.mxu0 0.0
  %8768 = vmatpush1.msra.mxu0 0.0
  %8769 = vmatprep.subr.mxu0 0.0
  %8770 = vmatpush1.msra.mxu0 0.0
  %8771 = vmatprep.subr.mxu0 0.0
  %8772 = vmatpush1.msra.mxu0 0.0
  %8773 = vmatprep.mubr.f32.mxu0 %v8701
  %8774 = vmatmul.mubr.f32.gmra.mrb[0].mxu0 %v8669
  %v8775 = vpop.f32.mrb[0].mxu0
  %v8776 = vadd.f32 %v8693, %v8775
  %v8777 = vpop.f32.mrb[0].mxu0
  %8778 = vmatprep.mubr.f32.mxu0 %v8704
  %8779 = vmatmul.mubr.f32.gmra.mrb[0].mxu0 %v8671
  %v8780 = vpop.f32.mrb[0].mxu0
  %v8781 = vadd.f32 %v8698, %v8780
  %v8782 = vpop.f32.mrb[0].mxu0
  %8783 = vdwg.mxu0
  %8784 = vadd.xlane.f32.xlu0 %v8776
  %v8785 = vpop.xlane.xlu0 %8784
  %8786 = vadd.xlane.f32.xlu0 %v8781
  %v8787 = vpop.xlane.xlu0 %8786
  %v8788 = vmul.f32 %v8785, 0.0078125
  %v8789 = vmul.f32 %v8787, 0.0078125
  %v8790 = vsub.f32 %v8776, %v8788
  %v8791 = vsub.f32 %v8781, %v8789
  %v8792 = vmul.f32 %v8790, %v8790
  %v8793 = vmul.f32 %v8791, %v8791
  %8794 = vadd.xlane.f32.xlu0 %v8792
  %v8795 = vpop.xlane.xlu0 %8794
  %8796 = vadd.xlane.f32.xlu0 %v8793
  %v8797 = vpop.xlane.xlu0 %8796
  %v8798 = vmul.f32 %v8795, 0.0078125
  %v8799 = vmul.f32 %v8797, 0.0078125
  %v8800 = vadd.f32 %v8798, 1e-05
  %v8801 = vadd.f32 %v8799, 1e-05
  %v8802 = vrsqrt.pop %v8800
  %v8803 = vrsqrt.pop %v8801
  %v8804 = vmul.f32 %v7761, %v8802
  %v8805 = vmul.f32 %v7762, %v8803
  %8807 = vset.pattern.permute.xlu0 0
  %8808 = vperm.xlu0 %8807, %v8804
  %v8809 = vpop.permute.xlu0 %8808
  %8812 = vset.pattern.permute.xlu0 0
  %8813 = vperm.xlu0 %8812, %v8805
  %v8814 = vpop.permute.xlu0 %8813
  %v8816 = vmul.f32 %v8790, %v8809
  %v8817 = vmul.f32 %v8791, %v8814
  %8819 = vset.pattern.permute.xlu0 0
  %8820 = vperm.xlu0 %8819, %v7763
  %v8821 = vpop.permute.xlu0 %8820
  %8824 = vset.pattern.permute.xlu0 0
  %8825 = vperm.xlu0 %8824, %v7764
  %v8826 = vpop.permute.xlu0 %8825
  %v8828 = vadd.f32 %v8816, %v8821
  %v8829 = vadd.f32 %v8817, %v8826
  %vm8830 = vcmp.ge.f32.partialorder %v8828, 0.0
  %vm8831 = vcmp.ge.f32.partialorder %v8829, 0.0
  %v8832 = vmul.f32 %v8828, 0.2
  %v8833 = vmul.f32 %v8829, 0.2
  %v8834 = vsel %vm8830, %v8828, %v8832
  %v8835 = vsel %vm8831, %v8829, %v8833
  %v8836 = vld [vmem:[%s79] sm:$0xff]
  %v8837 = vld [vmem:[%s81] sm:$0xff]
  %v8838 = vld [vmem:[%s83] sm:$0xff]
  %v8839 = vld [vmem:[%s85] sm:$0xff]
  %v8840 = vld [vmem:[%s85 + $0x8] sm:$0xff]
  %v8841 = vld [vmem:[%s85 + $0x10] sm:$0xff]
  %v8842 = vld [vmem:[%s85 + $0x18] sm:$0xff]
  %v8843 = vld [vmem:[%s85 + $0x20] sm:$0xff]
  %v8844 = vld [vmem:[%s85 + $0x28] sm:$0xff]
  %v8845 = vld [vmem:[%s85 + $0x30] sm:$0xff]
  %v8846 = vld [vmem:[%s85 + $0x38] sm:$0xff]
  %v8847 = vld [vmem:[%s85 + $0x40] sm:$0xff]
  %v8848 = vld [vmem:[%s85 + $0x48] sm:$0xff]
  %v8849 = vld [vmem:[%s85 + $0x50] sm:$0xff]
  %v8850 = vld [vmem:[%s85 + $0x58] sm:$0xff]
  %v8851 = vld [vmem:[%s85 + $0x60] sm:$0xff]
  %v8852 = vld [vmem:[%s85 + $0x68] sm:$0xff]
  %v8853 = vld [vmem:[%s85 + $0x70] sm:$0xff]
  %v8854 = vld [vmem:[%s85 + $0x78] sm:$0xff]
  %v8855 = vld [vmem:[%s85 + $0x80] sm:$0xff]
  %v8856 = vld [vmem:[%s85 + $0x88] sm:$0xff]
  %v8857 = vld [vmem:[%s85 + $0x90] sm:$0xff]
  %v8858 = vld [vmem:[%s85 + $0x98] sm:$0xff]
  %v8859 = vld [vmem:[%s85 + $0xa0] sm:$0xff]
  %v8860 = vld [vmem:[%s85 + $0xa8] sm:$0xff]
  %v8861 = vld [vmem:[%s85 + $0xb0] sm:$0xff]
  %v8862 = vld [vmem:[%s85 + $0xb8] sm:$0xff]
  %v8863 = vld [vmem:[%s85 + $0xc0] sm:$0xff]
  %v8864 = vld [vmem:[%s85 + $0xc8] sm:$0xff]
  %v8865 = vld [vmem:[%s85 + $0xd0] sm:$0xff]
  %v8866 = vld [vmem:[%s85 + $0xd8] sm:$0xff]
  %v8867 = vld [vmem:[%s85 + $0xe0] sm:$0xff]
  %v8868 = vld [vmem:[%s85 + $0xe8] sm:$0xff]
  %v8869 = vld [vmem:[%s85 + $0xf0] sm:$0xff]
  %v8870 = vld [vmem:[%s85 + $0xf8] sm:$0xff]
  %v8871 = vld [vmem:[%s85 + $0x100] sm:$0xff]
  %v8872 = vld [vmem:[%s85 + $0x108] sm:$0xff]
  %v8873 = vld [vmem:[%s85 + $0x110] sm:$0xff]
  %v8874 = vld [vmem:[%s85 + $0x118] sm:$0xff]
  %v8875 = vld [vmem:[%s85 + $0x120] sm:$0xff]
  %v8876 = vld [vmem:[%s85 + $0x128] sm:$0xff]
  %v8877 = vld [vmem:[%s85 + $0x130] sm:$0xff]
  %v8878 = vld [vmem:[%s85 + $0x138] sm:$0xff]
  %v8879 = vld [vmem:[%s85 + $0x140] sm:$0xff]
  %v8880 = vld [vmem:[%s85 + $0x148] sm:$0xff]
  %v8881 = vld [vmem:[%s85 + $0x150] sm:$0xff]
  %v8882 = vld [vmem:[%s85 + $0x158] sm:$0xff]
  %v8883 = vld [vmem:[%s85 + $0x160] sm:$0xff]
  %v8884 = vld [vmem:[%s85 + $0x168] sm:$0xff]
  %v8885 = vld [vmem:[%s85 + $0x170] sm:$0xff]
  %v8886 = vld [vmem:[%s85 + $0x178] sm:$0xff]
  %8887 = vmatprep.subr.mxu0 %v8840
  %8888 = vmatpush1.msra.mxu0 %v8839
  %8889 = vmatprep.subr.mxu0 %v8843
  %8890 = vmatpush1.msra.mxu0 %v8842
  %8891 = vmatprep.subr.mxu0 %v8846
  %8892 = vmatpush1.msra.mxu0 %v8845
  %8893 = vmatprep.subr.mxu0 %v8849
  %8894 = vmatpush1.msra.mxu0 %v8848
  %8895 = vmatprep.subr.mxu0 %v8852
  %8896 = vmatpush1.msra.mxu0 %v8851
  %8897 = vmatprep.subr.mxu0 %v8855
  %8898 = vmatpush1.msra.mxu0 %v8854
  %8899 = vmatprep.subr.mxu0 %v8858
  %8900 = vmatpush1.msra.mxu0 %v8857
  %8901 = vmatprep.subr.mxu0 %v8861
  %8902 = vmatpush1.msra.mxu0 %v8860
  %8903 = vmatprep.subr.mxu0 %v8864
  %8904 = vmatpush1.msra.mxu0 %v8863
  %8905 = vmatprep.subr.mxu0 %v8867
  %8906 = vmatpush1.msra.mxu0 %v8866
  %8907 = vmatprep.subr.mxu0 %v8870
  %8908 = vmatpush1.msra.mxu0 %v8869
  %8909 = vmatprep.subr.mxu0 %v8873
  %8910 = vmatpush1.msra.mxu0 %v8872
  %8911 = vmatprep.subr.mxu0 %v8876
  %8912 = vmatpush1.msra.mxu0 %v8875
  %8913 = vmatprep.subr.mxu0 %v8879
  %8914 = vmatpush1.msra.mxu0 %v8878
  %8915 = vmatprep.subr.mxu0 %v8882
  %8916 = vmatpush1.msra.mxu0 %v8881
  %8917 = vmatprep.subr.mxu0 %v8885
  %8918 = vmatpush1.msra.mxu0 %v8884
  %8919 = vmatprep.subr.mxu0 0.0
  %8920 = vmatpush1.msra.mxu0 0.0
  %8921 = vmatprep.subr.mxu0 0.0
  %8922 = vmatpush1.msra.mxu0 0.0
  %8923 = vmatprep.subr.mxu0 0.0
  %8924 = vmatpush1.msra.mxu0 0.0
  %8925 = vmatprep.subr.mxu0 0.0
  %8926 = vmatpush1.msra.mxu0 0.0
  %8927 = vmatprep.subr.mxu0 0.0
  %8928 = vmatpush1.msra.mxu0 0.0
  %8929 = vmatprep.subr.mxu0 0.0
  %8930 = vmatpush1.msra.mxu0 0.0
  %8931 = vmatprep.subr.mxu0 0.0
  %8932 = vmatpush1.msra.mxu0 0.0
  %8933 = vmatprep.subr.mxu0 0.0
  %8934 = vmatpush1.msra.mxu0 0.0
  %8935 = vmatprep.subr.mxu0 0.0
  %8936 = vmatpush1.msra.mxu0 0.0
  %8937 = vmatprep.subr.mxu0 0.0
  %8938 = vmatpush1.msra.mxu0 0.0
  %8939 = vmatprep.subr.mxu0 0.0
  %8940 = vmatpush1.msra.mxu0 0.0
  %8941 = vmatprep.subr.mxu0 0.0
  %8942 = vmatpush1.msra.mxu0 0.0
  %8943 = vmatprep.subr.mxu0 0.0
  %8944 = vmatpush1.msra.mxu0 0.0
  %8945 = vmatprep.subr.mxu0 0.0
  %8946 = vmatpush1.msra.mxu0 0.0
  %8947 = vmatprep.subr.mxu0 0.0
  %8948 = vmatpush1.msra.mxu0 0.0
  %8949 = vmatprep.subr.mxu0 0.0
  %8950 = vmatpush1.msra.mxu0 0.0
  %8951 = vmatprep.mubr.f32.mxu0 0.0
  %8952 = vmatmul.mubr.f32.gmra.mrb[0].mxu0 %v8834
  %v8953 = vpop.f32.mrb[0].mxu0
  %v8954 = vadd.f32 0.0, %v8953
  %v8955 = vpop.f32.mrb[0].mxu0
  %v8956 = vadd.f32 0.0, %v8955
  %8957 = vmatprep.mubr.f32.mxu0 0.0
  %8958 = vmatmul.mubr.f32.gmra.mrb[0].mxu0 %v8835
  %v8959 = vpop.f32.mrb[0].mxu0
  %v8960 = vadd.f32 0.0, %v8959
  %v8961 = vpop.f32.mrb[0].mxu0
  %v8962 = vadd.f32 0.0, %v8961
  %8963 = vdwg.mxu0
  %8964 = vmatprep.subr.mxu0 0.0
  %8965 = vmatpush1.msra.mxu0 %v8841
  %8966 = vmatprep.subr.mxu0 0.0
  %8967 = vmatpush1.msra.mxu0 %v8844
  %8968 = vmatprep.subr.mxu0 0.0
  %8969 = vmatpush1.msra.mxu0 %v8847
  %8970 = vmatprep.subr.mxu0 0.0
  %8971 = vmatpush1.msra.mxu0 %v8850
  %8972 = vmatprep.subr.mxu0 0.0
  %8973 = vmatpush1.msra.mxu0 %v8853
  %8974 = vmatprep.subr.mxu0 0.0
  %8975 = vmatpush1.msra.mxu0 %v8856
  %8976 = vmatprep.subr.mxu0 0.0
  %8977 = vmatpush1.msra.mxu0 %v8859
  %8978 = vmatprep.subr.mxu0 0.0
  %8979 = vmatpush1.msra.mxu0 %v8862
  %8980 = vmatprep.subr.mxu0 0.0
  %8981 = vmatpush1.msra.mxu0 %v8865
  %8982 = vmatprep.subr.mxu0 0.0
  %8983 = vmatpush1.msra.mxu0 %v8868
  %8984 = vmatprep.subr.mxu0 0.0
  %8985 = vmatpush1.msra.mxu0 %v8871
  %8986 = vmatprep.subr.mxu0 0.0
  %8987 = vmatpush1.msra.mxu0 %v8874
  %8988 = vmatprep.subr.mxu0 0.0
  %8989 = vmatpush1.msra.mxu0 %v8877
  %8990 = vmatprep.subr.mxu0 0.0
  %8991 = vmatpush1.msra.mxu0 %v8880
  %8992 = vmatprep.subr.mxu0 0.0
  %8993 = vmatpush1.msra.mxu0 %v8883
  %8994 = vmatprep.subr.mxu0 0.0
  %8995 = vmatpush1.msra.mxu0 %v8886
  %8996 = vmatprep.subr.mxu0 0.0
  %8997 = vmatpush1.msra.mxu0 0.0
  %8998 = vmatprep.subr.mxu0 0.0
  %8999 = vmatpush1.msra.mxu0 0.0
  %9000 = vmatprep.subr.mxu0 0.0
  %9001 = vmatpush1.msra.mxu0 0.0
  %9002 = vmatprep.subr.mxu0 0.0
  %9003 = vmatpush1.msra.mxu0 0.0
  %9004 = vmatprep.subr.mxu0 0.0
  %9005 = vmatpush1.msra.mxu0 0.0
  %9006 = vmatprep.subr.mxu0 0.0
  %9007 = vmatpush1.msra.mxu0 0.0
  %9008 = vmatprep.subr.mxu0 0.0
  %9009 = vmatpush1.msra.mxu0 0.0
  %9010 = vmatprep.subr.mxu0 0.0
  %9011 = vmatpush1.msra.mxu0 0.0
  %9012 = vmatprep.subr.mxu0 0.0
  %9013 = vmatpush1.msra.mxu0 0.0
  %9014 = vmatprep.subr.mxu0 0.0
  %9015 = vmatpush1.msra.mxu0 0.0
  %9016 = vmatprep.subr.mxu0 0.0
  %9017 = vmatpush1.msra.mxu0 0.0
  %9018 = vmatprep.subr.mxu0 0.0
  %9019 = vmatpush1.msra.mxu0 0.0
  %9020 = vmatprep.subr.mxu0 0.0
  %9021 = vmatpush1.msra.mxu0 0.0
  %9022 = vmatprep.subr.mxu0 0.0
  %9023 = vmatpush1.msra.mxu0 0.0
  %9024 = vmatprep.subr.mxu0 0.0
  %9025 = vmatpush1.msra.mxu0 0.0
  %9026 = vmatprep.subr.mxu0 0.0
  %9027 = vmatpush1.msra.mxu0 0.0
  %9028 = vmatprep.mubr.f32.mxu0 0.0
  %9029 = vmatmul.mubr.f32.gmra.mrb[0].mxu0 %v8834
  %v9030 = vpop.f32.mrb[0].mxu0
  %v9031 = vadd.f32 0.0, %v9030
  %v9032 = vpop.f32.mrb[0].mxu0
  %9033 = vmatprep.mubr.f32.mxu0 0.0
  %9034 = vmatmul.mubr.f32.gmra.mrb[0].mxu0 %v8835
  %v9035 = vpop.f32.mrb[0].mxu0
  %v9036 = vadd.f32 0.0, %v9035
  %v9037 = vpop.f32.mrb[0].mxu0
  %9038 = vdwg.mxu0
  %v9039 = vld [vmem:[%s77] sm:$0xff]
  %s9040 = scalar_lea.vmem %s77, 8
  %v9041 = vld [vmem:[%s9040] sm:$0xff]
  %9048 = vrot.lane.b32.xlu0 %v8954, 127
  %v9049 = vpop.permute.xlu0 %9048
  %9050 = vrot.lane.b32.xlu0 %v8956, 127
  %v9051 = vpop.permute.xlu0 %9050
  %9052 = vrot.lane.b32.xlu0 %v9031, 127
  %v9053 = vpop.permute.xlu0 %9052
  %9054 = vrot.lane.b32.xlu0 %v8960, 127
  %v9055 = vpop.permute.xlu0 %9054
  %9056 = vrot.lane.b32.xlu0 %v8962, 127
  %v9057 = vpop.permute.xlu0 %9056
  %9058 = vrot.lane.b32.xlu0 %v9036, 127
  %v9059 = vpop.permute.xlu0 %9058
  %v9060 = vsel %vm236, %v9049, %v9051
  %v9061 = vsel %vm236, %v9051, %v9053
  %v9062 = vsel %vm236, %v9055, %v9057
  %v9063 = vsel %vm236, %v9057, %v9059
  %v9071 = vsel %vm1300, %v9041, 0
  %9073 = vmatprep.subr.mxu0 %v9061
  %9074 = vmatpush1.msra.mxu0 %v9060
  %9075 = vmatprep.subr.mxu0 %v9063
  %9076 = vmatpush1.msra.mxu0 %v9062
  %9077 = vmatprep.subr.mxu0 0.0
  %9078 = vmatpush1.msra.mxu0 0.0
  %9079 = vmatprep.subr.mxu0 0.0
  %9080 = vmatpush1.msra.mxu0 0.0
  %9081 = vmatprep.subr.mxu0 0.0
  %9082 = vmatpush1.msra.mxu0 0.0
  %9083 = vmatprep.subr.mxu0 0.0
  %9084 = vmatpush1.msra.mxu0 0.0
  %9085 = vmatprep.subr.mxu0 0.0
  %9086 = vmatpush1.msra.mxu0 0.0
  %9087 = vmatprep.subr.mxu0 0.0
  %9088 = vmatpush1.msra.mxu0 0.0
  %9089 = vmatprep.subr.mxu0 0.0
  %9090 = vmatpush1.msra.mxu0 0.0
  %9091 = vmatprep.subr.mxu0 0.0
  %9092 = vmatpush1.msra.mxu0 0.0
  %9093 = vmatprep.subr.mxu0 0.0
  %9094 = vmatpush1.msra.mxu0 0.0
  %9095 = vmatprep.subr.mxu0 0.0
  %9096 = vmatpush1.msra.mxu0 0.0
  %9097 = vmatprep.subr.mxu0 0.0
  %9098 = vmatpush1.msra.mxu0 0.0
  %9099 = vmatprep.subr.mxu0 0.0
  %9100 = vmatpush1.msra.mxu0 0.0
  %9101 = vmatprep.subr.mxu0 0.0
  %9102 = vmatpush1.msra.mxu0 0.0
  %9103 = vmatprep.subr.mxu0 0.0
  %9104 = vmatpush1.msra.mxu0 0.0
  %9105 = vmatprep.subr.mxu0 0.0
  %9106 = vmatpush1.msra.mxu0 0.0
  %9107 = vmatprep.subr.mxu0 0.0
  %9108 = vmatpush1.msra.mxu0 0.0
  %9109 = vmatprep.subr.mxu0 0.0
  %9110 = vmatpush1.msra.mxu0 0.0
  %9111 = vmatprep.subr.mxu0 0.0
  %9112 = vmatpush1.msra.mxu0 0.0
  %9113 = vmatprep.subr.mxu0 0.0
  %9114 = vmatpush1.msra.mxu0 0.0
  %9115 = vmatprep.subr.mxu0 0.0
  %9116 = vmatpush1.msra.mxu0 0.0
  %9117 = vmatprep.subr.mxu0 0.0
  %9118 = vmatpush1.msra.mxu0 0.0
  %9119 = vmatprep.subr.mxu0 0.0
  %9120 = vmatpush1.msra.mxu0 0.0
  %9121 = vmatprep.subr.mxu0 0.0
  %9122 = vmatpush1.msra.mxu0 0.0
  %9123 = vmatprep.subr.mxu0 0.0
  %9124 = vmatpush1.msra.mxu0 0.0
  %9125 = vmatprep.subr.mxu0 0.0
  %9126 = vmatpush1.msra.mxu0 0.0
  %9127 = vmatprep.subr.mxu0 0.0
  %9128 = vmatpush1.msra.mxu0 0.0
  %9129 = vmatprep.subr.mxu0 0.0
  %9130 = vmatpush1.msra.mxu0 0.0
  %9131 = vmatprep.subr.mxu0 0.0
  %9132 = vmatpush1.msra.mxu0 0.0
  %9133 = vmatprep.subr.mxu0 0.0
  %9134 = vmatpush1.msra.mxu0 0.0
  %9135 = vmatprep.subr.mxu0 0.0
  %9136 = vmatpush1.msra.mxu0 0.0
  %9137 = vmatprep.mubr.f32.mxu0 0.0
  %9138 = vmatmul.mubr.f32.gmra.mrb[0].mxu0 %v9071
  %v9139 = vpop.f32.mrb[0].mxu0
  %v9140 = vadd.f32 0.0, %v9139
  %v9141 = vpop.f32.mrb[0].mxu0
  %v9142 = vadd.f32 0.0, %v9141
  %9143 = vdwg.mxu0
  %9144 = vmatprep.subr.mxu0 0.0
  %9145 = vmatpush1.msra.mxu0 %v9053
  %9146 = vmatprep.subr.mxu0 0.0
  %9147 = vmatpush1.msra.mxu0 %v9059
  %9148 = vmatprep.subr.mxu0 0.0
  %9149 = vmatpush1.msra.mxu0 0.0
  %9150 = vmatprep.subr.mxu0 0.0
  %9151 = vmatpush1.msra.mxu0 0.0
  %9152 = vmatprep.subr.mxu0 0.0
  %9153 = vmatpush1.msra.mxu0 0.0
  %9154 = vmatprep.subr.mxu0 0.0
  %9155 = vmatpush1.msra.mxu0 0.0
  %9156 = vmatprep.subr.mxu0 0.0
  %9157 = vmatpush1.msra.mxu0 0.0
  %9158 = vmatprep.subr.mxu0 0.0
  %9159 = vmatpush1.msra.mxu0 0.0
  %9160 = vmatprep.subr.mxu0 0.0
  %9161 = vmatpush1.msra.mxu0 0.0
  %9162 = vmatprep.subr.mxu0 0.0
  %9163 = vmatpush1.msra.mxu0 0.0
  %9164 = vmatprep.subr.mxu0 0.0
  %9165 = vmatpush1.msra.mxu0 0.0
  %9166 = vmatprep.subr.mxu0 0.0
  %9167 = vmatpush1.msra.mxu0 0.0
  %9168 = vmatprep.subr.mxu0 0.0
  %9169 = vmatpush1.msra.mxu0 0.0
  %9170 = vmatprep.subr.mxu0 0.0
  %9171 = vmatpush1.msra.mxu0 0.0
  %9172 = vmatprep.subr.mxu0 0.0
  %9173 = vmatpush1.msra.mxu0 0.0
  %9174 = vmatprep.subr.mxu0 0.0
  %9175 = vmatpush1.msra.mxu0 0.0
  %9176 = vmatprep.subr.mxu0 0.0
  %9177 = vmatpush1.msra.mxu0 0.0
  %9178 = vmatprep.subr.mxu0 0.0
  %9179 = vmatpush1.msra.mxu0 0.0
  %9180 = vmatprep.subr.mxu0 0.0
  %9181 = vmatpush1.msra.mxu0 0.0
  %9182 = vmatprep.subr.mxu0 0.0
  %9183 = vmatpush1.msra.mxu0 0.0
  %9184 = vmatprep.subr.mxu0 0.0
  %9185 = vmatpush1.msra.mxu0 0.0
  %9186 = vmatprep.subr.mxu0 0.0
  %9187 = vmatpush1.msra.mxu0 0.0
  %9188 = vmatprep.subr.mxu0 0.0
  %9189 = vmatpush1.msra.mxu0 0.0
  %9190 = vmatprep.subr.mxu0 0.0
  %9191 = vmatpush1.msra.mxu0 0.0
  %9192 = vmatprep.subr.mxu0 0.0
  %9193 = vmatpush1.msra.mxu0 0.0
  %9194 = vmatprep.subr.mxu0 0.0
  %9195 = vmatpush1.msra.mxu0 0.0
  %9196 = vmatprep.subr.mxu0 0.0
  %9197 = vmatpush1.msra.mxu0 0.0
  %9198 = vmatprep.subr.mxu0 0.0
  %9199 = vmatpush1.msra.mxu0 0.0
  %9200 = vmatprep.subr.mxu0 0.0
  %9201 = vmatpush1.msra.mxu0 0.0
  %9202 = vmatprep.subr.mxu0 0.0
  %9203 = vmatpush1.msra.mxu0 0.0
  %9204 = vmatprep.subr.mxu0 0.0
  %9205 = vmatpush1.msra.mxu0 0.0
  %9206 = vmatprep.subr.mxu0 0.0
  %9207 = vmatpush1.msra.mxu0 0.0
  %9208 = vmatprep.mubr.f32.mxu0 0.0
  %9209 = vmatmul.mubr.f32.gmra.mrb[0].mxu0 %v9071
  %v9210 = vpop.f32.mrb[0].mxu0
  %v9211 = vadd.f32 0.0, %v9210
  %v9212 = vpop.f32.mrb[0].mxu0
  %9213 = vdwg.mxu0
  %v9215 = vsel %vm1300, %v9039, 0
  %9217 = vmatprep.subr.mxu0 %v8956
  %9218 = vmatpush1.msra.mxu0 %v8954
  %9219 = vmatprep.subr.mxu0 %v8962
  %9220 = vmatpush1.msra.mxu0 %v8960
  %9221 = vmatprep.subr.mxu0 0.0
  %9222 = vmatpush1.msra.mxu0 0.0
  %9223 = vmatprep.subr.mxu0 0.0
  %9224 = vmatpush1.msra.mxu0 0.0
  %9225 = vmatprep.subr.mxu0 0.0
  %9226 = vmatpush1.msra.mxu0 0.0
  %9227 = vmatprep.subr.mxu0 0.0
  %9228 = vmatpush1.msra.mxu0 0.0
  %9229 = vmatprep.subr.mxu0 0.0
  %9230 = vmatpush1.msra.mxu0 0.0
  %9231 = vmatprep.subr.mxu0 0.0
  %9232 = vmatpush1.msra.mxu0 0.0
  %9233 = vmatprep.subr.mxu0 0.0
  %9234 = vmatpush1.msra.mxu0 0.0
  %9235 = vmatprep.subr.mxu0 0.0
  %9236 = vmatpush1.msra.mxu0 0.0
  %9237 = vmatprep.subr.mxu0 0.0
  %9238 = vmatpush1.msra.mxu0 0.0
  %9239 = vmatprep.subr.mxu0 0.0
  %9240 = vmatpush1.msra.mxu0 0.0
  %9241 = vmatprep.subr.mxu0 0.0
  %9242 = vmatpush1.msra.mxu0 0.0
  %9243 = vmatprep.subr.mxu0 0.0
  %9244 = vmatpush1.msra.mxu0 0.0
  %9245 = vmatprep.subr.mxu0 0.0
  %9246 = vmatpush1.msra.mxu0 0.0
  %9247 = vmatprep.subr.mxu0 0.0
  %9248 = vmatpush1.msra.mxu0 0.0
  %9249 = vmatprep.subr.mxu0 0.0
  %9250 = vmatpush1.msra.mxu0 0.0
  %9251 = vmatprep.subr.mxu0 0.0
  %9252 = vmatpush1.msra.mxu0 0.0
  %9253 = vmatprep.subr.mxu0 0.0
  %9254 = vmatpush1.msra.mxu0 0.0
  %9255 = vmatprep.subr.mxu0 0.0
  %9256 = vmatpush1.msra.mxu0 0.0
  %9257 = vmatprep.subr.mxu0 0.0
  %9258 = vmatpush1.msra.mxu0 0.0
  %9259 = vmatprep.subr.mxu0 0.0
  %9260 = vmatpush1.msra.mxu0 0.0
  %9261 = vmatprep.subr.mxu0 0.0
  %9262 = vmatpush1.msra.mxu0 0.0
  %9263 = vmatprep.subr.mxu0 0.0
  %9264 = vmatpush1.msra.mxu0 0.0
  %9265 = vmatprep.subr.mxu0 0.0
  %9266 = vmatpush1.msra.mxu0 0.0
  %9267 = vmatprep.subr.mxu0 0.0
  %9268 = vmatpush1.msra.mxu0 0.0
  %9269 = vmatprep.subr.mxu0 0.0
  %9270 = vmatpush1.msra.mxu0 0.0
  %9271 = vmatprep.subr.mxu0 0.0
  %9272 = vmatpush1.msra.mxu0 0.0
  %9273 = vmatprep.subr.mxu0 0.0
  %9274 = vmatpush1.msra.mxu0 0.0
  %9275 = vmatprep.subr.mxu0 0.0
  %9276 = vmatpush1.msra.mxu0 0.0
  %9277 = vmatprep.subr.mxu0 0.0
  %9278 = vmatpush1.msra.mxu0 0.0
  %9279 = vmatprep.subr.mxu0 0.0
  %9280 = vmatpush1.msra.mxu0 0.0
  %9281 = vmatprep.mubr.f32.mxu0 0.0
  %9282 = vmatmul.mubr.f32.gmra.mrb[0].mxu0 %v9215
  %v9283 = vpop.f32.mrb[0].mxu0
  %v9284 = vadd.f32 %v9140, %v9283
  %v9285 = vpop.f32.mrb[0].mxu0
  %v9286 = vadd.f32 %v9142, %v9285
  %9287 = vdwg.mxu0
  %9288 = vmatprep.subr.mxu0 0.0
  %9289 = vmatpush1.msra.mxu0 %v9031
  %9290 = vmatprep.subr.mxu0 0.0
  %9291 = vmatpush1.msra.mxu0 %v9036
  %9292 = vmatprep.subr.mxu0 0.0
  %9293 = vmatpush1.msra.mxu0 0.0
  %9294 = vmatprep.subr.mxu0 0.0
  %9295 = vmatpush1.msra.mxu0 0.0
  %9296 = vmatprep.subr.mxu0 0.0
  %9297 = vmatpush1.msra.mxu0 0.0
  %9298 = vmatprep.subr.mxu0 0.0
  %9299 = vmatpush1.msra.mxu0 0.0
  %9300 = vmatprep.subr.mxu0 0.0
  %9301 = vmatpush1.msra.mxu0 0.0
  %9302 = vmatprep.subr.mxu0 0.0
  %9303 = vmatpush1.msra.mxu0 0.0
  %9304 = vmatprep.subr.mxu0 0.0
  %9305 = vmatpush1.msra.mxu0 0.0
  %9306 = vmatprep.subr.mxu0 0.0
  %9307 = vmatpush1.msra.mxu0 0.0
  %9308 = vmatprep.subr.mxu0 0.0
  %9309 = vmatpush1.msra.mxu0 0.0
  %9310 = vmatprep.subr.mxu0 0.0
  %9311 = vmatpush1.msra.mxu0 0.0
  %9312 = vmatprep.subr.mxu0 0.0
  %9313 = vmatpush1.msra.mxu0 0.0
  %9314 = vmatprep.subr.mxu0 0.0
  %9315 = vmatpush1.msra.mxu0 0.0
  %9316 = vmatprep.subr.mxu0 0.0
  %9317 = vmatpush1.msra.mxu0 0.0
  %9318 = vmatprep.subr.mxu0 0.0
  %9319 = vmatpush1.msra.mxu0 0.0
  %9320 = vmatprep.subr.mxu0 0.0
  %9321 = vmatpush1.msra.mxu0 0.0
  %9322 = vmatprep.subr.mxu0 0.0
  %9323 = vmatpush1.msra.mxu0 0.0
  %9324 = vmatprep.subr.mxu0 0.0
  %9325 = vmatpush1.msra.mxu0 0.0
  %9326 = vmatprep.subr.mxu0 0.0
  %9327 = vmatpush1.msra.mxu0 0.0
  %9328 = vmatprep.subr.mxu0 0.0
  %9329 = vmatpush1.msra.mxu0 0.0
  %9330 = vmatprep.subr.mxu0 0.0
  %9331 = vmatpush1.msra.mxu0 0.0
  %9332 = vmatprep.subr.mxu0 0.0
  %9333 = vmatpush1.msra.mxu0 0.0
  %9334 = vmatprep.subr.mxu0 0.0
  %9335 = vmatpush1.msra.mxu0 0.0
  %9336 = vmatprep.subr.mxu0 0.0
  %9337 = vmatpush1.msra.mxu0 0.0
  %9338 = vmatprep.subr.mxu0 0.0
  %9339 = vmatpush1.msra.mxu0 0.0
  %9340 = vmatprep.subr.mxu0 0.0
  %9341 = vmatpush1.msra.mxu0 0.0
  %9342 = vmatprep.subr.mxu0 0.0
  %9343 = vmatpush1.msra.mxu0 0.0
  %9344 = vmatprep.subr.mxu0 0.0
  %9345 = vmatpush1.msra.mxu0 0.0
  %9346 = vmatprep.subr.mxu0 0.0
  %9347 = vmatpush1.msra.mxu0 0.0
  %9348 = vmatprep.subr.mxu0 0.0
  %9349 = vmatpush1.msra.mxu0 0.0
  %9350 = vmatprep.subr.mxu0 0.0
  %9351 = vmatpush1.msra.mxu0 0.0
  %9352 = vmatprep.mubr.f32.mxu0 0.0
  %9353 = vmatmul.mubr.f32.gmra.mrb[0].mxu0 %v9215
  %v9354 = vpop.f32.mrb[0].mxu0
  %v9355 = vadd.f32 %v9211, %v9354
  %v9356 = vpop.f32.mrb[0].mxu0
  %9357 = vdwg.mxu0
  %s9358 = scalar_lea.vmem %s77, 16
  %v9359 = vld [vmem:[%s9358] sm:$0xff]
  %9360 = vrot.lane.b32.xlu0 %v8954, 126
  %v9361 = vpop.permute.xlu0 %9360
  %9362 = vrot.lane.b32.xlu0 %v8956, 126
  %v9363 = vpop.permute.xlu0 %9362
  %9364 = vrot.lane.b32.xlu0 %v9031, 126
  %v9365 = vpop.permute.xlu0 %9364
  %9366 = vrot.lane.b32.xlu0 %v8960, 126
  %v9367 = vpop.permute.xlu0 %9366
  %9368 = vrot.lane.b32.xlu0 %v8962, 126
  %v9369 = vpop.permute.xlu0 %9368
  %9370 = vrot.lane.b32.xlu0 %v9036, 126
  %v9371 = vpop.permute.xlu0 %9370
  %v9372 = vsel %vm257, %v9361, %v9363
  %v9373 = vsel %vm257, %v9363, %v9365
  %v9374 = vsel %vm257, %v9367, %v9369
  %v9375 = vsel %vm257, %v9369, %v9371
  %v9383 = vsel %vm1300, %v9359, 0
  %9385 = vmatprep.subr.mxu0 %v9373
  %9386 = vmatpush1.msra.mxu0 %v9372
  %9387 = vmatprep.subr.mxu0 %v9375
  %9388 = vmatpush1.msra.mxu0 %v9374
  %9389 = vmatprep.subr.mxu0 0.0
  %9390 = vmatpush1.msra.mxu0 0.0
  %9391 = vmatprep.subr.mxu0 0.0
  %9392 = vmatpush1.msra.mxu0 0.0
  %9393 = vmatprep.subr.mxu0 0.0
  %9394 = vmatpush1.msra.mxu0 0.0
  %9395 = vmatprep.subr.mxu0 0.0
  %9396 = vmatpush1.msra.mxu0 0.0
  %9397 = vmatprep.subr.mxu0 0.0
  %9398 = vmatpush1.msra.mxu0 0.0
  %9399 = vmatprep.subr.mxu0 0.0
  %9400 = vmatpush1.msra.mxu0 0.0
  %9401 = vmatprep.subr.mxu0 0.0
  %9402 = vmatpush1.msra.mxu0 0.0
  %9403 = vmatprep.subr.mxu0 0.0
  %9404 = vmatpush1.msra.mxu0 0.0
  %9405 = vmatprep.subr.mxu0 0.0
  %9406 = vmatpush1.msra.mxu0 0.0
  %9407 = vmatprep.subr.mxu0 0.0
  %9408 = vmatpush1.msra.mxu0 0.0
  %9409 = vmatprep.subr.mxu0 0.0
  %9410 = vmatpush1.msra.mxu0 0.0
  %9411 = vmatprep.subr.mxu0 0.0
  %9412 = vmatpush1.msra.mxu0 0.0
  %9413 = vmatprep.subr.mxu0 0.0
  %9414 = vmatpush1.msra.mxu0 0.0
  %9415 = vmatprep.subr.mxu0 0.0
  %9416 = vmatpush1.msra.mxu0 0.0
  %9417 = vmatprep.subr.mxu0 0.0
  %9418 = vmatpush1.msra.mxu0 0.0
  %9419 = vmatprep.subr.mxu0 0.0
  %9420 = vmatpush1.msra.mxu0 0.0
  %9421 = vmatprep.subr.mxu0 0.0
  %9422 = vmatpush1.msra.mxu0 0.0
  %9423 = vmatprep.subr.mxu0 0.0
  %9424 = vmatpush1.msra.mxu0 0.0
  %9425 = vmatprep.subr.mxu0 0.0
  %9426 = vmatpush1.msra.mxu0 0.0
  %9427 = vmatprep.subr.mxu0 0.0
  %9428 = vmatpush1.msra.mxu0 0.0
  %9429 = vmatprep.subr.mxu0 0.0
  %9430 = vmatpush1.msra.mxu0 0.0
  %9431 = vmatprep.subr.mxu0 0.0
  %9432 = vmatpush1.msra.mxu0 0.0
  %9433 = vmatprep.subr.mxu0 0.0
  %9434 = vmatpush1.msra.mxu0 0.0
  %9435 = vmatprep.subr.mxu0 0.0
  %9436 = vmatpush1.msra.mxu0 0.0
  %9437 = vmatprep.subr.mxu0 0.0
  %9438 = vmatpush1.msra.mxu0 0.0
  %9439 = vmatprep.subr.mxu0 0.0
  %9440 = vmatpush1.msra.mxu0 0.0
  %9441 = vmatprep.subr.mxu0 0.0
  %9442 = vmatpush1.msra.mxu0 0.0
  %9443 = vmatprep.subr.mxu0 0.0
  %9444 = vmatpush1.msra.mxu0 0.0
  %9445 = vmatprep.subr.mxu0 0.0
  %9446 = vmatpush1.msra.mxu0 0.0
  %9447 = vmatprep.subr.mxu0 0.0
  %9448 = vmatpush1.msra.mxu0 0.0
  %9449 = vmatprep.mubr.f32.mxu0 0.0
  %9450 = vmatmul.mubr.f32.gmra.mrb[0].mxu0 %v9383
  %v9451 = vpop.f32.mrb[0].mxu0
  %v9452 = vadd.f32 0.0, %v9451
  %v9453 = vpop.f32.mrb[0].mxu0
  %v9454 = vadd.f32 0.0, %v9453
  %9455 = vdwg.mxu0
  %9456 = vmatprep.subr.mxu0 0.0
  %9457 = vmatpush1.msra.mxu0 %v9365
  %9458 = vmatprep.subr.mxu0 0.0
  %9459 = vmatpush1.msra.mxu0 %v9371
  %9460 = vmatprep.subr.mxu0 0.0
  %9461 = vmatpush1.msra.mxu0 0.0
  %9462 = vmatprep.subr.mxu0 0.0
  %9463 = vmatpush1.msra.mxu0 0.0
  %9464 = vmatprep.subr.mxu0 0.0
  %9465 = vmatpush1.msra.mxu0 0.0
  %9466 = vmatprep.subr.mxu0 0.0
  %9467 = vmatpush1.msra.mxu0 0.0
  %9468 = vmatprep.subr.mxu0 0.0
  %9469 = vmatpush1.msra.mxu0 0.0
  %9470 = vmatprep.subr.mxu0 0.0
  %9471 = vmatpush1.msra.mxu0 0.0
  %9472 = vmatprep.subr.mxu0 0.0
  %9473 = vmatpush1.msra.mxu0 0.0
  %9474 = vmatprep.subr.mxu0 0.0
  %9475 = vmatpush1.msra.mxu0 0.0
  %9476 = vmatprep.subr.mxu0 0.0
  %9477 = vmatpush1.msra.mxu0 0.0
  %9478 = vmatprep.subr.mxu0 0.0
  %9479 = vmatpush1.msra.mxu0 0.0
  %9480 = vmatprep.subr.mxu0 0.0
  %9481 = vmatpush1.msra.mxu0 0.0
  %9482 = vmatprep.subr.mxu0 0.0
  %9483 = vmatpush1.msra.mxu0 0.0
  %9484 = vmatprep.subr.mxu0 0.0
  %9485 = vmatpush1.msra.mxu0 0.0
  %9486 = vmatprep.subr.mxu0 0.0
  %9487 = vmatpush1.msra.mxu0 0.0
  %9488 = vmatprep.subr.mxu0 0.0
  %9489 = vmatpush1.msra.mxu0 0.0
  %9490 = vmatprep.subr.mxu0 0.0
  %9491 = vmatpush1.msra.mxu0 0.0
  %9492 = vmatprep.subr.mxu0 0.0
  %9493 = vmatpush1.msra.mxu0 0.0
  %9494 = vmatprep.subr.mxu0 0.0
  %9495 = vmatpush1.msra.mxu0 0.0
  %9496 = vmatprep.subr.mxu0 0.0
  %9497 = vmatpush1.msra.mxu0 0.0
  %9498 = vmatprep.subr.mxu0 0.0
  %9499 = vmatpush1.msra.mxu0 0.0
  %9500 = vmatprep.subr.mxu0 0.0
  %9501 = vmatpush1.msra.mxu0 0.0
  %9502 = vmatprep.subr.mxu0 0.0
  %9503 = vmatpush1.msra.mxu0 0.0
  %9504 = vmatprep.subr.mxu0 0.0
  %9505 = vmatpush1.msra.mxu0 0.0
  %9506 = vmatprep.subr.mxu0 0.0
  %9507 = vmatpush1.msra.mxu0 0.0
  %9508 = vmatprep.subr.mxu0 0.0
  %9509 = vmatpush1.msra.mxu0 0.0
  %9510 = vmatprep.subr.mxu0 0.0
  %9511 = vmatpush1.msra.mxu0 0.0
  %9512 = vmatprep.subr.mxu0 0.0
  %9513 = vmatpush1.msra.mxu0 0.0
  %9514 = vmatprep.subr.mxu0 0.0
  %9515 = vmatpush1.msra.mxu0 0.0
  %9516 = vmatprep.subr.mxu0 0.0
  %9517 = vmatpush1.msra.mxu0 0.0
  %9518 = vmatprep.subr.mxu0 0.0
  %9519 = vmatpush1.msra.mxu0 0.0
  %9520 = vmatprep.mubr.f32.mxu0 0.0
  %9521 = vmatmul.mubr.f32.gmra.mrb[0].mxu0 %v9383
  %v9522 = vpop.f32.mrb[0].mxu0
  %v9523 = vadd.f32 0.0, %v9522
  %v9524 = vpop.f32.mrb[0].mxu0
  %9525 = vdwg.mxu0
  %v9526 = vadd.f32 %v9284, %v9452
  %v9527 = vadd.f32 %v9286, %v9454
  %v9528 = vadd.f32 %v9355, %v9523
  %s9529 = scalar_lea.vmem %s77, 24
  %v9530 = vld [vmem:[%s9529] sm:$0xff]
  %9531 = vrot.lane.b32.xlu0 %v8954, 125
  %v9532 = vpop.permute.xlu0 %9531
  %9533 = vrot.lane.b32.xlu0 %v8956, 125
  %v9534 = vpop.permute.xlu0 %9533
  %9535 = vrot.lane.b32.xlu0 %v9031, 125
  %v9536 = vpop.permute.xlu0 %9535
  %9537 = vrot.lane.b32.xlu0 %v8960, 125
  %v9538 = vpop.permute.xlu0 %9537
  %9539 = vrot.lane.b32.xlu0 %v8962, 125
  %v9540 = vpop.permute.xlu0 %9539
  %9541 = vrot.lane.b32.xlu0 %v9036, 125
  %v9542 = vpop.permute.xlu0 %9541
  %v9543 = vsel %vm278, %v9532, %v9534
  %v9544 = vsel %vm278, %v9534, %v9536
  %v9545 = vsel %vm278, %v9538, %v9540
  %v9546 = vsel %vm278, %v9540, %v9542
  %v9554 = vsel %vm1300, %v9530, 0
  %9556 = vmatprep.subr.mxu0 %v9544
  %9557 = vmatpush1.msra.mxu0 %v9543
  %9558 = vmatprep.subr.mxu0 %v9546
  %9559 = vmatpush1.msra.mxu0 %v9545
  %9560 = vmatprep.subr.mxu0 0.0
  %9561 = vmatpush1.msra.mxu0 0.0
  %9562 = vmatprep.subr.mxu0 0.0
  %9563 = vmatpush1.msra.mxu0 0.0
  %9564 = vmatprep.subr.mxu0 0.0
  %9565 = vmatpush1.msra.mxu0 0.0
  %9566 = vmatprep.subr.mxu0 0.0
  %9567 = vmatpush1.msra.mxu0 0.0
  %9568 = vmatprep.subr.mxu0 0.0
  %9569 = vmatpush1.msra.mxu0 0.0
  %9570 = vmatprep.subr.mxu0 0.0
  %9571 = vmatpush1.msra.mxu0 0.0
  %9572 = vmatprep.subr.mxu0 0.0
  %9573 = vmatpush1.msra.mxu0 0.0
  %9574 = vmatprep.subr.mxu0 0.0
  %9575 = vmatpush1.msra.mxu0 0.0
  %9576 = vmatprep.subr.mxu0 0.0
  %9577 = vmatpush1.msra.mxu0 0.0
  %9578 = vmatprep.subr.mxu0 0.0
  %9579 = vmatpush1.msra.mxu0 0.0
  %9580 = vmatprep.subr.mxu0 0.0
  %9581 = vmatpush1.msra.mxu0 0.0
  %9582 = vmatprep.subr.mxu0 0.0
  %9583 = vmatpush1.msra.mxu0 0.0
  %9584 = vmatprep.subr.mxu0 0.0
  %9585 = vmatpush1.msra.mxu0 0.0
  %9586 = vmatprep.subr.mxu0 0.0
  %9587 = vmatpush1.msra.mxu0 0.0
  %9588 = vmatprep.subr.mxu0 0.0
  %9589 = vmatpush1.msra.mxu0 0.0
  %9590 = vmatprep.subr.mxu0 0.0
  %9591 = vmatpush1.msra.mxu0 0.0
  %9592 = vmatprep.subr.mxu0 0.0
  %9593 = vmatpush1.msra.mxu0 0.0
  %9594 = vmatprep.subr.mxu0 0.0
  %9595 = vmatpush1.msra.mxu0 0.0
  %9596 = vmatprep.subr.mxu0 0.0
  %9597 = vmatpush1.msra.mxu0 0.0
  %9598 = vmatprep.subr.mxu0 0.0
  %9599 = vmatpush1.msra.mxu0 0.0
  %9600 = vmatprep.subr.mxu0 0.0
  %9601 = vmatpush1.msra.mxu0 0.0
  %9602 = vmatprep.subr.mxu0 0.0
  %9603 = vmatpush1.msra.mxu0 0.0
  %9604 = vmatprep.subr.mxu0 0.0
  %9605 = vmatpush1.msra.mxu0 0.0
  %9606 = vmatprep.subr.mxu0 0.0
  %9607 = vmatpush1.msra.mxu0 0.0
  %9608 = vmatprep.subr.mxu0 0.0
  %9609 = vmatpush1.msra.mxu0 0.0
  %9610 = vmatprep.subr.mxu0 0.0
  %9611 = vmatpush1.msra.mxu0 0.0
  %9612 = vmatprep.subr.mxu0 0.0
  %9613 = vmatpush1.msra.mxu0 0.0
  %9614 = vmatprep.subr.mxu0 0.0
  %9615 = vmatpush1.msra.mxu0 0.0
  %9616 = vmatprep.subr.mxu0 0.0
  %9617 = vmatpush1.msra.mxu0 0.0
  %9618 = vmatprep.subr.mxu0 0.0
  %9619 = vmatpush1.msra.mxu0 0.0
  %9620 = vmatprep.mubr.f32.mxu0 0.0
  %9621 = vmatmul.mubr.f32.gmra.mrb[0].mxu0 %v9554
  %v9622 = vpop.f32.mrb[0].mxu0
  %v9623 = vadd.f32 0.0, %v9622
  %v9624 = vpop.f32.mrb[0].mxu0
  %v9625 = vadd.f32 0.0, %v9624
  %9626 = vdwg.mxu0
  %9627 = vmatprep.subr.mxu0 0.0
  %9628 = vmatpush1.msra.mxu0 %v9536
  %9629 = vmatprep.subr.mxu0 0.0
  %9630 = vmatpush1.msra.mxu0 %v9542
  %9631 = vmatprep.subr.mxu0 0.0
  %9632 = vmatpush1.msra.mxu0 0.0
  %9633 = vmatprep.subr.mxu0 0.0
  %9634 = vmatpush1.msra.mxu0 0.0
  %9635 = vmatprep.subr.mxu0 0.0
  %9636 = vmatpush1.msra.mxu0 0.0
  %9637 = vmatprep.subr.mxu0 0.0
  %9638 = vmatpush1.msra.mxu0 0.0
  %9639 = vmatprep.subr.mxu0 0.0
  %9640 = vmatpush1.msra.mxu0 0.0
  %9641 = vmatprep.subr.mxu0 0.0
  %9642 = vmatpush1.msra.mxu0 0.0
  %9643 = vmatprep.subr.mxu0 0.0
  %9644 = vmatpush1.msra.mxu0 0.0
  %9645 = vmatprep.subr.mxu0 0.0
  %9646 = vmatpush1.msra.mxu0 0.0
  %9647 = vmatprep.subr.mxu0 0.0
  %9648 = vmatpush1.msra.mxu0 0.0
  %9649 = vmatprep.subr.mxu0 0.0
  %9650 = vmatpush1.msra.mxu0 0.0
  %9651 = vmatprep.subr.mxu0 0.0
  %9652 = vmatpush1.msra.mxu0 0.0
  %9653 = vmatprep.subr.mxu0 0.0
  %9654 = vmatpush1.msra.mxu0 0.0
  %9655 = vmatprep.subr.mxu0 0.0
  %9656 = vmatpush1.msra.mxu0 0.0
  %9657 = vmatprep.subr.mxu0 0.0
  %9658 = vmatpush1.msra.mxu0 0.0
  %9659 = vmatprep.subr.mxu0 0.0
  %9660 = vmatpush1.msra.mxu0 0.0
  %9661 = vmatprep.subr.mxu0 0.0
  %9662 = vmatpush1.msra.mxu0 0.0
  %9663 = vmatprep.subr.mxu0 0.0
  %9664 = vmatpush1.msra.mxu0 0.0
  %9665 = vmatprep.subr.mxu0 0.0
  %9666 = vmatpush1.msra.mxu0 0.0
  %9667 = vmatprep.subr.mxu0 0.0
  %9668 = vmatpush1.msra.mxu0 0.0
  %9669 = vmatprep.subr.mxu0 0.0
  %9670 = vmatpush1.msra.mxu0 0.0
  %9671 = vmatprep.subr.mxu0 0.0
  %9672 = vmatpush1.msra.mxu0 0.0
  %9673 = vmatprep.subr.mxu0 0.0
  %9674 = vmatpush1.msra.mxu0 0.0
  %9675 = vmatprep.subr.mxu0 0.0
  %9676 = vmatpush1.msra.mxu0 0.0
  %9677 = vmatprep.subr.mxu0 0.0
  %9678 = vmatpush1.msra.mxu0 0.0
  %9679 = vmatprep.subr.mxu0 0.0
  %9680 = vmatpush1.msra.mxu0 0.0
  %9681 = vmatprep.subr.mxu0 0.0
  %9682 = vmatpush1.msra.mxu0 0.0
  %9683 = vmatprep.subr.mxu0 0.0
  %9684 = vmatpush1.msra.mxu0 0.0
  %9685 = vmatprep.subr.mxu0 0.0
  %9686 = vmatpush1.msra.mxu0 0.0
  %9687 = vmatprep.subr.mxu0 0.0
  %9688 = vmatpush1.msra.mxu0 0.0
  %9689 = vmatprep.subr.mxu0 0.0
  %9690 = vmatpush1.msra.mxu0 0.0
  %9691 = vmatprep.mubr.f32.mxu0 0.0
  %9692 = vmatmul.mubr.f32.gmra.mrb[0].mxu0 %v9554
  %v9693 = vpop.f32.mrb[0].mxu0
  %v9694 = vadd.f32 0.0, %v9693
  %v9695 = vpop.f32.mrb[0].mxu0
  %9696 = vdwg.mxu0
  %v9697 = vadd.f32 %v9526, %v9623
  %v9698 = vadd.f32 %v9527, %v9625
  %v9699 = vadd.f32 %v9528, %v9694
  %s9700 = scalar_lea.vmem %s77, 32
  %v9701 = vld [vmem:[%s9700] sm:$0xff]
  %9702 = vrot.lane.b32.xlu0 %v8954, 124
  %v9703 = vpop.permute.xlu0 %9702
  %9704 = vrot.lane.b32.xlu0 %v8956, 124
  %v9705 = vpop.permute.xlu0 %9704
  %9706 = vrot.lane.b32.xlu0 %v9031, 124
  %v9707 = vpop.permute.xlu0 %9706
  %9708 = vrot.lane.b32.xlu0 %v8960, 124
  %v9709 = vpop.permute.xlu0 %9708
  %9710 = vrot.lane.b32.xlu0 %v8962, 124
  %v9711 = vpop.permute.xlu0 %9710
  %9712 = vrot.lane.b32.xlu0 %v9036, 124
  %v9713 = vpop.permute.xlu0 %9712
  %v9714 = vsel %vm299, %v9703, %v9705
  %v9715 = vsel %vm299, %v9705, %v9707
  %v9716 = vsel %vm299, %v9709, %v9711
  %v9717 = vsel %vm299, %v9711, %v9713
  %v9725 = vsel %vm1300, %v9701, 0
  %9727 = vmatprep.subr.mxu0 %v9715
  %9728 = vmatpush1.msra.mxu0 %v9714
  %9729 = vmatprep.subr.mxu0 %v9717
  %9730 = vmatpush1.msra.mxu0 %v9716
  %9731 = vmatprep.subr.mxu0 0.0
  %9732 = vmatpush1.msra.mxu0 0.0
  %9733 = vmatprep.subr.mxu0 0.0
  %9734 = vmatpush1.msra.mxu0 0.0
  %9735 = vmatprep.subr.mxu0 0.0
  %9736 = vmatpush1.msra.mxu0 0.0
  %9737 = vmatprep.subr.mxu0 0.0
  %9738 = vmatpush1.msra.mxu0 0.0
  %9739 = vmatprep.subr.mxu0 0.0
  %9740 = vmatpush1.msra.mxu0 0.0
  %9741 = vmatprep.subr.mxu0 0.0
  %9742 = vmatpush1.msra.mxu0 0.0
  %9743 = vmatprep.subr.mxu0 0.0
  %9744 = vmatpush1.msra.mxu0 0.0
  %9745 = vmatprep.subr.mxu0 0.0
  %9746 = vmatpush1.msra.mxu0 0.0
  %9747 = vmatprep.subr.mxu0 0.0
  %9748 = vmatpush1.msra.mxu0 0.0
  %9749 = vmatprep.subr.mxu0 0.0
  %9750 = vmatpush1.msra.mxu0 0.0
  %9751 = vmatprep.subr.mxu0 0.0
  %9752 = vmatpush1.msra.mxu0 0.0
  %9753 = vmatprep.subr.mxu0 0.0
  %9754 = vmatpush1.msra.mxu0 0.0
  %9755 = vmatprep.subr.mxu0 0.0
  %9756 = vmatpush1.msra.mxu0 0.0
  %9757 = vmatprep.subr.mxu0 0.0
  %9758 = vmatpush1.msra.mxu0 0.0
  %9759 = vmatprep.subr.mxu0 0.0
  %9760 = vmatpush1.msra.mxu0 0.0
  %9761 = vmatprep.subr.mxu0 0.0
  %9762 = vmatpush1.msra.mxu0 0.0
  %9763 = vmatprep.subr.mxu0 0.0
  %9764 = vmatpush1.msra.mxu0 0.0
  %9765 = vmatprep.subr.mxu0 0.0
  %9766 = vmatpush1.msra.mxu0 0.0
  %9767 = vmatprep.subr.mxu0 0.0
  %9768 = vmatpush1.msra.mxu0 0.0
  %9769 = vmatprep.subr.mxu0 0.0
  %9770 = vmatpush1.msra.mxu0 0.0
  %9771 = vmatprep.subr.mxu0 0.0
  %9772 = vmatpush1.msra.mxu0 0.0
  %9773 = vmatprep.subr.mxu0 0.0
  %9774 = vmatpush1.msra.mxu0 0.0
  %9775 = vmatprep.subr.mxu0 0.0
  %9776 = vmatpush1.msra.mxu0 0.0
  %9777 = vmatprep.subr.mxu0 0.0
  %9778 = vmatpush1.msra.mxu0 0.0
  %9779 = vmatprep.subr.mxu0 0.0
  %9780 = vmatpush1.msra.mxu0 0.0
  %9781 = vmatprep.subr.mxu0 0.0
  %9782 = vmatpush1.msra.mxu0 0.0
  %9783 = vmatprep.subr.mxu0 0.0
  %9784 = vmatpush1.msra.mxu0 0.0
  %9785 = vmatprep.subr.mxu0 0.0
  %9786 = vmatpush1.msra.mxu0 0.0
  %9787 = vmatprep.subr.mxu0 0.0
  %9788 = vmatpush1.msra.mxu0 0.0
  %9789 = vmatprep.subr.mxu0 0.0
  %9790 = vmatpush1.msra.mxu0 0.0
  %9791 = vmatprep.mubr.f32.mxu0 0.0
  %9792 = vmatmul.mubr.f32.gmra.mrb[0].mxu0 %v9725
  %v9793 = vpop.f32.mrb[0].mxu0
  %v9794 = vadd.f32 0.0, %v9793
  %v9795 = vpop.f32.mrb[0].mxu0
  %v9796 = vadd.f32 0.0, %v9795
  %9797 = vdwg.mxu0
  %9798 = vmatprep.subr.mxu0 0.0
  %9799 = vmatpush1.msra.mxu0 %v9707
  %9800 = vmatprep.subr.mxu0 0.0
  %9801 = vmatpush1.msra.mxu0 %v9713
  %9802 = vmatprep.subr.mxu0 0.0
  %9803 = vmatpush1.msra.mxu0 0.0
  %9804 = vmatprep.subr.mxu0 0.0
  %9805 = vmatpush1.msra.mxu0 0.0
  %9806 = vmatprep.subr.mxu0 0.0
  %9807 = vmatpush1.msra.mxu0 0.0
  %9808 = vmatprep.subr.mxu0 0.0
  %9809 = vmatpush1.msra.mxu0 0.0
  %9810 = vmatprep.subr.mxu0 0.0
  %9811 = vmatpush1.msra.mxu0 0.0
  %9812 = vmatprep.subr.mxu0 0.0
  %9813 = vmatpush1.msra.mxu0 0.0
  %9814 = vmatprep.subr.mxu0 0.0
  %9815 = vmatpush1.msra.mxu0 0.0
  %9816 = vmatprep.subr.mxu0 0.0
  %9817 = vmatpush1.msra.mxu0 0.0
  %9818 = vmatprep.subr.mxu0 0.0
  %9819 = vmatpush1.msra.mxu0 0.0
  %9820 = vmatprep.subr.mxu0 0.0
  %9821 = vmatpush1.msra.mxu0 0.0
  %9822 = vmatprep.subr.mxu0 0.0
  %9823 = vmatpush1.msra.mxu0 0.0
  %9824 = vmatprep.subr.mxu0 0.0
  %9825 = vmatpush1.msra.mxu0 0.0
  %9826 = vmatprep.subr.mxu0 0.0
  %9827 = vmatpush1.msra.mxu0 0.0
  %9828 = vmatprep.subr.mxu0 0.0
  %9829 = vmatpush1.msra.mxu0 0.0
  %9830 = vmatprep.subr.mxu0 0.0
  %9831 = vmatpush1.msra.mxu0 0.0
  %9832 = vmatprep.subr.mxu0 0.0
  %9833 = vmatpush1.msra.mxu0 0.0
  %9834 = vmatprep.subr.mxu0 0.0
  %9835 = vmatpush1.msra.mxu0 0.0
  %9836 = vmatprep.subr.mxu0 0.0
  %9837 = vmatpush1.msra.mxu0 0.0
  %9838 = vmatprep.subr.mxu0 0.0
  %9839 = vmatpush1.msra.mxu0 0.0
  %9840 = vmatprep.subr.mxu0 0.0
  %9841 = vmatpush1.msra.mxu0 0.0
  %9842 = vmatprep.subr.mxu0 0.0
  %9843 = vmatpush1.msra.mxu0 0.0
  %9844 = vmatprep.subr.mxu0 0.0
  %9845 = vmatpush1.msra.mxu0 0.0
  %9846 = vmatprep.subr.mxu0 0.0
  %9847 = vmatpush1.msra.mxu0 0.0
  %9848 = vmatprep.subr.mxu0 0.0
  %9849 = vmatpush1.msra.mxu0 0.0
  %9850 = vmatprep.subr.mxu0 0.0
  %9851 = vmatpush1.msra.mxu0 0.0
  %9852 = vmatprep.subr.mxu0 0.0
  %9853 = vmatpush1.msra.mxu0 0.0
  %9854 = vmatprep.subr.mxu0 0.0
  %9855 = vmatpush1.msra.mxu0 0.0
  %9856 = vmatprep.subr.mxu0 0.0
  %9857 = vmatpush1.msra.mxu0 0.0
  %9858 = vmatprep.subr.mxu0 0.0
  %9859 = vmatpush1.msra.mxu0 0.0
  %9860 = vmatprep.subr.mxu0 0.0
  %9861 = vmatpush1.msra.mxu0 0.0
  %9862 = vmatprep.mubr.f32.mxu0 0.0
  %9863 = vmatmul.mubr.f32.gmra.mrb[0].mxu0 %v9725
  %v9864 = vpop.f32.mrb[0].mxu0
  %v9865 = vadd.f32 0.0, %v9864
  %v9866 = vpop.f32.mrb[0].mxu0
  %9867 = vdwg.mxu0
  %v9868 = vadd.f32 %v9697, %v9794
  %v9869 = vadd.f32 %v9698, %v9796
  %v9870 = vadd.f32 %v9699, %v9865
  %s9871 = scalar_lea.vmem %s77, 40
  %v9872 = vld [vmem:[%s9871] sm:$0xff]
  %9873 = vrot.lane.b32.xlu0 %v8954, 123
  %v9874 = vpop.permute.xlu0 %9873
  %9875 = vrot.lane.b32.xlu0 %v8956, 123
  %v9876 = vpop.permute.xlu0 %9875
  %9877 = vrot.lane.b32.xlu0 %v9031, 123
  %v9878 = vpop.permute.xlu0 %9877
  %9879 = vrot.lane.b32.xlu0 %v8960, 123
  %v9880 = vpop.permute.xlu0 %9879
  %9881 = vrot.lane.b32.xlu0 %v8962, 123
  %v9882 = vpop.permute.xlu0 %9881
  %9883 = vrot.lane.b32.xlu0 %v9036, 123
  %v9884 = vpop.permute.xlu0 %9883
  %v9885 = vsel %vm320, %v9874, %v9876
  %v9886 = vsel %vm320, %v9876, %v9878
  %v9887 = vsel %vm320, %v9880, %v9882
  %v9888 = vsel %vm320, %v9882, %v9884
  %v9896 = vsel %vm1300, %v9872, 0
  %9898 = vmatprep.subr.mxu0 %v9886
  %9899 = vmatpush1.msra.mxu0 %v9885
  %9900 = vmatprep.subr.mxu0 %v9888
  %9901 = vmatpush1.msra.mxu0 %v9887
  %9902 = vmatprep.subr.mxu0 0.0
  %9903 = vmatpush1.msra.mxu0 0.0
  %9904 = vmatprep.subr.mxu0 0.0
  %9905 = vmatpush1.msra.mxu0 0.0
  %9906 = vmatprep.subr.mxu0 0.0
  %9907 = vmatpush1.msra.mxu0 0.0
  %9908 = vmatprep.subr.mxu0 0.0
  %9909 = vmatpush1.msra.mxu0 0.0
  %9910 = vmatprep.subr.mxu0 0.0
  %9911 = vmatpush1.msra.mxu0 0.0
  %9912 = vmatprep.subr.mxu0 0.0
  %9913 = vmatpush1.msra.mxu0 0.0
  %9914 = vmatprep.subr.mxu0 0.0
  %9915 = vmatpush1.msra.mxu0 0.0
  %9916 = vmatprep.subr.mxu0 0.0
  %9917 = vmatpush1.msra.mxu0 0.0
  %9918 = vmatprep.subr.mxu0 0.0
  %9919 = vmatpush1.msra.mxu0 0.0
  %9920 = vmatprep.subr.mxu0 0.0
  %9921 = vmatpush1.msra.mxu0 0.0
  %9922 = vmatprep.subr.mxu0 0.0
  %9923 = vmatpush1.msra.mxu0 0.0
  %9924 = vmatprep.subr.mxu0 0.0
  %9925 = vmatpush1.msra.mxu0 0.0
  %9926 = vmatprep.subr.mxu0 0.0
  %9927 = vmatpush1.msra.mxu0 0.0
  %9928 = vmatprep.subr.mxu0 0.0
  %9929 = vmatpush1.msra.mxu0 0.0
  %9930 = vmatprep.subr.mxu0 0.0
  %9931 = vmatpush1.msra.mxu0 0.0
  %9932 = vmatprep.subr.mxu0 0.0
  %9933 = vmatpush1.msra.mxu0 0.0
  %9934 = vmatprep.subr.mxu0 0.0
  %9935 = vmatpush1.msra.mxu0 0.0
  %9936 = vmatprep.subr.mxu0 0.0
  %9937 = vmatpush1.msra.mxu0 0.0
  %9938 = vmatprep.subr.mxu0 0.0
  %9939 = vmatpush1.msra.mxu0 0.0
  %9940 = vmatprep.subr.mxu0 0.0
  %9941 = vmatpush1.msra.mxu0 0.0
  %9942 = vmatprep.subr.mxu0 0.0
  %9943 = vmatpush1.msra.mxu0 0.0
  %9944 = vmatprep.subr.mxu0 0.0
  %9945 = vmatpush1.msra.mxu0 0.0
  %9946 = vmatprep.subr.mxu0 0.0
  %9947 = vmatpush1.msra.mxu0 0.0
  %9948 = vmatprep.subr.mxu0 0.0
  %9949 = vmatpush1.msra.mxu0 0.0
  %9950 = vmatprep.subr.mxu0 0.0
  %9951 = vmatpush1.msra.mxu0 0.0
  %9952 = vmatprep.subr.mxu0 0.0
  %9953 = vmatpush1.msra.mxu0 0.0
  %9954 = vmatprep.subr.mxu0 0.0
  %9955 = vmatpush1.msra.mxu0 0.0
  %9956 = vmatprep.subr.mxu0 0.0
  %9957 = vmatpush1.msra.mxu0 0.0
  %9958 = vmatprep.subr.mxu0 0.0
  %9959 = vmatpush1.msra.mxu0 0.0
  %9960 = vmatprep.subr.mxu0 0.0
  %9961 = vmatpush1.msra.mxu0 0.0
  %9962 = vmatprep.mubr.f32.mxu0 0.0
  %9963 = vmatmul.mubr.f32.gmra.mrb[0].mxu0 %v9896
  %v9964 = vpop.f32.mrb[0].mxu0
  %v9965 = vadd.f32 0.0, %v9964
  %v9966 = vpop.f32.mrb[0].mxu0
  %v9967 = vadd.f32 0.0, %v9966
  %9968 = vdwg.mxu0
  %9969 = vmatprep.subr.mxu0 0.0
  %9970 = vmatpush1.msra.mxu0 %v9878
  %9971 = vmatprep.subr.mxu0 0.0
  %9972 = vmatpush1.msra.mxu0 %v9884
  %9973 = vmatprep.subr.mxu0 0.0
  %9974 = vmatpush1.msra.mxu0 0.0
  %9975 = vmatprep.subr.mxu0 0.0
  %9976 = vmatpush1.msra.mxu0 0.0
  %9977 = vmatprep.subr.mxu0 0.0
  %9978 = vmatpush1.msra.mxu0 0.0
  %9979 = vmatprep.subr.mxu0 0.0
  %9980 = vmatpush1.msra.mxu0 0.0
  %9981 = vmatprep.subr.mxu0 0.0
  %9982 = vmatpush1.msra.mxu0 0.0
  %9983 = vmatprep.subr.mxu0 0.0
  %9984 = vmatpush1.msra.mxu0 0.0
  %9985 = vmatprep.subr.mxu0 0.0
  %9986 = vmatpush1.msra.mxu0 0.0
  %9987 = vmatprep.subr.mxu0 0.0
  %9988 = vmatpush1.msra.mxu0 0.0
  %9989 = vmatprep.subr.mxu0 0.0
  %9990 = vmatpush1.msra.mxu0 0.0
  %9991 = vmatprep.subr.mxu0 0.0
  %9992 = vmatpush1.msra.mxu0 0.0
  %9993 = vmatprep.subr.mxu0 0.0
  %9994 = vmatpush1.msra.mxu0 0.0
  %9995 = vmatprep.subr.mxu0 0.0
  %9996 = vmatpush1.msra.mxu0 0.0
  %9997 = vmatprep.subr.mxu0 0.0
  %9998 = vmatpush1.msra.mxu0 0.0
  %9999 = vmatprep.subr.mxu0 0.0
  %10000 = vmatpush1.msra.mxu0 0.0
  %10001 = vmatprep.subr.mxu0 0.0
  %10002 = vmatpush1.msra.mxu0 0.0
  %10003 = vmatprep.subr.mxu0 0.0
  %10004 = vmatpush1.msra.mxu0 0.0
  %10005 = vmatprep.subr.mxu0 0.0
  %10006 = vmatpush1.msra.mxu0 0.0
  %10007 = vmatprep.subr.mxu0 0.0
  %10008 = vmatpush1.msra.mxu0 0.0
  %10009 = vmatprep.subr.mxu0 0.0
  %10010 = vmatpush1.msra.mxu0 0.0
  %10011 = vmatprep.subr.mxu0 0.0
  %10012 = vmatpush1.msra.mxu0 0.0
  %10013 = vmatprep.subr.mxu0 0.0
  %10014 = vmatpush1.msra.mxu0 0.0
  %10015 = vmatprep.subr.mxu0 0.0
  %10016 = vmatpush1.msra.mxu0 0.0
  %10017 = vmatprep.subr.mxu0 0.0
  %10018 = vmatpush1.msra.mxu0 0.0
  %10019 = vmatprep.subr.mxu0 0.0
  %10020 = vmatpush1.msra.mxu0 0.0
  %10021 = vmatprep.subr.mxu0 0.0
  %10022 = vmatpush1.msra.mxu0 0.0
  %10023 = vmatprep.subr.mxu0 0.0
  %10024 = vmatpush1.msra.mxu0 0.0
  %10025 = vmatprep.subr.mxu0 0.0
  %10026 = vmatpush1.msra.mxu0 0.0
  %10027 = vmatprep.subr.mxu0 0.0
  %10028 = vmatpush1.msra.mxu0 0.0
  %10029 = vmatprep.subr.mxu0 0.0
  %10030 = vmatpush1.msra.mxu0 0.0
  %10031 = vmatprep.subr.mxu0 0.0
  %10032 = vmatpush1.msra.mxu0 0.0
  %10033 = vmatprep.mubr.f32.mxu0 0.0
  %10034 = vmatmul.mubr.f32.gmra.mrb[0].mxu0 %v9896
  %v10035 = vpop.f32.mrb[0].mxu0
  %v10036 = vadd.f32 0.0, %v10035
  %v10037 = vpop.f32.mrb[0].mxu0
  %10038 = vdwg.mxu0
  %v10039 = vadd.f32 %v9868, %v9965
  %v10040 = vadd.f32 %v9869, %v9967
  %v10041 = vadd.f32 %v9870, %v10036
  %v10042 = vld [vmem:[%s87] sm:$0xff]
  %v10043 = vld [vmem:[%s87 + $0x8] sm:$0xff]
  %v10044 = vld [vmem:[%s87 + $0x10] sm:$0xff]
  %v10045 = vld [vmem:[%s87 + $0x18] sm:$0xff]
  %v10046 = vld [vmem:[%s87 + $0x20] sm:$0xff]
  %v10047 = vld [vmem:[%s87 + $0x28] sm:$0xff]
  %v10048 = vld [vmem:[%s87 + $0x30] sm:$0xff]
  %v10049 = vld [vmem:[%s87 + $0x38] sm:$0xff]
  %v10050 = vld [vmem:[%s87 + $0x40] sm:$0xff]
  %v10051 = vld [vmem:[%s87 + $0x48] sm:$0xff]
  %v10052 = vld [vmem:[%s87 + $0x50] sm:$0xff]
  %v10053 = vld [vmem:[%s87 + $0x58] sm:$0xff]
  %v10054 = vld [vmem:[%s87 + $0x60] sm:$0xff]
  %v10055 = vld [vmem:[%s87 + $0x68] sm:$0xff]
  %v10056 = vld [vmem:[%s87 + $0x70] sm:$0xff]
  %v10057 = vld [vmem:[%s87 + $0x78] sm:$0xff]
  %v10058 = vld [vmem:[%s87 + $0x80] sm:$0xff]
  %v10059 = vld [vmem:[%s87 + $0x88] sm:$0xff]
  %v10060 = vld [vmem:[%s87 + $0x90] sm:$0xff]
  %v10061 = vld [vmem:[%s87 + $0x98] sm:$0xff]
  %v10062 = vld [vmem:[%s87 + $0xa0] sm:$0xff]
  %v10063 = vld [vmem:[%s87 + $0xa8] sm:$0xff]
  %v10064 = vld [vmem:[%s87 + $0xb0] sm:$0xff]
  %v10065 = vld [vmem:[%s87 + $0xb8] sm:$0xff]
  %v10066 = vld [vmem:[%s87 + $0xc0] sm:$0xff]
  %v10067 = vld [vmem:[%s87 + $0xc8] sm:$0xff]
  %v10068 = vld [vmem:[%s87 + $0xd0] sm:$0xff]
  %v10069 = vld [vmem:[%s87 + $0xd8] sm:$0xff]
  %v10070 = vld [vmem:[%s87 + $0xe0] sm:$0xff]
  %v10071 = vld [vmem:[%s87 + $0xe8] sm:$0xff]
  %v10072 = vld [vmem:[%s87 + $0xf0] sm:$0xff]
  %v10073 = vld [vmem:[%s87 + $0xf8] sm:$0xff]
  %v10074 = vld [vmem:[%s87 + $0x100] sm:$0xff]
  %v10075 = vld [vmem:[%s87 + $0x108] sm:$0xff]
  %v10076 = vld [vmem:[%s87 + $0x110] sm:$0xff]
  %v10077 = vld [vmem:[%s87 + $0x118] sm:$0xff]
  %v10078 = vld [vmem:[%s87 + $0x120] sm:$0xff]
  %v10079 = vld [vmem:[%s87 + $0x128] sm:$0xff]
  %v10080 = vld [vmem:[%s87 + $0x130] sm:$0xff]
  %v10081 = vld [vmem:[%s87 + $0x138] sm:$0xff]
  %v10082 = vld [vmem:[%s87 + $0x140] sm:$0xff]
  %v10083 = vld [vmem:[%s87 + $0x148] sm:$0xff]
  %v10084 = vld [vmem:[%s87 + $0x150] sm:$0xff]
  %v10085 = vld [vmem:[%s87 + $0x158] sm:$0xff]
  %v10086 = vld [vmem:[%s87 + $0x160] sm:$0xff]
  %v10087 = vld [vmem:[%s87 + $0x168] sm:$0xff]
  %v10088 = vld [vmem:[%s87 + $0x170] sm:$0xff]
  %v10089 = vld [vmem:[%s87 + $0x178] sm:$0xff]
  %v10090 = vld [vmem:[%s87 + $0x180] sm:$0xff]
  %v10091 = vld [vmem:[%s87 + $0x188] sm:$0xff]
  %v10092 = vld [vmem:[%s87 + $0x190] sm:$0xff]
  %v10093 = vld [vmem:[%s87 + $0x198] sm:$0xff]
  %v10094 = vld [vmem:[%s87 + $0x1a0] sm:$0xff]
  %v10095 = vld [vmem:[%s87 + $0x1a8] sm:$0xff]
  %v10096 = vld [vmem:[%s87 + $0x1b0] sm:$0xff]
  %v10097 = vld [vmem:[%s87 + $0x1b8] sm:$0xff]
  %v10098 = vld [vmem:[%s87 + $0x1c0] sm:$0xff]
  %v10099 = vld [vmem:[%s87 + $0x1c8] sm:$0xff]
  %v10100 = vld [vmem:[%s87 + $0x1d0] sm:$0xff]
  %v10101 = vld [vmem:[%s87 + $0x1d8] sm:$0xff]
  %v10102 = vld [vmem:[%s87 + $0x1e0] sm:$0xff]
  %v10103 = vld [vmem:[%s87 + $0x1e8] sm:$0xff]
  %v10104 = vld [vmem:[%s87 + $0x1f0] sm:$0xff]
  %v10105 = vld [vmem:[%s87 + $0x1f8] sm:$0xff]
  %v10106 = vld [vmem:[%s87 + $0x200] sm:$0xff]
  %v10107 = vld [vmem:[%s87 + $0x208] sm:$0xff]
  %v10108 = vld [vmem:[%s87 + $0x210] sm:$0xff]
  %v10109 = vld [vmem:[%s87 + $0x218] sm:$0xff]
  %v10110 = vld [vmem:[%s87 + $0x220] sm:$0xff]
  %v10111 = vld [vmem:[%s87 + $0x228] sm:$0xff]
  %v10112 = vld [vmem:[%s87 + $0x230] sm:$0xff]
  %v10113 = vld [vmem:[%s87 + $0x238] sm:$0xff]
  %v10114 = vld [vmem:[%s87 + $0x240] sm:$0xff]
  %v10115 = vld [vmem:[%s87 + $0x248] sm:$0xff]
  %v10116 = vld [vmem:[%s87 + $0x250] sm:$0xff]
  %v10117 = vld [vmem:[%s87 + $0x258] sm:$0xff]
  %v10118 = vld [vmem:[%s87 + $0x260] sm:$0xff]
  %v10119 = vld [vmem:[%s87 + $0x268] sm:$0xff]
  %v10120 = vld [vmem:[%s87 + $0x270] sm:$0xff]
  %v10121 = vld [vmem:[%s87 + $0x278] sm:$0xff]
  %v10122 = vld [vmem:[%s87 + $0x280] sm:$0xff]
  %v10123 = vld [vmem:[%s87 + $0x288] sm:$0xff]
  %v10124 = vld [vmem:[%s87 + $0x290] sm:$0xff]
  %v10125 = vld [vmem:[%s87 + $0x298] sm:$0xff]
  %v10126 = vld [vmem:[%s87 + $0x2a0] sm:$0xff]
  %v10127 = vld [vmem:[%s87 + $0x2a8] sm:$0xff]
  %v10128 = vld [vmem:[%s87 + $0x2b0] sm:$0xff]
  %v10129 = vld [vmem:[%s87 + $0x2b8] sm:$0xff]
  %v10130 = vld [vmem:[%s87 + $0x2c0] sm:$0xff]
  %v10131 = vld [vmem:[%s87 + $0x2c8] sm:$0xff]
  %v10132 = vld [vmem:[%s87 + $0x2d0] sm:$0xff]
  %v10133 = vld [vmem:[%s87 + $0x2d8] sm:$0xff]
  %v10134 = vld [vmem:[%s87 + $0x2e0] sm:$0xff]
  %v10135 = vld [vmem:[%s87 + $0x2e8] sm:$0xff]
  %v10136 = vld [vmem:[%s87 + $0x2f0] sm:$0xff]
  %v10137 = vld [vmem:[%s87 + $0x2f8] sm:$0xff]
  %v10138 = vld [vmem:[%s87 + $0x300] sm:$0xff]
  %v10139 = vld [vmem:[%s87 + $0x308] sm:$0xff]
  %v10140 = vld [vmem:[%s87 + $0x310] sm:$0xff]
  %v10141 = vld [vmem:[%s87 + $0x318] sm:$0x1f]
  %v10142 = vld [vmem:[%s87 + $0x320] sm:$0x1f]
  %v10143 = vld [vmem:[%s87 + $0x328] sm:$0x1f]
  %10145 = vset.pattern.permute.xlu0 0
  %10146 = vperm.xlu0 %10145, %v8836
  %v10147 = vpop.permute.xlu0 %10146
  %vm10149 = vcmask 105472
  %v10151 = vsel %vm10149, %v10041, 0
  %vm10153 = vcmask 1044480
  %v10155 = vsel %vm10153, %v10141, 0
  %v10158 = vsel %vm10153, %v10142, 0
  %v10161 = vsel %vm10153, %v10143, 0
  %10163 = vmatprep.subr.mxu0 %v10043
  %10164 = vmatpush1.msra.mxu0 %v10042
  %10165 = vmatprep.subr.mxu0 %v10046
  %10166 = vmatpush1.msra.mxu0 %v10045
  %10167 = vmatprep.subr.mxu0 %v10049
  %10168 = vmatpush1.msra.mxu0 %v10048
  %10169 = vmatprep.subr.mxu0 %v10052
  %10170 = vmatpush1.msra.mxu0 %v10051
  %10171 = vmatprep.subr.mxu0 %v10055
  %10172 = vmatpush1.msra.mxu0 %v10054
  %10173 = vmatprep.subr.mxu0 %v10058
  %10174 = vmatpush1.msra.mxu0 %v10057
  %10175 = vmatprep.subr.mxu0 %v10061
  %10176 = vmatpush1.msra.mxu0 %v10060
  %10177 = vmatprep.subr.mxu0 %v10064
  %10178 = vmatpush1.msra.mxu0 %v10063
  %10179 = vmatprep.subr.mxu0 %v10067
  %10180 = vmatpush1.msra.mxu0 %v10066
  %10181 = vmatprep.subr.mxu0 %v10070
  %10182 = vmatpush1.msra.mxu0 %v10069
  %10183 = vmatprep.subr.mxu0 %v10073
  %10184 = vmatpush1.msra.mxu0 %v10072
  %10185 = vmatprep.subr.mxu0 %v10076
  %10186 = vmatpush1.msra.mxu0 %v10075
  %10187 = vmatprep.subr.mxu0 %v10079
  %10188 = vmatpush1.msra.mxu0 %v10078
  %10189 = vmatprep.subr.mxu0 %v10082
  %10190 = vmatpush1.msra.mxu0 %v10081
  %10191 = vmatprep.subr.mxu0 %v10085
  %10192 = vmatpush1.msra.mxu0 %v10084
  %10193 = vmatprep.subr.mxu0 %v10088
  %10194 = vmatpush1.msra.mxu0 %v10087
  %10195 = vmatprep.subr.mxu0 %v10091
  %10196 = vmatpush1.msra.mxu0 %v10090
  %10197 = vmatprep.subr.mxu0 %v10094
  %10198 = vmatpush1.msra.mxu0 %v10093
  %10199 = vmatprep.subr.mxu0 %v10097
  %10200 = vmatpush1.msra.mxu0 %v10096
  %10201 = vmatprep.subr.mxu0 %v10100
  %10202 = vmatpush1.msra.mxu0 %v10099
  %10203 = vmatprep.subr.mxu0 %v10103
  %10204 = vmatpush1.msra.mxu0 %v10102
  %10205 = vmatprep.subr.mxu0 %v10106
  %10206 = vmatpush1.msra.mxu0 %v10105
  %10207 = vmatprep.subr.mxu0 %v10109
  %10208 = vmatpush1.msra.mxu0 %v10108
  %10209 = vmatprep.subr.mxu0 %v10112
  %10210 = vmatpush1.msra.mxu0 %v10111
  %10211 = vmatprep.subr.mxu0 %v10115
  %10212 = vmatpush1.msra.mxu0 %v10114
  %10213 = vmatprep.subr.mxu0 %v10118
  %10214 = vmatpush1.msra.mxu0 %v10117
  %10215 = vmatprep.subr.mxu0 %v10121
  %10216 = vmatpush1.msra.mxu0 %v10120
  %10217 = vmatprep.subr.mxu0 %v10124
  %10218 = vmatpush1.msra.mxu0 %v10123
  %10219 = vmatprep.subr.mxu0 %v10127
  %10220 = vmatpush1.msra.mxu0 %v10126
  %10221 = vmatprep.subr.mxu0 %v10130
  %10222 = vmatpush1.msra.mxu0 %v10129
  %10223 = vmatprep.subr.mxu0 %v10133
  %10224 = vmatpush1.msra.mxu0 %v10132
  %10225 = vmatprep.subr.mxu0 %v10136
  %10226 = vmatpush1.msra.mxu0 %v10135
  %10227 = vmatprep.mubr.f32.mxu0 %v10040
  %10228 = vmatmul.mubr.f32.gmra.mrb[0].mxu0 %v10039
  %v10229 = vpop.f32.mrb[0].mxu0
  %v10230 = vadd.f32 %v10147, %v10229
  %v10231 = vpop.f32.mrb[0].mxu0
  %v10232 = vadd.f32 %v10147, %v10231
  %10233 = vdwg.mxu0
  %10234 = vmatprep.subr.mxu0 %v10139
  %10235 = vmatpush1.msra.mxu0 %v10138
  %10236 = vmatprep.subr.mxu0 %v10158
  %10237 = vmatpush1.msra.mxu0 %v10155
  %10238 = vmatprep.subr.mxu0 0.0
  %10239 = vmatpush1.msra.mxu0 0.0
  %10240 = vmatprep.subr.mxu0 0.0
  %10241 = vmatpush1.msra.mxu0 0.0
  %10242 = vmatprep.subr.mxu0 0.0
  %10243 = vmatpush1.msra.mxu0 0.0
  %10244 = vmatprep.subr.mxu0 0.0
  %10245 = vmatpush1.msra.mxu0 0.0
  %10246 = vmatprep.subr.mxu0 0.0
  %10247 = vmatpush1.msra.mxu0 0.0
  %10248 = vmatprep.subr.mxu0 0.0
  %10249 = vmatpush1.msra.mxu0 0.0
  %10250 = vmatprep.subr.mxu0 0.0
  %10251 = vmatpush1.msra.mxu0 0.0
  %10252 = vmatprep.subr.mxu0 0.0
  %10253 = vmatpush1.msra.mxu0 0.0
  %10254 = vmatprep.subr.mxu0 0.0
  %10255 = vmatpush1.msra.mxu0 0.0
  %10256 = vmatprep.subr.mxu0 0.0
  %10257 = vmatpush1.msra.mxu0 0.0
  %10258 = vmatprep.subr.mxu0 0.0
  %10259 = vmatpush1.msra.mxu0 0.0
  %10260 = vmatprep.subr.mxu0 0.0
  %10261 = vmatpush1.msra.mxu0 0.0
  %10262 = vmatprep.subr.mxu0 0.0
  %10263 = vmatpush1.msra.mxu0 0.0
  %10264 = vmatprep.subr.mxu0 0.0
  %10265 = vmatpush1.msra.mxu0 0.0
  %10266 = vmatprep.subr.mxu0 0.0
  %10267 = vmatpush1.msra.mxu0 0.0
  %10268 = vmatprep.subr.mxu0 0.0
  %10269 = vmatpush1.msra.mxu0 0.0
  %10270 = vmatprep.subr.mxu0 0.0
  %10271 = vmatpush1.msra.mxu0 0.0
  %10272 = vmatprep.subr.mxu0 0.0
  %10273 = vmatpush1.msra.mxu0 0.0
  %10274 = vmatprep.subr.mxu0 0.0
  %10275 = vmatpush1.msra.mxu0 0.0
  %10276 = vmatprep.subr.mxu0 0.0
  %10277 = vmatpush1.msra.mxu0 0.0
  %10278 = vmatprep.subr.mxu0 0.0
  %10279 = vmatpush1.msra.mxu0 0.0
  %10280 = vmatprep.subr.mxu0 0.0
  %10281 = vmatpush1.msra.mxu0 0.0
  %10282 = vmatprep.subr.mxu0 0.0
  %10283 = vmatpush1.msra.mxu0 0.0
  %10284 = vmatprep.subr.mxu0 0.0
  %10285 = vmatpush1.msra.mxu0 0.0
  %10286 = vmatprep.subr.mxu0 0.0
  %10287 = vmatpush1.msra.mxu0 0.0
  %10288 = vmatprep.subr.mxu0 0.0
  %10289 = vmatpush1.msra.mxu0 0.0
  %10290 = vmatprep.subr.mxu0 0.0
  %10291 = vmatpush1.msra.mxu0 0.0
  %10292 = vmatprep.subr.mxu0 0.0
  %10293 = vmatpush1.msra.mxu0 0.0
  %10294 = vmatprep.subr.mxu0 0.0
  %10295 = vmatpush1.msra.mxu0 0.0
  %10296 = vmatprep.subr.mxu0 0.0
  %10297 = vmatpush1.msra.mxu0 0.0
  %10298 = vmatprep.mubr.f32.mxu0 0.0
  %10299 = vmatmul.mubr.f32.gmra.mrb[0].mxu0 %v10151
  %v10300 = vpop.f32.mrb[0].mxu0
  %v10301 = vadd.f32 %v10230, %v10300
  %v10302 = vpop.f32.mrb[0].mxu0
  %v10303 = vadd.f32 %v10232, %v10302
  %10304 = vdwg.mxu0
  %10305 = vmatprep.subr.mxu0 0.0
  %10306 = vmatpush1.msra.mxu0 %v10044
  %10307 = vmatprep.subr.mxu0 0.0
  %10308 = vmatpush1.msra.mxu0 %v10047
  %10309 = vmatprep.subr.mxu0 0.0
  %10310 = vmatpush1.msra.mxu0 %v10050
  %10311 = vmatprep.subr.mxu0 0.0
  %10312 = vmatpush1.msra.mxu0 %v10053
  %10313 = vmatprep.subr.mxu0 0.0
  %10314 = vmatpush1.msra.mxu0 %v10056
  %10315 = vmatprep.subr.mxu0 0.0
  %10316 = vmatpush1.msra.mxu0 %v10059
  %10317 = vmatprep.subr.mxu0 0.0
  %10318 = vmatpush1.msra.mxu0 %v10062
  %10319 = vmatprep.subr.mxu0 0.0
  %10320 = vmatpush1.msra.mxu0 %v10065
  %10321 = vmatprep.subr.mxu0 0.0
  %10322 = vmatpush1.msra.mxu0 %v10068
  %10323 = vmatprep.subr.mxu0 0.0
  %10324 = vmatpush1.msra.mxu0 %v10071
  %10325 = vmatprep.subr.mxu0 0.0
  %10326 = vmatpush1.msra.mxu0 %v10074
  %10327 = vmatprep.subr.mxu0 0.0
  %10328 = vmatpush1.msra.mxu0 %v10077
  %10329 = vmatprep.subr.mxu0 0.0
  %10330 = vmatpush1.msra.mxu0 %v10080
  %10331 = vmatprep.subr.mxu0 0.0
  %10332 = vmatpush1.msra.mxu0 %v10083
  %10333 = vmatprep.subr.mxu0 0.0
  %10334 = vmatpush1.msra.mxu0 %v10086
  %10335 = vmatprep.subr.mxu0 0.0
  %10336 = vmatpush1.msra.mxu0 %v10089
  %10337 = vmatprep.subr.mxu0 0.0
  %10338 = vmatpush1.msra.mxu0 %v10092
  %10339 = vmatprep.subr.mxu0 0.0
  %10340 = vmatpush1.msra.mxu0 %v10095
  %10341 = vmatprep.subr.mxu0 0.0
  %10342 = vmatpush1.msra.mxu0 %v10098
  %10343 = vmatprep.subr.mxu0 0.0
  %10344 = vmatpush1.msra.mxu0 %v10101
  %10345 = vmatprep.subr.mxu0 0.0
  %10346 = vmatpush1.msra.mxu0 %v10104
  %10347 = vmatprep.subr.mxu0 0.0
  %10348 = vmatpush1.msra.mxu0 %v10107
  %10349 = vmatprep.subr.mxu0 0.0
  %10350 = vmatpush1.msra.mxu0 %v10110
  %10351 = vmatprep.subr.mxu0 0.0
  %10352 = vmatpush1.msra.mxu0 %v10113
  %10353 = vmatprep.subr.mxu0 0.0
  %10354 = vmatpush1.msra.mxu0 %v10116
  %10355 = vmatprep.subr.mxu0 0.0
  %10356 = vmatpush1.msra.mxu0 %v10119
  %10357 = vmatprep.subr.mxu0 0.0
  %10358 = vmatpush1.msra.mxu0 %v10122
  %10359 = vmatprep.subr.mxu0 0.0
  %10360 = vmatpush1.msra.mxu0 %v10125
  %10361 = vmatprep.subr.mxu0 0.0
  %10362 = vmatpush1.msra.mxu0 %v10128
  %10363 = vmatprep.subr.mxu0 0.0
  %10364 = vmatpush1.msra.mxu0 %v10131
  %10365 = vmatprep.subr.mxu0 0.0
  %10366 = vmatpush1.msra.mxu0 %v10134
  %10367 = vmatprep.subr.mxu0 0.0
  %10368 = vmatpush1.msra.mxu0 %v10137
  %10369 = vmatprep.mubr.f32.mxu0 %v10040
  %10370 = vmatmul.mubr.f32.gmra.mrb[0].mxu0 %v10039
  %v10371 = vpop.f32.mrb[0].mxu0
  %v10372 = vadd.f32 %v10147, %v10371
  %v10373 = vpop.f32.mrb[0].mxu0
  %10374 = vdwg.mxu0
  %10375 = vmatprep.subr.mxu0 0.0
  %10376 = vmatpush1.msra.mxu0 %v10140
  %10377 = vmatprep.subr.mxu0 0.0
  %10378 = vmatpush1.msra.mxu0 %v10161
  %10379 = vmatprep.subr.mxu0 0.0
  %10380 = vmatpush1.msra.mxu0 0.0
  %10381 = vmatprep.subr.mxu0 0.0
  %10382 = vmatpush1.msra.mxu0 0.0
  %10383 = vmatprep.subr.mxu0 0.0
  %10384 = vmatpush1.msra.mxu0 0.0
  %10385 = vmatprep.subr.mxu0 0.0
  %10386 = vmatpush1.msra.mxu0 0.0
  %10387 = vmatprep.subr.mxu0 0.0
  %10388 = vmatpush1.msra.mxu0 0.0
  %10389 = vmatprep.subr.mxu0 0.0
  %10390 = vmatpush1.msra.mxu0 0.0
  %10391 = vmatprep.subr.mxu0 0.0
  %10392 = vmatpush1.msra.mxu0 0.0
  %10393 = vmatprep.subr.mxu0 0.0
  %10394 = vmatpush1.msra.mxu0 0.0
  %10395 = vmatprep.subr.mxu0 0.0
  %10396 = vmatpush1.msra.mxu0 0.0
  %10397 = vmatprep.subr.mxu0 0.0
  %10398 = vmatpush1.msra.mxu0 0.0
  %10399 = vmatprep.subr.mxu0 0.0
  %10400 = vmatpush1.msra.mxu0 0.0
  %10401 = vmatprep.subr.mxu0 0.0
  %10402 = vmatpush1.msra.mxu0 0.0
  %10403 = vmatprep.subr.mxu0 0.0
  %10404 = vmatpush1.msra.mxu0 0.0
  %10405 = vmatprep.subr.mxu0 0.0
  %10406 = vmatpush1.msra.mxu0 0.0
  %10407 = vmatprep.subr.mxu0 0.0
  %10408 = vmatpush1.msra.mxu0 0.0
  %10409 = vmatprep.subr.mxu0 0.0
  %10410 = vmatpush1.msra.mxu0 0.0
  %10411 = vmatprep.subr.mxu0 0.0
  %10412 = vmatpush1.msra.mxu0 0.0
  %10413 = vmatprep.subr.mxu0 0.0
  %10414 = vmatpush1.msra.mxu0 0.0
  %10415 = vmatprep.subr.mxu0 0.0
  %10416 = vmatpush1.msra.mxu0 0.0
  %10417 = vmatprep.subr.mxu0 0.0
  %10418 = vmatpush1.msra.mxu0 0.0
  %10419 = vmatprep.subr.mxu0 0.0
  %10420 = vmatpush1.msra.mxu0 0.0
  %10421 = vmatprep.subr.mxu0 0.0
  %10422 = vmatpush1.msra.mxu0 0.0
  %10423 = vmatprep.subr.mxu0 0.0
  %10424 = vmatpush1.msra.mxu0 0.0
  %10425 = vmatprep.subr.mxu0 0.0
  %10426 = vmatpush1.msra.mxu0 0.0
  %10427 = vmatprep.subr.mxu0 0.0
  %10428 = vmatpush1.msra.mxu0 0.0
  %10429 = vmatprep.subr.mxu0 0.0
  %10430 = vmatpush1.msra.mxu0 0.0
  %10431 = vmatprep.subr.mxu0 0.0
  %10432 = vmatpush1.msra.mxu0 0.0
  %10433 = vmatprep.subr.mxu0 0.0
  %10434 = vmatpush1.msra.mxu0 0.0
  %10435 = vmatprep.subr.mxu0 0.0
  %10436 = vmatpush1.msra.mxu0 0.0
  %10437 = vmatprep.subr.mxu0 0.0
  %10438 = vmatpush1.msra.mxu0 0.0
  %10439 = vmatprep.mubr.f32.mxu0 0.0
  %10440 = vmatmul.mubr.f32.gmra.mrb[0].mxu0 %v10151
  %v10441 = vpop.f32.mrb[0].mxu0
  %v10442 = vadd.f32 %v10372, %v10441
  %v10443 = vpop.f32.mrb[0].mxu0
  %10444 = vdwg.mxu0
  %v10445 = vadd.f32 %v10301, %v10303
  %v10446 = vsel %vm500, %v10442, 0.0
  %v10447 = vadd.f32 %v10445, %v10446
  %10448 = vadd.xlane.f32.xlu0 %v10447
  %v10449 = vpop.xlane.xlu0 %10448
  %v10450 = vmul.f32 %v10449, 0.003787879
  %v10451 = vsub.f32 %v10301, %v10450
  %v10452 = vsub.f32 %v10303, %v10450
  %v10453 = vsub.f32 %v10442, %v10450
  %v10454 = vmul.f32 %v10451, %v10451
  %v10455 = vmul.f32 %v10452, %v10452
  %v10456 = vmul.f32 %v10453, %v10453
  %v10457 = vadd.f32 %v10454, %v10455
  %v10458 = vsel %vm500, %v10456, 0.0
  %v10459 = vadd.f32 %v10457, %v10458
  %10460 = vadd.xlane.f32.xlu0 %v10459
  %v10461 = vpop.xlane.xlu0 %10460
  %v10462 = vmul.f32 %v10461, 0.003787879
  %v10463 = vadd.f32 %v10462, 1e-05
  %v10464 = vrsqrt.pop %v10463
  %v10465 = vmul.f32 %v8837, %v10464
  %10467 = vset.pattern.permute.xlu0 0
  %10468 = vperm.xlu0 %10467, %v10465
  %v10469 = vpop.permute.xlu0 %10468
  %v10471 = vmul.f32 %v10451, %v10469
  %v10472 = vmul.f32 %v10452, %v10469
  %v10473 = vmul.f32 %v10453, %v10469
  %10475 = vset.pattern.permute.xlu0 0
  %10476 = vperm.xlu0 %10475, %v8838
  %v10477 = vpop.permute.xlu0 %10476
  %v10479 = vadd.f32 %v10471, %v10477
  %v10480 = vadd.f32 %v10472, %v10477
  %v10481 = vadd.f32 %v10473, %v10477
  %vm10482 = vcmp.ge.f32.partialorder %v10479, 0.0
  %vm10483 = vcmp.ge.f32.partialorder %v10480, 0.0
  %vm10484 = vcmp.ge.f32.partialorder %v10481, 0.0
  %v10485 = vmul.f32 %v10479, 0.2
  %v10486 = vmul.f32 %v10480, 0.2
  %v10487 = vmul.f32 %v10481, 0.2
  %v10488 = vsel %vm10482, %v10479, %v10485
  %v10489 = vsel %vm10483, %v10480, %v10486
  %v10490 = vsel %vm10484, %v10481, %v10487
  %v10491 = vld [vmem:[#allocation2] sm:$0x1]
  %v10492 = vld [vmem:[%s93] sm:$0xff]
  %v10493 = vld [vmem:[%s93 + $0x8] sm:$0xff]
  %v10494 = vld [vmem:[%s93 + $0x10] sm:$0xff]
  %v10495 = vld [vmem:[%s93 + $0x18] sm:$0xff]
  %v10496 = vld [vmem:[%s93 + $0x20] sm:$0xff]
  %v10497 = vld [vmem:[%s93 + $0x28] sm:$0xff]
  %v10498 = vld [vmem:[%s93 + $0x30] sm:$0xff]
  %v10499 = vld [vmem:[%s93 + $0x38] sm:$0xff]
  %v10500 = vld [vmem:[%s93 + $0x40] sm:$0xff]
  %v10501 = vld [vmem:[%s93 + $0x48] sm:$0xff]
  %v10502 = vld [vmem:[%s93 + $0x50] sm:$0xff]
  %v10503 = vld [vmem:[%s93 + $0x58] sm:$0xff]
  %v10504 = vld [vmem:[%s93 + $0x60] sm:$0xff]
  %v10505 = vld [vmem:[%s93 + $0x68] sm:$0xff]
  %v10506 = vld [vmem:[%s93 + $0x70] sm:$0xff]
  %v10507 = vld [vmem:[%s93 + $0x78] sm:$0xff]
  %v10508 = vld [vmem:[%s93 + $0x80] sm:$0xff]
  %v10509 = vld [vmem:[%s93 + $0x88] sm:$0xff]
  %v10510 = vld [vmem:[%s93 + $0x90] sm:$0xff]
  %v10511 = vld [vmem:[%s93 + $0x98] sm:$0xff]
  %v10512 = vld [vmem:[%s93 + $0xa0] sm:$0xff]
  %v10513 = vld [vmem:[%s93 + $0xa8] sm:$0xff]
  %v10514 = vld [vmem:[%s93 + $0xb0] sm:$0xff]
  %v10515 = vld [vmem:[%s93 + $0xb8] sm:$0xff]
  %v10516 = vld [vmem:[%s93 + $0xc0] sm:$0xff]
  %v10517 = vld [vmem:[%s93 + $0xc8] sm:$0xff]
  %v10518 = vld [vmem:[%s93 + $0xd0] sm:$0xff]
  %v10519 = vld [vmem:[%s93 + $0xd8] sm:$0xff]
  %v10520 = vld [vmem:[%s93 + $0xe0] sm:$0xff]
  %v10521 = vld [vmem:[%s93 + $0xe8] sm:$0xff]
  %v10522 = vld [vmem:[%s93 + $0xf0] sm:$0xff]
  %v10523 = vld [vmem:[%s93 + $0xf8] sm:$0xff]
  %v10524 = vld [vmem:[%s93 + $0x100] sm:$0xff]
  %v10525 = vld [vmem:[%s93 + $0x108] sm:$0xff]
  %v10526 = vld [vmem:[%s93 + $0x110] sm:$0xff]
  %v10527 = vld [vmem:[%s93 + $0x118] sm:$0xff]
  %v10528 = vld [vmem:[%s93 + $0x120] sm:$0xff]
  %v10529 = vld [vmem:[%s93 + $0x128] sm:$0xff]
  %v10530 = vld [vmem:[%s93 + $0x130] sm:$0xff]
  %v10531 = vld [vmem:[%s93 + $0x138] sm:$0xff]
  %v10532 = vld [vmem:[%s93 + $0x140] sm:$0xff]
  %v10533 = vld [vmem:[%s93 + $0x148] sm:$0xff]
  %v10534 = vld [vmem:[%s93 + $0x150] sm:$0xff]
  %v10535 = vld [vmem:[%s93 + $0x158] sm:$0xff]
  %v10536 = vld [vmem:[%s93 + $0x160] sm:$0xff]
  %v10537 = vld [vmem:[%s93 + $0x168] sm:$0xff]
  %v10538 = vld [vmem:[%s93 + $0x170] sm:$0xff]
  %v10539 = vld [vmem:[%s93 + $0x178] sm:$0xff]
  %v10540 = vld [vmem:[%s93 + $0x180] sm:$0xff]
  %v10541 = vld [vmem:[%s93 + $0x188] sm:$0xff]
  %v10542 = vld [vmem:[%s93 + $0x190] sm:$0xff]
  %v10543 = vld [vmem:[%s93 + $0x198] sm:$0xff]
  %v10544 = vld [vmem:[%s93 + $0x1a0] sm:$0xff]
  %v10545 = vld [vmem:[%s93 + $0x1a8] sm:$0xff]
  %v10546 = vld [vmem:[%s93 + $0x1b0] sm:$0xff]
  %v10547 = vld [vmem:[%s93 + $0x1b8] sm:$0xff]
  %v10548 = vld [vmem:[%s93 + $0x1c0] sm:$0xff]
  %v10549 = vld [vmem:[%s93 + $0x1c8] sm:$0xff]
  %v10550 = vld [vmem:[%s93 + $0x1d0] sm:$0xff]
  %v10551 = vld [vmem:[%s93 + $0x1d8] sm:$0xff]
  %v10552 = vld [vmem:[%s93 + $0x1e0] sm:$0xff]
  %v10553 = vld [vmem:[%s93 + $0x1e8] sm:$0xff]
  %v10554 = vld [vmem:[%s93 + $0x1f0] sm:$0xff]
  %v10555 = vld [vmem:[%s93 + $0x1f8] sm:$0xff]
  %v10556 = vld [vmem:[%s93 + $0x200] sm:$0xff]
  %v10557 = vld [vmem:[%s93 + $0x208] sm:$0xff]
  %v10558 = vld [vmem:[%s93 + $0x210] sm:$0xff]
  %v10559 = vld [vmem:[%s93 + $0x218] sm:$0xff]
  %v10560 = vld [vmem:[%s93 + $0x220] sm:$0xff]
  %v10561 = vld [vmem:[%s93 + $0x228] sm:$0xff]
  %v10562 = vld [vmem:[%s93 + $0x230] sm:$0xff]
  %v10563 = vld [vmem:[%s93 + $0x238] sm:$0xff]
  %v10564 = vld [vmem:[%s93 + $0x240] sm:$0xff]
  %v10565 = vld [vmem:[%s93 + $0x248] sm:$0xff]
  %v10566 = vld [vmem:[%s93 + $0x250] sm:$0xff]
  %v10567 = vld [vmem:[%s93 + $0x258] sm:$0xff]
  %v10568 = vld [vmem:[%s93 + $0x260] sm:$0xff]
  %v10569 = vld [vmem:[%s93 + $0x268] sm:$0xff]
  %v10570 = vld [vmem:[%s93 + $0x270] sm:$0xff]
  %v10571 = vld [vmem:[%s93 + $0x278] sm:$0xff]
  %v10572 = vld [vmem:[%s93 + $0x280] sm:$0xff]
  %v10573 = vld [vmem:[%s93 + $0x288] sm:$0xff]
  %v10574 = vld [vmem:[%s93 + $0x290] sm:$0xff]
  %v10575 = vld [vmem:[%s93 + $0x298] sm:$0xff]
  %v10576 = vld [vmem:[%s93 + $0x2a0] sm:$0xff]
  %v10577 = vld [vmem:[%s93 + $0x2a8] sm:$0xff]
  %v10578 = vld [vmem:[%s93 + $0x2b0] sm:$0xff]
  %v10579 = vld [vmem:[%s93 + $0x2b8] sm:$0xff]
  %v10580 = vld [vmem:[%s93 + $0x2c0] sm:$0xff]
  %v10581 = vld [vmem:[%s93 + $0x2c8] sm:$0xff]
  %v10582 = vld [vmem:[%s93 + $0x2d0] sm:$0xff]
  %v10583 = vld [vmem:[%s93 + $0x2d8] sm:$0xff]
  %v10584 = vld [vmem:[%s93 + $0x2e0] sm:$0xff]
  %v10585 = vld [vmem:[%s93 + $0x2e8] sm:$0xff]
  %v10586 = vld [vmem:[%s93 + $0x2f0] sm:$0xff]
  %v10587 = vld [vmem:[%s93 + $0x2f8] sm:$0xff]
  %v10588 = vld [vmem:[%s93 + $0x300] sm:$0xff]
  %v10589 = vld [vmem:[%s93 + $0x308] sm:$0xff]
  %v10590 = vld [vmem:[%s93 + $0x310] sm:$0xff]
  %v10592 = vsel %vm500, %v10490, 0
  %10594 = vmatprep.subr.mxu0 %v10493
  %10595 = vmatpush1.msra.mxu0 %v10492
  %10596 = vmatprep.subr.mxu0 %v10496
  %10597 = vmatpush1.msra.mxu0 %v10495
  %10598 = vmatprep.subr.mxu0 %v10499
  %10599 = vmatpush1.msra.mxu0 %v10498
  %10600 = vmatprep.subr.mxu0 %v10502
  %10601 = vmatpush1.msra.mxu0 %v10501
  %10602 = vmatprep.subr.mxu0 %v10505
  %10603 = vmatpush1.msra.mxu0 %v10504
  %10604 = vmatprep.subr.mxu0 %v10508
  %10605 = vmatpush1.msra.mxu0 %v10507
  %10606 = vmatprep.subr.mxu0 %v10511
  %10607 = vmatpush1.msra.mxu0 %v10510
  %10608 = vmatprep.subr.mxu0 %v10514
  %10609 = vmatpush1.msra.mxu0 %v10513
  %10610 = vmatprep.subr.mxu0 %v10517
  %10611 = vmatpush1.msra.mxu0 %v10516
  %10612 = vmatprep.subr.mxu0 %v10520
  %10613 = vmatpush1.msra.mxu0 %v10519
  %10614 = vmatprep.subr.mxu0 %v10523
  %10615 = vmatpush1.msra.mxu0 %v10522
  %10616 = vmatprep.subr.mxu0 %v10526
  %10617 = vmatpush1.msra.mxu0 %v10525
  %10618 = vmatprep.subr.mxu0 %v10529
  %10619 = vmatpush1.msra.mxu0 %v10528
  %10620 = vmatprep.subr.mxu0 %v10532
  %10621 = vmatpush1.msra.mxu0 %v10531
  %10622 = vmatprep.subr.mxu0 %v10535
  %10623 = vmatpush1.msra.mxu0 %v10534
  %10624 = vmatprep.subr.mxu0 %v10538
  %10625 = vmatpush1.msra.mxu0 %v10537
  %10626 = vmatprep.subr.mxu0 %v10541
  %10627 = vmatpush1.msra.mxu0 %v10540
  %10628 = vmatprep.subr.mxu0 %v10544
  %10629 = vmatpush1.msra.mxu0 %v10543
  %10630 = vmatprep.subr.mxu0 %v10547
  %10631 = vmatpush1.msra.mxu0 %v10546
  %10632 = vmatprep.subr.mxu0 %v10550
  %10633 = vmatpush1.msra.mxu0 %v10549
  %10634 = vmatprep.subr.mxu0 %v10553
  %10635 = vmatpush1.msra.mxu0 %v10552
  %10636 = vmatprep.subr.mxu0 %v10556
  %10637 = vmatpush1.msra.mxu0 %v10555
  %10638 = vmatprep.subr.mxu0 %v10559
  %10639 = vmatpush1.msra.mxu0 %v10558
  %10640 = vmatprep.subr.mxu0 %v10562
  %10641 = vmatpush1.msra.mxu0 %v10561
  %10642 = vmatprep.subr.mxu0 %v10565
  %10643 = vmatpush1.msra.mxu0 %v10564
  %10644 = vmatprep.subr.mxu0 %v10568
  %10645 = vmatpush1.msra.mxu0 %v10567
  %10646 = vmatprep.subr.mxu0 %v10571
  %10647 = vmatpush1.msra.mxu0 %v10570
  %10648 = vmatprep.subr.mxu0 %v10574
  %10649 = vmatpush1.msra.mxu0 %v10573
  %10650 = vmatprep.subr.mxu0 %v10577
  %10651 = vmatpush1.msra.mxu0 %v10576
  %10652 = vmatprep.subr.mxu0 %v10580
  %10653 = vmatpush1.msra.mxu0 %v10579
  %10654 = vmatprep.subr.mxu0 %v10583
  %10655 = vmatpush1.msra.mxu0 %v10582
  %10656 = vmatprep.subr.mxu0 %v10586
  %10657 = vmatpush1.msra.mxu0 %v10585
  %10658 = vmatprep.mubr.f32.mxu0 %v10489
  %10659 = vmatmul.mubr.f32.gmra.mrb[0].mxu0 %v10488
  %v10660 = vpop.f32.mrb[0].mxu0
  %v10661 = vadd.f32 0.0, %v10660
  %v10662 = vpop.f32.mrb[0].mxu0
  %v10663 = vadd.f32 0.0, %v10662
  %10664 = vdwg.mxu0
  %10665 = vmatprep.subr.mxu0 %v10589
  %10666 = vmatpush1.msra.mxu0 %v10588
  %10667 = vmatprep.subr.mxu0 0.0
  %10668 = vmatpush1.msra.mxu0 0.0
  %10669 = vmatprep.subr.mxu0 0.0
  %10670 = vmatpush1.msra.mxu0 0.0
  %10671 = vmatprep.subr.mxu0 0.0
  %10672 = vmatpush1.msra.mxu0 0.0
  %10673 = vmatprep.subr.mxu0 0.0
  %10674 = vmatpush1.msra.mxu0 0.0
  %10675 = vmatprep.subr.mxu0 0.0
  %10676 = vmatpush1.msra.mxu0 0.0
  %10677 = vmatprep.subr.mxu0 0.0
  %10678 = vmatpush1.msra.mxu0 0.0
  %10679 = vmatprep.subr.mxu0 0.0
  %10680 = vmatpush1.msra.mxu0 0.0
  %10681 = vmatprep.subr.mxu0 0.0
  %10682 = vmatpush1.msra.mxu0 0.0
  %10683 = vmatprep.subr.mxu0 0.0
  %10684 = vmatpush1.msra.mxu0 0.0
  %10685 = vmatprep.subr.mxu0 0.0
  %10686 = vmatpush1.msra.mxu0 0.0
  %10687 = vmatprep.subr.mxu0 0.0
  %10688 = vmatpush1.msra.mxu0 0.0
  %10689 = vmatprep.subr.mxu0 0.0
  %10690 = vmatpush1.msra.mxu0 0.0
  %10691 = vmatprep.subr.mxu0 0.0
  %10692 = vmatpush1.msra.mxu0 0.0
  %10693 = vmatprep.subr.mxu0 0.0
  %10694 = vmatpush1.msra.mxu0 0.0
  %10695 = vmatprep.subr.mxu0 0.0
  %10696 = vmatpush1.msra.mxu0 0.0
  %10697 = vmatprep.subr.mxu0 0.0
  %10698 = vmatpush1.msra.mxu0 0.0
  %10699 = vmatprep.subr.mxu0 0.0
  %10700 = vmatpush1.msra.mxu0 0.0
  %10701 = vmatprep.subr.mxu0 0.0
  %10702 = vmatpush1.msra.mxu0 0.0
  %10703 = vmatprep.subr.mxu0 0.0
  %10704 = vmatpush1.msra.mxu0 0.0
  %10705 = vmatprep.subr.mxu0 0.0
  %10706 = vmatpush1.msra.mxu0 0.0
  %10707 = vmatprep.subr.mxu0 0.0
  %10708 = vmatpush1.msra.mxu0 0.0
  %10709 = vmatprep.subr.mxu0 0.0
  %10710 = vmatpush1.msra.mxu0 0.0
  %10711 = vmatprep.subr.mxu0 0.0
  %10712 = vmatpush1.msra.mxu0 0.0
  %10713 = vmatprep.subr.mxu0 0.0
  %10714 = vmatpush1.msra.mxu0 0.0
  %10715 = vmatprep.subr.mxu0 0.0
  %10716 = vmatpush1.msra.mxu0 0.0
  %10717 = vmatprep.subr.mxu0 0.0
  %10718 = vmatpush1.msra.mxu0 0.0
  %10719 = vmatprep.subr.mxu0 0.0
  %10720 = vmatpush1.msra.mxu0 0.0
  %10721 = vmatprep.subr.mxu0 0.0
  %10722 = vmatpush1.msra.mxu0 0.0
  %10723 = vmatprep.subr.mxu0 0.0
  %10724 = vmatpush1.msra.mxu0 0.0
  %10725 = vmatprep.subr.mxu0 0.0
  %10726 = vmatpush1.msra.mxu0 0.0
  %10727 = vmatprep.subr.mxu0 0.0
  %10728 = vmatpush1.msra.mxu0 0.0
  %10729 = vmatprep.mubr.f32.mxu0 0.0
  %10730 = vmatmul.mubr.f32.gmra.mrb[0].mxu0 %v10592
  %v10731 = vpop.f32.mrb[0].mxu0
  %v10732 = vadd.f32 %v10661, %v10731
  %v10733 = vpop.f32.mrb[0].mxu0
  %v10734 = vadd.f32 %v10663, %v10733
  %10735 = vdwg.mxu0
  %10736 = vmatprep.subr.mxu0 0.0
  %10737 = vmatpush1.msra.mxu0 %v10494
  %10738 = vmatprep.subr.mxu0 0.0
  %10739 = vmatpush1.msra.mxu0 %v10497
  %10740 = vmatprep.subr.mxu0 0.0
  %10741 = vmatpush1.msra.mxu0 %v10500
  %10742 = vmatprep.subr.mxu0 0.0
  %10743 = vmatpush1.msra.mxu0 %v10503
  %10744 = vmatprep.subr.mxu0 0.0
  %10745 = vmatpush1.msra.mxu0 %v10506
  %10746 = vmatprep.subr.mxu0 0.0
  %10747 = vmatpush1.msra.mxu0 %v10509
  %10748 = vmatprep.subr.mxu0 0.0
  %10749 = vmatpush1.msra.mxu0 %v10512
  %10750 = vmatprep.subr.mxu0 0.0
  %10751 = vmatpush1.msra.mxu0 %v10515
  %10752 = vmatprep.subr.mxu0 0.0
  %10753 = vmatpush1.msra.mxu0 %v10518
  %10754 = vmatprep.subr.mxu0 0.0
  %10755 = vmatpush1.msra.mxu0 %v10521
  %10756 = vmatprep.subr.mxu0 0.0
  %10757 = vmatpush1.msra.mxu0 %v10524
  %10758 = vmatprep.subr.mxu0 0.0
  %10759 = vmatpush1.msra.mxu0 %v10527
  %10760 = vmatprep.subr.mxu0 0.0
  %10761 = vmatpush1.msra.mxu0 %v10530
  %10762 = vmatprep.subr.mxu0 0.0
  %10763 = vmatpush1.msra.mxu0 %v10533
  %10764 = vmatprep.subr.mxu0 0.0
  %10765 = vmatpush1.msra.mxu0 %v10536
  %10766 = vmatprep.subr.mxu0 0.0
  %10767 = vmatpush1.msra.mxu0 %v10539
  %10768 = vmatprep.subr.mxu0 0.0
  %10769 = vmatpush1.msra.mxu0 %v10542
  %10770 = vmatprep.subr.mxu0 0.0
  %10771 = vmatpush1.msra.mxu0 %v10545
  %10772 = vmatprep.subr.mxu0 0.0
  %10773 = vmatpush1.msra.mxu0 %v10548
  %10774 = vmatprep.subr.mxu0 0.0
  %10775 = vmatpush1.msra.mxu0 %v10551
  %10776 = vmatprep.subr.mxu0 0.0
  %10777 = vmatpush1.msra.mxu0 %v10554
  %10778 = vmatprep.subr.mxu0 0.0
  %10779 = vmatpush1.msra.mxu0 %v10557
  %10780 = vmatprep.subr.mxu0 0.0
  %10781 = vmatpush1.msra.mxu0 %v10560
  %10782 = vmatprep.subr.mxu0 0.0
  %10783 = vmatpush1.msra.mxu0 %v10563
  %10784 = vmatprep.subr.mxu0 0.0
  %10785 = vmatpush1.msra.mxu0 %v10566
  %10786 = vmatprep.subr.mxu0 0.0
  %10787 = vmatpush1.msra.mxu0 %v10569
  %10788 = vmatprep.subr.mxu0 0.0
  %10789 = vmatpush1.msra.mxu0 %v10572
  %10790 = vmatprep.subr.mxu0 0.0
  %10791 = vmatpush1.msra.mxu0 %v10575
  %10792 = vmatprep.subr.mxu0 0.0
  %10793 = vmatpush1.msra.mxu0 %v10578
  %10794 = vmatprep.subr.mxu0 0.0
  %10795 = vmatpush1.msra.mxu0 %v10581
  %10796 = vmatprep.subr.mxu0 0.0
  %10797 = vmatpush1.msra.mxu0 %v10584
  %10798 = vmatprep.subr.mxu0 0.0
  %10799 = vmatpush1.msra.mxu0 %v10587
  %10800 = vmatprep.mubr.f32.mxu0 %v10489
  %10801 = vmatmul.mubr.f32.gmra.mrb[0].mxu0 %v10488
  %v10802 = vpop.f32.mrb[0].mxu0
  %v10803 = vadd.f32 0.0, %v10802
  %v10804 = vpop.f32.mrb[0].mxu0
  %10805 = vdwg.mxu0
  %10806 = vmatprep.subr.mxu0 0.0
  %10807 = vmatpush1.msra.mxu0 %v10590
  %10808 = vmatprep.subr.mxu0 0.0
  %10809 = vmatpush1.msra.mxu0 0.0
  %10810 = vmatprep.subr.mxu0 0.0
  %10811 = vmatpush1.msra.mxu0 0.0
  %10812 = vmatprep.subr.mxu0 0.0
  %10813 = vmatpush1.msra.mxu0 0.0
  %10814 = vmatprep.subr.mxu0 0.0
  %10815 = vmatpush1.msra.mxu0 0.0
  %10816 = vmatprep.subr.mxu0 0.0
  %10817 = vmatpush1.msra.mxu0 0.0
  %10818 = vmatprep.subr.mxu0 0.0
  %10819 = vmatpush1.msra.mxu0 0.0
  %10820 = vmatprep.subr.mxu0 0.0
  %10821 = vmatpush1.msra.mxu0 0.0
  %10822 = vmatprep.subr.mxu0 0.0
  %10823 = vmatpush1.msra.mxu0 0.0
  %10824 = vmatprep.subr.mxu0 0.0
  %10825 = vmatpush1.msra.mxu0 0.0
  %10826 = vmatprep.subr.mxu0 0.0
  %10827 = vmatpush1.msra.mxu0 0.0
  %10828 = vmatprep.subr.mxu0 0.0
  %10829 = vmatpush1.msra.mxu0 0.0
  %10830 = vmatprep.subr.mxu0 0.0
  %10831 = vmatpush1.msra.mxu0 0.0
  %10832 = vmatprep.subr.mxu0 0.0
  %10833 = vmatpush1.msra.mxu0 0.0
  %10834 = vmatprep.subr.mxu0 0.0
  %10835 = vmatpush1.msra.mxu0 0.0
  %10836 = vmatprep.subr.mxu0 0.0
  %10837 = vmatpush1.msra.mxu0 0.0
  %10838 = vmatprep.subr.mxu0 0.0
  %10839 = vmatpush1.msra.mxu0 0.0
  %10840 = vmatprep.subr.mxu0 0.0
  %10841 = vmatpush1.msra.mxu0 0.0
  %10842 = vmatprep.subr.mxu0 0.0
  %10843 = vmatpush1.msra.mxu0 0.0
  %10844 = vmatprep.subr.mxu0 0.0
  %10845 = vmatpush1.msra.mxu0 0.0
  %10846 = vmatprep.subr.mxu0 0.0
  %10847 = vmatpush1.msra.mxu0 0.0
  %10848 = vmatprep.subr.mxu0 0.0
  %10849 = vmatpush1.msra.mxu0 0.0
  %10850 = vmatprep.subr.mxu0 0.0
  %10851 = vmatpush1.msra.mxu0 0.0
  %10852 = vmatprep.subr.mxu0 0.0
  %10853 = vmatpush1.msra.mxu0 0.0
  %10854 = vmatprep.subr.mxu0 0.0
  %10855 = vmatpush1.msra.mxu0 0.0
  %10856 = vmatprep.subr.mxu0 0.0
  %10857 = vmatpush1.msra.mxu0 0.0
  %10858 = vmatprep.subr.mxu0 0.0
  %10859 = vmatpush1.msra.mxu0 0.0
  %10860 = vmatprep.subr.mxu0 0.0
  %10861 = vmatpush1.msra.mxu0 0.0
  %10862 = vmatprep.subr.mxu0 0.0
  %10863 = vmatpush1.msra.mxu0 0.0
  %10864 = vmatprep.subr.mxu0 0.0
  %10865 = vmatpush1.msra.mxu0 0.0
  %10866 = vmatprep.subr.mxu0 0.0
  %10867 = vmatpush1.msra.mxu0 0.0
  %10868 = vmatprep.subr.mxu0 0.0
  %10869 = vmatpush1.msra.mxu0 0.0
  %10870 = vmatprep.mubr.f32.mxu0 0.0
  %10871 = vmatmul.mubr.f32.gmra.mrb[0].mxu0 %v10592
  %v10872 = vpop.f32.mrb[0].mxu0
  %v10873 = vadd.f32 %v10803, %v10872
  %v10874 = vpop.f32.mrb[0].mxu0
  %10875 = vdwg.mxu0
  %v10876 = vld [vmem:[%s89] sm:$0x1]
  %s10877 = scalar_lea.vmem %s89, 1
  %v10878 = vld [vmem:[%s10877] sm:$0x1]
  %10882 = vrot.lane.b32.xlu0 %v10732, 127
  %v10883 = vpop.permute.xlu0 %10882
  %10884 = vrot.lane.b32.xlu0 %v10734, 127
  %v10885 = vpop.permute.xlu0 %10884
  %10886 = vrot.lane.b32.xlu0 %v10873, 127
  %v10887 = vpop.permute.xlu0 %10886
  %v10888 = vsel %vm236, %v10883, %v10885
  %v10889 = vsel %vm236, %v10885, %v10887
  %v10894 = vsel %vm500, %v10878, 0
  %10896 = vmatprep.subr.mxu0 %v10889
  %10897 = vmatpush1.msra.mxu0 %v10888
  %10898 = vmatprep.subr.mxu0 0.0
  %10899 = vmatpush1.msra.mxu0 0.0
  %10900 = vmatprep.subr.mxu0 0.0
  %10901 = vmatpush1.msra.mxu0 0.0
  %10902 = vmatprep.subr.mxu0 0.0
  %10903 = vmatpush1.msra.mxu0 0.0
  %10904 = vmatprep.subr.mxu0 0.0
  %10905 = vmatpush1.msra.mxu0 0.0
  %10906 = vmatprep.subr.mxu0 0.0
  %10907 = vmatpush1.msra.mxu0 0.0
  %10908 = vmatprep.subr.mxu0 0.0
  %10909 = vmatpush1.msra.mxu0 0.0
  %10910 = vmatprep.subr.mxu0 0.0
  %10911 = vmatpush1.msra.mxu0 0.0
  %10912 = vmatprep.subr.mxu0 0.0
  %10913 = vmatpush1.msra.mxu0 0.0
  %10914 = vmatprep.subr.mxu0 0.0
  %10915 = vmatpush1.msra.mxu0 0.0
  %10916 = vmatprep.subr.mxu0 0.0
  %10917 = vmatpush1.msra.mxu0 0.0
  %10918 = vmatprep.subr.mxu0 0.0
  %10919 = vmatpush1.msra.mxu0 0.0
  %10920 = vmatprep.subr.mxu0 0.0
  %10921 = vmatpush1.msra.mxu0 0.0
  %10922 = vmatprep.subr.mxu0 0.0
  %10923 = vmatpush1.msra.mxu0 0.0
  %10924 = vmatprep.subr.mxu0 0.0
  %10925 = vmatpush1.msra.mxu0 0.0
  %10926 = vmatprep.subr.mxu0 0.0
  %10927 = vmatpush1.msra.mxu0 0.0
  %10928 = vmatprep.subr.mxu0 0.0
  %10929 = vmatpush1.msra.mxu0 0.0
  %10930 = vmatprep.subr.mxu0 0.0
  %10931 = vmatpush1.msra.mxu0 0.0
  %10932 = vmatprep.subr.mxu0 0.0
  %10933 = vmatpush1.msra.mxu0 0.0
  %10934 = vmatprep.subr.mxu0 0.0
  %10935 = vmatpush1.msra.mxu0 0.0
  %10936 = vmatprep.subr.mxu0 0.0
  %10937 = vmatpush1.msra.mxu0 0.0
  %10938 = vmatprep.subr.mxu0 0.0
  %10939 = vmatpush1.msra.mxu0 0.0
  %10940 = vmatprep.subr.mxu0 0.0
  %10941 = vmatpush1.msra.mxu0 0.0
  %10942 = vmatprep.subr.mxu0 0.0
  %10943 = vmatpush1.msra.mxu0 0.0
  %10944 = vmatprep.subr.mxu0 0.0
  %10945 = vmatpush1.msra.mxu0 0.0
  %10946 = vmatprep.subr.mxu0 0.0
  %10947 = vmatpush1.msra.mxu0 0.0
  %10948 = vmatprep.subr.mxu0 0.0
  %10949 = vmatpush1.msra.mxu0 0.0
  %10950 = vmatprep.subr.mxu0 0.0
  %10951 = vmatpush1.msra.mxu0 0.0
  %10952 = vmatprep.subr.mxu0 0.0
  %10953 = vmatpush1.msra.mxu0 0.0
  %10954 = vmatprep.subr.mxu0 0.0
  %10955 = vmatpush1.msra.mxu0 0.0
  %10956 = vmatprep.subr.mxu0 0.0
  %10957 = vmatpush1.msra.mxu0 0.0
  %10958 = vmatprep.subr.mxu0 0.0
  %10959 = vmatpush1.msra.mxu0 0.0
  %10960 = vmatprep.mubr.f32.mxu0 0.0
  %10961 = vmatmul.mubr.f32.gmra.mrb[0].mxu0 %v10894
  %v10962 = vpop.f32.mrb[0].mxu0
  %v10963 = vadd.f32 0.0, %v10962
  %v10964 = vpop.f32.mrb[0].mxu0
  %v10965 = vadd.f32 0.0, %v10964
  %10966 = vdwg.mxu0
  %10967 = vmatprep.subr.mxu0 0.0
  %10968 = vmatpush1.msra.mxu0 %v10887
  %10969 = vmatprep.subr.mxu0 0.0
  %10970 = vmatpush1.msra.mxu0 0.0
  %10971 = vmatprep.subr.mxu0 0.0
  %10972 = vmatpush1.msra.mxu0 0.0
  %10973 = vmatprep.subr.mxu0 0.0
  %10974 = vmatpush1.msra.mxu0 0.0
  %10975 = vmatprep.subr.mxu0 0.0
  %10976 = vmatpush1.msra.mxu0 0.0
  %10977 = vmatprep.subr.mxu0 0.0
  %10978 = vmatpush1.msra.mxu0 0.0
  %10979 = vmatprep.subr.mxu0 0.0
  %10980 = vmatpush1.msra.mxu0 0.0
  %10981 = vmatprep.subr.mxu0 0.0
  %10982 = vmatpush1.msra.mxu0 0.0
  %10983 = vmatprep.subr.mxu0 0.0
  %10984 = vmatpush1.msra.mxu0 0.0
  %10985 = vmatprep.subr.mxu0 0.0
  %10986 = vmatpush1.msra.mxu0 0.0
  %10987 = vmatprep.subr.mxu0 0.0
  %10988 = vmatpush1.msra.mxu0 0.0
  %10989 = vmatprep.subr.mxu0 0.0
  %10990 = vmatpush1.msra.mxu0 0.0
  %10991 = vmatprep.subr.mxu0 0.0
  %10992 = vmatpush1.msra.mxu0 0.0
  %10993 = vmatprep.subr.mxu0 0.0
  %10994 = vmatpush1.msra.mxu0 0.0
  %10995 = vmatprep.subr.mxu0 0.0
  %10996 = vmatpush1.msra.mxu0 0.0
  %10997 = vmatprep.subr.mxu0 0.0
  %10998 = vmatpush1.msra.mxu0 0.0
  %10999 = vmatprep.subr.mxu0 0.0
  %11000 = vmatpush1.msra.mxu0 0.0
  %11001 = vmatprep.subr.mxu0 0.0
  %11002 = vmatpush1.msra.mxu0 0.0
  %11003 = vmatprep.subr.mxu0 0.0
  %11004 = vmatpush1.msra.mxu0 0.0
  %11005 = vmatprep.subr.mxu0 0.0
  %11006 = vmatpush1.msra.mxu0 0.0
  %11007 = vmatprep.subr.mxu0 0.0
  %11008 = vmatpush1.msra.mxu0 0.0
  %11009 = vmatprep.subr.mxu0 0.0
  %11010 = vmatpush1.msra.mxu0 0.0
  %11011 = vmatprep.subr.mxu0 0.0
  %11012 = vmatpush1.msra.mxu0 0.0
  %11013 = vmatprep.subr.mxu0 0.0
  %11014 = vmatpush1.msra.mxu0 0.0
  %11015 = vmatprep.subr.mxu0 0.0
  %11016 = vmatpush1.msra.mxu0 0.0
  %11017 = vmatprep.subr.mxu0 0.0
  %11018 = vmatpush1.msra.mxu0 0.0
  %11019 = vmatprep.subr.mxu0 0.0
  %11020 = vmatpush1.msra.mxu0 0.0
  %11021 = vmatprep.subr.mxu0 0.0
  %11022 = vmatpush1.msra.mxu0 0.0
  %11023 = vmatprep.subr.mxu0 0.0
  %11024 = vmatpush1.msra.mxu0 0.0
  %11025 = vmatprep.subr.mxu0 0.0
  %11026 = vmatpush1.msra.mxu0 0.0
  %11027 = vmatprep.subr.mxu0 0.0
  %11028 = vmatpush1.msra.mxu0 0.0
  %11029 = vmatprep.subr.mxu0 0.0
  %11030 = vmatpush1.msra.mxu0 0.0
  %11031 = vmatprep.mubr.f32.mxu0 0.0
  %11032 = vmatmul.mubr.f32.gmra.mrb[0].mxu0 %v10894
  %v11033 = vpop.f32.mrb[0].mxu0
  %v11034 = vadd.f32 0.0, %v11033
  %v11035 = vpop.f32.mrb[0].mxu0
  %11036 = vdwg.mxu0
  %v11038 = vsel %vm500, %v10876, 0
  %11040 = vmatprep.subr.mxu0 %v10734
  %11041 = vmatpush1.msra.mxu0 %v10732
  %11042 = vmatprep.subr.mxu0 0.0
  %11043 = vmatpush1.msra.mxu0 0.0
  %11044 = vmatprep.subr.mxu0 0.0
  %11045 = vmatpush1.msra.mxu0 0.0
  %11046 = vmatprep.subr.mxu0 0.0
  %11047 = vmatpush1.msra.mxu0 0.0
  %11048 = vmatprep.subr.mxu0 0.0
  %11049 = vmatpush1.msra.mxu0 0.0
  %11050 = vmatprep.subr.mxu0 0.0
  %11051 = vmatpush1.msra.mxu0 0.0
  %11052 = vmatprep.subr.mxu0 0.0
  %11053 = vmatpush1.msra.mxu0 0.0
  %11054 = vmatprep.subr.mxu0 0.0
  %11055 = vmatpush1.msra.mxu0 0.0
  %11056 = vmatprep.subr.mxu0 0.0
  %11057 = vmatpush1.msra.mxu0 0.0
  %11058 = vmatprep.subr.mxu0 0.0
  %11059 = vmatpush1.msra.mxu0 0.0
  %11060 = vmatprep.subr.mxu0 0.0
  %11061 = vmatpush1.msra.mxu0 0.0
  %11062 = vmatprep.subr.mxu0 0.0
  %11063 = vmatpush1.msra.mxu0 0.0
  %11064 = vmatprep.subr.mxu0 0.0
  %11065 = vmatpush1.msra.mxu0 0.0
  %11066 = vmatprep.subr.mxu0 0.0
  %11067 = vmatpush1.msra.mxu0 0.0
  %11068 = vmatprep.subr.mxu0 0.0
  %11069 = vmatpush1.msra.mxu0 0.0
  %11070 = vmatprep.subr.mxu0 0.0
  %11071 = vmatpush1.msra.mxu0 0.0
  %11072 = vmatprep.subr.mxu0 0.0
  %11073 = vmatpush1.msra.mxu0 0.0
  %11074 = vmatprep.subr.mxu0 0.0
  %11075 = vmatpush1.msra.mxu0 0.0
  %11076 = vmatprep.subr.mxu0 0.0
  %11077 = vmatpush1.msra.mxu0 0.0
  %11078 = vmatprep.subr.mxu0 0.0
  %11079 = vmatpush1.msra.mxu0 0.0
  %11080 = vmatprep.subr.mxu0 0.0
  %11081 = vmatpush1.msra.mxu0 0.0
  %11082 = vmatprep.subr.mxu0 0.0
  %11083 = vmatpush1.msra.mxu0 0.0
  %11084 = vmatprep.subr.mxu0 0.0
  %11085 = vmatpush1.msra.mxu0 0.0
  %11086 = vmatprep.subr.mxu0 0.0
  %11087 = vmatpush1.msra.mxu0 0.0
  %11088 = vmatprep.subr.mxu0 0.0
  %11089 = vmatpush1.msra.mxu0 0.0
  %11090 = vmatprep.subr.mxu0 0.0
  %11091 = vmatpush1.msra.mxu0 0.0
  %11092 = vmatprep.subr.mxu0 0.0
  %11093 = vmatpush1.msra.mxu0 0.0
  %11094 = vmatprep.subr.mxu0 0.0
  %11095 = vmatpush1.msra.mxu0 0.0
  %11096 = vmatprep.subr.mxu0 0.0
  %11097 = vmatpush1.msra.mxu0 0.0
  %11098 = vmatprep.subr.mxu0 0.0
  %11099 = vmatpush1.msra.mxu0 0.0
  %11100 = vmatprep.subr.mxu0 0.0
  %11101 = vmatpush1.msra.mxu0 0.0
  %11102 = vmatprep.subr.mxu0 0.0
  %11103 = vmatpush1.msra.mxu0 0.0
  %11104 = vmatprep.mubr.f32.mxu0 0.0
  %11105 = vmatmul.mubr.f32.gmra.mrb[0].mxu0 %v11038
  %v11106 = vpop.f32.mrb[0].mxu0
  %v11107 = vadd.f32 %v10963, %v11106
  %v11108 = vpop.f32.mrb[0].mxu0
  %v11109 = vadd.f32 %v10965, %v11108
  %11110 = vdwg.mxu0
  %11111 = vmatprep.subr.mxu0 0.0
  %11112 = vmatpush1.msra.mxu0 %v10873
  %11113 = vmatprep.subr.mxu0 0.0
  %11114 = vmatpush1.msra.mxu0 0.0
  %11115 = vmatprep.subr.mxu0 0.0
  %11116 = vmatpush1.msra.mxu0 0.0
  %11117 = vmatprep.subr.mxu0 0.0
  %11118 = vmatpush1.msra.mxu0 0.0
  %11119 = vmatprep.subr.mxu0 0.0
  %11120 = vmatpush1.msra.mxu0 0.0
  %11121 = vmatprep.subr.mxu0 0.0
  %11122 = vmatpush1.msra.mxu0 0.0
  %11123 = vmatprep.subr.mxu0 0.0
  %11124 = vmatpush1.msra.mxu0 0.0
  %11125 = vmatprep.subr.mxu0 0.0
  %11126 = vmatpush1.msra.mxu0 0.0
  %11127 = vmatprep.subr.mxu0 0.0
  %11128 = vmatpush1.msra.mxu0 0.0
  %11129 = vmatprep.subr.mxu0 0.0
  %11130 = vmatpush1.msra.mxu0 0.0
  %11131 = vmatprep.subr.mxu0 0.0
  %11132 = vmatpush1.msra.mxu0 0.0
  %11133 = vmatprep.subr.mxu0 0.0
  %11134 = vmatpush1.msra.mxu0 0.0
  %11135 = vmatprep.subr.mxu0 0.0
  %11136 = vmatpush1.msra.mxu0 0.0
  %11137 = vmatprep.subr.mxu0 0.0
  %11138 = vmatpush1.msra.mxu0 0.0
  %11139 = vmatprep.subr.mxu0 0.0
  %11140 = vmatpush1.msra.mxu0 0.0
  %11141 = vmatprep.subr.mxu0 0.0
  %11142 = vmatpush1.msra.mxu0 0.0
  %11143 = vmatprep.subr.mxu0 0.0
  %11144 = vmatpush1.msra.mxu0 0.0
  %11145 = vmatprep.subr.mxu0 0.0
  %11146 = vmatpush1.msra.mxu0 0.0
  %11147 = vmatprep.subr.mxu0 0.0
  %11148 = vmatpush1.msra.mxu0 0.0
  %11149 = vmatprep.subr.mxu0 0.0
  %11150 = vmatpush1.msra.mxu0 0.0
  %11151 = vmatprep.subr.mxu0 0.0
  %11152 = vmatpush1.msra.mxu0 0.0
  %11153 = vmatprep.subr.mxu0 0.0
  %11154 = vmatpush1.msra.mxu0 0.0
  %11155 = vmatprep.subr.mxu0 0.0
  %11156 = vmatpush1.msra.mxu0 0.0
  %11157 = vmatprep.subr.mxu0 0.0
  %11158 = vmatpush1.msra.mxu0 0.0
  %11159 = vmatprep.subr.mxu0 0.0
  %11160 = vmatpush1.msra.mxu0 0.0
  %11161 = vmatprep.subr.mxu0 0.0
  %11162 = vmatpush1.msra.mxu0 0.0
  %11163 = vmatprep.subr.mxu0 0.0
  %11164 = vmatpush1.msra.mxu0 0.0
  %11165 = vmatprep.subr.mxu0 0.0
  %11166 = vmatpush1.msra.mxu0 0.0
  %11167 = vmatprep.subr.mxu0 0.0
  %11168 = vmatpush1.msra.mxu0 0.0
  %11169 = vmatprep.subr.mxu0 0.0
  %11170 = vmatpush1.msra.mxu0 0.0
  %11171 = vmatprep.subr.mxu0 0.0
  %11172 = vmatpush1.msra.mxu0 0.0
  %11173 = vmatprep.subr.mxu0 0.0
  %11174 = vmatpush1.msra.mxu0 0.0
  %11175 = vmatprep.mubr.f32.mxu0 0.0
  %11176 = vmatmul.mubr.f32.gmra.mrb[0].mxu0 %v11038
  %v11177 = vpop.f32.mrb[0].mxu0
  %v11178 = vadd.f32 %v11034, %v11177
  %v11179 = vpop.f32.mrb[0].mxu0
  %11180 = vdwg.mxu0
  %s11181 = scalar_lea.vmem %s89, 2
  %v11182 = vld [vmem:[%s11181] sm:$0x1]
  %11183 = vrot.lane.b32.xlu0 %v10732, 126
  %v11184 = vpop.permute.xlu0 %11183
  %11185 = vrot.lane.b32.xlu0 %v10734, 126
  %v11186 = vpop.permute.xlu0 %11185
  %11187 = vrot.lane.b32.xlu0 %v10873, 126
  %v11188 = vpop.permute.xlu0 %11187
  %v11189 = vsel %vm257, %v11184, %v11186
  %v11190 = vsel %vm257, %v11186, %v11188
  %v11195 = vsel %vm500, %v11182, 0
  %11197 = vmatprep.subr.mxu0 %v11190
  %11198 = vmatpush1.msra.mxu0 %v11189
  %11199 = vmatprep.subr.mxu0 0.0
  %11200 = vmatpush1.msra.mxu0 0.0
  %11201 = vmatprep.subr.mxu0 0.0
  %11202 = vmatpush1.msra.mxu0 0.0
  %11203 = vmatprep.subr.mxu0 0.0
  %11204 = vmatpush1.msra.mxu0 0.0
  %11205 = vmatprep.subr.mxu0 0.0
  %11206 = vmatpush1.msra.mxu0 0.0
  %11207 = vmatprep.subr.mxu0 0.0
  %11208 = vmatpush1.msra.mxu0 0.0
  %11209 = vmatprep.subr.mxu0 0.0
  %11210 = vmatpush1.msra.mxu0 0.0
  %11211 = vmatprep.subr.mxu0 0.0
  %11212 = vmatpush1.msra.mxu0 0.0
  %11213 = vmatprep.subr.mxu0 0.0
  %11214 = vmatpush1.msra.mxu0 0.0
  %11215 = vmatprep.subr.mxu0 0.0
  %11216 = vmatpush1.msra.mxu0 0.0
  %11217 = vmatprep.subr.mxu0 0.0
  %11218 = vmatpush1.msra.mxu0 0.0
  %11219 = vmatprep.subr.mxu0 0.0
  %11220 = vmatpush1.msra.mxu0 0.0
  %11221 = vmatprep.subr.mxu0 0.0
  %11222 = vmatpush1.msra.mxu0 0.0
  %11223 = vmatprep.subr.mxu0 0.0
  %11224 = vmatpush1.msra.mxu0 0.0
  %11225 = vmatprep.subr.mxu0 0.0
  %11226 = vmatpush1.msra.mxu0 0.0
  %11227 = vmatprep.subr.mxu0 0.0
  %11228 = vmatpush1.msra.mxu0 0.0
  %11229 = vmatprep.subr.mxu0 0.0
  %11230 = vmatpush1.msra.mxu0 0.0
  %11231 = vmatprep.subr.mxu0 0.0
  %11232 = vmatpush1.msra.mxu0 0.0
  %11233 = vmatprep.subr.mxu0 0.0
  %11234 = vmatpush1.msra.mxu0 0.0
  %11235 = vmatprep.subr.mxu0 0.0
  %11236 = vmatpush1.msra.mxu0 0.0
  %11237 = vmatprep.subr.mxu0 0.0
  %11238 = vmatpush1.msra.mxu0 0.0
  %11239 = vmatprep.subr.mxu0 0.0
  %11240 = vmatpush1.msra.mxu0 0.0
  %11241 = vmatprep.subr.mxu0 0.0
  %11242 = vmatpush1.msra.mxu0 0.0
  %11243 = vmatprep.subr.mxu0 0.0
  %11244 = vmatpush1.msra.mxu0 0.0
  %11245 = vmatprep.subr.mxu0 0.0
  %11246 = vmatpush1.msra.mxu0 0.0
  %11247 = vmatprep.subr.mxu0 0.0
  %11248 = vmatpush1.msra.mxu0 0.0
  %11249 = vmatprep.subr.mxu0 0.0
  %11250 = vmatpush1.msra.mxu0 0.0
  %11251 = vmatprep.subr.mxu0 0.0
  %11252 = vmatpush1.msra.mxu0 0.0
  %11253 = vmatprep.subr.mxu0 0.0
  %11254 = vmatpush1.msra.mxu0 0.0
  %11255 = vmatprep.subr.mxu0 0.0
  %11256 = vmatpush1.msra.mxu0 0.0
  %11257 = vmatprep.subr.mxu0 0.0
  %11258 = vmatpush1.msra.mxu0 0.0
  %11259 = vmatprep.subr.mxu0 0.0
  %11260 = vmatpush1.msra.mxu0 0.0
  %11261 = vmatprep.mubr.f32.mxu0 0.0
  %11262 = vmatmul.mubr.f32.gmra.mrb[0].mxu0 %v11195
  %v11263 = vpop.f32.mrb[0].mxu0
  %v11264 = vadd.f32 0.0, %v11263
  %v11265 = vpop.f32.mrb[0].mxu0
  %v11266 = vadd.f32 0.0, %v11265
  %11267 = vdwg.mxu0
  %11268 = vmatprep.subr.mxu0 0.0
  %11269 = vmatpush1.msra.mxu0 %v11188
  %11270 = vmatprep.subr.mxu0 0.0
  %11271 = vmatpush1.msra.mxu0 0.0
  %11272 = vmatprep.subr.mxu0 0.0
  %11273 = vmatpush1.msra.mxu0 0.0
  %11274 = vmatprep.subr.mxu0 0.0
  %11275 = vmatpush1.msra.mxu0 0.0
  %11276 = vmatprep.subr.mxu0 0.0
  %11277 = vmatpush1.msra.mxu0 0.0
  %11278 = vmatprep.subr.mxu0 0.0
  %11279 = vmatpush1.msra.mxu0 0.0
  %11280 = vmatprep.subr.mxu0 0.0
  %11281 = vmatpush1.msra.mxu0 0.0
  %11282 = vmatprep.subr.mxu0 0.0
  %11283 = vmatpush1.msra.mxu0 0.0
  %11284 = vmatprep.subr.mxu0 0.0
  %11285 = vmatpush1.msra.mxu0 0.0
  %11286 = vmatprep.subr.mxu0 0.0
  %11287 = vmatpush1.msra.mxu0 0.0
  %11288 = vmatprep.subr.mxu0 0.0
  %11289 = vmatpush1.msra.mxu0 0.0
  %11290 = vmatprep.subr.mxu0 0.0
  %11291 = vmatpush1.msra.mxu0 0.0
  %11292 = vmatprep.subr.mxu0 0.0
  %11293 = vmatpush1.msra.mxu0 0.0
  %11294 = vmatprep.subr.mxu0 0.0
  %11295 = vmatpush1.msra.mxu0 0.0
  %11296 = vmatprep.subr.mxu0 0.0
  %11297 = vmatpush1.msra.mxu0 0.0
  %11298 = vmatprep.subr.mxu0 0.0
  %11299 = vmatpush1.msra.mxu0 0.0
  %11300 = vmatprep.subr.mxu0 0.0
  %11301 = vmatpush1.msra.mxu0 0.0
  %11302 = vmatprep.subr.mxu0 0.0
  %11303 = vmatpush1.msra.mxu0 0.0
  %11304 = vmatprep.subr.mxu0 0.0
  %11305 = vmatpush1.msra.mxu0 0.0
  %11306 = vmatprep.subr.mxu0 0.0
  %11307 = vmatpush1.msra.mxu0 0.0
  %11308 = vmatprep.subr.mxu0 0.0
  %11309 = vmatpush1.msra.mxu0 0.0
  %11310 = vmatprep.subr.mxu0 0.0
  %11311 = vmatpush1.msra.mxu0 0.0
  %11312 = vmatprep.subr.mxu0 0.0
  %11313 = vmatpush1.msra.mxu0 0.0
  %11314 = vmatprep.subr.mxu0 0.0
  %11315 = vmatpush1.msra.mxu0 0.0
  %11316 = vmatprep.subr.mxu0 0.0
  %11317 = vmatpush1.msra.mxu0 0.0
  %11318 = vmatprep.subr.mxu0 0.0
  %11319 = vmatpush1.msra.mxu0 0.0
  %11320 = vmatprep.subr.mxu0 0.0
  %11321 = vmatpush1.msra.mxu0 0.0
  %11322 = vmatprep.subr.mxu0 0.0
  %11323 = vmatpush1.msra.mxu0 0.0
  %11324 = vmatprep.subr.mxu0 0.0
  %11325 = vmatpush1.msra.mxu0 0.0
  %11326 = vmatprep.subr.mxu0 0.0
  %11327 = vmatpush1.msra.mxu0 0.0
  %11328 = vmatprep.subr.mxu0 0.0
  %11329 = vmatpush1.msra.mxu0 0.0
  %11330 = vmatprep.subr.mxu0 0.0
  %11331 = vmatpush1.msra.mxu0 0.0
  %11332 = vmatprep.mubr.f32.mxu0 0.0
  %11333 = vmatmul.mubr.f32.gmra.mrb[0].mxu0 %v11195
  %v11334 = vpop.f32.mrb[0].mxu0
  %v11335 = vadd.f32 0.0, %v11334
  %v11336 = vpop.f32.mrb[0].mxu0
  %11337 = vdwg.mxu0
  %v11338 = vadd.f32 %v11107, %v11264
  %v11339 = vadd.f32 %v11109, %v11266
  %v11340 = vadd.f32 %v11178, %v11335
  %v11341 = vld [vmem:[%s95] sm:$0xff]
  %v11342 = vld [vmem:[%s95 + $0x8] sm:$0xff]
  %v11343 = vld [vmem:[%s95 + $0x10] sm:$0xff]
  %v11344 = vld [vmem:[%s95 + $0x18] sm:$0xff]
  %v11345 = vld [vmem:[%s95 + $0x20] sm:$0xff]
  %v11346 = vld [vmem:[%s95 + $0x28] sm:$0xff]
  %v11347 = vld [vmem:[%s95 + $0x30] sm:$0xff]
  %v11348 = vld [vmem:[%s95 + $0x38] sm:$0xff]
  %v11349 = vld [vmem:[%s95 + $0x40] sm:$0xff]
  %v11350 = vld [vmem:[%s95 + $0x48] sm:$0xff]
  %v11351 = vld [vmem:[%s95 + $0x50] sm:$0xff]
  %v11352 = vld [vmem:[%s95 + $0x58] sm:$0xff]
  %v11353 = vld [vmem:[%s95 + $0x60] sm:$0xff]
  %v11354 = vld [vmem:[%s95 + $0x68] sm:$0xff]
  %v11355 = vld [vmem:[%s95 + $0x70] sm:$0xff]
  %v11356 = vld [vmem:[%s95 + $0x78] sm:$0xff]
  %v11357 = vld [vmem:[%s95 + $0x80] sm:$0xff]
  %v11358 = vld [vmem:[%s95 + $0x88] sm:$0xff]
  %v11359 = vld [vmem:[%s95 + $0x90] sm:$0xff]
  %v11360 = vld [vmem:[%s95 + $0x98] sm:$0xff]
  %v11361 = vld [vmem:[%s95 + $0xa0] sm:$0xff]
  %v11362 = vld [vmem:[%s95 + $0xa8] sm:$0xff]
  %v11363 = vld [vmem:[%s95 + $0xb0] sm:$0xff]
  %v11364 = vld [vmem:[%s95 + $0xb8] sm:$0xff]
  %v11365 = vld [vmem:[%s95 + $0xc0] sm:$0xff]
  %v11366 = vld [vmem:[%s95 + $0xc8] sm:$0xff]
  %v11367 = vld [vmem:[%s95 + $0xd0] sm:$0xff]
  %v11368 = vld [vmem:[%s95 + $0xd8] sm:$0xff]
  %v11369 = vld [vmem:[%s95 + $0xe0] sm:$0xff]
  %v11370 = vld [vmem:[%s95 + $0xe8] sm:$0xff]
  %v11371 = vld [vmem:[%s95 + $0xf0] sm:$0xff]
  %v11372 = vld [vmem:[%s95 + $0xf8] sm:$0xff]
  %v11373 = vld [vmem:[%s95 + $0x100] sm:$0xff]
  %v11374 = vld [vmem:[%s95 + $0x108] sm:$0xff]
  %v11375 = vld [vmem:[%s95 + $0x110] sm:$0xff]
  %v11376 = vld [vmem:[%s95 + $0x118] sm:$0xff]
  %v11377 = vld [vmem:[%s95 + $0x120] sm:$0xff]
  %v11378 = vld [vmem:[%s95 + $0x128] sm:$0xff]
  %v11379 = vld [vmem:[%s95 + $0x130] sm:$0xff]
  %v11380 = vld [vmem:[%s95 + $0x138] sm:$0xff]
  %v11381 = vld [vmem:[%s95 + $0x140] sm:$0xff]
  %v11382 = vld [vmem:[%s95 + $0x148] sm:$0xff]
  %v11383 = vld [vmem:[%s95 + $0x150] sm:$0xff]
  %v11384 = vld [vmem:[%s95 + $0x158] sm:$0xff]
  %v11385 = vld [vmem:[%s95 + $0x160] sm:$0xff]
  %v11386 = vld [vmem:[%s95 + $0x168] sm:$0xff]
  %v11387 = vld [vmem:[%s95 + $0x170] sm:$0xff]
  %v11388 = vld [vmem:[%s95 + $0x178] sm:$0xff]
  %v11389 = vld [vmem:[%s95 + $0x180] sm:$0xff]
  %v11390 = vld [vmem:[%s95 + $0x188] sm:$0xff]
  %v11391 = vld [vmem:[%s95 + $0x190] sm:$0xff]
  %v11392 = vld [vmem:[%s95 + $0x198] sm:$0xff]
  %v11393 = vld [vmem:[%s95 + $0x1a0] sm:$0xff]
  %v11394 = vld [vmem:[%s95 + $0x1a8] sm:$0xff]
  %v11395 = vld [vmem:[%s95 + $0x1b0] sm:$0xff]
  %v11396 = vld [vmem:[%s95 + $0x1b8] sm:$0xff]
  %v11397 = vld [vmem:[%s95 + $0x1c0] sm:$0xff]
  %v11398 = vld [vmem:[%s95 + $0x1c8] sm:$0xff]
  %v11399 = vld [vmem:[%s95 + $0x1d0] sm:$0xff]
  %v11400 = vld [vmem:[%s95 + $0x1d8] sm:$0xff]
  %v11401 = vld [vmem:[%s95 + $0x1e0] sm:$0xff]
  %v11402 = vld [vmem:[%s95 + $0x1e8] sm:$0xff]
  %v11403 = vld [vmem:[%s95 + $0x1f0] sm:$0xff]
  %v11404 = vld [vmem:[%s95 + $0x1f8] sm:$0xff]
  %v11405 = vld [vmem:[%s95 + $0x200] sm:$0xff]
  %v11406 = vld [vmem:[%s95 + $0x208] sm:$0xff]
  %v11407 = vld [vmem:[%s95 + $0x210] sm:$0xff]
  %v11408 = vld [vmem:[%s95 + $0x218] sm:$0xff]
  %v11409 = vld [vmem:[%s95 + $0x220] sm:$0xff]
  %v11410 = vld [vmem:[%s95 + $0x228] sm:$0xff]
  %v11411 = vld [vmem:[%s95 + $0x230] sm:$0xff]
  %v11412 = vld [vmem:[%s95 + $0x238] sm:$0xff]
  %v11413 = vld [vmem:[%s95 + $0x240] sm:$0xff]
  %v11414 = vld [vmem:[%s95 + $0x248] sm:$0xff]
  %v11415 = vld [vmem:[%s95 + $0x250] sm:$0xff]
  %v11416 = vld [vmem:[%s95 + $0x258] sm:$0xff]
  %v11417 = vld [vmem:[%s95 + $0x260] sm:$0xff]
  %v11418 = vld [vmem:[%s95 + $0x268] sm:$0xff]
  %v11419 = vld [vmem:[%s95 + $0x270] sm:$0xff]
  %v11420 = vld [vmem:[%s95 + $0x278] sm:$0xff]
  %v11421 = vld [vmem:[%s95 + $0x280] sm:$0xff]
  %v11422 = vld [vmem:[%s95 + $0x288] sm:$0xff]
  %v11423 = vld [vmem:[%s95 + $0x290] sm:$0xff]
  %v11424 = vld [vmem:[%s95 + $0x298] sm:$0xff]
  %v11425 = vld [vmem:[%s95 + $0x2a0] sm:$0xff]
  %v11426 = vld [vmem:[%s95 + $0x2a8] sm:$0xff]
  %v11427 = vld [vmem:[%s95 + $0x2b0] sm:$0xff]
  %v11428 = vld [vmem:[%s95 + $0x2b8] sm:$0xff]
  %v11429 = vld [vmem:[%s95 + $0x2c0] sm:$0xff]
  %v11430 = vld [vmem:[%s95 + $0x2c8] sm:$0xff]
  %v11431 = vld [vmem:[%s95 + $0x2d0] sm:$0xff]
  %v11432 = vld [vmem:[%s95 + $0x2d8] sm:$0xff]
  %v11433 = vld [vmem:[%s95 + $0x2e0] sm:$0xff]
  %v11434 = vld [vmem:[%s95 + $0x2e8] sm:$0xff]
  %v11435 = vld [vmem:[%s95 + $0x2f0] sm:$0xff]
  %v11436 = vld [vmem:[%s95 + $0x2f8] sm:$0xff]
  %v11437 = vld [vmem:[%s95 + $0x300] sm:$0xff]
  %v11438 = vld [vmem:[%s95 + $0x308] sm:$0xff]
  %v11439 = vld [vmem:[%s95 + $0x310] sm:$0xff]
  %v11440 = vld [vmem:[%s95 + $0x318] sm:$0x3f]
  %v11441 = vld [vmem:[%s95 + $0x320] sm:$0x3f]
  %v11442 = vld [vmem:[%s95 + $0x328] sm:$0x3f]
  %11444 = vset.pattern.permute.xlu0 0
  %11445 = vperm.xlu0 %11444, %v10491
  %v11446 = vpop.permute.xlu0 %11445
  %v11448 = vlaneseq
  %v11449 = vshrl.u32 %v11448, 7
  %v11450 = vsub.s32 0, %v11449
  %v11451 = vrot.slane %v11446, %v11450
  %v11453 = vsel %vm6369, %v11340, 0
  %v11456 = vsel %vm6394, %v11440, 0
  %v11459 = vsel %vm6394, %v11441, 0
  %v11462 = vsel %vm6394, %v11442, 0
  %11464 = vmatprep.subr.mxu0 %v11342
  %11465 = vmatpush1.msra.mxu0 %v11341
  %11466 = vmatprep.subr.mxu0 %v11345
  %11467 = vmatpush1.msra.mxu0 %v11344
  %11468 = vmatprep.subr.mxu0 %v11348
  %11469 = vmatpush1.msra.mxu0 %v11347
  %11470 = vmatprep.subr.mxu0 %v11351
  %11471 = vmatpush1.msra.mxu0 %v11350
  %11472 = vmatprep.subr.mxu0 %v11354
  %11473 = vmatpush1.msra.mxu0 %v11353
  %11474 = vmatprep.subr.mxu0 %v11357
  %11475 = vmatpush1.msra.mxu0 %v11356
  %11476 = vmatprep.subr.mxu0 %v11360
  %11477 = vmatpush1.msra.mxu0 %v11359
  %11478 = vmatprep.subr.mxu0 %v11363
  %11479 = vmatpush1.msra.mxu0 %v11362
  %11480 = vmatprep.subr.mxu0 %v11366
  %11481 = vmatpush1.msra.mxu0 %v11365
  %11482 = vmatprep.subr.mxu0 %v11369
  %11483 = vmatpush1.msra.mxu0 %v11368
  %11484 = vmatprep.subr.mxu0 %v11372
  %11485 = vmatpush1.msra.mxu0 %v11371
  %11486 = vmatprep.subr.mxu0 %v11375
  %11487 = vmatpush1.msra.mxu0 %v11374
  %11488 = vmatprep.subr.mxu0 %v11378
  %11489 = vmatpush1.msra.mxu0 %v11377
  %11490 = vmatprep.subr.mxu0 %v11381
  %11491 = vmatpush1.msra.mxu0 %v11380
  %11492 = vmatprep.subr.mxu0 %v11384
  %11493 = vmatpush1.msra.mxu0 %v11383
  %11494 = vmatprep.subr.mxu0 %v11387
  %11495 = vmatpush1.msra.mxu0 %v11386
  %11496 = vmatprep.subr.mxu0 %v11390
  %11497 = vmatpush1.msra.mxu0 %v11389
  %11498 = vmatprep.subr.mxu0 %v11393
  %11499 = vmatpush1.msra.mxu0 %v11392
  %11500 = vmatprep.subr.mxu0 %v11396
  %11501 = vmatpush1.msra.mxu0 %v11395
  %11502 = vmatprep.subr.mxu0 %v11399
  %11503 = vmatpush1.msra.mxu0 %v11398
  %11504 = vmatprep.subr.mxu0 %v11402
  %11505 = vmatpush1.msra.mxu0 %v11401
  %11506 = vmatprep.subr.mxu0 %v11405
  %11507 = vmatpush1.msra.mxu0 %v11404
  %11508 = vmatprep.subr.mxu0 %v11408
  %11509 = vmatpush1.msra.mxu0 %v11407
  %11510 = vmatprep.subr.mxu0 %v11411
  %11511 = vmatpush1.msra.mxu0 %v11410
  %11512 = vmatprep.subr.mxu0 %v11414
  %11513 = vmatpush1.msra.mxu0 %v11413
  %11514 = vmatprep.subr.mxu0 %v11417
  %11515 = vmatpush1.msra.mxu0 %v11416
  %11516 = vmatprep.subr.mxu0 %v11420
  %11517 = vmatpush1.msra.mxu0 %v11419
  %11518 = vmatprep.subr.mxu0 %v11423
  %11519 = vmatpush1.msra.mxu0 %v11422
  %11520 = vmatprep.subr.mxu0 %v11426
  %11521 = vmatpush1.msra.mxu0 %v11425
  %11522 = vmatprep.subr.mxu0 %v11429
  %11523 = vmatpush1.msra.mxu0 %v11428
  %11524 = vmatprep.subr.mxu0 %v11432
  %11525 = vmatpush1.msra.mxu0 %v11431
  %11526 = vmatprep.subr.mxu0 %v11435
  %11527 = vmatpush1.msra.mxu0 %v11434
  %11528 = vmatprep.mubr.f32.mxu0 %v11339
  %11529 = vmatmul.mubr.f32.gmra.mrb[0].mxu0 %v11338
  %v11530 = vpop.f32.mrb[0].mxu0
  %v11531 = vadd.f32 %v11451, %v11530
  %v11532 = vpop.f32.mrb[0].mxu0
  %v11533 = vadd.f32 %v11451, %v11532
  %11534 = vdwg.mxu0
  %11535 = vmatprep.subr.mxu0 %v11438
  %11536 = vmatpush1.msra.mxu0 %v11437
  %11537 = vmatprep.subr.mxu0 %v11459
  %11538 = vmatpush1.msra.mxu0 %v11456
  %11539 = vmatprep.subr.mxu0 0.0
  %11540 = vmatpush1.msra.mxu0 0.0
  %11541 = vmatprep.subr.mxu0 0.0
  %11542 = vmatpush1.msra.mxu0 0.0
  %11543 = vmatprep.subr.mxu0 0.0
  %11544 = vmatpush1.msra.mxu0 0.0
  %11545 = vmatprep.subr.mxu0 0.0
  %11546 = vmatpush1.msra.mxu0 0.0
  %11547 = vmatprep.subr.mxu0 0.0
  %11548 = vmatpush1.msra.mxu0 0.0
  %11549 = vmatprep.subr.mxu0 0.0
  %11550 = vmatpush1.msra.mxu0 0.0
  %11551 = vmatprep.subr.mxu0 0.0
  %11552 = vmatpush1.msra.mxu0 0.0
  %11553 = vmatprep.subr.mxu0 0.0
  %11554 = vmatpush1.msra.mxu0 0.0
  %11555 = vmatprep.subr.mxu0 0.0
  %11556 = vmatpush1.msra.mxu0 0.0
  %11557 = vmatprep.subr.mxu0 0.0
  %11558 = vmatpush1.msra.mxu0 0.0
  %11559 = vmatprep.subr.mxu0 0.0
  %11560 = vmatpush1.msra.mxu0 0.0
  %11561 = vmatprep.subr.mxu0 0.0
  %11562 = vmatpush1.msra.mxu0 0.0
  %11563 = vmatprep.subr.mxu0 0.0
  %11564 = vmatpush1.msra.mxu0 0.0
  %11565 = vmatprep.subr.mxu0 0.0
  %11566 = vmatpush1.msra.mxu0 0.0
  %11567 = vmatprep.subr.mxu0 0.0
  %11568 = vmatpush1.msra.mxu0 0.0
  %11569 = vmatprep.subr.mxu0 0.0
  %11570 = vmatpush1.msra.mxu0 0.0
  %11571 = vmatprep.subr.mxu0 0.0
  %11572 = vmatpush1.msra.mxu0 0.0
  %11573 = vmatprep.subr.mxu0 0.0
  %11574 = vmatpush1.msra.mxu0 0.0
  %11575 = vmatprep.subr.mxu0 0.0
  %11576 = vmatpush1.msra.mxu0 0.0
  %11577 = vmatprep.subr.mxu0 0.0
  %11578 = vmatpush1.msra.mxu0 0.0
  %11579 = vmatprep.subr.mxu0 0.0
  %11580 = vmatpush1.msra.mxu0 0.0
  %11581 = vmatprep.subr.mxu0 0.0
  %11582 = vmatpush1.msra.mxu0 0.0
  %11583 = vmatprep.subr.mxu0 0.0
  %11584 = vmatpush1.msra.mxu0 0.0
  %11585 = vmatprep.subr.mxu0 0.0
  %11586 = vmatpush1.msra.mxu0 0.0
  %11587 = vmatprep.subr.mxu0 0.0
  %11588 = vmatpush1.msra.mxu0 0.0
  %11589 = vmatprep.subr.mxu0 0.0
  %11590 = vmatpush1.msra.mxu0 0.0
  %11591 = vmatprep.subr.mxu0 0.0
  %11592 = vmatpush1.msra.mxu0 0.0
  %11593 = vmatprep.subr.mxu0 0.0
  %11594 = vmatpush1.msra.mxu0 0.0
  %11595 = vmatprep.subr.mxu0 0.0
  %11596 = vmatpush1.msra.mxu0 0.0
  %11597 = vmatprep.subr.mxu0 0.0
  %11598 = vmatpush1.msra.mxu0 0.0
  %11599 = vmatprep.mubr.f32.mxu0 0.0
  %11600 = vmatmul.mubr.f32.gmra.mrb[0].mxu0 %v11453
  %v11601 = vpop.f32.mrb[0].mxu0
  %v11602 = vadd.f32 %v11531, %v11601
  %v11603 = vpop.f32.mrb[0].mxu0
  %v11604 = vadd.f32 %v11533, %v11603
  %11605 = vdwg.mxu0
  %11606 = vmatprep.subr.mxu0 0.0
  %11607 = vmatpush1.msra.mxu0 %v11343
  %11608 = vmatprep.subr.mxu0 0.0
  %11609 = vmatpush1.msra.mxu0 %v11346
  %11610 = vmatprep.subr.mxu0 0.0
  %11611 = vmatpush1.msra.mxu0 %v11349
  %11612 = vmatprep.subr.mxu0 0.0
  %11613 = vmatpush1.msra.mxu0 %v11352
  %11614 = vmatprep.subr.mxu0 0.0
  %11615 = vmatpush1.msra.mxu0 %v11355
  %11616 = vmatprep.subr.mxu0 0.0
  %11617 = vmatpush1.msra.mxu0 %v11358
  %11618 = vmatprep.subr.mxu0 0.0
  %11619 = vmatpush1.msra.mxu0 %v11361
  %11620 = vmatprep.subr.mxu0 0.0
  %11621 = vmatpush1.msra.mxu0 %v11364
  %11622 = vmatprep.subr.mxu0 0.0
  %11623 = vmatpush1.msra.mxu0 %v11367
  %11624 = vmatprep.subr.mxu0 0.0
  %11625 = vmatpush1.msra.mxu0 %v11370
  %11626 = vmatprep.subr.mxu0 0.0
  %11627 = vmatpush1.msra.mxu0 %v11373
  %11628 = vmatprep.subr.mxu0 0.0
  %11629 = vmatpush1.msra.mxu0 %v11376
  %11630 = vmatprep.subr.mxu0 0.0
  %11631 = vmatpush1.msra.mxu0 %v11379
  %11632 = vmatprep.subr.mxu0 0.0
  %11633 = vmatpush1.msra.mxu0 %v11382
  %11634 = vmatprep.subr.mxu0 0.0
  %11635 = vmatpush1.msra.mxu0 %v11385
  %11636 = vmatprep.subr.mxu0 0.0
  %11637 = vmatpush1.msra.mxu0 %v11388
  %11638 = vmatprep.subr.mxu0 0.0
  %11639 = vmatpush1.msra.mxu0 %v11391
  %11640 = vmatprep.subr.mxu0 0.0
  %11641 = vmatpush1.msra.mxu0 %v11394
  %11642 = vmatprep.subr.mxu0 0.0
  %11643 = vmatpush1.msra.mxu0 %v11397
  %11644 = vmatprep.subr.mxu0 0.0
  %11645 = vmatpush1.msra.mxu0 %v11400
  %11646 = vmatprep.subr.mxu0 0.0
  %11647 = vmatpush1.msra.mxu0 %v11403
  %11648 = vmatprep.subr.mxu0 0.0
  %11649 = vmatpush1.msra.mxu0 %v11406
  %11650 = vmatprep.subr.mxu0 0.0
  %11651 = vmatpush1.msra.mxu0 %v11409
  %11652 = vmatprep.subr.mxu0 0.0
  %11653 = vmatpush1.msra.mxu0 %v11412
  %11654 = vmatprep.subr.mxu0 0.0
  %11655 = vmatpush1.msra.mxu0 %v11415
  %11656 = vmatprep.subr.mxu0 0.0
  %11657 = vmatpush1.msra.mxu0 %v11418
  %11658 = vmatprep.subr.mxu0 0.0
  %11659 = vmatpush1.msra.mxu0 %v11421
  %11660 = vmatprep.subr.mxu0 0.0
  %11661 = vmatpush1.msra.mxu0 %v11424
  %11662 = vmatprep.subr.mxu0 0.0
  %11663 = vmatpush1.msra.mxu0 %v11427
  %11664 = vmatprep.subr.mxu0 0.0
  %11665 = vmatpush1.msra.mxu0 %v11430
  %11666 = vmatprep.subr.mxu0 0.0
  %11667 = vmatpush1.msra.mxu0 %v11433
  %11668 = vmatprep.subr.mxu0 0.0
  %11669 = vmatpush1.msra.mxu0 %v11436
  %11670 = vmatprep.mubr.f32.mxu0 %v11339
  %11671 = vmatmul.mubr.f32.gmra.mrb[0].mxu0 %v11338
  %v11672 = vpop.f32.mrb[0].mxu0
  %v11673 = vadd.f32 %v11451, %v11672
  %v11674 = vpop.f32.mrb[0].mxu0
  %11675 = vdwg.mxu0
  %11676 = vmatprep.subr.mxu0 0.0
  %11677 = vmatpush1.msra.mxu0 %v11439
  %11678 = vmatprep.subr.mxu0 0.0
  %11679 = vmatpush1.msra.mxu0 %v11462
  %11680 = vmatprep.subr.mxu0 0.0
  %11681 = vmatpush1.msra.mxu0 0.0
  %11682 = vmatprep.subr.mxu0 0.0
  %11683 = vmatpush1.msra.mxu0 0.0
  %11684 = vmatprep.subr.mxu0 0.0
  %11685 = vmatpush1.msra.mxu0 0.0
  %11686 = vmatprep.subr.mxu0 0.0
  %11687 = vmatpush1.msra.mxu0 0.0
  %11688 = vmatprep.subr.mxu0 0.0
  %11689 = vmatpush1.msra.mxu0 0.0
  %11690 = vmatprep.subr.mxu0 0.0
  %11691 = vmatpush1.msra.mxu0 0.0
  %11692 = vmatprep.subr.mxu0 0.0
  %11693 = vmatpush1.msra.mxu0 0.0
  %11694 = vmatprep.subr.mxu0 0.0
  %11695 = vmatpush1.msra.mxu0 0.0
  %11696 = vmatprep.subr.mxu0 0.0
  %11697 = vmatpush1.msra.mxu0 0.0
  %11698 = vmatprep.subr.mxu0 0.0
  %11699 = vmatpush1.msra.mxu0 0.0
  %11700 = vmatprep.subr.mxu0 0.0
  %11701 = vmatpush1.msra.mxu0 0.0
  %11702 = vmatprep.subr.mxu0 0.0
  %11703 = vmatpush1.msra.mxu0 0.0
  %11704 = vmatprep.subr.mxu0 0.0
  %11705 = vmatpush1.msra.mxu0 0.0
  %11706 = vmatprep.subr.mxu0 0.0
  %11707 = vmatpush1.msra.mxu0 0.0
  %11708 = vmatprep.subr.mxu0 0.0
  %11709 = vmatpush1.msra.mxu0 0.0
  %11710 = vmatprep.subr.mxu0 0.0
  %11711 = vmatpush1.msra.mxu0 0.0
  %11712 = vmatprep.subr.mxu0 0.0
  %11713 = vmatpush1.msra.mxu0 0.0
  %11714 = vmatprep.subr.mxu0 0.0
  %11715 = vmatpush1.msra.mxu0 0.0
  %11716 = vmatprep.subr.mxu0 0.0
  %11717 = vmatpush1.msra.mxu0 0.0
  %11718 = vmatprep.subr.mxu0 0.0
  %11719 = vmatpush1.msra.mxu0 0.0
  %11720 = vmatprep.subr.mxu0 0.0
  %11721 = vmatpush1.msra.mxu0 0.0
  %11722 = vmatprep.subr.mxu0 0.0
  %11723 = vmatpush1.msra.mxu0 0.0
  %11724 = vmatprep.subr.mxu0 0.0
  %11725 = vmatpush1.msra.mxu0 0.0
  %11726 = vmatprep.subr.mxu0 0.0
  %11727 = vmatpush1.msra.mxu0 0.0
  %11728 = vmatprep.subr.mxu0 0.0
  %11729 = vmatpush1.msra.mxu0 0.0
  %11730 = vmatprep.subr.mxu0 0.0
  %11731 = vmatpush1.msra.mxu0 0.0
  %11732 = vmatprep.subr.mxu0 0.0
  %11733 = vmatpush1.msra.mxu0 0.0
  %11734 = vmatprep.subr.mxu0 0.0
  %11735 = vmatpush1.msra.mxu0 0.0
  %11736 = vmatprep.subr.mxu0 0.0
  %11737 = vmatpush1.msra.mxu0 0.0
  %11738 = vmatprep.subr.mxu0 0.0
  %11739 = vmatpush1.msra.mxu0 0.0
  %11740 = vmatprep.mubr.f32.mxu0 0.0
  %11741 = vmatmul.mubr.f32.gmra.mrb[0].mxu0 %v11453
  %v11742 = vpop.f32.mrb[0].mxu0
  %v11743 = vadd.f32 %v11673, %v11742
  %v11744 = vpop.f32.mrb[0].mxu0
  %11745 = vdwg.mxu0
  %v11746 = vsub.f32 0.0, %v11602
  %v11747 = vsub.f32 0.0, %v11604
  %v11748 = vsub.f32 0.0, %v11743
  %v11749 = vmul.f32 %v11746, 1.442695
  %v11750 = vpow.pop %v11749
  %v11751 = vmul.f32 %v11747, 1.442695
  %v11752 = vpow.pop %v11751
  %v11753 = vmul.f32 %v11748, 1.442695
  %v11754 = vpow.pop %v11753
  %v11755 = vadd.f32 %v11750, 1.0
  %v11756 = vadd.f32 %v11752, 1.0
  %v11757 = vadd.f32 %v11754, 1.0
  %v11758 = vrcp.pop %v11755
  %v11759 = vmul.f32 1.0, %v11758
  %v11760 = vrcp.pop %v11756
  %v11761 = vmul.f32 1.0, %v11760
  %v11762 = vrcp.pop %v11757
  %v11763 = vmul.f32 1.0, %v11762
  %v11767 = vcombine.low %v11759, %v11761
  %v11769 = vunpack.c.l.s4 1966171168
  %v11770 = vunpack.c.0.s8 %v11769
  %v11771 = vlaneseq
  %v11772 = vshrl.u32 %v11771, 7
  %v11773 = vsub.s32 %v11770, %v11772
  %v11774 = vrot.slane %v11767, %v11773
  %v11776 = vunpack.c.l.s4 1966171168
  %v11777 = vunpack.c.0.s8 %v11776
  %v11778 = vlaneseq
  %v11779 = vshrl.u32 %v11778, 7
  %v11780 = vsub.s32 %v11777, %v11779
  %v11781 = vrot.slane %v11763, %v11780
  %v11782 = vcombine.low %v11774, %v11781
  %v11784 = vunpack.c.l.s4 1966171168
  %v11785 = vunpack.c.0.s8 %v11784
  %v11786 = vlaneseq
  %v11787 = vshrl.u32 %v11786, 7
  %v11788 = vsub.s32 %v11785, %v11787
  %v11789 = vrot.slane %v11782, %v11788
  %v11791 = vlaneseq
  %vm11792 = vcmp.ge.s32.totalorder %v11791, 0
  %vm11793 = vcmp.lt.s32.totalorder %v11791, 268
  %vm11794 = vmand %vm11792, %vm11793
  %11795 = vst.msk [vmem:[%s97] sm:$0x7] %vm11794, %v11789
  // Predicated region
  $region194: #{autoencoder_forward.1} parent=0 // pred_check
    _
  $region195: #{autoencoder_forward.1} parent=0 // pred_check_branch
    %11797 = sbr.rel (0) target = $region197
  $region196: #{autoencoder_forward.1} parent=0 // pred_region
    _
  $region197: #{autoencoder_forward.1} parent=0 // pred_fallthru
    _
  // Predicated region
  $region198: #{autoencoder_forward.1} parent=0 // pred_check
    _
  $region199: #{autoencoder_forward.1} parent=0 // pred_check_branch
    %11799 = sbr.rel (0) target = $region201
  $region200: #{autoencoder_forward.1} parent=0 // pred_region
    _
  $region201: #{autoencoder_forward.1} parent=0 // pred_fallthru
    _

</llo_original>
